<compile_context>
chip_gen: v6e
topology: v6e:2x2x1
jax: 0.10.0
libtpu: 0.0.40
codegen_flags: <defaults>
</compile_context>

<pallas_src>
import math
from functools import partial

import jax
import jax.numpy as jnp
from jax import lax
from jax.experimental import pallas as pl
from jax.experimental.pallas import tpu as pltpu

GROUPS = 16       # GroupNorm(16, out_planes)
EPS = 1e-5        # PyTorch GroupNorm default eps


def _round_up(v, m):
    return (v + m - 1) // m * m


# ---------------------------------------------------------------------------
# Masked GroupNorm(groups) + ELU over a (P, C) f32 tile.
# `mask` (P, 1) zeroes padded/garbage columns out of the statistics (those
# values are always finite, so the discarded ELU/where branch is harmless).
# `inv_count` = 1 / (#valid positions * channels-per-group).  The per-group
# reduction is an unrolled exact-f32 masked reduce (no MXU emulation).
# ---------------------------------------------------------------------------
def _masked_gn_elu(acc, mask, inv_count, gamma, beta, ch, cg, groups, eps):
    am = acc * mask
    s1 = jnp.sum(am, axis=0, keepdims=True)            # (1, C)
    s2 = jnp.sum(am * acc, axis=0, keepdims=True)      # (1, C)
    mean_c = jnp.zeros_like(s1)
    inv_c = jnp.zeros_like(s1)
    for g in range(groups):
        gm = ((ch >= g * cg) & (ch < (g + 1) * cg)).astype(jnp.float32)  # (1, C)
        m = jnp.sum(s1 * gm, keepdims=True) * inv_count                  # (1, 1)
        ex2 = jnp.sum(s2 * gm, keepdims=True) * inv_count                # (1, 1)
        var = jnp.maximum(ex2 - m * m, 0.0)   # guard E[x^2]-E[x]^2 cancellation
        inv = lax.rsqrt(var + eps)
        mean_c = mean_c + m * gm
        inv_c = inv_c + inv * gm
    y = (acc - mean_c) * (inv_c * gamma) + beta
    return jnp.where(y > 0.0, y, jnp.exp(y) - 1.0)      # ELU(alpha=1)


# ---------------------------------------------------------------------------
# Fused residual block kernel (one image per grid step).
#   xph_ref : (1, s*s*p1_in, Cin) bf16   phase-split, flattened padded input
#   xs_ref  : (1, P, Cin)         bf16   strided 1x1-shortcut input
#   weights : big-K reshaped (9*Cin, Cout) / (9*Cout, Cout) / (Cin, Cout) bf16
#   o_ref   : (1, Cout, P)               channel-major (NCHW-ready) output
#   x9_ref  : (P, 9*max(Cin,Cout)) bf16  big-K GEMM staging scratch
#   y1p_ref : (p2_in, Cout)        bf16  conv1 output in conv2's padded layout
# ---------------------------------------------------------------------------
def _resblock_kernel(xph_ref, xs_ref,
                     w1_ref, b1_ref, g1_ref, be1_ref,
                     w2_ref, b2_ref, g2_ref, be2_ref,
                     w3_ref, b3_ref, g4_ref, be4_ref,
                     o_ref, x9_ref, y1p_ref, *,
                     s, p1_in, lead, wq, wo, ho, groups, eps):
    k = 3
    p_out = ho * wq
    cin = xph_ref.shape[-1]
    cout = w3_ref.shape[-1]
    cg = cout // groups
    inv_count = 1.0 / float(ho * wo * cg)

    # Validity mask for the width-padded flat domain: (p % wq) < wo, built in
    # kernel.  Exact f32 floor-div trick (avoids vector int div/rem); exact
    # for p_out < ~4e6 which the whole-image-per-step form requires anyway.
    p_idx = lax.broadcasted_iota(jnp.int32, (p_out, 1), 0)
    r_idx = jnp.floor((p_idx.astype(jnp.float32) + 0.5) * (1.0 / wq)
                      ).astype(jnp.int32)
    col = p_idx - r_idx * wq
    mask = (col < wo).astype(jnp.float32)                # (P, 1)
    ch = lax.broadcasted_iota(jnp.int32, (1, cout), 1)   # channel ids

    # ---- conv1: 3x3 / stride s as ONE big-K GEMM (K = 9*Cin) ----------------
    for kh in range(k):
        for kw in range(k):
            t = kh * k + kw
            phase = (kh % s) * s + (kw % s)
            off = phase * p1_in + (kh // s) * wq + (kw // s)      # static
            x9_ref[:, t * cin:(t + 1) * cin] = xph_ref[0, off:off + p_out, :]
    acc = jnp.dot(x9_ref[:, 0:k * k * cin], w1_ref[...],
                  preferred_element_type=jnp.float32) + b1_ref[...]
    y1 = _masked_gn_elu(acc, mask, inv_count, g1_ref[...], be1_ref[...],
                        ch, cg, groups, eps)

    # ---- stash conv1 output straight into conv2's zero-padded layout --------
    # Garbage columns are zeroed by `mask`, so they become the zero border.
    y1p_ref[...] = jnp.zeros(y1p_ref.shape, y1p_ref.dtype)
    st = lead + wq + 1                  # 16-aligned by construction of `lead`
    y1p_ref[st:st + p_out, :] = (y1 * mask).astype(y1p_ref.dtype)

    # ---- conv2: 3x3 / stride 1 as ONE big-K GEMM (K = 9*Cout) ---------------
    for kh in range(k):
        for kw in range(k):
            t = kh * k + kw
            off = lead + kh * wq + kw                             # static
            x9_ref[:, t * cout:(t + 1) * cout] = y1p_ref[off:off + p_out, :]
    acc = jnp.dot(x9_ref[:, 0:k * k * cout], w2_ref[...],
                  preferred_element_type=jnp.float32) + b2_ref[...]
    y2 = _masked_gn_elu(acc, mask, inv_count, g2_ref[...], be2_ref[...],
                        ch, cg, groups, eps)

    # ---- 1x1 shortcut (dropout=None -> plain conv) + residual + final GN/ELU
    z = y2 + b3_ref[...] + jnp.dot(xs_ref[0], w3_ref[...],
                                   preferred_element_type=jnp.float32)
    out = _masked_gn_elu(z, mask, inv_count, g4_ref[...], be4_ref[...],
                         ch, cg, groups, eps)

    # Channel-major store: lane axis = spatial (lane-dense) and the result is
    # already in NCHW order - no XLA transpose afterwards.
    o_ref[0] = jnp.transpose(out).astype(o_ref.dtype)


# ---------------------------------------------------------------------------
# Host-side phase-split (space-to-depth) packing of the padded image.
# Pure data movement, ~1x the input size (no 9x HBM im2col).
# ---------------------------------------------------------------------------
def _phase_pack(x_pad, s, hq, wq, p_in):
    n, _, _, c = x_pad.shape
    parts = []
    for ph in range(s):
        for pw in range(s):
            xp = x_pad[:, ph::s, pw::s, :][:, :hq, :wq, :]
            xp = jnp.pad(xp, ((0, 0), (0, hq - xp.shape[1]),
                              (0, wq - xp.shape[2]), (0, 0)))
            xp = xp.reshape(n, hq * wq, c)
            xp = jnp.pad(xp, ((0, 0), (0, p_in - hq * wq), (0, 0)))
            parts.append(xp)
    return jnp.concatenate(parts, axis=1)


# ---------------------------------------------------------------------------
# Full forward of resconv_basic (Pallas version).  Accepts NCHW, returns NCHW.
# ---------------------------------------------------------------------------
def resconv_basic_forward(x_nchw, params, stride, out_dtype=jnp.float32):
    (w1, b1, g1, be1,
     w2, b2, g2, be2,
     w3, b3, g4, be4) = params
    k, pad, s = 3, 1, int(stride)
    cin, cout = w1.shape[2], w1.shape[3]
    n, _, h, w = x_nchw.shape
    assert cout % GROUPS == 0, "GroupNorm(16) needs out_planes % 16 == 0"

    x = jnp.transpose(x_nchw, (0, 2, 3, 1))                      # NCHW -> NHWC

    # Shared width-padded flat domain for conv1 output / conv2 input+output.
    hp, wp = h + 2 * pad, w + 2 * pad
    ho, wo = (hp - k) // s + 1, (wp - k) // s + 1
    q1 = (k - 1) // s                       # extra rows a conv1 phase needs
    wq = wo + (k - 1)                       # padded domain width (= wo + 2)
    p_out = ho * wq
    hq1 = ho + q1
    p1_in = _round_up(hq1 * wq + q1, 8)     # per-phase rows incl. slack
    hq2 = ho + 2
    lead = (-(wq + 1)) % 16                 # aligns the in-kernel y1 store
    p2_in = _round_up(lead + hq2 * wq + 2, 16)
    cmax = max(cin, cout)

    # Host-side packing: ~1x input data movement.
    x_pad = jnp.pad(x, ((0, 0), (pad, pad), (pad, pad), (0, 0))).astype(jnp.bfloat16)
    xph = _phase_pack(x_pad, s, hq1, wq, p1_in)                  # (N, s*s*p1_in, Cin)

    xs = x[:, ::s, ::s, :][:, :ho, :wo, :]                       # shortcut input
    xs = jnp.pad(xs, ((0, 0), (0, 0), (0, wq - wo), (0, 0)))
    xs = xs.reshape(n, p_out, cin).astype(jnp.bfloat16)

    w1r = w1.reshape(k * k * cin, cout).astype(jnp.bfloat16)
    w2r = w2.reshape(k * k * cout, cout).astype(jnp.bfloat16)
    w3r = w3.astype(jnp.bfloat16)

    try:   # generation-aware scoped-VMEM limit (v7x only has 64 MiB per TC)
        cap = int(getattr(pltpu.get_tpu_info(), "vmem_capacity_bytes"))
    except Exception:
        cap = 128 * 1024 * 1024
    vmem_limit = max(min(cap - 16 * 1024 * 1024, 96 * 1024 * 1024),
                     32 * 1024 * 1024)

    cost = pl.CostEstimate(
        flops=2 * n * p_out * cout * (k * k * cin + k * k * cout + cin),
        transcendentals=3 * n * p_out * cout,
        bytes_accessed=int(xph.size * 2 + xs.size * 2
                           + (w1r.size + w2r.size + w3r.size) * 2
                           + n * cout * p_out * 4
                           + (b1.size + g1.size + be1.size + b2.size + g2.size
                              + be2.size + b3.size + g4.size + be4.size) * 4))

    vec = pl.BlockSpec((1, cout), lambda i: (0, 0))
    out = pl.pallas_call(
        partial(_resblock_kernel, s=s, p1_in=p1_in, lead=lead, wq=wq, wo=wo,
                ho=ho, groups=GROUPS, eps=EPS),
        out_shape=jax.ShapeDtypeStruct((n, cout, p_out), out_dtype),
        grid=(n,),
        in_specs=[
            pl.BlockSpec((1, s * s * p1_in, cin), lambda i: (i, 0, 0)),
            pl.BlockSpec((1, p_out, cin), lambda i: (i, 0, 0)),
            pl.BlockSpec((k * k * cin, cout), lambda i: (0, 0)),
            vec, vec, vec,
            pl.BlockSpec((k * k * cout, cout), lambda i: (0, 0)),
            vec, vec, vec,
            pl.BlockSpec((cin, cout), lambda i: (0, 0)),
            vec, vec, vec,
        ],
        out_specs=pl.BlockSpec((1, cout, p_out), lambda i: (i, 0, 0)),
        scratch_shapes=[
            pltpu.VMEM((p_out, k * k * cmax), jnp.bfloat16),     # big-K staging
            pltpu.VMEM((p2_in, cout), jnp.bfloat16),             # padded y1
        ],
        compiler_params=pltpu.CompilerParams(
            dimension_semantics=("parallel",),
            vmem_limit_bytes=vmem_limit),
        cost_estimate=cost,
    )(xph, xs, w1r, b1, g1, be1, w2r, b2, g2, be2, w3r, b3, g4, be4)

    # (N, Cout, Ho, Wq) is already channel-major; drop the padded columns.
    return out.reshape(n, cout, ho, wq)[:, :, :, :wo]


# ---------------------------------------------------------------------------
# Pure-JAX reference with the same numeric policy as the kernel
# (bf16 conv operands, f32 accumulation, f32 GroupNorm).
# ---------------------------------------------------------------------------
def resconv_basic_reference(x_nchw, params, stride):
    (w1, b1, g1, be1, w2, b2, g2, be2, w3, b3, g4, be4) = params
    x = jnp.transpose(x_nchw, (0, 2, 3, 1))

    def conv2d(x, w, b, s, pad):
        y = lax.conv_general_dilated(
            x.astype(jnp.bfloat16), w.astype(jnp.bfloat16), (s, s),
            [(pad, pad), (pad, pad)],
            dimension_numbers=("NHWC", "HWIO", "NHWC"),
            preferred_element_type=jnp.float32)
        return y + b.reshape(1, 1, 1, -1)

    def gn(x, g, b):
        n, h, w, c = x.shape
        cg = c // GROUPS
        xr = x.reshape(n, h * w, GROUPS, cg)
        m = xr.mean(axis=(1, 3), keepdims=True)
        v = ((xr - m) ** 2).mean(axis=(1, 3), keepdims=True)
        xn = ((xr - m) / jnp.sqrt(v + EPS)).reshape(n, h, w, c)
        return xn * g.reshape(1, 1, 1, -1) + b.reshape(1, 1, 1, -1)

    def elu(x):
        return jnp.where(x > 0, x, jnp.exp(x) - 1.0)

    y1 = elu(gn(conv2d(x, w1, b1, stride, 1), g1, be1))
    y2 = elu(gn(conv2d(y1, w2, b2, 1, 1), g2, be2))
    sc = conv2d(x, w3.reshape(1, 1, *w3.shape), b3, stride, 0)
    out = elu(gn(y2 + sc, g4, be4))
    return jnp.transpose(out, (0, 3, 1, 2))


# ---------------------------------------------------------------------------
if __name__ == "__main__":
    # out_planes must be divisible by 16 for GroupNorm(16, out_planes).
    N, Cin, H, W = 2, 16, 16, 16
    Cout = 32

    key = jax.random.PRNGKey(0)
    ks = jax.random.split(key, 16)
    x = jax.random.normal(ks[0], (N, Cin, H, W), jnp.float32)

    def winit(k_, shape, fan_in):
        return jax.random.normal(k_, shape, jnp.float32) * (1.0 / math.sqrt(fan_in))

    # conv1: 3x3 (in_planes -> out_planes, stride)
    w1 = winit(ks[1], (3, 3, Cin, Cout), 9 * Cin)
    b1 = winit(ks[2], (1, Cout), 9 * Cin)
    g1 = 1.0 + 0.1 * jax.random.normal(ks[3], (1, Cout), jnp.float32)
    be1 = 0.1 * jax.random.normal(ks[4], (1, Cout), jnp.float32)
    # conv2: 3x3 (out_planes -> out_planes, stride 1)
    w2 = winit(ks[5], (3, 3, Cout, Cout), 9 * Cout)
    b2 = winit(ks[6], (1, Cout), 9 * Cout)
    g2 = 1.0 + 0.1 * jax.random.normal(ks[7], (1, Cout), jnp.float32)
    be2 = 0.1 * jax.random.normal(ks[8], (1, Cout), jnp.float32)
    # conv3: 1x1 shortcut (in_planes -> out_planes, stride); dropout=None
    w3 = winit(ks[9], (Cin, Cout), Cin)
    b3 = winit(ks[10], (1, Cout), Cin)
    # final GroupNorm of resconv_basic
    g4 = 1.0 + 0.1 * jax.random.normal(ks[11], (1, Cout), jnp.float32)
    be4 = 0.1 * jax.random.normal(ks[12], (1, Cout), jnp.float32)

    params = (w1, b1, g1, be1, w2, b2, g2, be2, w3, b3, g4, be4)

    fwd = jax.jit(resconv_basic_forward, static_argnums=2)

    for stride, hw in ((2, H // 2), (1, H)):
        out = jax.block_until_ready(fwd(x, params, stride))
        ref = jax.block_until_ready(resconv_basic_reference(x, params, stride))
        assert out.shape == (N, Cout, hw, hw), (stride, out.shape)
        max_err = float(jnp.max(jnp.abs(out - ref)))
        # bf16 MXU operands / bf16 y1 intermediate vs matching bf16-policy ref.
        assert max_err < 2e-2, f"stride={stride} mismatch: max_err={max_err}"

    print("KERNEL_OK")
</pallas_src>

<mosaic_0001>
module attributes {stable_mosaic.version = 11 : i64} {
  func.func @_resblock_kernel(%arg0: i32, %arg1: memref<1x384x16xbf16, #tpu.memory_space<vmem>>, %arg2: memref<1x80x16xbf16, #tpu.memory_space<vmem>>, %arg3: memref<144x32xbf16, #tpu.memory_space<vmem>>, %arg4: memref<1x32xf32, #tpu.memory_space<vmem>>, %arg5: memref<1x32xf32, #tpu.memory_space<vmem>>, %arg6: memref<1x32xf32, #tpu.memory_space<vmem>>, %arg7: memref<288x32xbf16, #tpu.memory_space<vmem>>, %arg8: memref<1x32xf32, #tpu.memory_space<vmem>>, %arg9: memref<1x32xf32, #tpu.memory_space<vmem>>, %arg10: memref<1x32xf32, #tpu.memory_space<vmem>>, %arg11: memref<16x32xbf16, #tpu.memory_space<vmem>>, %arg12: memref<1x32xf32, #tpu.memory_space<vmem>>, %arg13: memref<1x32xf32, #tpu.memory_space<vmem>>, %arg14: memref<1x32xf32, #tpu.memory_space<vmem>>, %arg15: memref<1x32x80xf32, #tpu.memory_space<vmem>>, %arg16: memref<80x288xbf16, #tpu.memory_space<vmem>>, %arg17: memref<112x32xbf16, #tpu.memory_space<vmem>>) attributes {dimension_semantics = [#tpu.dimension_semantics<parallel>], iteration_bounds = array<i64: 2>, scalar_prefetch = 0 : i64, scratch_operands = 2 : i64, tpu.core_type = #tpu.core_type<tc>, window_params = [{transform_indices = @transform_0, window_bounds = array<i64: 1, 384, 16>}, {transform_indices = @transform_1, window_bounds = array<i64: 1, 80, 16>}, {pipeline_mode = #tpu.pipeline_mode<synchronous>, transform_indices = @transform_2, window_bounds = array<i64: 144, 32>}, {pipeline_mode = #tpu.pipeline_mode<synchronous>, transform_indices = @transform_3, window_bounds = array<i64: 1, 32>}, {pipeline_mode = #tpu.pipeline_mode<synchronous>, transform_indices = @transform_4, window_bounds = array<i64: 1, 32>}, {pipeline_mode = #tpu.pipeline_mode<synchronous>, transform_indices = @transform_5, window_bounds = array<i64: 1, 32>}, {pipeline_mode = #tpu.pipeline_mode<synchronous>, transform_indices = @transform_6, window_bounds = array<i64: 288, 32>}, {pipeline_mode = #tpu.pipeline_mode<synchronous>, transform_indices = @transform_7, window_bounds = array<i64: 1, 32>}, {pipeline_mode = #tpu.pipeline_mode<synchronous>, transform_indices = @transform_8, window_bounds = array<i64: 1, 32>}, {pipeline_mode = #tpu.pipeline_mode<synchronous>, transform_indices = @transform_9, window_bounds = array<i64: 1, 32>}, {pipeline_mode = #tpu.pipeline_mode<synchronous>, transform_indices = @transform_10, window_bounds = array<i64: 16, 32>}, {pipeline_mode = #tpu.pipeline_mode<synchronous>, transform_indices = @transform_11, window_bounds = array<i64: 1, 32>}, {pipeline_mode = #tpu.pipeline_mode<synchronous>, transform_indices = @transform_12, window_bounds = array<i64: 1, 32>}, {pipeline_mode = #tpu.pipeline_mode<synchronous>, transform_indices = @transform_13, window_bounds = array<i64: 1, 32>}, {transform_indices = @transform_14, window_bounds = array<i64: 1, 32, 80>}]} {
    %0 = tpu.iota {dimensions = array<i32: 0>} : vector<80x1xi32>
    %1 = arith.sitofp %0 : vector<80x1xi32> to vector<80x1xf32>
    %cst = arith.constant 5.000000e-01 : f32
    %2 = vector.broadcast %cst : f32 to vector<80x1xf32>
    %3 = arith.addf %1, %2 : vector<80x1xf32>
    %cst_0 = arith.constant 1.000000e-01 : f32
    %4 = vector.broadcast %cst_0 : f32 to vector<80x1xf32>
    %5 = arith.mulf %3, %4 : vector<80x1xf32>
    %6 = math.floor %5 : vector<80x1xf32>
    %7 = arith.fptosi %6 : vector<80x1xf32> to vector<80x1xi32>
    %c10_i32 = arith.constant 10 : i32
    %8 = vector.broadcast %c10_i32 : i32 to vector<80x1xi32>
    %9 = arith.muli %7, %8 : vector<80x1xi32>
    %10 = arith.subi %0, %9 : vector<80x1xi32>
    %c8_i32 = arith.constant 8 : i32
    %11 = vector.broadcast %c8_i32 : i32 to vector<80x1xi32>
    %12 = arith.cmpi slt, %10, %11 : vector<80x1xi32>
    %13 = arith.extui %12 : vector<80x1xi1> to vector<80x1xi32>
    %14 = arith.sitofp %13 : vector<80x1xi32> to vector<80x1xf32>
    %15 = tpu.iota {dimensions = array<i32: 1>} : vector<1x32xi32>
    %c0 = arith.constant 0 : index
    %c0_1 = arith.constant 0 : index
    %c0_2 = arith.constant 0 : index
    %16 = vector.load %arg1[%c0, %c0_1, %c0_2] : memref<1x384x16xbf16, #tpu.memory_space<vmem>>, vector<1x80x16xbf16>
    %17 = vector.shape_cast %16 : vector<1x80x16xbf16> to vector<80x16xbf16>
    %c0_3 = arith.constant 0 : index
    %c0_4 = arith.constant 0 : index
    %18 = vector.load %arg16[%c0_3, %c0_4] : memref<80x288xbf16, #tpu.memory_space<vmem>>, vector<80x16xbf16>
    tpu.vector_store %arg16[%c0_3, %c0_4], %17 {strides = array<i32>} : memref<80x288xbf16, #tpu.memory_space<vmem>>, vector<80x16xbf16>,
    %c0_5 = arith.constant 0 : index
    %c96 = arith.constant 96 : index
    %c0_6 = arith.constant 0 : index
    %19 = vector.load %arg1[%c0_5, %c96, %c0_6] : memref<1x384x16xbf16, #tpu.memory_space<vmem>>, vector<1x80x16xbf16>
    %20 = vector.shape_cast %19 : vector<1x80x16xbf16> to vector<80x16xbf16>
    %c0_7 = arith.constant 0 : index
    %c16 = arith.constant 16 : index
    %21 = vector.load %arg16[%c0_7, %c16] : memref<80x288xbf16, #tpu.memory_space<vmem>>, vector<80x16xbf16>
    tpu.vector_store %arg16[%c0_7, %c16], %20 {strides = array<i32>} : memref<80x288xbf16, #tpu.memory_space<vmem>>, vector<80x16xbf16>,
    %c0_8 = arith.constant 0 : index
    %c1 = arith.constant 1 : index
    %c0_9 = arith.constant 0 : index
    %22 = vector.load %arg1[%c0_8, %c1, %c0_9] : memref<1x384x16xbf16, #tpu.memory_space<vmem>>, vector<1x80x16xbf16>
    %23 = vector.shape_cast %22 : vector<1x80x16xbf16> to vector<80x16xbf16>
    %c0_10 = arith.constant 0 : index
    %c32 = arith.constant 32 : index
    %24 = vector.load %arg16[%c0_10, %c32] : memref<80x288xbf16, #tpu.memory_space<vmem>>, vector<80x16xbf16>
    tpu.vector_store %arg16[%c0_10, %c32], %23 {strides = array<i32>} : memref<80x288xbf16, #tpu.memory_space<vmem>>, vector<80x16xbf16>,
    %c0_11 = arith.constant 0 : index
    %c192 = arith.constant 192 : index
    %c0_12 = arith.constant 0 : index
    %25 = vector.load %arg1[%c0_11, %c192, %c0_12] : memref<1x384x16xbf16, #tpu.memory_space<vmem>>, vector<1x80x16xbf16>
    %26 = vector.shape_cast %25 : vector<1x80x16xbf16> to vector<80x16xbf16>
    %c0_13 = arith.constant 0 : index
    %c48 = arith.constant 48 : index
    %27 = vector.load %arg16[%c0_13, %c48] : memref<80x288xbf16, #tpu.memory_space<vmem>>, vector<80x16xbf16>
    tpu.vector_store %arg16[%c0_13, %c48], %26 {strides = array<i32>} : memref<80x288xbf16, #tpu.memory_space<vmem>>, vector<80x16xbf16>,
    %c0_14 = arith.constant 0 : index
    %c288 = arith.constant 288 : index
    %c0_15 = arith.constant 0 : index
    %28 = vector.load %arg1[%c0_14, %c288, %c0_15] : memref<1x384x16xbf16, #tpu.memory_space<vmem>>, vector<1x80x16xbf16>
    %29 = vector.shape_cast %28 : vector<1x80x16xbf16> to vector<80x16xbf16>
    %c0_16 = arith.constant 0 : index
    %c64 = arith.constant 64 : index
    %30 = vector.load %arg16[%c0_16, %c64] : memref<80x288xbf16, #tpu.memory_space<vmem>>, vector<80x16xbf16>
    tpu.vector_store %arg16[%c0_16, %c64], %29 {strides = array<i32>} : memref<80x288xbf16, #tpu.memory_space<vmem>>, vector<80x16xbf16>,
    %c0_17 = arith.constant 0 : index
    %c193 = arith.constant 193 : index
    %c0_18 = arith.constant 0 : index
    %31 = vector.load %arg1[%c0_17, %c193, %c0_18] : memref<1x384x16xbf16, #tpu.memory_space<vmem>>, vector<1x80x16xbf16>
    %32 = vector.shape_cast %31 : vector<1x80x16xbf16> to vector<80x16xbf16>
    %c0_19 = arith.constant 0 : index
    %c80 = arith.constant 80 : index
    %33 = vector.load %arg16[%c0_19, %c80] : memref<80x288xbf16, #tpu.memory_space<vmem>>, vector<80x16xbf16>
    tpu.vector_store %arg16[%c0_19, %c80], %32 {strides = array<i32>} : memref<80x288xbf16, #tpu.memory_space<vmem>>, vector<80x16xbf16>,
    %c0_20 = arith.constant 0 : index
    %c10 = arith.constant 10 : index
    %c0_21 = arith.constant 0 : index
    %34 = vector.load %arg1[%c0_20, %c10, %c0_21] : memref<1x384x16xbf16, #tpu.memory_space<vmem>>, vector<1x80x16xbf16>
    %35 = vector.shape_cast %34 : vector<1x80x16xbf16> to vector<80x16xbf16>
    %c0_22 = arith.constant 0 : index
    %c96_23 = arith.constant 96 : index
    %36 = vector.load %arg16[%c0_22, %c96_23] : memref<80x288xbf16, #tpu.memory_space<vmem>>, vector<80x16xbf16>
    tpu.vector_store %arg16[%c0_22, %c96_23], %35 {strides = array<i32>} : memref<80x288xbf16, #tpu.memory_space<vmem>>, vector<80x16xbf16>,
    %c0_24 = arith.constant 0 : index
    %c106 = arith.constant 106 : index
    %c0_25 = arith.constant 0 : index
    %37 = vector.load %arg1[%c0_24, %c106, %c0_25] : memref<1x384x16xbf16, #tpu.memory_space<vmem>>, vector<1x80x16xbf16>
    %38 = vector.shape_cast %37 : vector<1x80x16xbf16> to vector<80x16xbf16>
    %c0_26 = arith.constant 0 : index
    %c112 = arith.constant 112 : index
    %39 = vector.load %arg16[%c0_26, %c112] : memref<80x288xbf16, #tpu.memory_space<vmem>>, vector<80x16xbf16>
    tpu.vector_store %arg16[%c0_26, %c112], %38 {strides = array<i32>} : memref<80x288xbf16, #tpu.memory_space<vmem>>, vector<80x16xbf16>,
    %c0_27 = arith.constant 0 : index
    %c11 = arith.constant 11 : index
    %c0_28 = arith.constant 0 : index
    %40 = vector.load %arg1[%c0_27, %c11, %c0_28] : memref<1x384x16xbf16, #tpu.memory_space<vmem>>, vector<1x80x16xbf16>
    %41 = vector.shape_cast %40 : vector<1x80x16xbf16> to vector<80x16xbf16>
    %c0_29 = arith.constant 0 : index
    %c128 = arith.constant 128 : index
    %42 = vector.load %arg16[%c0_29, %c128] : memref<80x288xbf16, #tpu.memory_space<vmem>>, vector<80x16xbf16>
    tpu.vector_store %arg16[%c0_29, %c128], %41 {strides = array<i32>} : memref<80x288xbf16, #tpu.memory_space<vmem>>, vector<80x16xbf16>,
    %c0_30 = arith.constant 0 : index
    %c0_31 = arith.constant 0 : index
    %43 = vector.load %arg16[%c0_30, %c0_31] : memref<80x288xbf16, #tpu.memory_space<vmem>>, vector<80x144xbf16>
    %c0_32 = arith.constant 0 : index
    %c0_33 = arith.constant 0 : index
    %44 = vector.load %arg3[%c0_32, %c0_33] : memref<144x32xbf16, #tpu.memory_space<vmem>>, vector<144x32xbf16>
    %cst_34 = arith.constant dense<0.000000e+00> : vector<80x32xf32>
    %45 = tpu.matmul %43, %44, %cst_34 {dimension_numbers = #tpu.dot_dimension_numbers<[1], [0], [0], [1], [0, 0, 1, 1], [], []>} : vector<80x144xbf16>, vector<144x32xbf16>, vector<80x32xf32> -> vector<80x32xf32>
    %c0_35 = arith.constant 0 : index
    %c0_36 = arith.constant 0 : index
    %46 = vector.load %arg4[%c0_35, %c0_36] : memref<1x32xf32, #tpu.memory_space<vmem>>, vector<1x32xf32>
    %47 = vector.broadcast %46 : vector<1x32xf32> to vector<80x32xf32>
    %48 = arith.addf %45, %47 : vector<80x32xf32>
    %c0_37 = arith.constant 0 : index
    %c0_38 = arith.constant 0 : index
    %49 = vector.load %arg5[%c0_37, %c0_38] : memref<1x32xf32, #tpu.memory_space<vmem>>, vector<1x32xf32>
    %c0_39 = arith.constant 0 : index
    %c0_40 = arith.constant 0 : index
    %50 = vector.load %arg6[%c0_39, %c0_40] : memref<1x32xf32, #tpu.memory_space<vmem>>, vector<1x32xf32>
    %51 = vector.broadcast %14 : vector<80x1xf32> to vector<80x32xf32>
    %52 = arith.mulf %48, %51 : vector<80x32xf32>
    %cst_41 = arith.constant dense<0.000000e+00> : vector<32xf32>
    %53 = vector.multi_reduction <add>, %52, %cst_41 [0] : vector<80x32xf32> to vector<32xf32>
    %54 = vector.shape_cast %53 : vector<32xf32> to vector<1x32xf32>
    %55 = arith.mulf %52, %48 : vector<80x32xf32>
    %cst_42 = arith.constant dense<0.000000e+00> : vector<32xf32>
    %56 = vector.multi_reduction <add>, %55, %cst_42 [0] : vector<80x32xf32> to vector<32xf32>
    %57 = vector.shape_cast %56 : vector<32xf32> to vector<1x32xf32>
    %cst_43 = arith.constant 0.000000e+00 : f32
    %58 = vector.broadcast %cst_43 : f32 to vector<1x32xf32>
    %cst_44 = arith.constant 0.000000e+00 : f32
    %59 = vector.broadcast %cst_44 : f32 to vector<1x32xf32>
    %c0_i32 = arith.constant 0 : i32
    %60 = vector.broadcast %c0_i32 : i32 to vector<1x32xi32>
    %61 = arith.cmpi sge, %15, %60 : vector<1x32xi32>
    %c2_i32 = arith.constant 2 : i32
    %62 = vector.broadcast %c2_i32 : i32 to vector<1x32xi32>
    %63 = arith.cmpi slt, %15, %62 : vector<1x32xi32>
    %64 = arith.andi %61, %63 : vector<1x32xi1>
    %65 = arith.extui %64 : vector<1x32xi1> to vector<1x32xi32>
    %66 = arith.sitofp %65 : vector<1x32xi32> to vector<1x32xf32>
    %67 = arith.mulf %54, %66 : vector<1x32xf32>
    %68 = vector.shape_cast %67 : vector<1x32xf32> to vector<1x1x32xf32>
    %cst_45 = arith.constant dense<0.000000e+00> : vector<1xf32>
    %69 = vector.multi_reduction <add>, %68, %cst_45 [1, 2] : vector<1x1x32xf32> to vector<1xf32>
    %70 = vector.shape_cast %69 : vector<1xf32> to vector<1x1x1xf32>
    %71 = vector.extract %70[0, 0, 0] : f32 from vector<1x1x1xf32>
    %72 = vector.broadcast %71 : f32 to vector<1x1xf32>
    %cst_46 = arith.constant 7.812500e-03 : f32
    %73 = vector.broadcast %cst_46 : f32 to vector<1x1xf32>
    %74 = arith.mulf %72, %73 : vector<1x1xf32>
    %75 = arith.mulf %57, %66 : vector<1x32xf32>
    %76 = vector.shape_cast %75 : vector<1x32xf32> to vector<1x1x32xf32>
    %cst_47 = arith.constant dense<0.000000e+00> : vector<1xf32>
    %77 = vector.multi_reduction <add>, %76, %cst_47 [1, 2] : vector<1x1x32xf32> to vector<1xf32>
    %78 = vector.shape_cast %77 : vector<1xf32> to vector<1x1x1xf32>
    %79 = vector.extract %78[0, 0, 0] : f32 from vector<1x1x1xf32>
    %80 = vector.broadcast %79 : f32 to vector<1x1xf32>
    %cst_48 = arith.constant 7.812500e-03 : f32
    %81 = vector.broadcast %cst_48 : f32 to vector<1x1xf32>
    %82 = arith.mulf %80, %81 : vector<1x1xf32>
    %83 = arith.mulf %74, %74 : vector<1x1xf32>
    %84 = arith.subf %82, %83 : vector<1x1xf32>
    %cst_49 = arith.constant 0.000000e+00 : f32
    %85 = vector.broadcast %cst_49 : f32 to vector<1x1xf32>
    %86 = arith.maximumf %84, %85 : vector<1x1xf32>
    %cst_50 = arith.constant 9.99999974E-6 : f32
    %87 = vector.broadcast %cst_50 : f32 to vector<1x1xf32>
    %88 = arith.addf %86, %87 : vector<1x1xf32>
    %89 = math.rsqrt %88 : vector<1x1xf32>
    %90 = vector.broadcast %74 : vector<1x1xf32> to vector<1x32xf32>
    %91 = arith.mulf %90, %66 : vector<1x32xf32>
    %92 = arith.addf %58, %91 : vector<1x32xf32>
    %93 = vector.broadcast %89 : vector<1x1xf32> to vector<1x32xf32>
    %94 = arith.mulf %93, %66 : vector<1x32xf32>
    %95 = arith.addf %59, %94 : vector<1x32xf32>
    %c2_i32_51 = arith.constant 2 : i32
    %96 = vector.broadcast %c2_i32_51 : i32 to vector<1x32xi32>
    %97 = arith.cmpi sge, %15, %96 : vector<1x32xi32>
    %c4_i32 = arith.constant 4 : i32
    %98 = vector.broadcast %c4_i32 : i32 to vector<1x32xi32>
    %99 = arith.cmpi slt, %15, %98 : vector<1x32xi32>
    %100 = arith.andi %97, %99 : vector<1x32xi1>
    %101 = arith.extui %100 : vector<1x32xi1> to vector<1x32xi32>
    %102 = arith.sitofp %101 : vector<1x32xi32> to vector<1x32xf32>
    %103 = arith.mulf %54, %102 : vector<1x32xf32>
    %104 = vector.shape_cast %103 : vector<1x32xf32> to vector<1x1x32xf32>
    %cst_52 = arith.constant dense<0.000000e+00> : vector<1xf32>
    %105 = vector.multi_reduction <add>, %104, %cst_52 [1, 2] : vector<1x1x32xf32> to vector<1xf32>
    %106 = vector.shape_cast %105 : vector<1xf32> to vector<1x1x1xf32>
    %107 = vector.extract %106[0, 0, 0] : f32 from vector<1x1x1xf32>
    %108 = vector.broadcast %107 : f32 to vector<1x1xf32>
    %cst_53 = arith.constant 7.812500e-03 : f32
    %109 = vector.broadcast %cst_53 : f32 to vector<1x1xf32>
    %110 = arith.mulf %108, %109 : vector<1x1xf32>
    %111 = arith.mulf %57, %102 : vector<1x32xf32>
    %112 = vector.shape_cast %111 : vector<1x32xf32> to vector<1x1x32xf32>
    %cst_54 = arith.constant dense<0.000000e+00> : vector<1xf32>
    %113 = vector.multi_reduction <add>, %112, %cst_54 [1, 2] : vector<1x1x32xf32> to vector<1xf32>
    %114 = vector.shape_cast %113 : vector<1xf32> to vector<1x1x1xf32>
    %115 = vector.extract %114[0, 0, 0] : f32 from vector<1x1x1xf32>
    %116 = vector.broadcast %115 : f32 to vector<1x1xf32>
    %cst_55 = arith.constant 7.812500e-03 : f32
    %117 = vector.broadcast %cst_55 : f32 to vector<1x1xf32>
    %118 = arith.mulf %116, %117 : vector<1x1xf32>
    %119 = arith.mulf %110, %110 : vector<1x1xf32>
    %120 = arith.subf %118, %119 : vector<1x1xf32>
    %cst_56 = arith.constant 0.000000e+00 : f32
    %121 = vector.broadcast %cst_56 : f32 to vector<1x1xf32>
    %122 = arith.maximumf %120, %121 : vector<1x1xf32>
    %cst_57 = arith.constant 9.99999974E-6 : f32
    %123 = vector.broadcast %cst_57 : f32 to vector<1x1xf32>
    %124 = arith.addf %122, %123 : vector<1x1xf32>
    %125 = math.rsqrt %124 : vector<1x1xf32>
    %126 = vector.broadcast %110 : vector<1x1xf32> to vector<1x32xf32>
    %127 = arith.mulf %126, %102 : vector<1x32xf32>
    %128 = arith.addf %92, %127 : vector<1x32xf32>
    %129 = vector.broadcast %125 : vector<1x1xf32> to vector<1x32xf32>
    %130 = arith.mulf %129, %102 : vector<1x32xf32>
    %131 = arith.addf %95, %130 : vector<1x32xf32>
    %c4_i32_58 = arith.constant 4 : i32
    %132 = vector.broadcast %c4_i32_58 : i32 to vector<1x32xi32>
    %133 = arith.cmpi sge, %15, %132 : vector<1x32xi32>
    %c6_i32 = arith.constant 6 : i32
    %134 = vector.broadcast %c6_i32 : i32 to vector<1x32xi32>
    %135 = arith.cmpi slt, %15, %134 : vector<1x32xi32>
    %136 = arith.andi %133, %135 : vector<1x32xi1>
    %137 = arith.extui %136 : vector<1x32xi1> to vector<1x32xi32>
    %138 = arith.sitofp %137 : vector<1x32xi32> to vector<1x32xf32>
    %139 = arith.mulf %54, %138 : vector<1x32xf32>
    %140 = vector.shape_cast %139 : vector<1x32xf32> to vector<1x1x32xf32>
    %cst_59 = arith.constant dense<0.000000e+00> : vector<1xf32>
    %141 = vector.multi_reduction <add>, %140, %cst_59 [1, 2] : vector<1x1x32xf32> to vector<1xf32>
    %142 = vector.shape_cast %141 : vector<1xf32> to vector<1x1x1xf32>
    %143 = vector.extract %142[0, 0, 0] : f32 from vector<1x1x1xf32>
    %144 = vector.broadcast %143 : f32 to vector<1x1xf32>
    %cst_60 = arith.constant 7.812500e-03 : f32
    %145 = vector.broadcast %cst_60 : f32 to vector<1x1xf32>
    %146 = arith.mulf %144, %145 : vector<1x1xf32>
    %147 = arith.mulf %57, %138 : vector<1x32xf32>
    %148 = vector.shape_cast %147 : vector<1x32xf32> to vector<1x1x32xf32>
    %cst_61 = arith.constant dense<0.000000e+00> : vector<1xf32>
    %149 = vector.multi_reduction <add>, %148, %cst_61 [1, 2] : vector<1x1x32xf32> to vector<1xf32>
    %150 = vector.shape_cast %149 : vector<1xf32> to vector<1x1x1xf32>
    %151 = vector.extract %150[0, 0, 0] : f32 from vector<1x1x1xf32>
    %152 = vector.broadcast %151 : f32 to vector<1x1xf32>
    %cst_62 = arith.constant 7.812500e-03 : f32
    %153 = vector.broadcast %cst_62 : f32 to vector<1x1xf32>
    %154 = arith.mulf %152, %153 : vector<1x1xf32>
    %155 = arith.mulf %146, %146 : vector<1x1xf32>
    %156 = arith.subf %154, %155 : vector<1x1xf32>
    %cst_63 = arith.constant 0.000000e+00 : f32
    %157 = vector.broadcast %cst_63 : f32 to vector<1x1xf32>
    %158 = arith.maximumf %156, %157 : vector<1x1xf32>
    %cst_64 = arith.constant 9.99999974E-6 : f32
    %159 = vector.broadcast %cst_64 : f32 to vector<1x1xf32>
    %160 = arith.addf %158, %159 : vector<1x1xf32>
    %161 = math.rsqrt %160 : vector<1x1xf32>
    %162 = vector.broadcast %146 : vector<1x1xf32> to vector<1x32xf32>
    %163 = arith.mulf %162, %138 : vector<1x32xf32>
    %164 = arith.addf %128, %163 : vector<1x32xf32>
    %165 = vector.broadcast %161 : vector<1x1xf32> to vector<1x32xf32>
    %166 = arith.mulf %165, %138 : vector<1x32xf32>
    %167 = arith.addf %131, %166 : vector<1x32xf32>
    %c6_i32_65 = arith.constant 6 : i32
    %168 = vector.broadcast %c6_i32_65 : i32 to vector<1x32xi32>
    %169 = arith.cmpi sge, %15, %168 : vector<1x32xi32>
    %c8_i32_66 = arith.constant 8 : i32
    %170 = vector.broadcast %c8_i32_66 : i32 to vector<1x32xi32>
    %171 = arith.cmpi slt, %15, %170 : vector<1x32xi32>
    %172 = arith.andi %169, %171 : vector<1x32xi1>
    %173 = arith.extui %172 : vector<1x32xi1> to vector<1x32xi32>
    %174 = arith.sitofp %173 : vector<1x32xi32> to vector<1x32xf32>
    %175 = arith.mulf %54, %174 : vector<1x32xf32>
    %176 = vector.shape_cast %175 : vector<1x32xf32> to vector<1x1x32xf32>
    %cst_67 = arith.constant dense<0.000000e+00> : vector<1xf32>
    %177 = vector.multi_reduction <add>, %176, %cst_67 [1, 2] : vector<1x1x32xf32> to vector<1xf32>
    %178 = vector.shape_cast %177 : vector<1xf32> to vector<1x1x1xf32>
    %179 = vector.extract %178[0, 0, 0] : f32 from vector<1x1x1xf32>
    %180 = vector.broadcast %179 : f32 to vector<1x1xf32>
    %cst_68 = arith.constant 7.812500e-03 : f32
    %181 = vector.broadcast %cst_68 : f32 to vector<1x1xf32>
    %182 = arith.mulf %180, %181 : vector<1x1xf32>
    %183 = arith.mulf %57, %174 : vector<1x32xf32>
    %184 = vector.shape_cast %183 : vector<1x32xf32> to vector<1x1x32xf32>
    %cst_69 = arith.constant dense<0.000000e+00> : vector<1xf32>
    %185 = vector.multi_reduction <add>, %184, %cst_69 [1, 2] : vector<1x1x32xf32> to vector<1xf32>
    %186 = vector.shape_cast %185 : vector<1xf32> to vector<1x1x1xf32>
    %187 = vector.extract %186[0, 0, 0] : f32 from vector<1x1x1xf32>
    %188 = vector.broadcast %187 : f32 to vector<1x1xf32>
    %cst_70 = arith.constant 7.812500e-03 : f32
    %189 = vector.broadcast %cst_70 : f32 to vector<1x1xf32>
    %190 = arith.mulf %188, %189 : vector<1x1xf32>
    %191 = arith.mulf %182, %182 : vector<1x1xf32>
    %192 = arith.subf %190, %191 : vector<1x1xf32>
    %cst_71 = arith.constant 0.000000e+00 : f32
    %193 = vector.broadcast %cst_71 : f32 to vector<1x1xf32>
    %194 = arith.maximumf %192, %193 : vector<1x1xf32>
    %cst_72 = arith.constant 9.99999974E-6 : f32
    %195 = vector.broadcast %cst_72 : f32 to vector<1x1xf32>
    %196 = arith.addf %194, %195 : vector<1x1xf32>
    %197 = math.rsqrt %196 : vector<1x1xf32>
    %198 = vector.broadcast %182 : vector<1x1xf32> to vector<1x32xf32>
    %199 = arith.mulf %198, %174 : vector<1x32xf32>
    %200 = arith.addf %164, %199 : vector<1x32xf32>
    %201 = vector.broadcast %197 : vector<1x1xf32> to vector<1x32xf32>
    %202 = arith.mulf %201, %174 : vector<1x32xf32>
    %203 = arith.addf %167, %202 : vector<1x32xf32>
    %c8_i32_73 = arith.constant 8 : i32
    %204 = vector.broadcast %c8_i32_73 : i32 to vector<1x32xi32>
    %205 = arith.cmpi sge, %15, %204 : vector<1x32xi32>
    %c10_i32_74 = arith.constant 10 : i32
    %206 = vector.broadcast %c10_i32_74 : i32 to vector<1x32xi32>
    %207 = arith.cmpi slt, %15, %206 : vector<1x32xi32>
    %208 = arith.andi %205, %207 : vector<1x32xi1>
    %209 = arith.extui %208 : vector<1x32xi1> to vector<1x32xi32>
    %210 = arith.sitofp %209 : vector<1x32xi32> to vector<1x32xf32>
    %211 = arith.mulf %54, %210 : vector<1x32xf32>
    %212 = vector.shape_cast %211 : vector<1x32xf32> to vector<1x1x32xf32>
    %cst_75 = arith.constant dense<0.000000e+00> : vector<1xf32>
    %213 = vector.multi_reduction <add>, %212, %cst_75 [1, 2] : vector<1x1x32xf32> to vector<1xf32>
    %214 = vector.shape_cast %213 : vector<1xf32> to vector<1x1x1xf32>
    %215 = vector.extract %214[0, 0, 0] : f32 from vector<1x1x1xf32>
    %216 = vector.broadcast %215 : f32 to vector<1x1xf32>
    %cst_76 = arith.constant 7.812500e-03 : f32
    %217 = vector.broadcast %cst_76 : f32 to vector<1x1xf32>
    %218 = arith.mulf %216, %217 : vector<1x1xf32>
    %219 = arith.mulf %57, %210 : vector<1x32xf32>
    %220 = vector.shape_cast %219 : vector<1x32xf32> to vector<1x1x32xf32>
    %cst_77 = arith.constant dense<0.000000e+00> : vector<1xf32>
    %221 = vector.multi_reduction <add>, %220, %cst_77 [1, 2] : vector<1x1x32xf32> to vector<1xf32>
    %222 = vector.shape_cast %221 : vector<1xf32> to vector<1x1x1xf32>
    %223 = vector.extract %222[0, 0, 0] : f32 from vector<1x1x1xf32>
    %224 = vector.broadcast %223 : f32 to vector<1x1xf32>
    %cst_78 = arith.constant 7.812500e-03 : f32
    %225 = vector.broadcast %cst_78 : f32 to vector<1x1xf32>
    %226 = arith.mulf %224, %225 : vector<1x1xf32>
    %227 = arith.mulf %218, %218 : vector<1x1xf32>
    %228 = arith.subf %226, %227 : vector<1x1xf32>
    %cst_79 = arith.constant 0.000000e+00 : f32
    %229 = vector.broadcast %cst_79 : f32 to vector<1x1xf32>
    %230 = arith.maximumf %228, %229 : vector<1x1xf32>
    %cst_80 = arith.constant 9.99999974E-6 : f32
    %231 = vector.broadcast %cst_80 : f32 to vector<1x1xf32>
    %232 = arith.addf %230, %231 : vector<1x1xf32>
    %233 = math.rsqrt %232 : vector<1x1xf32>
    %234 = vector.broadcast %218 : vector<1x1xf32> to vector<1x32xf32>
    %235 = arith.mulf %234, %210 : vector<1x32xf32>
    %236 = arith.addf %200, %235 : vector<1x32xf32>
    %237 = vector.broadcast %233 : vector<1x1xf32> to vector<1x32xf32>
    %238 = arith.mulf %237, %210 : vector<1x32xf32>
    %239 = arith.addf %203, %238 : vector<1x32xf32>
    %c10_i32_81 = arith.constant 10 : i32
    %240 = vector.broadcast %c10_i32_81 : i32 to vector<1x32xi32>
    %241 = arith.cmpi sge, %15, %240 : vector<1x32xi32>
    %c12_i32 = arith.constant 12 : i32
    %242 = vector.broadcast %c12_i32 : i32 to vector<1x32xi32>
    %243 = arith.cmpi slt, %15, %242 : vector<1x32xi32>
    %244 = arith.andi %241, %243 : vector<1x32xi1>
    %245 = arith.extui %244 : vector<1x32xi1> to vector<1x32xi32>
    %246 = arith.sitofp %245 : vector<1x32xi32> to vector<1x32xf32>
    %247 = arith.mulf %54, %246 : vector<1x32xf32>
    %248 = vector.shape_cast %247 : vector<1x32xf32> to vector<1x1x32xf32>
    %cst_82 = arith.constant dense<0.000000e+00> : vector<1xf32>
    %249 = vector.multi_reduction <add>, %248, %cst_82 [1, 2] : vector<1x1x32xf32> to vector<1xf32>
    %250 = vector.shape_cast %249 : vector<1xf32> to vector<1x1x1xf32>
    %251 = vector.extract %250[0, 0, 0] : f32 from vector<1x1x1xf32>
    %252 = vector.broadcast %251 : f32 to vector<1x1xf32>
    %cst_83 = arith.constant 7.812500e-03 : f32
    %253 = vector.broadcast %cst_83 : f32 to vector<1x1xf32>
    %254 = arith.mulf %252, %253 : vector<1x1xf32>
    %255 = arith.mulf %57, %246 : vector<1x32xf32>
    %256 = vector.shape_cast %255 : vector<1x32xf32> to vector<1x1x32xf32>
    %cst_84 = arith.constant dense<0.000000e+00> : vector<1xf32>
    %257 = vector.multi_reduction <add>, %256, %cst_84 [1, 2] : vector<1x1x32xf32> to vector<1xf32>
    %258 = vector.shape_cast %257 : vector<1xf32> to vector<1x1x1xf32>
    %259 = vector.extract %258[0, 0, 0] : f32 from vector<1x1x1xf32>
    %260 = vector.broadcast %259 : f32 to vector<1x1xf32>
    %cst_85 = arith.constant 7.812500e-03 : f32
    %261 = vector.broadcast %cst_85 : f32 to vector<1x1xf32>
    %262 = arith.mulf %260, %261 : vector<1x1xf32>
    %263 = arith.mulf %254, %254 : vector<1x1xf32>
    %264 = arith.subf %262, %263 : vector<1x1xf32>
    %cst_86 = arith.constant 0.000000e+00 : f32
    %265 = vector.broadcast %cst_86 : f32 to vector<1x1xf32>
    %266 = arith.maximumf %264, %265 : vector<1x1xf32>
    %cst_87 = arith.constant 9.99999974E-6 : f32
    %267 = vector.broadcast %cst_87 : f32 to vector<1x1xf32>
    %268 = arith.addf %266, %267 : vector<1x1xf32>
    %269 = math.rsqrt %268 : vector<1x1xf32>
    %270 = vector.broadcast %254 : vector<1x1xf32> to vector<1x32xf32>
    %271 = arith.mulf %270, %246 : vector<1x32xf32>
    %272 = arith.addf %236, %271 : vector<1x32xf32>
    %273 = vector.broadcast %269 : vector<1x1xf32> to vector<1x32xf32>
    %274 = arith.mulf %273, %246 : vector<1x32xf32>
    %275 = arith.addf %239, %274 : vector<1x32xf32>
    %c12_i32_88 = arith.constant 12 : i32
    %276 = vector.broadcast %c12_i32_88 : i32 to vector<1x32xi32>
    %277 = arith.cmpi sge, %15, %276 : vector<1x32xi32>
    %c14_i32 = arith.constant 14 : i32
    %278 = vector.broadcast %c14_i32 : i32 to vector<1x32xi32>
    %279 = arith.cmpi slt, %15, %278 : vector<1x32xi32>
    %280 = arith.andi %277, %279 : vector<1x32xi1>
    %281 = arith.extui %280 : vector<1x32xi1> to vector<1x32xi32>
    %282 = arith.sitofp %281 : vector<1x32xi32> to vector<1x32xf32>
    %283 = arith.mulf %54, %282 : vector<1x32xf32>
    %284 = vector.shape_cast %283 : vector<1x32xf32> to vector<1x1x32xf32>
    %cst_89 = arith.constant dense<0.000000e+00> : vector<1xf32>
    %285 = vector.multi_reduction <add>, %284, %cst_89 [1, 2] : vector<1x1x32xf32> to vector<1xf32>
    %286 = vector.shape_cast %285 : vector<1xf32> to vector<1x1x1xf32>
    %287 = vector.extract %286[0, 0, 0] : f32 from vector<1x1x1xf32>
    %288 = vector.broadcast %287 : f32 to vector<1x1xf32>
    %cst_90 = arith.constant 7.812500e-03 : f32
    %289 = vector.broadcast %cst_90 : f32 to vector<1x1xf32>
    %290 = arith.mulf %288, %289 : vector<1x1xf32>
    %291 = arith.mulf %57, %282 : vector<1x32xf32>
    %292 = vector.shape_cast %291 : vector<1x32xf32> to vector<1x1x32xf32>
    %cst_91 = arith.constant dense<0.000000e+00> : vector<1xf32>
    %293 = vector.multi_reduction <add>, %292, %cst_91 [1, 2] : vector<1x1x32xf32> to vector<1xf32>
    %294 = vector.shape_cast %293 : vector<1xf32> to vector<1x1x1xf32>
    %295 = vector.extract %294[0, 0, 0] : f32 from vector<1x1x1xf32>
    %296 = vector.broadcast %295 : f32 to vector<1x1xf32>
    %cst_92 = arith.constant 7.812500e-03 : f32
    %297 = vector.broadcast %cst_92 : f32 to vector<1x1xf32>
    %298 = arith.mulf %296, %297 : vector<1x1xf32>
    %299 = arith.mulf %290, %290 : vector<1x1xf32>
    %300 = arith.subf %298, %299 : vector<1x1xf32>
    %cst_93 = arith.constant 0.000000e+00 : f32
    %301 = vector.broadcast %cst_93 : f32 to vector<1x1xf32>
    %302 = arith.maximumf %300, %301 : vector<1x1xf32>
    %cst_94 = arith.constant 9.99999974E-6 : f32
    %303 = vector.broadcast %cst_94 : f32 to vector<1x1xf32>
    %304 = arith.addf %302, %303 : vector<1x1xf32>
    %305 = math.rsqrt %304 : vector<1x1xf32>
    %306 = vector.broadcast %290 : vector<1x1xf32> to vector<1x32xf32>
    %307 = arith.mulf %306, %282 : vector<1x32xf32>
    %308 = arith.addf %272, %307 : vector<1x32xf32>
    %309 = vector.broadcast %305 : vector<1x1xf32> to vector<1x32xf32>
    %310 = arith.mulf %309, %282 : vector<1x32xf32>
    %311 = arith.addf %275, %310 : vector<1x32xf32>
    %c14_i32_95 = arith.constant 14 : i32
    %312 = vector.broadcast %c14_i32_95 : i32 to vector<1x32xi32>
    %313 = arith.cmpi sge, %15, %312 : vector<1x32xi32>
    %c16_i32 = arith.constant 16 : i32
    %314 = vector.broadcast %c16_i32 : i32 to vector<1x32xi32>
    %315 = arith.cmpi slt, %15, %314 : vector<1x32xi32>
    %316 = arith.andi %313, %315 : vector<1x32xi1>
    %317 = arith.extui %316 : vector<1x32xi1> to vector<1x32xi32>
    %318 = arith.sitofp %317 : vector<1x32xi32> to vector<1x32xf32>
    %319 = arith.mulf %54, %318 : vector<1x32xf32>
    %320 = vector.shape_cast %319 : vector<1x32xf32> to vector<1x1x32xf32>
    %cst_96 = arith.constant dense<0.000000e+00> : vector<1xf32>
    %321 = vector.multi_reduction <add>, %320, %cst_96 [1, 2] : vector<1x1x32xf32> to vector<1xf32>
    %322 = vector.shape_cast %321 : vector<1xf32> to vector<1x1x1xf32>
    %323 = vector.extract %322[0, 0, 0] : f32 from vector<1x1x1xf32>
    %324 = vector.broadcast %323 : f32 to vector<1x1xf32>
    %cst_97 = arith.constant 7.812500e-03 : f32
    %325 = vector.broadcast %cst_97 : f32 to vector<1x1xf32>
    %326 = arith.mulf %324, %325 : vector<1x1xf32>
    %327 = arith.mulf %57, %318 : vector<1x32xf32>
    %328 = vector.shape_cast %327 : vector<1x32xf32> to vector<1x1x32xf32>
    %cst_98 = arith.constant dense<0.000000e+00> : vector<1xf32>
    %329 = vector.multi_reduction <add>, %328, %cst_98 [1, 2] : vector<1x1x32xf32> to vector<1xf32>
    %330 = vector.shape_cast %329 : vector<1xf32> to vector<1x1x1xf32>
    %331 = vector.extract %330[0, 0, 0] : f32 from vector<1x1x1xf32>
    %332 = vector.broadcast %331 : f32 to vector<1x1xf32>
    %cst_99 = arith.constant 7.812500e-03 : f32
    %333 = vector.broadcast %cst_99 : f32 to vector<1x1xf32>
    %334 = arith.mulf %332, %333 : vector<1x1xf32>
    %335 = arith.mulf %326, %326 : vector<1x1xf32>
    %336 = arith.subf %334, %335 : vector<1x1xf32>
    %cst_100 = arith.constant 0.000000e+00 : f32
    %337 = vector.broadcast %cst_100 : f32 to vector<1x1xf32>
    %338 = arith.maximumf %336, %337 : vector<1x1xf32>
    %cst_101 = arith.constant 9.99999974E-6 : f32
    %339 = vector.broadcast %cst_101 : f32 to vector<1x1xf32>
    %340 = arith.addf %338, %339 : vector<1x1xf32>
    %341 = math.rsqrt %340 : vector<1x1xf32>
    %342 = vector.broadcast %326 : vector<1x1xf32> to vector<1x32xf32>
    %343 = arith.mulf %342, %318 : vector<1x32xf32>
    %344 = arith.addf %308, %343 : vector<1x32xf32>
    %345 = vector.broadcast %341 : vector<1x1xf32> to vector<1x32xf32>
    %346 = arith.mulf %345, %318 : vector<1x32xf32>
    %347 = arith.addf %311, %346 : vector<1x32xf32>
    %c16_i32_102 = arith.constant 16 : i32
    %348 = vector.broadcast %c16_i32_102 : i32 to vector<1x32xi32>
    %349 = arith.cmpi sge, %15, %348 : vector<1x32xi32>
    %c18_i32 = arith.constant 18 : i32
    %350 = vector.broadcast %c18_i32 : i32 to vector<1x32xi32>
    %351 = arith.cmpi slt, %15, %350 : vector<1x32xi32>
    %352 = arith.andi %349, %351 : vector<1x32xi1>
    %353 = arith.extui %352 : vector<1x32xi1> to vector<1x32xi32>
    %354 = arith.sitofp %353 : vector<1x32xi32> to vector<1x32xf32>
    %355 = arith.mulf %54, %354 : vector<1x32xf32>
    %356 = vector.shape_cast %355 : vector<1x32xf32> to vector<1x1x32xf32>
    %cst_103 = arith.constant dense<0.000000e+00> : vector<1xf32>
    %357 = vector.multi_reduction <add>, %356, %cst_103 [1, 2] : vector<1x1x32xf32> to vector<1xf32>
    %358 = vector.shape_cast %357 : vector<1xf32> to vector<1x1x1xf32>
    %359 = vector.extract %358[0, 0, 0] : f32 from vector<1x1x1xf32>
    %360 = vector.broadcast %359 : f32 to vector<1x1xf32>
    %cst_104 = arith.constant 7.812500e-03 : f32
    %361 = vector.broadcast %cst_104 : f32 to vector<1x1xf32>
    %362 = arith.mulf %360, %361 : vector<1x1xf32>
    %363 = arith.mulf %57, %354 : vector<1x32xf32>
    %364 = vector.shape_cast %363 : vector<1x32xf32> to vector<1x1x32xf32>
    %cst_105 = arith.constant dense<0.000000e+00> : vector<1xf32>
    %365 = vector.multi_reduction <add>, %364, %cst_105 [1, 2] : vector<1x1x32xf32> to vector<1xf32>
    %366 = vector.shape_cast %365 : vector<1xf32> to vector<1x1x1xf32>
    %367 = vector.extract %366[0, 0, 0] : f32 from vector<1x1x1xf32>
    %368 = vector.broadcast %367 : f32 to vector<1x1xf32>
    %cst_106 = arith.constant 7.812500e-03 : f32
    %369 = vector.broadcast %cst_106 : f32 to vector<1x1xf32>
    %370 = arith.mulf %368, %369 : vector<1x1xf32>
    %371 = arith.mulf %362, %362 : vector<1x1xf32>
    %372 = arith.subf %370, %371 : vector<1x1xf32>
    %cst_107 = arith.constant 0.000000e+00 : f32
    %373 = vector.broadcast %cst_107 : f32 to vector<1x1xf32>
    %374 = arith.maximumf %372, %373 : vector<1x1xf32>
    %cst_108 = arith.constant 9.99999974E-6 : f32
    %375 = vector.broadcast %cst_108 : f32 to vector<1x1xf32>
    %376 = arith.addf %374, %375 : vector<1x1xf32>
    %377 = math.rsqrt %376 : vector<1x1xf32>
    %378 = vector.broadcast %362 : vector<1x1xf32> to vector<1x32xf32>
    %379 = arith.mulf %378, %354 : vector<1x32xf32>
    %380 = arith.addf %344, %379 : vector<1x32xf32>
    %381 = vector.broadcast %377 : vector<1x1xf32> to vector<1x32xf32>
    %382 = arith.mulf %381, %354 : vector<1x32xf32>
    %383 = arith.addf %347, %382 : vector<1x32xf32>
    %c18_i32_109 = arith.constant 18 : i32
    %384 = vector.broadcast %c18_i32_109 : i32 to vector<1x32xi32>
    %385 = arith.cmpi sge, %15, %384 : vector<1x32xi32>
    %c20_i32 = arith.constant 20 : i32
    %386 = vector.broadcast %c20_i32 : i32 to vector<1x32xi32>
    %387 = arith.cmpi slt, %15, %386 : vector<1x32xi32>
    %388 = arith.andi %385, %387 : vector<1x32xi1>
    %389 = arith.extui %388 : vector<1x32xi1> to vector<1x32xi32>
    %390 = arith.sitofp %389 : vector<1x32xi32> to vector<1x32xf32>
    %391 = arith.mulf %54, %390 : vector<1x32xf32>
    %392 = vector.shape_cast %391 : vector<1x32xf32> to vector<1x1x32xf32>
    %cst_110 = arith.constant dense<0.000000e+00> : vector<1xf32>
    %393 = vector.multi_reduction <add>, %392, %cst_110 [1, 2] : vector<1x1x32xf32> to vector<1xf32>
    %394 = vector.shape_cast %393 : vector<1xf32> to vector<1x1x1xf32>
    %395 = vector.extract %394[0, 0, 0] : f32 from vector<1x1x1xf32>
    %396 = vector.broadcast %395 : f32 to vector<1x1xf32>
    %cst_111 = arith.constant 7.812500e-03 : f32
    %397 = vector.broadcast %cst_111 : f32 to vector<1x1xf32>
    %398 = arith.mulf %396, %397 : vector<1x1xf32>
    %399 = arith.mulf %57, %390 : vector<1x32xf32>
    %400 = vector.shape_cast %399 : vector<1x32xf32> to vector<1x1x32xf32>
    %cst_112 = arith.constant dense<0.000000e+00> : vector<1xf32>
    %401 = vector.multi_reduction <add>, %400, %cst_112 [1, 2] : vector<1x1x32xf32> to vector<1xf32>
    %402 = vector.shape_cast %401 : vector<1xf32> to vector<1x1x1xf32>
    %403 = vector.extract %402[0, 0, 0] : f32 from vector<1x1x1xf32>
    %404 = vector.broadcast %403 : f32 to vector<1x1xf32>
    %cst_113 = arith.constant 7.812500e-03 : f32
    %405 = vector.broadcast %cst_113 : f32 to vector<1x1xf32>
    %406 = arith.mulf %404, %405 : vector<1x1xf32>
    %407 = arith.mulf %398, %398 : vector<1x1xf32>
    %408 = arith.subf %406, %407 : vector<1x1xf32>
    %cst_114 = arith.constant 0.000000e+00 : f32
    %409 = vector.broadcast %cst_114 : f32 to vector<1x1xf32>
    %410 = arith.maximumf %408, %409 : vector<1x1xf32>
    %cst_115 = arith.constant 9.99999974E-6 : f32
    %411 = vector.broadcast %cst_115 : f32 to vector<1x1xf32>
    %412 = arith.addf %410, %411 : vector<1x1xf32>
    %413 = math.rsqrt %412 : vector<1x1xf32>
    %414 = vector.broadcast %398 : vector<1x1xf32> to vector<1x32xf32>
    %415 = arith.mulf %414, %390 : vector<1x32xf32>
    %416 = arith.addf %380, %415 : vector<1x32xf32>
    %417 = vector.broadcast %413 : vector<1x1xf32> to vector<1x32xf32>
    %418 = arith.mulf %417, %390 : vector<1x32xf32>
    %419 = arith.addf %383, %418 : vector<1x32xf32>
    %c20_i32_116 = arith.constant 20 : i32
    %420 = vector.broadcast %c20_i32_116 : i32 to vector<1x32xi32>
    %421 = arith.cmpi sge, %15, %420 : vector<1x32xi32>
    %c22_i32 = arith.constant 22 : i32
    %422 = vector.broadcast %c22_i32 : i32 to vector<1x32xi32>
    %423 = arith.cmpi slt, %15, %422 : vector<1x32xi32>
    %424 = arith.andi %421, %423 : vector<1x32xi1>
    %425 = arith.extui %424 : vector<1x32xi1> to vector<1x32xi32>
    %426 = arith.sitofp %425 : vector<1x32xi32> to vector<1x32xf32>
    %427 = arith.mulf %54, %426 : vector<1x32xf32>
    %428 = vector.shape_cast %427 : vector<1x32xf32> to vector<1x1x32xf32>
    %cst_117 = arith.constant dense<0.000000e+00> : vector<1xf32>
    %429 = vector.multi_reduction <add>, %428, %cst_117 [1, 2] : vector<1x1x32xf32> to vector<1xf32>
    %430 = vector.shape_cast %429 : vector<1xf32> to vector<1x1x1xf32>
    %431 = vector.extract %430[0, 0, 0] : f32 from vector<1x1x1xf32>
    %432 = vector.broadcast %431 : f32 to vector<1x1xf32>
    %cst_118 = arith.constant 7.812500e-03 : f32
    %433 = vector.broadcast %cst_118 : f32 to vector<1x1xf32>
    %434 = arith.mulf %432, %433 : vector<1x1xf32>
    %435 = arith.mulf %57, %426 : vector<1x32xf32>
    %436 = vector.shape_cast %435 : vector<1x32xf32> to vector<1x1x32xf32>
    %cst_119 = arith.constant dense<0.000000e+00> : vector<1xf32>
    %437 = vector.multi_reduction <add>, %436, %cst_119 [1, 2] : vector<1x1x32xf32> to vector<1xf32>
    %438 = vector.shape_cast %437 : vector<1xf32> to vector<1x1x1xf32>
    %439 = vector.extract %438[0, 0, 0] : f32 from vector<1x1x1xf32>
    %440 = vector.broadcast %439 : f32 to vector<1x1xf32>
    %cst_120 = arith.constant 7.812500e-03 : f32
    %441 = vector.broadcast %cst_120 : f32 to vector<1x1xf32>
    %442 = arith.mulf %440, %441 : vector<1x1xf32>
    %443 = arith.mulf %434, %434 : vector<1x1xf32>
    %444 = arith.subf %442, %443 : vector<1x1xf32>
    %cst_121 = arith.constant 0.000000e+00 : f32
    %445 = vector.broadcast %cst_121 : f32 to vector<1x1xf32>
    %446 = arith.maximumf %444, %445 : vector<1x1xf32>
    %cst_122 = arith.constant 9.99999974E-6 : f32
    %447 = vector.broadcast %cst_122 : f32 to vector<1x1xf32>
    %448 = arith.addf %446, %447 : vector<1x1xf32>
    %449 = math.rsqrt %448 : vector<1x1xf32>
    %450 = vector.broadcast %434 : vector<1x1xf32> to vector<1x32xf32>
    %451 = arith.mulf %450, %426 : vector<1x32xf32>
    %452 = arith.addf %416, %451 : vector<1x32xf32>
    %453 = vector.broadcast %449 : vector<1x1xf32> to vector<1x32xf32>
    %454 = arith.mulf %453, %426 : vector<1x32xf32>
    %455 = arith.addf %419, %454 : vector<1x32xf32>
    %c22_i32_123 = arith.constant 22 : i32
    %456 = vector.broadcast %c22_i32_123 : i32 to vector<1x32xi32>
    %457 = arith.cmpi sge, %15, %456 : vector<1x32xi32>
    %c24_i32 = arith.constant 24 : i32
    %458 = vector.broadcast %c24_i32 : i32 to vector<1x32xi32>
    %459 = arith.cmpi slt, %15, %458 : vector<1x32xi32>
    %460 = arith.andi %457, %459 : vector<1x32xi1>
    %461 = arith.extui %460 : vector<1x32xi1> to vector<1x32xi32>
    %462 = arith.sitofp %461 : vector<1x32xi32> to vector<1x32xf32>
    %463 = arith.mulf %54, %462 : vector<1x32xf32>
    %464 = vector.shape_cast %463 : vector<1x32xf32> to vector<1x1x32xf32>
    %cst_124 = arith.constant dense<0.000000e+00> : vector<1xf32>
    %465 = vector.multi_reduction <add>, %464, %cst_124 [1, 2] : vector<1x1x32xf32> to vector<1xf32>
    %466 = vector.shape_cast %465 : vector<1xf32> to vector<1x1x1xf32>
    %467 = vector.extract %466[0, 0, 0] : f32 from vector<1x1x1xf32>
    %468 = vector.broadcast %467 : f32 to vector<1x1xf32>
    %cst_125 = arith.constant 7.812500e-03 : f32
    %469 = vector.broadcast %cst_125 : f32 to vector<1x1xf32>
    %470 = arith.mulf %468, %469 : vector<1x1xf32>
    %471 = arith.mulf %57, %462 : vector<1x32xf32>
    %472 = vector.shape_cast %471 : vector<1x32xf32> to vector<1x1x32xf32>
    %cst_126 = arith.constant dense<0.000000e+00> : vector<1xf32>
    %473 = vector.multi_reduction <add>, %472, %cst_126 [1, 2] : vector<1x1x32xf32> to vector<1xf32>
    %474 = vector.shape_cast %473 : vector<1xf32> to vector<1x1x1xf32>
    %475 = vector.extract %474[0, 0, 0] : f32 from vector<1x1x1xf32>
    %476 = vector.broadcast %475 : f32 to vector<1x1xf32>
    %cst_127 = arith.constant 7.812500e-03 : f32
    %477 = vector.broadcast %cst_127 : f32 to vector<1x1xf32>
    %478 = arith.mulf %476, %477 : vector<1x1xf32>
    %479 = arith.mulf %470, %470 : vector<1x1xf32>
    %480 = arith.subf %478, %479 : vector<1x1xf32>
    %cst_128 = arith.constant 0.000000e+00 : f32
    %481 = vector.broadcast %cst_128 : f32 to vector<1x1xf32>
    %482 = arith.maximumf %480, %481 : vector<1x1xf32>
    %cst_129 = arith.constant 9.99999974E-6 : f32
    %483 = vector.broadcast %cst_129 : f32 to vector<1x1xf32>
    %484 = arith.addf %482, %483 : vector<1x1xf32>
    %485 = math.rsqrt %484 : vector<1x1xf32>
    %486 = vector.broadcast %470 : vector<1x1xf32> to vector<1x32xf32>
    %487 = arith.mulf %486, %462 : vector<1x32xf32>
    %488 = arith.addf %452, %487 : vector<1x32xf32>
    %489 = vector.broadcast %485 : vector<1x1xf32> to vector<1x32xf32>
    %490 = arith.mulf %489, %462 : vector<1x32xf32>
    %491 = arith.addf %455, %490 : vector<1x32xf32>
    %c24_i32_130 = arith.constant 24 : i32
    %492 = vector.broadcast %c24_i32_130 : i32 to vector<1x32xi32>
    %493 = arith.cmpi sge, %15, %492 : vector<1x32xi32>
    %c26_i32 = arith.constant 26 : i32
    %494 = vector.broadcast %c26_i32 : i32 to vector<1x32xi32>
    %495 = arith.cmpi slt, %15, %494 : vector<1x32xi32>
    %496 = arith.andi %493, %495 : vector<1x32xi1>
    %497 = arith.extui %496 : vector<1x32xi1> to vector<1x32xi32>
    %498 = arith.sitofp %497 : vector<1x32xi32> to vector<1x32xf32>
    %499 = arith.mulf %54, %498 : vector<1x32xf32>
    %500 = vector.shape_cast %499 : vector<1x32xf32> to vector<1x1x32xf32>
    %cst_131 = arith.constant dense<0.000000e+00> : vector<1xf32>
    %501 = vector.multi_reduction <add>, %500, %cst_131 [1, 2] : vector<1x1x32xf32> to vector<1xf32>
    %502 = vector.shape_cast %501 : vector<1xf32> to vector<1x1x1xf32>
    %503 = vector.extract %502[0, 0, 0] : f32 from vector<1x1x1xf32>
    %504 = vector.broadcast %503 : f32 to vector<1x1xf32>
    %cst_132 = arith.constant 7.812500e-03 : f32
    %505 = vector.broadcast %cst_132 : f32 to vector<1x1xf32>
    %506 = arith.mulf %504, %505 : vector<1x1xf32>
    %507 = arith.mulf %57, %498 : vector<1x32xf32>
    %508 = vector.shape_cast %507 : vector<1x32xf32> to vector<1x1x32xf32>
    %cst_133 = arith.constant dense<0.000000e+00> : vector<1xf32>
    %509 = vector.multi_reduction <add>, %508, %cst_133 [1, 2] : vector<1x1x32xf32> to vector<1xf32>
    %510 = vector.shape_cast %509 : vector<1xf32> to vector<1x1x1xf32>
    %511 = vector.extract %510[0, 0, 0] : f32 from vector<1x1x1xf32>
    %512 = vector.broadcast %511 : f32 to vector<1x1xf32>
    %cst_134 = arith.constant 7.812500e-03 : f32
    %513 = vector.broadcast %cst_134 : f32 to vector<1x1xf32>
    %514 = arith.mulf %512, %513 : vector<1x1xf32>
    %515 = arith.mulf %506, %506 : vector<1x1xf32>
    %516 = arith.subf %514, %515 : vector<1x1xf32>
    %cst_135 = arith.constant 0.000000e+00 : f32
    %517 = vector.broadcast %cst_135 : f32 to vector<1x1xf32>
    %518 = arith.maximumf %516, %517 : vector<1x1xf32>
    %cst_136 = arith.constant 9.99999974E-6 : f32
    %519 = vector.broadcast %cst_136 : f32 to vector<1x1xf32>
    %520 = arith.addf %518, %519 : vector<1x1xf32>
    %521 = math.rsqrt %520 : vector<1x1xf32>
    %522 = vector.broadcast %506 : vector<1x1xf32> to vector<1x32xf32>
    %523 = arith.mulf %522, %498 : vector<1x32xf32>
    %524 = arith.addf %488, %523 : vector<1x32xf32>
    %525 = vector.broadcast %521 : vector<1x1xf32> to vector<1x32xf32>
    %526 = arith.mulf %525, %498 : vector<1x32xf32>
    %527 = arith.addf %491, %526 : vector<1x32xf32>
    %c26_i32_137 = arith.constant 26 : i32
    %528 = vector.broadcast %c26_i32_137 : i32 to vector<1x32xi32>
    %529 = arith.cmpi sge, %15, %528 : vector<1x32xi32>
    %c28_i32 = arith.constant 28 : i32
    %530 = vector.broadcast %c28_i32 : i32 to vector<1x32xi32>
    %531 = arith.cmpi slt, %15, %530 : vector<1x32xi32>
    %532 = arith.andi %529, %531 : vector<1x32xi1>
    %533 = arith.extui %532 : vector<1x32xi1> to vector<1x32xi32>
    %534 = arith.sitofp %533 : vector<1x32xi32> to vector<1x32xf32>
    %535 = arith.mulf %54, %534 : vector<1x32xf32>
    %536 = vector.shape_cast %535 : vector<1x32xf32> to vector<1x1x32xf32>
    %cst_138 = arith.constant dense<0.000000e+00> : vector<1xf32>
    %537 = vector.multi_reduction <add>, %536, %cst_138 [1, 2] : vector<1x1x32xf32> to vector<1xf32>
    %538 = vector.shape_cast %537 : vector<1xf32> to vector<1x1x1xf32>
    %539 = vector.extract %538[0, 0, 0] : f32 from vector<1x1x1xf32>
    %540 = vector.broadcast %539 : f32 to vector<1x1xf32>
    %cst_139 = arith.constant 7.812500e-03 : f32
    %541 = vector.broadcast %cst_139 : f32 to vector<1x1xf32>
    %542 = arith.mulf %540, %541 : vector<1x1xf32>
    %543 = arith.mulf %57, %534 : vector<1x32xf32>
    %544 = vector.shape_cast %543 : vector<1x32xf32> to vector<1x1x32xf32>
    %cst_140 = arith.constant dense<0.000000e+00> : vector<1xf32>
    %545 = vector.multi_reduction <add>, %544, %cst_140 [1, 2] : vector<1x1x32xf32> to vector<1xf32>
    %546 = vector.shape_cast %545 : vector<1xf32> to vector<1x1x1xf32>
    %547 = vector.extract %546[0, 0, 0] : f32 from vector<1x1x1xf32>
    %548 = vector.broadcast %547 : f32 to vector<1x1xf32>
    %cst_141 = arith.constant 7.812500e-03 : f32
    %549 = vector.broadcast %cst_141 : f32 to vector<1x1xf32>
    %550 = arith.mulf %548, %549 : vector<1x1xf32>
    %551 = arith.mulf %542, %542 : vector<1x1xf32>
    %552 = arith.subf %550, %551 : vector<1x1xf32>
    %cst_142 = arith.constant 0.000000e+00 : f32
    %553 = vector.broadcast %cst_142 : f32 to vector<1x1xf32>
    %554 = arith.maximumf %552, %553 : vector<1x1xf32>
    %cst_143 = arith.constant 9.99999974E-6 : f32
    %555 = vector.broadcast %cst_143 : f32 to vector<1x1xf32>
    %556 = arith.addf %554, %555 : vector<1x1xf32>
    %557 = math.rsqrt %556 : vector<1x1xf32>
    %558 = vector.broadcast %542 : vector<1x1xf32> to vector<1x32xf32>
    %559 = arith.mulf %558, %534 : vector<1x32xf32>
    %560 = arith.addf %524, %559 : vector<1x32xf32>
    %561 = vector.broadcast %557 : vector<1x1xf32> to vector<1x32xf32>
    %562 = arith.mulf %561, %534 : vector<1x32xf32>
    %563 = arith.addf %527, %562 : vector<1x32xf32>
    %c28_i32_144 = arith.constant 28 : i32
    %564 = vector.broadcast %c28_i32_144 : i32 to vector<1x32xi32>
    %565 = arith.cmpi sge, %15, %564 : vector<1x32xi32>
    %c30_i32 = arith.constant 30 : i32
    %566 = vector.broadcast %c30_i32 : i32 to vector<1x32xi32>
    %567 = arith.cmpi slt, %15, %566 : vector<1x32xi32>
    %568 = arith.andi %565, %567 : vector<1x32xi1>
    %569 = arith.extui %568 : vector<1x32xi1> to vector<1x32xi32>
    %570 = arith.sitofp %569 : vector<1x32xi32> to vector<1x32xf32>
    %571 = arith.mulf %54, %570 : vector<1x32xf32>
    %572 = vector.shape_cast %571 : vector<1x32xf32> to vector<1x1x32xf32>
    %cst_145 = arith.constant dense<0.000000e+00> : vector<1xf32>
    %573 = vector.multi_reduction <add>, %572, %cst_145 [1, 2] : vector<1x1x32xf32> to vector<1xf32>
    %574 = vector.shape_cast %573 : vector<1xf32> to vector<1x1x1xf32>
    %575 = vector.extract %574[0, 0, 0] : f32 from vector<1x1x1xf32>
    %576 = vector.broadcast %575 : f32 to vector<1x1xf32>
    %cst_146 = arith.constant 7.812500e-03 : f32
    %577 = vector.broadcast %cst_146 : f32 to vector<1x1xf32>
    %578 = arith.mulf %576, %577 : vector<1x1xf32>
    %579 = arith.mulf %57, %570 : vector<1x32xf32>
    %580 = vector.shape_cast %579 : vector<1x32xf32> to vector<1x1x32xf32>
    %cst_147 = arith.constant dense<0.000000e+00> : vector<1xf32>
    %581 = vector.multi_reduction <add>, %580, %cst_147 [1, 2] : vector<1x1x32xf32> to vector<1xf32>
    %582 = vector.shape_cast %581 : vector<1xf32> to vector<1x1x1xf32>
    %583 = vector.extract %582[0, 0, 0] : f32 from vector<1x1x1xf32>
    %584 = vector.broadcast %583 : f32 to vector<1x1xf32>
    %cst_148 = arith.constant 7.812500e-03 : f32
    %585 = vector.broadcast %cst_148 : f32 to vector<1x1xf32>
    %586 = arith.mulf %584, %585 : vector<1x1xf32>
    %587 = arith.mulf %578, %578 : vector<1x1xf32>
    %588 = arith.subf %586, %587 : vector<1x1xf32>
    %cst_149 = arith.constant 0.000000e+00 : f32
    %589 = vector.broadcast %cst_149 : f32 to vector<1x1xf32>
    %590 = arith.maximumf %588, %589 : vector<1x1xf32>
    %cst_150 = arith.constant 9.99999974E-6 : f32
    %591 = vector.broadcast %cst_150 : f32 to vector<1x1xf32>
    %592 = arith.addf %590, %591 : vector<1x1xf32>
    %593 = math.rsqrt %592 : vector<1x1xf32>
    %594 = vector.broadcast %578 : vector<1x1xf32> to vector<1x32xf32>
    %595 = arith.mulf %594, %570 : vector<1x32xf32>
    %596 = arith.addf %560, %595 : vector<1x32xf32>
    %597 = vector.broadcast %593 : vector<1x1xf32> to vector<1x32xf32>
    %598 = arith.mulf %597, %570 : vector<1x32xf32>
    %599 = arith.addf %563, %598 : vector<1x32xf32>
    %c30_i32_151 = arith.constant 30 : i32
    %600 = vector.broadcast %c30_i32_151 : i32 to vector<1x32xi32>
    %601 = arith.cmpi sge, %15, %600 : vector<1x32xi32>
    %c32_i32 = arith.constant 32 : i32
    %602 = vector.broadcast %c32_i32 : i32 to vector<1x32xi32>
    %603 = arith.cmpi slt, %15, %602 : vector<1x32xi32>
    %604 = arith.andi %601, %603 : vector<1x32xi1>
    %605 = arith.extui %604 : vector<1x32xi1> to vector<1x32xi32>
    %606 = arith.sitofp %605 : vector<1x32xi32> to vector<1x32xf32>
    %607 = arith.mulf %54, %606 : vector<1x32xf32>
    %608 = vector.shape_cast %607 : vector<1x32xf32> to vector<1x1x32xf32>
    %cst_152 = arith.constant dense<0.000000e+00> : vector<1xf32>
    %609 = vector.multi_reduction <add>, %608, %cst_152 [1, 2] : vector<1x1x32xf32> to vector<1xf32>
    %610 = vector.shape_cast %609 : vector<1xf32> to vector<1x1x1xf32>
    %611 = vector.extract %610[0, 0, 0] : f32 from vector<1x1x1xf32>
    %612 = vector.broadcast %611 : f32 to vector<1x1xf32>
    %cst_153 = arith.constant 7.812500e-03 : f32
    %613 = vector.broadcast %cst_153 : f32 to vector<1x1xf32>
    %614 = arith.mulf %612, %613 : vector<1x1xf32>
    %615 = arith.mulf %57, %606 : vector<1x32xf32>
    %616 = vector.shape_cast %615 : vector<1x32xf32> to vector<1x1x32xf32>
    %cst_154 = arith.constant dense<0.000000e+00> : vector<1xf32>
    %617 = vector.multi_reduction <add>, %616, %cst_154 [1, 2] : vector<1x1x32xf32> to vector<1xf32>
    %618 = vector.shape_cast %617 : vector<1xf32> to vector<1x1x1xf32>
    %619 = vector.extract %618[0, 0, 0] : f32 from vector<1x1x1xf32>
    %620 = vector.broadcast %619 : f32 to vector<1x1xf32>
    %cst_155 = arith.constant 7.812500e-03 : f32
    %621 = vector.broadcast %cst_155 : f32 to vector<1x1xf32>
    %622 = arith.mulf %620, %621 : vector<1x1xf32>
    %623 = arith.mulf %614, %614 : vector<1x1xf32>
    %624 = arith.subf %622, %623 : vector<1x1xf32>
    %cst_156 = arith.constant 0.000000e+00 : f32
    %625 = vector.broadcast %cst_156 : f32 to vector<1x1xf32>
    %626 = arith.maximumf %624, %625 : vector<1x1xf32>
    %cst_157 = arith.constant 9.99999974E-6 : f32
    %627 = vector.broadcast %cst_157 : f32 to vector<1x1xf32>
    %628 = arith.addf %626, %627 : vector<1x1xf32>
    %629 = math.rsqrt %628 : vector<1x1xf32>
    %630 = vector.broadcast %614 : vector<1x1xf32> to vector<1x32xf32>
    %631 = arith.mulf %630, %606 : vector<1x32xf32>
    %632 = arith.addf %596, %631 : vector<1x32xf32>
    %633 = vector.broadcast %629 : vector<1x1xf32> to vector<1x32xf32>
    %634 = arith.mulf %633, %606 : vector<1x32xf32>
    %635 = arith.addf %599, %634 : vector<1x32xf32>
    %636 = vector.broadcast %632 : vector<1x32xf32> to vector<80x32xf32>
    %637 = arith.subf %48, %636 : vector<80x32xf32>
    %638 = arith.mulf %635, %49 : vector<1x32xf32>
    %639 = vector.broadcast %638 : vector<1x32xf32> to vector<80x32xf32>
    %640 = arith.mulf %637, %639 : vector<80x32xf32>
    %641 = vector.broadcast %50 : vector<1x32xf32> to vector<80x32xf32>
    %642 = arith.addf %640, %641 : vector<80x32xf32>
    %cst_158 = arith.constant 0.000000e+00 : f32
    %643 = vector.broadcast %cst_158 : f32 to vector<80x32xf32>
    %644 = arith.cmpf ogt, %642, %643 : vector<80x32xf32>
    %645 = math.exp %642 : vector<80x32xf32>
    %cst_159 = arith.constant 1.000000e+00 : f32
    %646 = vector.broadcast %cst_159 : f32 to vector<80x32xf32>
    %647 = arith.subf %645, %646 : vector<80x32xf32>
    %648 = arith.select %644, %642, %647 : vector<80x32xi1>, vector<80x32xf32>
    %cst_160 = arith.constant 0.000000e+00 : bf16
    %649 = vector.broadcast %cst_160 : bf16 to vector<112x32xbf16>
    %c0_161 = arith.constant 0 : index
    %c0_162 = arith.constant 0 : index
    %650 = vector.load %arg17[%c0_161, %c0_162] : memref<112x32xbf16, #tpu.memory_space<vmem>>, vector<112x32xbf16>
    tpu.vector_store %arg17[%c0_161, %c0_162], %649 {strides = array<i32>} : memref<112x32xbf16, #tpu.memory_space<vmem>>, vector<112x32xbf16>,
    %651 = vector.broadcast %14 : vector<80x1xf32> to vector<80x32xf32>
    %652 = arith.mulf %648, %651 : vector<80x32xf32>
    %653 = arith.truncf %652 : vector<80x32xf32> to vector<80x32xbf16>
    %c16_163 = arith.constant 16 : index
    %c0_164 = arith.constant 0 : index
    %654 = vector.load %arg17[%c16_163, %c0_164] : memref<112x32xbf16, #tpu.memory_space<vmem>>, vector<80x32xbf16>
    tpu.vector_store %arg17[%c16_163, %c0_164], %653 {strides = array<i32>} : memref<112x32xbf16, #tpu.memory_space<vmem>>, vector<80x32xbf16>,
    %c5 = arith.constant 5 : index
    %c0_165 = arith.constant 0 : index
    %655 = vector.load %arg17[%c5, %c0_165] : memref<112x32xbf16, #tpu.memory_space<vmem>>, vector<80x32xbf16>
    %c0_166 = arith.constant 0 : index
    %c0_167 = arith.constant 0 : index
    %656 = vector.load %arg16[%c0_166, %c0_167] : memref<80x288xbf16, #tpu.memory_space<vmem>>, vector<80x32xbf16>
    tpu.vector_store %arg16[%c0_166, %c0_167], %655 {strides = array<i32>} : memref<80x288xbf16, #tpu.memory_space<vmem>>, vector<80x32xbf16>,
    %c6 = arith.constant 6 : index
    %c0_168 = arith.constant 0 : index
    %657 = vector.load %arg17[%c6, %c0_168] : memref<112x32xbf16, #tpu.memory_space<vmem>>, vector<80x32xbf16>
    %c0_169 = arith.constant 0 : index
    %c32_170 = arith.constant 32 : index
    %658 = vector.load %arg16[%c0_169, %c32_170] : memref<80x288xbf16, #tpu.memory_space<vmem>>, vector<80x32xbf16>
    tpu.vector_store %arg16[%c0_169, %c32_170], %657 {strides = array<i32>} : memref<80x288xbf16, #tpu.memory_space<vmem>>, vector<80x32xbf16>,
    %c7 = arith.constant 7 : index
    %c0_171 = arith.constant 0 : index
    %659 = vector.load %arg17[%c7, %c0_171] : memref<112x32xbf16, #tpu.memory_space<vmem>>, vector<80x32xbf16>
    %c0_172 = arith.constant 0 : index
    %c64_173 = arith.constant 64 : index
    %660 = vector.load %arg16[%c0_172, %c64_173] : memref<80x288xbf16, #tpu.memory_space<vmem>>, vector<80x32xbf16>
    tpu.vector_store %arg16[%c0_172, %c64_173], %659 {strides = array<i32>} : memref<80x288xbf16, #tpu.memory_space<vmem>>, vector<80x32xbf16>,
    %c15 = arith.constant 15 : index
    %c0_174 = arith.constant 0 : index
    %661 = vector.load %arg17[%c15, %c0_174] : memref<112x32xbf16, #tpu.memory_space<vmem>>, vector<80x32xbf16>
    %c0_175 = arith.constant 0 : index
    %c96_176 = arith.constant 96 : index
    %662 = vector.load %arg16[%c0_175, %c96_176] : memref<80x288xbf16, #tpu.memory_space<vmem>>, vector<80x32xbf16>
    tpu.vector_store %arg16[%c0_175, %c96_176], %661 {strides = array<i32>} : memref<80x288xbf16, #tpu.memory_space<vmem>>, vector<80x32xbf16>,
    %c16_177 = arith.constant 16 : index
    %c0_178 = arith.constant 0 : index
    %663 = vector.load %arg17[%c16_177, %c0_178] : memref<112x32xbf16, #tpu.memory_space<vmem>>, vector<80x32xbf16>
    %c0_179 = arith.constant 0 : index
    %c128_180 = arith.constant 128 : index
    %664 = vector.load %arg16[%c0_179, %c128_180] : memref<80x288xbf16, #tpu.memory_space<vmem>>, vector<80x32xbf16>
    tpu.vector_store %arg16[%c0_179, %c128_180], %663 {strides = array<i32>} : memref<80x288xbf16, #tpu.memory_space<vmem>>, vector<80x32xbf16>,
    %c17 = arith.constant 17 : index
    %c0_181 = arith.constant 0 : index
    %665 = vector.load %arg17[%c17, %c0_181] : memref<112x32xbf16, #tpu.memory_space<vmem>>, vector<80x32xbf16>
    %c0_182 = arith.constant 0 : index
    %c160 = arith.constant 160 : index
    %666 = vector.load %arg16[%c0_182, %c160] : memref<80x288xbf16, #tpu.memory_space<vmem>>, vector<80x32xbf16>
    tpu.vector_store %arg16[%c0_182, %c160], %665 {strides = array<i32>} : memref<80x288xbf16, #tpu.memory_space<vmem>>, vector<80x32xbf16>,
    %c25 = arith.constant 25 : index
    %c0_183 = arith.constant 0 : index
    %667 = vector.load %arg17[%c25, %c0_183] : memref<112x32xbf16, #tpu.memory_space<vmem>>, vector<80x32xbf16>
    %c0_184 = arith.constant 0 : index
    %c192_185 = arith.constant 192 : index
    %668 = vector.load %arg16[%c0_184, %c192_185] : memref<80x288xbf16, #tpu.memory_space<vmem>>, vector<80x32xbf16>
    tpu.vector_store %arg16[%c0_184, %c192_185], %667 {strides = array<i32>} : memref<80x288xbf16, #tpu.memory_space<vmem>>, vector<80x32xbf16>,
    %c26 = arith.constant 26 : index
    %c0_186 = arith.constant 0 : index
    %669 = vector.load %arg17[%c26, %c0_186] : memref<112x32xbf16, #tpu.memory_space<vmem>>, vector<80x32xbf16>
    %c0_187 = arith.constant 0 : index
    %c224 = arith.constant 224 : index
    %670 = vector.load %arg16[%c0_187, %c224] : memref<80x288xbf16, #tpu.memory_space<vmem>>, vector<80x32xbf16>
    tpu.vector_store %arg16[%c0_187, %c224], %669 {strides = array<i32>} : memref<80x288xbf16, #tpu.memory_space<vmem>>, vector<80x32xbf16>,
    %c27 = arith.constant 27 : index
    %c0_188 = arith.constant 0 : index
    %671 = vector.load %arg17[%c27, %c0_188] : memref<112x32xbf16, #tpu.memory_space<vmem>>, vector<80x32xbf16>
    %c0_189 = arith.constant 0 : index
    %c256 = arith.constant 256 : index
    %672 = vector.load %arg16[%c0_189, %c256] : memref<80x288xbf16, #tpu.memory_space<vmem>>, vector<80x32xbf16>
    tpu.vector_store %arg16[%c0_189, %c256], %671 {strides = array<i32>} : memref<80x288xbf16, #tpu.memory_space<vmem>>, vector<80x32xbf16>,
    %c0_190 = arith.constant 0 : index
    %c0_191 = arith.constant 0 : index
    %673 = vector.load %arg16[%c0_190, %c0_191] : memref<80x288xbf16, #tpu.memory_space<vmem>>, vector<80x288xbf16>
    %c0_192 = arith.constant 0 : index
    %c0_193 = arith.constant 0 : index
    %674 = vector.load %arg7[%c0_192, %c0_193] : memref<288x32xbf16, #tpu.memory_space<vmem>>, vector<288x32xbf16>
    %cst_194 = arith.constant dense<0.000000e+00> : vector<80x32xf32>
    %675 = tpu.matmul %673, %674, %cst_194 {dimension_numbers = #tpu.dot_dimension_numbers<[1], [0], [0], [1], [0, 0, 1, 1], [], []>} : vector<80x288xbf16>, vector<288x32xbf16>, vector<80x32xf32> -> vector<80x32xf32>
    %c0_195 = arith.constant 0 : index
    %c0_196 = arith.constant 0 : index
    %676 = vector.load %arg8[%c0_195, %c0_196] : memref<1x32xf32, #tpu.memory_space<vmem>>, vector<1x32xf32>
    %677 = vector.broadcast %676 : vector<1x32xf32> to vector<80x32xf32>
    %678 = arith.addf %675, %677 : vector<80x32xf32>
    %c0_197 = arith.constant 0 : index
    %c0_198 = arith.constant 0 : index
    %679 = vector.load %arg9[%c0_197, %c0_198] : memref<1x32xf32, #tpu.memory_space<vmem>>, vector<1x32xf32>
    %c0_199 = arith.constant 0 : index
    %c0_200 = arith.constant 0 : index
    %680 = vector.load %arg10[%c0_199, %c0_200] : memref<1x32xf32, #tpu.memory_space<vmem>>, vector<1x32xf32>
    %681 = vector.broadcast %14 : vector<80x1xf32> to vector<80x32xf32>
    %682 = arith.mulf %678, %681 : vector<80x32xf32>
    %cst_201 = arith.constant dense<0.000000e+00> : vector<32xf32>
    %683 = vector.multi_reduction <add>, %682, %cst_201 [0] : vector<80x32xf32> to vector<32xf32>
    %684 = vector.shape_cast %683 : vector<32xf32> to vector<1x32xf32>
    %685 = arith.mulf %682, %678 : vector<80x32xf32>
    %cst_202 = arith.constant dense<0.000000e+00> : vector<32xf32>
    %686 = vector.multi_reduction <add>, %685, %cst_202 [0] : vector<80x32xf32> to vector<32xf32>
    %687 = vector.shape_cast %686 : vector<32xf32> to vector<1x32xf32>
    %cst_203 = arith.constant 0.000000e+00 : f32
    %688 = vector.broadcast %cst_203 : f32 to vector<1x32xf32>
    %cst_204 = arith.constant 0.000000e+00 : f32
    %689 = vector.broadcast %cst_204 : f32 to vector<1x32xf32>
    %c0_i32_205 = arith.constant 0 : i32
    %690 = vector.broadcast %c0_i32_205 : i32 to vector<1x32xi32>
    %691 = arith.cmpi sge, %15, %690 : vector<1x32xi32>
    %c2_i32_206 = arith.constant 2 : i32
    %692 = vector.broadcast %c2_i32_206 : i32 to vector<1x32xi32>
    %693 = arith.cmpi slt, %15, %692 : vector<1x32xi32>
    %694 = arith.andi %691, %693 : vector<1x32xi1>
    %695 = arith.extui %694 : vector<1x32xi1> to vector<1x32xi32>
    %696 = arith.sitofp %695 : vector<1x32xi32> to vector<1x32xf32>
    %697 = arith.mulf %684, %696 : vector<1x32xf32>
    %698 = vector.shape_cast %697 : vector<1x32xf32> to vector<1x1x32xf32>
    %cst_207 = arith.constant dense<0.000000e+00> : vector<1xf32>
    %699 = vector.multi_reduction <add>, %698, %cst_207 [1, 2] : vector<1x1x32xf32> to vector<1xf32>
    %700 = vector.shape_cast %699 : vector<1xf32> to vector<1x1x1xf32>
    %701 = vector.extract %700[0, 0, 0] : f32 from vector<1x1x1xf32>
    %702 = vector.broadcast %701 : f32 to vector<1x1xf32>
    %cst_208 = arith.constant 7.812500e-03 : f32
    %703 = vector.broadcast %cst_208 : f32 to vector<1x1xf32>
    %704 = arith.mulf %702, %703 : vector<1x1xf32>
    %705 = arith.mulf %687, %696 : vector<1x32xf32>
    %706 = vector.shape_cast %705 : vector<1x32xf32> to vector<1x1x32xf32>
    %cst_209 = arith.constant dense<0.000000e+00> : vector<1xf32>
    %707 = vector.multi_reduction <add>, %706, %cst_209 [1, 2] : vector<1x1x32xf32> to vector<1xf32>
    %708 = vector.shape_cast %707 : vector<1xf32> to vector<1x1x1xf32>
    %709 = vector.extract %708[0, 0, 0] : f32 from vector<1x1x1xf32>
    %710 = vector.broadcast %709 : f32 to vector<1x1xf32>
    %cst_210 = arith.constant 7.812500e-03 : f32
    %711 = vector.broadcast %cst_210 : f32 to vector<1x1xf32>
    %712 = arith.mulf %710, %711 : vector<1x1xf32>
    %713 = arith.mulf %704, %704 : vector<1x1xf32>
    %714 = arith.subf %712, %713 : vector<1x1xf32>
    %cst_211 = arith.constant 0.000000e+00 : f32
    %715 = vector.broadcast %cst_211 : f32 to vector<1x1xf32>
    %716 = arith.maximumf %714, %715 : vector<1x1xf32>
    %cst_212 = arith.constant 9.99999974E-6 : f32
    %717 = vector.broadcast %cst_212 : f32 to vector<1x1xf32>
    %718 = arith.addf %716, %717 : vector<1x1xf32>
    %719 = math.rsqrt %718 : vector<1x1xf32>
    %720 = vector.broadcast %704 : vector<1x1xf32> to vector<1x32xf32>
    %721 = arith.mulf %720, %696 : vector<1x32xf32>
    %722 = arith.addf %688, %721 : vector<1x32xf32>
    %723 = vector.broadcast %719 : vector<1x1xf32> to vector<1x32xf32>
    %724 = arith.mulf %723, %696 : vector<1x32xf32>
    %725 = arith.addf %689, %724 : vector<1x32xf32>
    %c2_i32_213 = arith.constant 2 : i32
    %726 = vector.broadcast %c2_i32_213 : i32 to vector<1x32xi32>
    %727 = arith.cmpi sge, %15, %726 : vector<1x32xi32>
    %c4_i32_214 = arith.constant 4 : i32
    %728 = vector.broadcast %c4_i32_214 : i32 to vector<1x32xi32>
    %729 = arith.cmpi slt, %15, %728 : vector<1x32xi32>
    %730 = arith.andi %727, %729 : vector<1x32xi1>
    %731 = arith.extui %730 : vector<1x32xi1> to vector<1x32xi32>
    %732 = arith.sitofp %731 : vector<1x32xi32> to vector<1x32xf32>
    %733 = arith.mulf %684, %732 : vector<1x32xf32>
    %734 = vector.shape_cast %733 : vector<1x32xf32> to vector<1x1x32xf32>
    %cst_215 = arith.constant dense<0.000000e+00> : vector<1xf32>
    %735 = vector.multi_reduction <add>, %734, %cst_215 [1, 2] : vector<1x1x32xf32> to vector<1xf32>
    %736 = vector.shape_cast %735 : vector<1xf32> to vector<1x1x1xf32>
    %737 = vector.extract %736[0, 0, 0] : f32 from vector<1x1x1xf32>
    %738 = vector.broadcast %737 : f32 to vector<1x1xf32>
    %cst_216 = arith.constant 7.812500e-03 : f32
    %739 = vector.broadcast %cst_216 : f32 to vector<1x1xf32>
    %740 = arith.mulf %738, %739 : vector<1x1xf32>
    %741 = arith.mulf %687, %732 : vector<1x32xf32>
    %742 = vector.shape_cast %741 : vector<1x32xf32> to vector<1x1x32xf32>
    %cst_217 = arith.constant dense<0.000000e+00> : vector<1xf32>
    %743 = vector.multi_reduction <add>, %742, %cst_217 [1, 2] : vector<1x1x32xf32> to vector<1xf32>
    %744 = vector.shape_cast %743 : vector<1xf32> to vector<1x1x1xf32>
    %745 = vector.extract %744[0, 0, 0] : f32 from vector<1x1x1xf32>
    %746 = vector.broadcast %745 : f32 to vector<1x1xf32>
    %cst_218 = arith.constant 7.812500e-03 : f32
    %747 = vector.broadcast %cst_218 : f32 to vector<1x1xf32>
    %748 = arith.mulf %746, %747 : vector<1x1xf32>
    %749 = arith.mulf %740, %740 : vector<1x1xf32>
    %750 = arith.subf %748, %749 : vector<1x1xf32>
    %cst_219 = arith.constant 0.000000e+00 : f32
    %751 = vector.broadcast %cst_219 : f32 to vector<1x1xf32>
    %752 = arith.maximumf %750, %751 : vector<1x1xf32>
    %cst_220 = arith.constant 9.99999974E-6 : f32
    %753 = vector.broadcast %cst_220 : f32 to vector<1x1xf32>
    %754 = arith.addf %752, %753 : vector<1x1xf32>
    %755 = math.rsqrt %754 : vector<1x1xf32>
    %756 = vector.broadcast %740 : vector<1x1xf32> to vector<1x32xf32>
    %757 = arith.mulf %756, %732 : vector<1x32xf32>
    %758 = arith.addf %722, %757 : vector<1x32xf32>
    %759 = vector.broadcast %755 : vector<1x1xf32> to vector<1x32xf32>
    %760 = arith.mulf %759, %732 : vector<1x32xf32>
    %761 = arith.addf %725, %760 : vector<1x32xf32>
    %c4_i32_221 = arith.constant 4 : i32
    %762 = vector.broadcast %c4_i32_221 : i32 to vector<1x32xi32>
    %763 = arith.cmpi sge, %15, %762 : vector<1x32xi32>
    %c6_i32_222 = arith.constant 6 : i32
    %764 = vector.broadcast %c6_i32_222 : i32 to vector<1x32xi32>
    %765 = arith.cmpi slt, %15, %764 : vector<1x32xi32>
    %766 = arith.andi %763, %765 : vector<1x32xi1>
    %767 = arith.extui %766 : vector<1x32xi1> to vector<1x32xi32>
    %768 = arith.sitofp %767 : vector<1x32xi32> to vector<1x32xf32>
    %769 = arith.mulf %684, %768 : vector<1x32xf32>
    %770 = vector.shape_cast %769 : vector<1x32xf32> to vector<1x1x32xf32>
    %cst_223 = arith.constant dense<0.000000e+00> : vector<1xf32>
    %771 = vector.multi_reduction <add>, %770, %cst_223 [1, 2] : vector<1x1x32xf32> to vector<1xf32>
    %772 = vector.shape_cast %771 : vector<1xf32> to vector<1x1x1xf32>
    %773 = vector.extract %772[0, 0, 0] : f32 from vector<1x1x1xf32>
    %774 = vector.broadcast %773 : f32 to vector<1x1xf32>
    %cst_224 = arith.constant 7.812500e-03 : f32
    %775 = vector.broadcast %cst_224 : f32 to vector<1x1xf32>
    %776 = arith.mulf %774, %775 : vector<1x1xf32>
    %777 = arith.mulf %687, %768 : vector<1x32xf32>
    %778 = vector.shape_cast %777 : vector<1x32xf32> to vector<1x1x32xf32>
    %cst_225 = arith.constant dense<0.000000e+00> : vector<1xf32>
    %779 = vector.multi_reduction <add>, %778, %cst_225 [1, 2] : vector<1x1x32xf32> to vector<1xf32>
    %780 = vector.shape_cast %779 : vector<1xf32> to vector<1x1x1xf32>
    %781 = vector.extract %780[0, 0, 0] : f32 from vector<1x1x1xf32>
    %782 = vector.broadcast %781 : f32 to vector<1x1xf32>
    %cst_226 = arith.constant 7.812500e-03 : f32
    %783 = vector.broadcast %cst_226 : f32 to vector<1x1xf32>
    %784 = arith.mulf %782, %783 : vector<1x1xf32>
    %785 = arith.mulf %776, %776 : vector<1x1xf32>
    %786 = arith.subf %784, %785 : vector<1x1xf32>
    %cst_227 = arith.constant 0.000000e+00 : f32
    %787 = vector.broadcast %cst_227 : f32 to vector<1x1xf32>
    %788 = arith.maximumf %786, %787 : vector<1x1xf32>
    %cst_228 = arith.constant 9.99999974E-6 : f32
    %789 = vector.broadcast %cst_228 : f32 to vector<1x1xf32>
    %790 = arith.addf %788, %789 : vector<1x1xf32>
    %791 = math.rsqrt %790 : vector<1x1xf32>
    %792 = vector.broadcast %776 : vector<1x1xf32> to vector<1x32xf32>
    %793 = arith.mulf %792, %768 : vector<1x32xf32>
    %794 = arith.addf %758, %793 : vector<1x32xf32>
    %795 = vector.broadcast %791 : vector<1x1xf32> to vector<1x32xf32>
    %796 = arith.mulf %795, %768 : vector<1x32xf32>
    %797 = arith.addf %761, %796 : vector<1x32xf32>
    %c6_i32_229 = arith.constant 6 : i32
    %798 = vector.broadcast %c6_i32_229 : i32 to vector<1x32xi32>
    %799 = arith.cmpi sge, %15, %798 : vector<1x32xi32>
    %c8_i32_230 = arith.constant 8 : i32
    %800 = vector.broadcast %c8_i32_230 : i32 to vector<1x32xi32>
    %801 = arith.cmpi slt, %15, %800 : vector<1x32xi32>
    %802 = arith.andi %799, %801 : vector<1x32xi1>
    %803 = arith.extui %802 : vector<1x32xi1> to vector<1x32xi32>
    %804 = arith.sitofp %803 : vector<1x32xi32> to vector<1x32xf32>
    %805 = arith.mulf %684, %804 : vector<1x32xf32>
    %806 = vector.shape_cast %805 : vector<1x32xf32> to vector<1x1x32xf32>
    %cst_231 = arith.constant dense<0.000000e+00> : vector<1xf32>
    %807 = vector.multi_reduction <add>, %806, %cst_231 [1, 2] : vector<1x1x32xf32> to vector<1xf32>
    %808 = vector.shape_cast %807 : vector<1xf32> to vector<1x1x1xf32>
    %809 = vector.extract %808[0, 0, 0] : f32 from vector<1x1x1xf32>
    %810 = vector.broadcast %809 : f32 to vector<1x1xf32>
    %cst_232 = arith.constant 7.812500e-03 : f32
    %811 = vector.broadcast %cst_232 : f32 to vector<1x1xf32>
    %812 = arith.mulf %810, %811 : vector<1x1xf32>
    %813 = arith.mulf %687, %804 : vector<1x32xf32>
    %814 = vector.shape_cast %813 : vector<1x32xf32> to vector<1x1x32xf32>
    %cst_233 = arith.constant dense<0.000000e+00> : vector<1xf32>
    %815 = vector.multi_reduction <add>, %814, %cst_233 [1, 2] : vector<1x1x32xf32> to vector<1xf32>
    %816 = vector.shape_cast %815 : vector<1xf32> to vector<1x1x1xf32>
    %817 = vector.extract %816[0, 0, 0] : f32 from vector<1x1x1xf32>
    %818 = vector.broadcast %817 : f32 to vector<1x1xf32>
    %cst_234 = arith.constant 7.812500e-03 : f32
    %819 = vector.broadcast %cst_234 : f32 to vector<1x1xf32>
    %820 = arith.mulf %818, %819 : vector<1x1xf32>
    %821 = arith.mulf %812, %812 : vector<1x1xf32>
    %822 = arith.subf %820, %821 : vector<1x1xf32>
    %cst_235 = arith.constant 0.000000e+00 : f32
    %823 = vector.broadcast %cst_235 : f32 to vector<1x1xf32>
    %824 = arith.maximumf %822, %823 : vector<1x1xf32>
    %cst_236 = arith.constant 9.99999974E-6 : f32
    %825 = vector.broadcast %cst_236 : f32 to vector<1x1xf32>
    %826 = arith.addf %824, %825 : vector<1x1xf32>
    %827 = math.rsqrt %826 : vector<1x1xf32>
    %828 = vector.broadcast %812 : vector<1x1xf32> to vector<1x32xf32>
    %829 = arith.mulf %828, %804 : vector<1x32xf32>
    %830 = arith.addf %794, %829 : vector<1x32xf32>
    %831 = vector.broadcast %827 : vector<1x1xf32> to vector<1x32xf32>
    %832 = arith.mulf %831, %804 : vector<1x32xf32>
    %833 = arith.addf %797, %832 : vector<1x32xf32>
    %c8_i32_237 = arith.constant 8 : i32
    %834 = vector.broadcast %c8_i32_237 : i32 to vector<1x32xi32>
    %835 = arith.cmpi sge, %15, %834 : vector<1x32xi32>
    %c10_i32_238 = arith.constant 10 : i32
    %836 = vector.broadcast %c10_i32_238 : i32 to vector<1x32xi32>
    %837 = arith.cmpi slt, %15, %836 : vector<1x32xi32>
    %838 = arith.andi %835, %837 : vector<1x32xi1>
    %839 = arith.extui %838 : vector<1x32xi1> to vector<1x32xi32>
    %840 = arith.sitofp %839 : vector<1x32xi32> to vector<1x32xf32>
    %841 = arith.mulf %684, %840 : vector<1x32xf32>
    %842 = vector.shape_cast %841 : vector<1x32xf32> to vector<1x1x32xf32>
    %cst_239 = arith.constant dense<0.000000e+00> : vector<1xf32>
    %843 = vector.multi_reduction <add>, %842, %cst_239 [1, 2] : vector<1x1x32xf32> to vector<1xf32>
    %844 = vector.shape_cast %843 : vector<1xf32> to vector<1x1x1xf32>
    %845 = vector.extract %844[0, 0, 0] : f32 from vector<1x1x1xf32>
    %846 = vector.broadcast %845 : f32 to vector<1x1xf32>
    %cst_240 = arith.constant 7.812500e-03 : f32
    %847 = vector.broadcast %cst_240 : f32 to vector<1x1xf32>
    %848 = arith.mulf %846, %847 : vector<1x1xf32>
    %849 = arith.mulf %687, %840 : vector<1x32xf32>
    %850 = vector.shape_cast %849 : vector<1x32xf32> to vector<1x1x32xf32>
    %cst_241 = arith.constant dense<0.000000e+00> : vector<1xf32>
    %851 = vector.multi_reduction <add>, %850, %cst_241 [1, 2] : vector<1x1x32xf32> to vector<1xf32>
    %852 = vector.shape_cast %851 : vector<1xf32> to vector<1x1x1xf32>
    %853 = vector.extract %852[0, 0, 0] : f32 from vector<1x1x1xf32>
    %854 = vector.broadcast %853 : f32 to vector<1x1xf32>
    %cst_242 = arith.constant 7.812500e-03 : f32
    %855 = vector.broadcast %cst_242 : f32 to vector<1x1xf32>
    %856 = arith.mulf %854, %855 : vector<1x1xf32>
    %857 = arith.mulf %848, %848 : vector<1x1xf32>
    %858 = arith.subf %856, %857 : vector<1x1xf32>
    %cst_243 = arith.constant 0.000000e+00 : f32
    %859 = vector.broadcast %cst_243 : f32 to vector<1x1xf32>
    %860 = arith.maximumf %858, %859 : vector<1x1xf32>
    %cst_244 = arith.constant 9.99999974E-6 : f32
    %861 = vector.broadcast %cst_244 : f32 to vector<1x1xf32>
    %862 = arith.addf %860, %861 : vector<1x1xf32>
    %863 = math.rsqrt %862 : vector<1x1xf32>
    %864 = vector.broadcast %848 : vector<1x1xf32> to vector<1x32xf32>
    %865 = arith.mulf %864, %840 : vector<1x32xf32>
    %866 = arith.addf %830, %865 : vector<1x32xf32>
    %867 = vector.broadcast %863 : vector<1x1xf32> to vector<1x32xf32>
    %868 = arith.mulf %867, %840 : vector<1x32xf32>
    %869 = arith.addf %833, %868 : vector<1x32xf32>
    %c10_i32_245 = arith.constant 10 : i32
    %870 = vector.broadcast %c10_i32_245 : i32 to vector<1x32xi32>
    %871 = arith.cmpi sge, %15, %870 : vector<1x32xi32>
    %c12_i32_246 = arith.constant 12 : i32
    %872 = vector.broadcast %c12_i32_246 : i32 to vector<1x32xi32>
    %873 = arith.cmpi slt, %15, %872 : vector<1x32xi32>
    %874 = arith.andi %871, %873 : vector<1x32xi1>
    %875 = arith.extui %874 : vector<1x32xi1> to vector<1x32xi32>
    %876 = arith.sitofp %875 : vector<1x32xi32> to vector<1x32xf32>
    %877 = arith.mulf %684, %876 : vector<1x32xf32>
    %878 = vector.shape_cast %877 : vector<1x32xf32> to vector<1x1x32xf32>
    %cst_247 = arith.constant dense<0.000000e+00> : vector<1xf32>
    %879 = vector.multi_reduction <add>, %878, %cst_247 [1, 2] : vector<1x1x32xf32> to vector<1xf32>
    %880 = vector.shape_cast %879 : vector<1xf32> to vector<1x1x1xf32>
    %881 = vector.extract %880[0, 0, 0] : f32 from vector<1x1x1xf32>
    %882 = vector.broadcast %881 : f32 to vector<1x1xf32>
    %cst_248 = arith.constant 7.812500e-03 : f32
    %883 = vector.broadcast %cst_248 : f32 to vector<1x1xf32>
    %884 = arith.mulf %882, %883 : vector<1x1xf32>
    %885 = arith.mulf %687, %876 : vector<1x32xf32>
    %886 = vector.shape_cast %885 : vector<1x32xf32> to vector<1x1x32xf32>
    %cst_249 = arith.constant dense<0.000000e+00> : vector<1xf32>
    %887 = vector.multi_reduction <add>, %886, %cst_249 [1, 2] : vector<1x1x32xf32> to vector<1xf32>
    %888 = vector.shape_cast %887 : vector<1xf32> to vector<1x1x1xf32>
    %889 = vector.extract %888[0, 0, 0] : f32 from vector<1x1x1xf32>
    %890 = vector.broadcast %889 : f32 to vector<1x1xf32>
    %cst_250 = arith.constant 7.812500e-03 : f32
    %891 = vector.broadcast %cst_250 : f32 to vector<1x1xf32>
    %892 = arith.mulf %890, %891 : vector<1x1xf32>
    %893 = arith.mulf %884, %884 : vector<1x1xf32>
    %894 = arith.subf %892, %893 : vector<1x1xf32>
    %cst_251 = arith.constant 0.000000e+00 : f32
    %895 = vector.broadcast %cst_251 : f32 to vector<1x1xf32>
    %896 = arith.maximumf %894, %895 : vector<1x1xf32>
    %cst_252 = arith.constant 9.99999974E-6 : f32
    %897 = vector.broadcast %cst_252 : f32 to vector<1x1xf32>
    %898 = arith.addf %896, %897 : vector<1x1xf32>
    %899 = math.rsqrt %898 : vector<1x1xf32>
    %900 = vector.broadcast %884 : vector<1x1xf32> to vector<1x32xf32>
    %901 = arith.mulf %900, %876 : vector<1x32xf32>
    %902 = arith.addf %866, %901 : vector<1x32xf32>
    %903 = vector.broadcast %899 : vector<1x1xf32> to vector<1x32xf32>
    %904 = arith.mulf %903, %876 : vector<1x32xf32>
    %905 = arith.addf %869, %904 : vector<1x32xf32>
    %c12_i32_253 = arith.constant 12 : i32
    %906 = vector.broadcast %c12_i32_253 : i32 to vector<1x32xi32>
    %907 = arith.cmpi sge, %15, %906 : vector<1x32xi32>
    %c14_i32_254 = arith.constant 14 : i32
    %908 = vector.broadcast %c14_i32_254 : i32 to vector<1x32xi32>
    %909 = arith.cmpi slt, %15, %908 : vector<1x32xi32>
    %910 = arith.andi %907, %909 : vector<1x32xi1>
    %911 = arith.extui %910 : vector<1x32xi1> to vector<1x32xi32>
    %912 = arith.sitofp %911 : vector<1x32xi32> to vector<1x32xf32>
    %913 = arith.mulf %684, %912 : vector<1x32xf32>
    %914 = vector.shape_cast %913 : vector<1x32xf32> to vector<1x1x32xf32>
    %cst_255 = arith.constant dense<0.000000e+00> : vector<1xf32>
    %915 = vector.multi_reduction <add>, %914, %cst_255 [1, 2] : vector<1x1x32xf32> to vector<1xf32>
    %916 = vector.shape_cast %915 : vector<1xf32> to vector<1x1x1xf32>
    %917 = vector.extract %916[0, 0, 0] : f32 from vector<1x1x1xf32>
    %918 = vector.broadcast %917 : f32 to vector<1x1xf32>
    %cst_256 = arith.constant 7.812500e-03 : f32
    %919 = vector.broadcast %cst_256 : f32 to vector<1x1xf32>
    %920 = arith.mulf %918, %919 : vector<1x1xf32>
    %921 = arith.mulf %687, %912 : vector<1x32xf32>
    %922 = vector.shape_cast %921 : vector<1x32xf32> to vector<1x1x32xf32>
    %cst_257 = arith.constant dense<0.000000e+00> : vector<1xf32>
    %923 = vector.multi_reduction <add>, %922, %cst_257 [1, 2] : vector<1x1x32xf32> to vector<1xf32>
    %924 = vector.shape_cast %923 : vector<1xf32> to vector<1x1x1xf32>
    %925 = vector.extract %924[0, 0, 0] : f32 from vector<1x1x1xf32>
    %926 = vector.broadcast %925 : f32 to vector<1x1xf32>
    %cst_258 = arith.constant 7.812500e-03 : f32
    %927 = vector.broadcast %cst_258 : f32 to vector<1x1xf32>
    %928 = arith.mulf %926, %927 : vector<1x1xf32>
    %929 = arith.mulf %920, %920 : vector<1x1xf32>
    %930 = arith.subf %928, %929 : vector<1x1xf32>
    %cst_259 = arith.constant 0.000000e+00 : f32
    %931 = vector.broadcast %cst_259 : f32 to vector<1x1xf32>
    %932 = arith.maximumf %930, %931 : vector<1x1xf32>
    %cst_260 = arith.constant 9.99999974E-6 : f32
    %933 = vector.broadcast %cst_260 : f32 to vector<1x1xf32>
    %934 = arith.addf %932, %933 : vector<1x1xf32>
    %935 = math.rsqrt %934 : vector<1x1xf32>
    %936 = vector.broadcast %920 : vector<1x1xf32> to vector<1x32xf32>
    %937 = arith.mulf %936, %912 : vector<1x32xf32>
    %938 = arith.addf %902, %937 : vector<1x32xf32>
    %939 = vector.broadcast %935 : vector<1x1xf32> to vector<1x32xf32>
    %940 = arith.mulf %939, %912 : vector<1x32xf32>
    %941 = arith.addf %905, %940 : vector<1x32xf32>
    %c14_i32_261 = arith.constant 14 : i32
    %942 = vector.broadcast %c14_i32_261 : i32 to vector<1x32xi32>
    %943 = arith.cmpi sge, %15, %942 : vector<1x32xi32>
    %c16_i32_262 = arith.constant 16 : i32
    %944 = vector.broadcast %c16_i32_262 : i32 to vector<1x32xi32>
    %945 = arith.cmpi slt, %15, %944 : vector<1x32xi32>
    %946 = arith.andi %943, %945 : vector<1x32xi1>
    %947 = arith.extui %946 : vector<1x32xi1> to vector<1x32xi32>
    %948 = arith.sitofp %947 : vector<1x32xi32> to vector<1x32xf32>
    %949 = arith.mulf %684, %948 : vector<1x32xf32>
    %950 = vector.shape_cast %949 : vector<1x32xf32> to vector<1x1x32xf32>
    %cst_263 = arith.constant dense<0.000000e+00> : vector<1xf32>
    %951 = vector.multi_reduction <add>, %950, %cst_263 [1, 2] : vector<1x1x32xf32> to vector<1xf32>
    %952 = vector.shape_cast %951 : vector<1xf32> to vector<1x1x1xf32>
    %953 = vector.extract %952[0, 0, 0] : f32 from vector<1x1x1xf32>
    %954 = vector.broadcast %953 : f32 to vector<1x1xf32>
    %cst_264 = arith.constant 7.812500e-03 : f32
    %955 = vector.broadcast %cst_264 : f32 to vector<1x1xf32>
    %956 = arith.mulf %954, %955 : vector<1x1xf32>
    %957 = arith.mulf %687, %948 : vector<1x32xf32>
    %958 = vector.shape_cast %957 : vector<1x32xf32> to vector<1x1x32xf32>
    %cst_265 = arith.constant dense<0.000000e+00> : vector<1xf32>
    %959 = vector.multi_reduction <add>, %958, %cst_265 [1, 2] : vector<1x1x32xf32> to vector<1xf32>
    %960 = vector.shape_cast %959 : vector<1xf32> to vector<1x1x1xf32>
    %961 = vector.extract %960[0, 0, 0] : f32 from vector<1x1x1xf32>
    %962 = vector.broadcast %961 : f32 to vector<1x1xf32>
    %cst_266 = arith.constant 7.812500e-03 : f32
    %963 = vector.broadcast %cst_266 : f32 to vector<1x1xf32>
    %964 = arith.mulf %962, %963 : vector<1x1xf32>
    %965 = arith.mulf %956, %956 : vector<1x1xf32>
    %966 = arith.subf %964, %965 : vector<1x1xf32>
    %cst_267 = arith.constant 0.000000e+00 : f32
    %967 = vector.broadcast %cst_267 : f32 to vector<1x1xf32>
    %968 = arith.maximumf %966, %967 : vector<1x1xf32>
    %cst_268 = arith.constant 9.99999974E-6 : f32
    %969 = vector.broadcast %cst_268 : f32 to vector<1x1xf32>
    %970 = arith.addf %968, %969 : vector<1x1xf32>
    %971 = math.rsqrt %970 : vector<1x1xf32>
    %972 = vector.broadcast %956 : vector<1x1xf32> to vector<1x32xf32>
    %973 = arith.mulf %972, %948 : vector<1x32xf32>
    %974 = arith.addf %938, %973 : vector<1x32xf32>
    %975 = vector.broadcast %971 : vector<1x1xf32> to vector<1x32xf32>
    %976 = arith.mulf %975, %948 : vector<1x32xf32>
    %977 = arith.addf %941, %976 : vector<1x32xf32>
    %c16_i32_269 = arith.constant 16 : i32
    %978 = vector.broadcast %c16_i32_269 : i32 to vector<1x32xi32>
    %979 = arith.cmpi sge, %15, %978 : vector<1x32xi32>
    %c18_i32_270 = arith.constant 18 : i32
    %980 = vector.broadcast %c18_i32_270 : i32 to vector<1x32xi32>
    %981 = arith.cmpi slt, %15, %980 : vector<1x32xi32>
    %982 = arith.andi %979, %981 : vector<1x32xi1>
    %983 = arith.extui %982 : vector<1x32xi1> to vector<1x32xi32>
    %984 = arith.sitofp %983 : vector<1x32xi32> to vector<1x32xf32>
    %985 = arith.mulf %684, %984 : vector<1x32xf32>
    %986 = vector.shape_cast %985 : vector<1x32xf32> to vector<1x1x32xf32>
    %cst_271 = arith.constant dense<0.000000e+00> : vector<1xf32>
    %987 = vector.multi_reduction <add>, %986, %cst_271 [1, 2] : vector<1x1x32xf32> to vector<1xf32>
    %988 = vector.shape_cast %987 : vector<1xf32> to vector<1x1x1xf32>
    %989 = vector.extract %988[0, 0, 0] : f32 from vector<1x1x1xf32>
    %990 = vector.broadcast %989 : f32 to vector<1x1xf32>
    %cst_272 = arith.constant 7.812500e-03 : f32
    %991 = vector.broadcast %cst_272 : f32 to vector<1x1xf32>
    %992 = arith.mulf %990, %991 : vector<1x1xf32>
    %993 = arith.mulf %687, %984 : vector<1x32xf32>
    %994 = vector.shape_cast %993 : vector<1x32xf32> to vector<1x1x32xf32>
    %cst_273 = arith.constant dense<0.000000e+00> : vector<1xf32>
    %995 = vector.multi_reduction <add>, %994, %cst_273 [1, 2] : vector<1x1x32xf32> to vector<1xf32>
    %996 = vector.shape_cast %995 : vector<1xf32> to vector<1x1x1xf32>
    %997 = vector.extract %996[0, 0, 0] : f32 from vector<1x1x1xf32>
    %998 = vector.broadcast %997 : f32 to vector<1x1xf32>
    %cst_274 = arith.constant 7.812500e-03 : f32
    %999 = vector.broadcast %cst_274 : f32 to vector<1x1xf32>
    %1000 = arith.mulf %998, %999 : vector<1x1xf32>
    %1001 = arith.mulf %992, %992 : vector<1x1xf32>
    %1002 = arith.subf %1000, %1001 : vector<1x1xf32>
    %cst_275 = arith.constant 0.000000e+00 : f32
    %1003 = vector.broadcast %cst_275 : f32 to vector<1x1xf32>
    %1004 = arith.maximumf %1002, %1003 : vector<1x1xf32>
    %cst_276 = arith.constant 9.99999974E-6 : f32
    %1005 = vector.broadcast %cst_276 : f32 to vector<1x1xf32>
    %1006 = arith.addf %1004, %1005 : vector<1x1xf32>
    %1007 = math.rsqrt %1006 : vector<1x1xf32>
    %1008 = vector.broadcast %992 : vector<1x1xf32> to vector<1x32xf32>
    %1009 = arith.mulf %1008, %984 : vector<1x32xf32>
    %1010 = arith.addf %974, %1009 : vector<1x32xf32>
    %1011 = vector.broadcast %1007 : vector<1x1xf32> to vector<1x32xf32>
    %1012 = arith.mulf %1011, %984 : vector<1x32xf32>
    %1013 = arith.addf %977, %1012 : vector<1x32xf32>
    %c18_i32_277 = arith.constant 18 : i32
    %1014 = vector.broadcast %c18_i32_277 : i32 to vector<1x32xi32>
    %1015 = arith.cmpi sge, %15, %1014 : vector<1x32xi32>
    %c20_i32_278 = arith.constant 20 : i32
    %1016 = vector.broadcast %c20_i32_278 : i32 to vector<1x32xi32>
    %1017 = arith.cmpi slt, %15, %1016 : vector<1x32xi32>
    %1018 = arith.andi %1015, %1017 : vector<1x32xi1>
    %1019 = arith.extui %1018 : vector<1x32xi1> to vector<1x32xi32>
    %1020 = arith.sitofp %1019 : vector<1x32xi32> to vector<1x32xf32>
    %1021 = arith.mulf %684, %1020 : vector<1x32xf32>
    %1022 = vector.shape_cast %1021 : vector<1x32xf32> to vector<1x1x32xf32>
    %cst_279 = arith.constant dense<0.000000e+00> : vector<1xf32>
    %1023 = vector.multi_reduction <add>, %1022, %cst_279 [1, 2] : vector<1x1x32xf32> to vector<1xf32>
    %1024 = vector.shape_cast %1023 : vector<1xf32> to vector<1x1x1xf32>
    %1025 = vector.extract %1024[0, 0, 0] : f32 from vector<1x1x1xf32>
    %1026 = vector.broadcast %1025 : f32 to vector<1x1xf32>
    %cst_280 = arith.constant 7.812500e-03 : f32
    %1027 = vector.broadcast %cst_280 : f32 to vector<1x1xf32>
    %1028 = arith.mulf %1026, %1027 : vector<1x1xf32>
    %1029 = arith.mulf %687, %1020 : vector<1x32xf32>
    %1030 = vector.shape_cast %1029 : vector<1x32xf32> to vector<1x1x32xf32>
    %cst_281 = arith.constant dense<0.000000e+00> : vector<1xf32>
    %1031 = vector.multi_reduction <add>, %1030, %cst_281 [1, 2] : vector<1x1x32xf32> to vector<1xf32>
    %1032 = vector.shape_cast %1031 : vector<1xf32> to vector<1x1x1xf32>
    %1033 = vector.extract %1032[0, 0, 0] : f32 from vector<1x1x1xf32>
    %1034 = vector.broadcast %1033 : f32 to vector<1x1xf32>
    %cst_282 = arith.constant 7.812500e-03 : f32
    %1035 = vector.broadcast %cst_282 : f32 to vector<1x1xf32>
    %1036 = arith.mulf %1034, %1035 : vector<1x1xf32>
    %1037 = arith.mulf %1028, %1028 : vector<1x1xf32>
    %1038 = arith.subf %1036, %1037 : vector<1x1xf32>
    %cst_283 = arith.constant 0.000000e+00 : f32
    %1039 = vector.broadcast %cst_283 : f32 to vector<1x1xf32>
    %1040 = arith.maximumf %1038, %1039 : vector<1x1xf32>
    %cst_284 = arith.constant 9.99999974E-6 : f32
    %1041 = vector.broadcast %cst_284 : f32 to vector<1x1xf32>
    %1042 = arith.addf %1040, %1041 : vector<1x1xf32>
    %1043 = math.rsqrt %1042 : vector<1x1xf32>
    %1044 = vector.broadcast %1028 : vector<1x1xf32> to vector<1x32xf32>
    %1045 = arith.mulf %1044, %1020 : vector<1x32xf32>
    %1046 = arith.addf %1010, %1045 : vector<1x32xf32>
    %1047 = vector.broadcast %1043 : vector<1x1xf32> to vector<1x32xf32>
    %1048 = arith.mulf %1047, %1020 : vector<1x32xf32>
    %1049 = arith.addf %1013, %1048 : vector<1x32xf32>
    %c20_i32_285 = arith.constant 20 : i32
    %1050 = vector.broadcast %c20_i32_285 : i32 to vector<1x32xi32>
    %1051 = arith.cmpi sge, %15, %1050 : vector<1x32xi32>
    %c22_i32_286 = arith.constant 22 : i32
    %1052 = vector.broadcast %c22_i32_286 : i32 to vector<1x32xi32>
    %1053 = arith.cmpi slt, %15, %1052 : vector<1x32xi32>
    %1054 = arith.andi %1051, %1053 : vector<1x32xi1>
    %1055 = arith.extui %1054 : vector<1x32xi1> to vector<1x32xi32>
    %1056 = arith.sitofp %1055 : vector<1x32xi32> to vector<1x32xf32>
    %1057 = arith.mulf %684, %1056 : vector<1x32xf32>
    %1058 = vector.shape_cast %1057 : vector<1x32xf32> to vector<1x1x32xf32>
    %cst_287 = arith.constant dense<0.000000e+00> : vector<1xf32>
    %1059 = vector.multi_reduction <add>, %1058, %cst_287 [1, 2] : vector<1x1x32xf32> to vector<1xf32>
    %1060 = vector.shape_cast %1059 : vector<1xf32> to vector<1x1x1xf32>
    %1061 = vector.extract %1060[0, 0, 0] : f32 from vector<1x1x1xf32>
    %1062 = vector.broadcast %1061 : f32 to vector<1x1xf32>
    %cst_288 = arith.constant 7.812500e-03 : f32
    %1063 = vector.broadcast %cst_288 : f32 to vector<1x1xf32>
    %1064 = arith.mulf %1062, %1063 : vector<1x1xf32>
    %1065 = arith.mulf %687, %1056 : vector<1x32xf32>
    %1066 = vector.shape_cast %1065 : vector<1x32xf32> to vector<1x1x32xf32>
    %cst_289 = arith.constant dense<0.000000e+00> : vector<1xf32>
    %1067 = vector.multi_reduction <add>, %1066, %cst_289 [1, 2] : vector<1x1x32xf32> to vector<1xf32>
    %1068 = vector.shape_cast %1067 : vector<1xf32> to vector<1x1x1xf32>
    %1069 = vector.extract %1068[0, 0, 0] : f32 from vector<1x1x1xf32>
    %1070 = vector.broadcast %1069 : f32 to vector<1x1xf32>
    %cst_290 = arith.constant 7.812500e-03 : f32
    %1071 = vector.broadcast %cst_290 : f32 to vector<1x1xf32>
    %1072 = arith.mulf %1070, %1071 : vector<1x1xf32>
    %1073 = arith.mulf %1064, %1064 : vector<1x1xf32>
    %1074 = arith.subf %1072, %1073 : vector<1x1xf32>
    %cst_291 = arith.constant 0.000000e+00 : f32
    %1075 = vector.broadcast %cst_291 : f32 to vector<1x1xf32>
    %1076 = arith.maximumf %1074, %1075 : vector<1x1xf32>
    %cst_292 = arith.constant 9.99999974E-6 : f32
    %1077 = vector.broadcast %cst_292 : f32 to vector<1x1xf32>
    %1078 = arith.addf %1076, %1077 : vector<1x1xf32>
    %1079 = math.rsqrt %1078 : vector<1x1xf32>
    %1080 = vector.broadcast %1064 : vector<1x1xf32> to vector<1x32xf32>
    %1081 = arith.mulf %1080, %1056 : vector<1x32xf32>
    %1082 = arith.addf %1046, %1081 : vector<1x32xf32>
    %1083 = vector.broadcast %1079 : vector<1x1xf32> to vector<1x32xf32>
    %1084 = arith.mulf %1083, %1056 : vector<1x32xf32>
    %1085 = arith.addf %1049, %1084 : vector<1x32xf32>
    %c22_i32_293 = arith.constant 22 : i32
    %1086 = vector.broadcast %c22_i32_293 : i32 to vector<1x32xi32>
    %1087 = arith.cmpi sge, %15, %1086 : vector<1x32xi32>
    %c24_i32_294 = arith.constant 24 : i32
    %1088 = vector.broadcast %c24_i32_294 : i32 to vector<1x32xi32>
    %1089 = arith.cmpi slt, %15, %1088 : vector<1x32xi32>
    %1090 = arith.andi %1087, %1089 : vector<1x32xi1>
    %1091 = arith.extui %1090 : vector<1x32xi1> to vector<1x32xi32>
    %1092 = arith.sitofp %1091 : vector<1x32xi32> to vector<1x32xf32>
    %1093 = arith.mulf %684, %1092 : vector<1x32xf32>
    %1094 = vector.shape_cast %1093 : vector<1x32xf32> to vector<1x1x32xf32>
    %cst_295 = arith.constant dense<0.000000e+00> : vector<1xf32>
    %1095 = vector.multi_reduction <add>, %1094, %cst_295 [1, 2] : vector<1x1x32xf32> to vector<1xf32>
    %1096 = vector.shape_cast %1095 : vector<1xf32> to vector<1x1x1xf32>
    %1097 = vector.extract %1096[0, 0, 0] : f32 from vector<1x1x1xf32>
    %1098 = vector.broadcast %1097 : f32 to vector<1x1xf32>
    %cst_296 = arith.constant 7.812500e-03 : f32
    %1099 = vector.broadcast %cst_296 : f32 to vector<1x1xf32>
    %1100 = arith.mulf %1098, %1099 : vector<1x1xf32>
    %1101 = arith.mulf %687, %1092 : vector<1x32xf32>
    %1102 = vector.shape_cast %1101 : vector<1x32xf32> to vector<1x1x32xf32>
    %cst_297 = arith.constant dense<0.000000e+00> : vector<1xf32>
    %1103 = vector.multi_reduction <add>, %1102, %cst_297 [1, 2] : vector<1x1x32xf32> to vector<1xf32>
    %1104 = vector.shape_cast %1103 : vector<1xf32> to vector<1x1x1xf32>
    %1105 = vector.extract %1104[0, 0, 0] : f32 from vector<1x1x1xf32>
    %1106 = vector.broadcast %1105 : f32 to vector<1x1xf32>
    %cst_298 = arith.constant 7.812500e-03 : f32
    %1107 = vector.broadcast %cst_298 : f32 to vector<1x1xf32>
    %1108 = arith.mulf %1106, %1107 : vector<1x1xf32>
    %1109 = arith.mulf %1100, %1100 : vector<1x1xf32>
    %1110 = arith.subf %1108, %1109 : vector<1x1xf32>
    %cst_299 = arith.constant 0.000000e+00 : f32
    %1111 = vector.broadcast %cst_299 : f32 to vector<1x1xf32>
    %1112 = arith.maximumf %1110, %1111 : vector<1x1xf32>
    %cst_300 = arith.constant 9.99999974E-6 : f32
    %1113 = vector.broadcast %cst_300 : f32 to vector<1x1xf32>
    %1114 = arith.addf %1112, %1113 : vector<1x1xf32>
    %1115 = math.rsqrt %1114 : vector<1x1xf32>
    %1116 = vector.broadcast %1100 : vector<1x1xf32> to vector<1x32xf32>
    %1117 = arith.mulf %1116, %1092 : vector<1x32xf32>
    %1118 = arith.addf %1082, %1117 : vector<1x32xf32>
    %1119 = vector.broadcast %1115 : vector<1x1xf32> to vector<1x32xf32>
    %1120 = arith.mulf %1119, %1092 : vector<1x32xf32>
    %1121 = arith.addf %1085, %1120 : vector<1x32xf32>
    %c24_i32_301 = arith.constant 24 : i32
    %1122 = vector.broadcast %c24_i32_301 : i32 to vector<1x32xi32>
    %1123 = arith.cmpi sge, %15, %1122 : vector<1x32xi32>
    %c26_i32_302 = arith.constant 26 : i32
    %1124 = vector.broadcast %c26_i32_302 : i32 to vector<1x32xi32>
    %1125 = arith.cmpi slt, %15, %1124 : vector<1x32xi32>
    %1126 = arith.andi %1123, %1125 : vector<1x32xi1>
    %1127 = arith.extui %1126 : vector<1x32xi1> to vector<1x32xi32>
    %1128 = arith.sitofp %1127 : vector<1x32xi32> to vector<1x32xf32>
    %1129 = arith.mulf %684, %1128 : vector<1x32xf32>
    %1130 = vector.shape_cast %1129 : vector<1x32xf32> to vector<1x1x32xf32>
    %cst_303 = arith.constant dense<0.000000e+00> : vector<1xf32>
    %1131 = vector.multi_reduction <add>, %1130, %cst_303 [1, 2] : vector<1x1x32xf32> to vector<1xf32>
    %1132 = vector.shape_cast %1131 : vector<1xf32> to vector<1x1x1xf32>
    %1133 = vector.extract %1132[0, 0, 0] : f32 from vector<1x1x1xf32>
    %1134 = vector.broadcast %1133 : f32 to vector<1x1xf32>
    %cst_304 = arith.constant 7.812500e-03 : f32
    %1135 = vector.broadcast %cst_304 : f32 to vector<1x1xf32>
    %1136 = arith.mulf %1134, %1135 : vector<1x1xf32>
    %1137 = arith.mulf %687, %1128 : vector<1x32xf32>
    %1138 = vector.shape_cast %1137 : vector<1x32xf32> to vector<1x1x32xf32>
    %cst_305 = arith.constant dense<0.000000e+00> : vector<1xf32>
    %1139 = vector.multi_reduction <add>, %1138, %cst_305 [1, 2] : vector<1x1x32xf32> to vector<1xf32>
    %1140 = vector.shape_cast %1139 : vector<1xf32> to vector<1x1x1xf32>
    %1141 = vector.extract %1140[0, 0, 0] : f32 from vector<1x1x1xf32>
    %1142 = vector.broadcast %1141 : f32 to vector<1x1xf32>
    %cst_306 = arith.constant 7.812500e-03 : f32
    %1143 = vector.broadcast %cst_306 : f32 to vector<1x1xf32>
    %1144 = arith.mulf %1142, %1143 : vector<1x1xf32>
    %1145 = arith.mulf %1136, %1136 : vector<1x1xf32>
    %1146 = arith.subf %1144, %1145 : vector<1x1xf32>
    %cst_307 = arith.constant 0.000000e+00 : f32
    %1147 = vector.broadcast %cst_307 : f32 to vector<1x1xf32>
    %1148 = arith.maximumf %1146, %1147 : vector<1x1xf32>
    %cst_308 = arith.constant 9.99999974E-6 : f32
    %1149 = vector.broadcast %cst_308 : f32 to vector<1x1xf32>
    %1150 = arith.addf %1148, %1149 : vector<1x1xf32>
    %1151 = math.rsqrt %1150 : vector<1x1xf32>
    %1152 = vector.broadcast %1136 : vector<1x1xf32> to vector<1x32xf32>
    %1153 = arith.mulf %1152, %1128 : vector<1x32xf32>
    %1154 = arith.addf %1118, %1153 : vector<1x32xf32>
    %1155 = vector.broadcast %1151 : vector<1x1xf32> to vector<1x32xf32>
    %1156 = arith.mulf %1155, %1128 : vector<1x32xf32>
    %1157 = arith.addf %1121, %1156 : vector<1x32xf32>
    %c26_i32_309 = arith.constant 26 : i32
    %1158 = vector.broadcast %c26_i32_309 : i32 to vector<1x32xi32>
    %1159 = arith.cmpi sge, %15, %1158 : vector<1x32xi32>
    %c28_i32_310 = arith.constant 28 : i32
    %1160 = vector.broadcast %c28_i32_310 : i32 to vector<1x32xi32>
    %1161 = arith.cmpi slt, %15, %1160 : vector<1x32xi32>
    %1162 = arith.andi %1159, %1161 : vector<1x32xi1>
    %1163 = arith.extui %1162 : vector<1x32xi1> to vector<1x32xi32>
    %1164 = arith.sitofp %1163 : vector<1x32xi32> to vector<1x32xf32>
    %1165 = arith.mulf %684, %1164 : vector<1x32xf32>
    %1166 = vector.shape_cast %1165 : vector<1x32xf32> to vector<1x1x32xf32>
    %cst_311 = arith.constant dense<0.000000e+00> : vector<1xf32>
    %1167 = vector.multi_reduction <add>, %1166, %cst_311 [1, 2] : vector<1x1x32xf32> to vector<1xf32>
    %1168 = vector.shape_cast %1167 : vector<1xf32> to vector<1x1x1xf32>
    %1169 = vector.extract %1168[0, 0, 0] : f32 from vector<1x1x1xf32>
    %1170 = vector.broadcast %1169 : f32 to vector<1x1xf32>
    %cst_312 = arith.constant 7.812500e-03 : f32
    %1171 = vector.broadcast %cst_312 : f32 to vector<1x1xf32>
    %1172 = arith.mulf %1170, %1171 : vector<1x1xf32>
    %1173 = arith.mulf %687, %1164 : vector<1x32xf32>
    %1174 = vector.shape_cast %1173 : vector<1x32xf32> to vector<1x1x32xf32>
    %cst_313 = arith.constant dense<0.000000e+00> : vector<1xf32>
    %1175 = vector.multi_reduction <add>, %1174, %cst_313 [1, 2] : vector<1x1x32xf32> to vector<1xf32>
    %1176 = vector.shape_cast %1175 : vector<1xf32> to vector<1x1x1xf32>
    %1177 = vector.extract %1176[0, 0, 0] : f32 from vector<1x1x1xf32>
    %1178 = vector.broadcast %1177 : f32 to vector<1x1xf32>
    %cst_314 = arith.constant 7.812500e-03 : f32
    %1179 = vector.broadcast %cst_314 : f32 to vector<1x1xf32>
    %1180 = arith.mulf %1178, %1179 : vector<1x1xf32>
    %1181 = arith.mulf %1172, %1172 : vector<1x1xf32>
    %1182 = arith.subf %1180, %1181 : vector<1x1xf32>
    %cst_315 = arith.constant 0.000000e+00 : f32
    %1183 = vector.broadcast %cst_315 : f32 to vector<1x1xf32>
    %1184 = arith.maximumf %1182, %1183 : vector<1x1xf32>
    %cst_316 = arith.constant 9.99999974E-6 : f32
    %1185 = vector.broadcast %cst_316 : f32 to vector<1x1xf32>
    %1186 = arith.addf %1184, %1185 : vector<1x1xf32>
    %1187 = math.rsqrt %1186 : vector<1x1xf32>
    %1188 = vector.broadcast %1172 : vector<1x1xf32> to vector<1x32xf32>
    %1189 = arith.mulf %1188, %1164 : vector<1x32xf32>
    %1190 = arith.addf %1154, %1189 : vector<1x32xf32>
    %1191 = vector.broadcast %1187 : vector<1x1xf32> to vector<1x32xf32>
    %1192 = arith.mulf %1191, %1164 : vector<1x32xf32>
    %1193 = arith.addf %1157, %1192 : vector<1x32xf32>
    %c28_i32_317 = arith.constant 28 : i32
    %1194 = vector.broadcast %c28_i32_317 : i32 to vector<1x32xi32>
    %1195 = arith.cmpi sge, %15, %1194 : vector<1x32xi32>
    %c30_i32_318 = arith.constant 30 : i32
    %1196 = vector.broadcast %c30_i32_318 : i32 to vector<1x32xi32>
    %1197 = arith.cmpi slt, %15, %1196 : vector<1x32xi32>
    %1198 = arith.andi %1195, %1197 : vector<1x32xi1>
    %1199 = arith.extui %1198 : vector<1x32xi1> to vector<1x32xi32>
    %1200 = arith.sitofp %1199 : vector<1x32xi32> to vector<1x32xf32>
    %1201 = arith.mulf %684, %1200 : vector<1x32xf32>
    %1202 = vector.shape_cast %1201 : vector<1x32xf32> to vector<1x1x32xf32>
    %cst_319 = arith.constant dense<0.000000e+00> : vector<1xf32>
    %1203 = vector.multi_reduction <add>, %1202, %cst_319 [1, 2] : vector<1x1x32xf32> to vector<1xf32>
    %1204 = vector.shape_cast %1203 : vector<1xf32> to vector<1x1x1xf32>
    %1205 = vector.extract %1204[0, 0, 0] : f32 from vector<1x1x1xf32>
    %1206 = vector.broadcast %1205 : f32 to vector<1x1xf32>
    %cst_320 = arith.constant 7.812500e-03 : f32
    %1207 = vector.broadcast %cst_320 : f32 to vector<1x1xf32>
    %1208 = arith.mulf %1206, %1207 : vector<1x1xf32>
    %1209 = arith.mulf %687, %1200 : vector<1x32xf32>
    %1210 = vector.shape_cast %1209 : vector<1x32xf32> to vector<1x1x32xf32>
    %cst_321 = arith.constant dense<0.000000e+00> : vector<1xf32>
    %1211 = vector.multi_reduction <add>, %1210, %cst_321 [1, 2] : vector<1x1x32xf32> to vector<1xf32>
    %1212 = vector.shape_cast %1211 : vector<1xf32> to vector<1x1x1xf32>
    %1213 = vector.extract %1212[0, 0, 0] : f32 from vector<1x1x1xf32>
    %1214 = vector.broadcast %1213 : f32 to vector<1x1xf32>
    %cst_322 = arith.constant 7.812500e-03 : f32
    %1215 = vector.broadcast %cst_322 : f32 to vector<1x1xf32>
    %1216 = arith.mulf %1214, %1215 : vector<1x1xf32>
    %1217 = arith.mulf %1208, %1208 : vector<1x1xf32>
    %1218 = arith.subf %1216, %1217 : vector<1x1xf32>
    %cst_323 = arith.constant 0.000000e+00 : f32
    %1219 = vector.broadcast %cst_323 : f32 to vector<1x1xf32>
    %1220 = arith.maximumf %1218, %1219 : vector<1x1xf32>
    %cst_324 = arith.constant 9.99999974E-6 : f32
    %1221 = vector.broadcast %cst_324 : f32 to vector<1x1xf32>
    %1222 = arith.addf %1220, %1221 : vector<1x1xf32>
    %1223 = math.rsqrt %1222 : vector<1x1xf32>
    %1224 = vector.broadcast %1208 : vector<1x1xf32> to vector<1x32xf32>
    %1225 = arith.mulf %1224, %1200 : vector<1x32xf32>
    %1226 = arith.addf %1190, %1225 : vector<1x32xf32>
    %1227 = vector.broadcast %1223 : vector<1x1xf32> to vector<1x32xf32>
    %1228 = arith.mulf %1227, %1200 : vector<1x32xf32>
    %1229 = arith.addf %1193, %1228 : vector<1x32xf32>
    %c30_i32_325 = arith.constant 30 : i32
    %1230 = vector.broadcast %c30_i32_325 : i32 to vector<1x32xi32>
    %1231 = arith.cmpi sge, %15, %1230 : vector<1x32xi32>
    %c32_i32_326 = arith.constant 32 : i32
    %1232 = vector.broadcast %c32_i32_326 : i32 to vector<1x32xi32>
    %1233 = arith.cmpi slt, %15, %1232 : vector<1x32xi32>
    %1234 = arith.andi %1231, %1233 : vector<1x32xi1>
    %1235 = arith.extui %1234 : vector<1x32xi1> to vector<1x32xi32>
    %1236 = arith.sitofp %1235 : vector<1x32xi32> to vector<1x32xf32>
    %1237 = arith.mulf %684, %1236 : vector<1x32xf32>
    %1238 = vector.shape_cast %1237 : vector<1x32xf32> to vector<1x1x32xf32>
    %cst_327 = arith.constant dense<0.000000e+00> : vector<1xf32>
    %1239 = vector.multi_reduction <add>, %1238, %cst_327 [1, 2] : vector<1x1x32xf32> to vector<1xf32>
    %1240 = vector.shape_cast %1239 : vector<1xf32> to vector<1x1x1xf32>
    %1241 = vector.extract %1240[0, 0, 0] : f32 from vector<1x1x1xf32>
    %1242 = vector.broadcast %1241 : f32 to vector<1x1xf32>
    %cst_328 = arith.constant 7.812500e-03 : f32
    %1243 = vector.broadcast %cst_328 : f32 to vector<1x1xf32>
    %1244 = arith.mulf %1242, %1243 : vector<1x1xf32>
    %1245 = arith.mulf %687, %1236 : vector<1x32xf32>
    %1246 = vector.shape_cast %1245 : vector<1x32xf32> to vector<1x1x32xf32>
    %cst_329 = arith.constant dense<0.000000e+00> : vector<1xf32>
    %1247 = vector.multi_reduction <add>, %1246, %cst_329 [1, 2] : vector<1x1x32xf32> to vector<1xf32>
    %1248 = vector.shape_cast %1247 : vector<1xf32> to vector<1x1x1xf32>
    %1249 = vector.extract %1248[0, 0, 0] : f32 from vector<1x1x1xf32>
    %1250 = vector.broadcast %1249 : f32 to vector<1x1xf32>
    %cst_330 = arith.constant 7.812500e-03 : f32
    %1251 = vector.broadcast %cst_330 : f32 to vector<1x1xf32>
    %1252 = arith.mulf %1250, %1251 : vector<1x1xf32>
    %1253 = arith.mulf %1244, %1244 : vector<1x1xf32>
    %1254 = arith.subf %1252, %1253 : vector<1x1xf32>
    %cst_331 = arith.constant 0.000000e+00 : f32
    %1255 = vector.broadcast %cst_331 : f32 to vector<1x1xf32>
    %1256 = arith.maximumf %1254, %1255 : vector<1x1xf32>
    %cst_332 = arith.constant 9.99999974E-6 : f32
    %1257 = vector.broadcast %cst_332 : f32 to vector<1x1xf32>
    %1258 = arith.addf %1256, %1257 : vector<1x1xf32>
    %1259 = math.rsqrt %1258 : vector<1x1xf32>
    %1260 = vector.broadcast %1244 : vector<1x1xf32> to vector<1x32xf32>
    %1261 = arith.mulf %1260, %1236 : vector<1x32xf32>
    %1262 = arith.addf %1226, %1261 : vector<1x32xf32>
    %1263 = vector.broadcast %1259 : vector<1x1xf32> to vector<1x32xf32>
    %1264 = arith.mulf %1263, %1236 : vector<1x32xf32>
    %1265 = arith.addf %1229, %1264 : vector<1x32xf32>
    %1266 = vector.broadcast %1262 : vector<1x32xf32> to vector<80x32xf32>
    %1267 = arith.subf %678, %1266 : vector<80x32xf32>
    %1268 = arith.mulf %1265, %679 : vector<1x32xf32>
    %1269 = vector.broadcast %1268 : vector<1x32xf32> to vector<80x32xf32>
    %1270 = arith.mulf %1267, %1269 : vector<80x32xf32>
    %1271 = vector.broadcast %680 : vector<1x32xf32> to vector<80x32xf32>
    %1272 = arith.addf %1270, %1271 : vector<80x32xf32>
    %cst_333 = arith.constant 0.000000e+00 : f32
    %1273 = vector.broadcast %cst_333 : f32 to vector<80x32xf32>
    %1274 = arith.cmpf ogt, %1272, %1273 : vector<80x32xf32>
    %1275 = math.exp %1272 : vector<80x32xf32>
    %cst_334 = arith.constant 1.000000e+00 : f32
    %1276 = vector.broadcast %cst_334 : f32 to vector<80x32xf32>
    %1277 = arith.subf %1275, %1276 : vector<80x32xf32>
    %1278 = arith.select %1274, %1272, %1277 : vector<80x32xi1>, vector<80x32xf32>
    %c0_335 = arith.constant 0 : index
    %c0_336 = arith.constant 0 : index
    %1279 = vector.load %arg12[%c0_335, %c0_336] : memref<1x32xf32, #tpu.memory_space<vmem>>, vector<1x32xf32>
    %1280 = vector.broadcast %1279 : vector<1x32xf32> to vector<80x32xf32>
    %1281 = arith.addf %1278, %1280 : vector<80x32xf32>
    %c0_337 = arith.constant 0 : index
    %c0_338 = arith.constant 0 : index
    %c0_339 = arith.constant 0 : index
    %1282 = vector.load %arg2[%c0_337, %c0_338, %c0_339] : memref<1x80x16xbf16, #tpu.memory_space<vmem>>, vector<1x80x16xbf16>
    %1283 = vector.shape_cast %1282 : vector<1x80x16xbf16> to vector<80x16xbf16>
    %c0_340 = arith.constant 0 : index
    %c0_341 = arith.constant 0 : index
    %1284 = vector.load %arg11[%c0_340, %c0_341] : memref<16x32xbf16, #tpu.memory_space<vmem>>, vector<16x32xbf16>
    %cst_342 = arith.constant dense<0.000000e+00> : vector<80x32xf32>
    %1285 = tpu.matmul %1283, %1284, %cst_342 {dimension_numbers = #tpu.dot_dimension_numbers<[1], [0], [0], [1], [0, 0, 1, 1], [], []>} : vector<80x16xbf16>, vector<16x32xbf16>, vector<80x32xf32> -> vector<80x32xf32>
    %1286 = arith.addf %1281, %1285 : vector<80x32xf32>
    %c0_343 = arith.constant 0 : index
    %c0_344 = arith.constant 0 : index
    %1287 = vector.load %arg13[%c0_343, %c0_344] : memref<1x32xf32, #tpu.memory_space<vmem>>, vector<1x32xf32>
    %c0_345 = arith.constant 0 : index
    %c0_346 = arith.constant 0 : index
    %1288 = vector.load %arg14[%c0_345, %c0_346] : memref<1x32xf32, #tpu.memory_space<vmem>>, vector<1x32xf32>
    %1289 = vector.broadcast %14 : vector<80x1xf32> to vector<80x32xf32>
    %1290 = arith.mulf %1286, %1289 : vector<80x32xf32>
    %cst_347 = arith.constant dense<0.000000e+00> : vector<32xf32>
    %1291 = vector.multi_reduction <add>, %1290, %cst_347 [0] : vector<80x32xf32> to vector<32xf32>
    %1292 = vector.shape_cast %1291 : vector<32xf32> to vector<1x32xf32>
    %1293 = arith.mulf %1290, %1286 : vector<80x32xf32>
    %cst_348 = arith.constant dense<0.000000e+00> : vector<32xf32>
    %1294 = vector.multi_reduction <add>, %1293, %cst_348 [0] : vector<80x32xf32> to vector<32xf32>
    %1295 = vector.shape_cast %1294 : vector<32xf32> to vector<1x32xf32>
    %cst_349 = arith.constant 0.000000e+00 : f32
    %1296 = vector.broadcast %cst_349 : f32 to vector<1x32xf32>
    %cst_350 = arith.constant 0.000000e+00 : f32
    %1297 = vector.broadcast %cst_350 : f32 to vector<1x32xf32>
    %c0_i32_351 = arith.constant 0 : i32
    %1298 = vector.broadcast %c0_i32_351 : i32 to vector<1x32xi32>
    %1299 = arith.cmpi sge, %15, %1298 : vector<1x32xi32>
    %c2_i32_352 = arith.constant 2 : i32
    %1300 = vector.broadcast %c2_i32_352 : i32 to vector<1x32xi32>
    %1301 = arith.cmpi slt, %15, %1300 : vector<1x32xi32>
    %1302 = arith.andi %1299, %1301 : vector<1x32xi1>
    %1303 = arith.extui %1302 : vector<1x32xi1> to vector<1x32xi32>
    %1304 = arith.sitofp %1303 : vector<1x32xi32> to vector<1x32xf32>
    %1305 = arith.mulf %1292, %1304 : vector<1x32xf32>
    %1306 = vector.shape_cast %1305 : vector<1x32xf32> to vector<1x1x32xf32>
    %cst_353 = arith.constant dense<0.000000e+00> : vector<1xf32>
    %1307 = vector.multi_reduction <add>, %1306, %cst_353 [1, 2] : vector<1x1x32xf32> to vector<1xf32>
    %1308 = vector.shape_cast %1307 : vector<1xf32> to vector<1x1x1xf32>
    %1309 = vector.extract %1308[0, 0, 0] : f32 from vector<1x1x1xf32>
    %1310 = vector.broadcast %1309 : f32 to vector<1x1xf32>
    %cst_354 = arith.constant 7.812500e-03 : f32
    %1311 = vector.broadcast %cst_354 : f32 to vector<1x1xf32>
    %1312 = arith.mulf %1310, %1311 : vector<1x1xf32>
    %1313 = arith.mulf %1295, %1304 : vector<1x32xf32>
    %1314 = vector.shape_cast %1313 : vector<1x32xf32> to vector<1x1x32xf32>
    %cst_355 = arith.constant dense<0.000000e+00> : vector<1xf32>
    %1315 = vector.multi_reduction <add>, %1314, %cst_355 [1, 2] : vector<1x1x32xf32> to vector<1xf32>
    %1316 = vector.shape_cast %1315 : vector<1xf32> to vector<1x1x1xf32>
    %1317 = vector.extract %1316[0, 0, 0] : f32 from vector<1x1x1xf32>
    %1318 = vector.broadcast %1317 : f32 to vector<1x1xf32>
    %cst_356 = arith.constant 7.812500e-03 : f32
    %1319 = vector.broadcast %cst_356 : f32 to vector<1x1xf32>
    %1320 = arith.mulf %1318, %1319 : vector<1x1xf32>
    %1321 = arith.mulf %1312, %1312 : vector<1x1xf32>
    %1322 = arith.subf %1320, %1321 : vector<1x1xf32>
    %cst_357 = arith.constant 0.000000e+00 : f32
    %1323 = vector.broadcast %cst_357 : f32 to vector<1x1xf32>
    %1324 = arith.maximumf %1322, %1323 : vector<1x1xf32>
    %cst_358 = arith.constant 9.99999974E-6 : f32
    %1325 = vector.broadcast %cst_358 : f32 to vector<1x1xf32>
    %1326 = arith.addf %1324, %1325 : vector<1x1xf32>
    %1327 = math.rsqrt %1326 : vector<1x1xf32>
    %1328 = vector.broadcast %1312 : vector<1x1xf32> to vector<1x32xf32>
    %1329 = arith.mulf %1328, %1304 : vector<1x32xf32>
    %1330 = arith.addf %1296, %1329 : vector<1x32xf32>
    %1331 = vector.broadcast %1327 : vector<1x1xf32> to vector<1x32xf32>
    %1332 = arith.mulf %1331, %1304 : vector<1x32xf32>
    %1333 = arith.addf %1297, %1332 : vector<1x32xf32>
    %c2_i32_359 = arith.constant 2 : i32
    %1334 = vector.broadcast %c2_i32_359 : i32 to vector<1x32xi32>
    %1335 = arith.cmpi sge, %15, %1334 : vector<1x32xi32>
    %c4_i32_360 = arith.constant 4 : i32
    %1336 = vector.broadcast %c4_i32_360 : i32 to vector<1x32xi32>
    %1337 = arith.cmpi slt, %15, %1336 : vector<1x32xi32>
    %1338 = arith.andi %1335, %1337 : vector<1x32xi1>
    %1339 = arith.extui %1338 : vector<1x32xi1> to vector<1x32xi32>
    %1340 = arith.sitofp %1339 : vector<1x32xi32> to vector<1x32xf32>
    %1341 = arith.mulf %1292, %1340 : vector<1x32xf32>
    %1342 = vector.shape_cast %1341 : vector<1x32xf32> to vector<1x1x32xf32>
    %cst_361 = arith.constant dense<0.000000e+00> : vector<1xf32>
    %1343 = vector.multi_reduction <add>, %1342, %cst_361 [1, 2] : vector<1x1x32xf32> to vector<1xf32>
    %1344 = vector.shape_cast %1343 : vector<1xf32> to vector<1x1x1xf32>
    %1345 = vector.extract %1344[0, 0, 0] : f32 from vector<1x1x1xf32>
    %1346 = vector.broadcast %1345 : f32 to vector<1x1xf32>
    %cst_362 = arith.constant 7.812500e-03 : f32
    %1347 = vector.broadcast %cst_362 : f32 to vector<1x1xf32>
    %1348 = arith.mulf %1346, %1347 : vector<1x1xf32>
    %1349 = arith.mulf %1295, %1340 : vector<1x32xf32>
    %1350 = vector.shape_cast %1349 : vector<1x32xf32> to vector<1x1x32xf32>
    %cst_363 = arith.constant dense<0.000000e+00> : vector<1xf32>
    %1351 = vector.multi_reduction <add>, %1350, %cst_363 [1, 2] : vector<1x1x32xf32> to vector<1xf32>
    %1352 = vector.shape_cast %1351 : vector<1xf32> to vector<1x1x1xf32>
    %1353 = vector.extract %1352[0, 0, 0] : f32 from vector<1x1x1xf32>
    %1354 = vector.broadcast %1353 : f32 to vector<1x1xf32>
    %cst_364 = arith.constant 7.812500e-03 : f32
    %1355 = vector.broadcast %cst_364 : f32 to vector<1x1xf32>
    %1356 = arith.mulf %1354, %1355 : vector<1x1xf32>
    %1357 = arith.mulf %1348, %1348 : vector<1x1xf32>
    %1358 = arith.subf %1356, %1357 : vector<1x1xf32>
    %cst_365 = arith.constant 0.000000e+00 : f32
    %1359 = vector.broadcast %cst_365 : f32 to vector<1x1xf32>
    %1360 = arith.maximumf %1358, %1359 : vector<1x1xf32>
    %cst_366 = arith.constant 9.99999974E-6 : f32
    %1361 = vector.broadcast %cst_366 : f32 to vector<1x1xf32>
    %1362 = arith.addf %1360, %1361 : vector<1x1xf32>
    %1363 = math.rsqrt %1362 : vector<1x1xf32>
    %1364 = vector.broadcast %1348 : vector<1x1xf32> to vector<1x32xf32>
    %1365 = arith.mulf %1364, %1340 : vector<1x32xf32>
    %1366 = arith.addf %1330, %1365 : vector<1x32xf32>
    %1367 = vector.broadcast %1363 : vector<1x1xf32> to vector<1x32xf32>
    %1368 = arith.mulf %1367, %1340 : vector<1x32xf32>
    %1369 = arith.addf %1333, %1368 : vector<1x32xf32>
    %c4_i32_367 = arith.constant 4 : i32
    %1370 = vector.broadcast %c4_i32_367 : i32 to vector<1x32xi32>
    %1371 = arith.cmpi sge, %15, %1370 : vector<1x32xi32>
    %c6_i32_368 = arith.constant 6 : i32
    %1372 = vector.broadcast %c6_i32_368 : i32 to vector<1x32xi32>
    %1373 = arith.cmpi slt, %15, %1372 : vector<1x32xi32>
    %1374 = arith.andi %1371, %1373 : vector<1x32xi1>
    %1375 = arith.extui %1374 : vector<1x32xi1> to vector<1x32xi32>
    %1376 = arith.sitofp %1375 : vector<1x32xi32> to vector<1x32xf32>
    %1377 = arith.mulf %1292, %1376 : vector<1x32xf32>
    %1378 = vector.shape_cast %1377 : vector<1x32xf32> to vector<1x1x32xf32>
    %cst_369 = arith.constant dense<0.000000e+00> : vector<1xf32>
    %1379 = vector.multi_reduction <add>, %1378, %cst_369 [1, 2] : vector<1x1x32xf32> to vector<1xf32>
    %1380 = vector.shape_cast %1379 : vector<1xf32> to vector<1x1x1xf32>
    %1381 = vector.extract %1380[0, 0, 0] : f32 from vector<1x1x1xf32>
    %1382 = vector.broadcast %1381 : f32 to vector<1x1xf32>
    %cst_370 = arith.constant 7.812500e-03 : f32
    %1383 = vector.broadcast %cst_370 : f32 to vector<1x1xf32>
    %1384 = arith.mulf %1382, %1383 : vector<1x1xf32>
    %1385 = arith.mulf %1295, %1376 : vector<1x32xf32>
    %1386 = vector.shape_cast %1385 : vector<1x32xf32> to vector<1x1x32xf32>
    %cst_371 = arith.constant dense<0.000000e+00> : vector<1xf32>
    %1387 = vector.multi_reduction <add>, %1386, %cst_371 [1, 2] : vector<1x1x32xf32> to vector<1xf32>
    %1388 = vector.shape_cast %1387 : vector<1xf32> to vector<1x1x1xf32>
    %1389 = vector.extract %1388[0, 0, 0] : f32 from vector<1x1x1xf32>
    %1390 = vector.broadcast %1389 : f32 to vector<1x1xf32>
    %cst_372 = arith.constant 7.812500e-03 : f32
    %1391 = vector.broadcast %cst_372 : f32 to vector<1x1xf32>
    %1392 = arith.mulf %1390, %1391 : vector<1x1xf32>
    %1393 = arith.mulf %1384, %1384 : vector<1x1xf32>
    %1394 = arith.subf %1392, %1393 : vector<1x1xf32>
    %cst_373 = arith.constant 0.000000e+00 : f32
    %1395 = vector.broadcast %cst_373 : f32 to vector<1x1xf32>
    %1396 = arith.maximumf %1394, %1395 : vector<1x1xf32>
    %cst_374 = arith.constant 9.99999974E-6 : f32
    %1397 = vector.broadcast %cst_374 : f32 to vector<1x1xf32>
    %1398 = arith.addf %1396, %1397 : vector<1x1xf32>
    %1399 = math.rsqrt %1398 : vector<1x1xf32>
    %1400 = vector.broadcast %1384 : vector<1x1xf32> to vector<1x32xf32>
    %1401 = arith.mulf %1400, %1376 : vector<1x32xf32>
    %1402 = arith.addf %1366, %1401 : vector<1x32xf32>
    %1403 = vector.broadcast %1399 : vector<1x1xf32> to vector<1x32xf32>
    %1404 = arith.mulf %1403, %1376 : vector<1x32xf32>
    %1405 = arith.addf %1369, %1404 : vector<1x32xf32>
    %c6_i32_375 = arith.constant 6 : i32
    %1406 = vector.broadcast %c6_i32_375 : i32 to vector<1x32xi32>
    %1407 = arith.cmpi sge, %15, %1406 : vector<1x32xi32>
    %c8_i32_376 = arith.constant 8 : i32
    %1408 = vector.broadcast %c8_i32_376 : i32 to vector<1x32xi32>
    %1409 = arith.cmpi slt, %15, %1408 : vector<1x32xi32>
    %1410 = arith.andi %1407, %1409 : vector<1x32xi1>
    %1411 = arith.extui %1410 : vector<1x32xi1> to vector<1x32xi32>
    %1412 = arith.sitofp %1411 : vector<1x32xi32> to vector<1x32xf32>
    %1413 = arith.mulf %1292, %1412 : vector<1x32xf32>
    %1414 = vector.shape_cast %1413 : vector<1x32xf32> to vector<1x1x32xf32>
    %cst_377 = arith.constant dense<0.000000e+00> : vector<1xf32>
    %1415 = vector.multi_reduction <add>, %1414, %cst_377 [1, 2] : vector<1x1x32xf32> to vector<1xf32>
    %1416 = vector.shape_cast %1415 : vector<1xf32> to vector<1x1x1xf32>
    %1417 = vector.extract %1416[0, 0, 0] : f32 from vector<1x1x1xf32>
    %1418 = vector.broadcast %1417 : f32 to vector<1x1xf32>
    %cst_378 = arith.constant 7.812500e-03 : f32
    %1419 = vector.broadcast %cst_378 : f32 to vector<1x1xf32>
    %1420 = arith.mulf %1418, %1419 : vector<1x1xf32>
    %1421 = arith.mulf %1295, %1412 : vector<1x32xf32>
    %1422 = vector.shape_cast %1421 : vector<1x32xf32> to vector<1x1x32xf32>
    %cst_379 = arith.constant dense<0.000000e+00> : vector<1xf32>
    %1423 = vector.multi_reduction <add>, %1422, %cst_379 [1, 2] : vector<1x1x32xf32> to vector<1xf32>
    %1424 = vector.shape_cast %1423 : vector<1xf32> to vector<1x1x1xf32>
    %1425 = vector.extract %1424[0, 0, 0] : f32 from vector<1x1x1xf32>
    %1426 = vector.broadcast %1425 : f32 to vector<1x1xf32>
    %cst_380 = arith.constant 7.812500e-03 : f32
    %1427 = vector.broadcast %cst_380 : f32 to vector<1x1xf32>
    %1428 = arith.mulf %1426, %1427 : vector<1x1xf32>
    %1429 = arith.mulf %1420, %1420 : vector<1x1xf32>
    %1430 = arith.subf %1428, %1429 : vector<1x1xf32>
    %cst_381 = arith.constant 0.000000e+00 : f32
    %1431 = vector.broadcast %cst_381 : f32 to vector<1x1xf32>
    %1432 = arith.maximumf %1430, %1431 : vector<1x1xf32>
    %cst_382 = arith.constant 9.99999974E-6 : f32
    %1433 = vector.broadcast %cst_382 : f32 to vector<1x1xf32>
    %1434 = arith.addf %1432, %1433 : vector<1x1xf32>
    %1435 = math.rsqrt %1434 : vector<1x1xf32>
    %1436 = vector.broadcast %1420 : vector<1x1xf32> to vector<1x32xf32>
    %1437 = arith.mulf %1436, %1412 : vector<1x32xf32>
    %1438 = arith.addf %1402, %1437 : vector<1x32xf32>
    %1439 = vector.broadcast %1435 : vector<1x1xf32> to vector<1x32xf32>
    %1440 = arith.mulf %1439, %1412 : vector<1x32xf32>
    %1441 = arith.addf %1405, %1440 : vector<1x32xf32>
    %c8_i32_383 = arith.constant 8 : i32
    %1442 = vector.broadcast %c8_i32_383 : i32 to vector<1x32xi32>
    %1443 = arith.cmpi sge, %15, %1442 : vector<1x32xi32>
    %c10_i32_384 = arith.constant 10 : i32
    %1444 = vector.broadcast %c10_i32_384 : i32 to vector<1x32xi32>
    %1445 = arith.cmpi slt, %15, %1444 : vector<1x32xi32>
    %1446 = arith.andi %1443, %1445 : vector<1x32xi1>
    %1447 = arith.extui %1446 : vector<1x32xi1> to vector<1x32xi32>
    %1448 = arith.sitofp %1447 : vector<1x32xi32> to vector<1x32xf32>
    %1449 = arith.mulf %1292, %1448 : vector<1x32xf32>
    %1450 = vector.shape_cast %1449 : vector<1x32xf32> to vector<1x1x32xf32>
    %cst_385 = arith.constant dense<0.000000e+00> : vector<1xf32>
    %1451 = vector.multi_reduction <add>, %1450, %cst_385 [1, 2] : vector<1x1x32xf32> to vector<1xf32>
    %1452 = vector.shape_cast %1451 : vector<1xf32> to vector<1x1x1xf32>
    %1453 = vector.extract %1452[0, 0, 0] : f32 from vector<1x1x1xf32>
    %1454 = vector.broadcast %1453 : f32 to vector<1x1xf32>
    %cst_386 = arith.constant 7.812500e-03 : f32
    %1455 = vector.broadcast %cst_386 : f32 to vector<1x1xf32>
    %1456 = arith.mulf %1454, %1455 : vector<1x1xf32>
    %1457 = arith.mulf %1295, %1448 : vector<1x32xf32>
    %1458 = vector.shape_cast %1457 : vector<1x32xf32> to vector<1x1x32xf32>
    %cst_387 = arith.constant dense<0.000000e+00> : vector<1xf32>
    %1459 = vector.multi_reduction <add>, %1458, %cst_387 [1, 2] : vector<1x1x32xf32> to vector<1xf32>
    %1460 = vector.shape_cast %1459 : vector<1xf32> to vector<1x1x1xf32>
    %1461 = vector.extract %1460[0, 0, 0] : f32 from vector<1x1x1xf32>
    %1462 = vector.broadcast %1461 : f32 to vector<1x1xf32>
    %cst_388 = arith.constant 7.812500e-03 : f32
    %1463 = vector.broadcast %cst_388 : f32 to vector<1x1xf32>
    %1464 = arith.mulf %1462, %1463 : vector<1x1xf32>
    %1465 = arith.mulf %1456, %1456 : vector<1x1xf32>
    %1466 = arith.subf %1464, %1465 : vector<1x1xf32>
    %cst_389 = arith.constant 0.000000e+00 : f32
    %1467 = vector.broadcast %cst_389 : f32 to vector<1x1xf32>
    %1468 = arith.maximumf %1466, %1467 : vector<1x1xf32>
    %cst_390 = arith.constant 9.99999974E-6 : f32
    %1469 = vector.broadcast %cst_390 : f32 to vector<1x1xf32>
    %1470 = arith.addf %1468, %1469 : vector<1x1xf32>
    %1471 = math.rsqrt %1470 : vector<1x1xf32>
    %1472 = vector.broadcast %1456 : vector<1x1xf32> to vector<1x32xf32>
    %1473 = arith.mulf %1472, %1448 : vector<1x32xf32>
    %1474 = arith.addf %1438, %1473 : vector<1x32xf32>
    %1475 = vector.broadcast %1471 : vector<1x1xf32> to vector<1x32xf32>
    %1476 = arith.mulf %1475, %1448 : vector<1x32xf32>
    %1477 = arith.addf %1441, %1476 : vector<1x32xf32>
    %c10_i32_391 = arith.constant 10 : i32
    %1478 = vector.broadcast %c10_i32_391 : i32 to vector<1x32xi32>
    %1479 = arith.cmpi sge, %15, %1478 : vector<1x32xi32>
    %c12_i32_392 = arith.constant 12 : i32
    %1480 = vector.broadcast %c12_i32_392 : i32 to vector<1x32xi32>
    %1481 = arith.cmpi slt, %15, %1480 : vector<1x32xi32>
    %1482 = arith.andi %1479, %1481 : vector<1x32xi1>
    %1483 = arith.extui %1482 : vector<1x32xi1> to vector<1x32xi32>
    %1484 = arith.sitofp %1483 : vector<1x32xi32> to vector<1x32xf32>
    %1485 = arith.mulf %1292, %1484 : vector<1x32xf32>
    %1486 = vector.shape_cast %1485 : vector<1x32xf32> to vector<1x1x32xf32>
    %cst_393 = arith.constant dense<0.000000e+00> : vector<1xf32>
    %1487 = vector.multi_reduction <add>, %1486, %cst_393 [1, 2] : vector<1x1x32xf32> to vector<1xf32>
    %1488 = vector.shape_cast %1487 : vector<1xf32> to vector<1x1x1xf32>
    %1489 = vector.extract %1488[0, 0, 0] : f32 from vector<1x1x1xf32>
    %1490 = vector.broadcast %1489 : f32 to vector<1x1xf32>
    %cst_394 = arith.constant 7.812500e-03 : f32
    %1491 = vector.broadcast %cst_394 : f32 to vector<1x1xf32>
    %1492 = arith.mulf %1490, %1491 : vector<1x1xf32>
    %1493 = arith.mulf %1295, %1484 : vector<1x32xf32>
    %1494 = vector.shape_cast %1493 : vector<1x32xf32> to vector<1x1x32xf32>
    %cst_395 = arith.constant dense<0.000000e+00> : vector<1xf32>
    %1495 = vector.multi_reduction <add>, %1494, %cst_395 [1, 2] : vector<1x1x32xf32> to vector<1xf32>
    %1496 = vector.shape_cast %1495 : vector<1xf32> to vector<1x1x1xf32>
    %1497 = vector.extract %1496[0, 0, 0] : f32 from vector<1x1x1xf32>
    %1498 = vector.broadcast %1497 : f32 to vector<1x1xf32>
    %cst_396 = arith.constant 7.812500e-03 : f32
    %1499 = vector.broadcast %cst_396 : f32 to vector<1x1xf32>
    %1500 = arith.mulf %1498, %1499 : vector<1x1xf32>
    %1501 = arith.mulf %1492, %1492 : vector<1x1xf32>
    %1502 = arith.subf %1500, %1501 : vector<1x1xf32>
    %cst_397 = arith.constant 0.000000e+00 : f32
    %1503 = vector.broadcast %cst_397 : f32 to vector<1x1xf32>
    %1504 = arith.maximumf %1502, %1503 : vector<1x1xf32>
    %cst_398 = arith.constant 9.99999974E-6 : f32
    %1505 = vector.broadcast %cst_398 : f32 to vector<1x1xf32>
    %1506 = arith.addf %1504, %1505 : vector<1x1xf32>
    %1507 = math.rsqrt %1506 : vector<1x1xf32>
    %1508 = vector.broadcast %1492 : vector<1x1xf32> to vector<1x32xf32>
    %1509 = arith.mulf %1508, %1484 : vector<1x32xf32>
    %1510 = arith.addf %1474, %1509 : vector<1x32xf32>
    %1511 = vector.broadcast %1507 : vector<1x1xf32> to vector<1x32xf32>
    %1512 = arith.mulf %1511, %1484 : vector<1x32xf32>
    %1513 = arith.addf %1477, %1512 : vector<1x32xf32>
    %c12_i32_399 = arith.constant 12 : i32
    %1514 = vector.broadcast %c12_i32_399 : i32 to vector<1x32xi32>
    %1515 = arith.cmpi sge, %15, %1514 : vector<1x32xi32>
    %c14_i32_400 = arith.constant 14 : i32
    %1516 = vector.broadcast %c14_i32_400 : i32 to vector<1x32xi32>
    %1517 = arith.cmpi slt, %15, %1516 : vector<1x32xi32>
    %1518 = arith.andi %1515, %1517 : vector<1x32xi1>
    %1519 = arith.extui %1518 : vector<1x32xi1> to vector<1x32xi32>
    %1520 = arith.sitofp %1519 : vector<1x32xi32> to vector<1x32xf32>
    %1521 = arith.mulf %1292, %1520 : vector<1x32xf32>
    %1522 = vector.shape_cast %1521 : vector<1x32xf32> to vector<1x1x32xf32>
    %cst_401 = arith.constant dense<0.000000e+00> : vector<1xf32>
    %1523 = vector.multi_reduction <add>, %1522, %cst_401 [1, 2] : vector<1x1x32xf32> to vector<1xf32>
    %1524 = vector.shape_cast %1523 : vector<1xf32> to vector<1x1x1xf32>
    %1525 = vector.extract %1524[0, 0, 0] : f32 from vector<1x1x1xf32>
    %1526 = vector.broadcast %1525 : f32 to vector<1x1xf32>
    %cst_402 = arith.constant 7.812500e-03 : f32
    %1527 = vector.broadcast %cst_402 : f32 to vector<1x1xf32>
    %1528 = arith.mulf %1526, %1527 : vector<1x1xf32>
    %1529 = arith.mulf %1295, %1520 : vector<1x32xf32>
    %1530 = vector.shape_cast %1529 : vector<1x32xf32> to vector<1x1x32xf32>
    %cst_403 = arith.constant dense<0.000000e+00> : vector<1xf32>
    %1531 = vector.multi_reduction <add>, %1530, %cst_403 [1, 2] : vector<1x1x32xf32> to vector<1xf32>
    %1532 = vector.shape_cast %1531 : vector<1xf32> to vector<1x1x1xf32>
    %1533 = vector.extract %1532[0, 0, 0] : f32 from vector<1x1x1xf32>
    %1534 = vector.broadcast %1533 : f32 to vector<1x1xf32>
    %cst_404 = arith.constant 7.812500e-03 : f32
    %1535 = vector.broadcast %cst_404 : f32 to vector<1x1xf32>
    %1536 = arith.mulf %1534, %1535 : vector<1x1xf32>
    %1537 = arith.mulf %1528, %1528 : vector<1x1xf32>
    %1538 = arith.subf %1536, %1537 : vector<1x1xf32>
    %cst_405 = arith.constant 0.000000e+00 : f32
    %1539 = vector.broadcast %cst_405 : f32 to vector<1x1xf32>
    %1540 = arith.maximumf %1538, %1539 : vector<1x1xf32>
    %cst_406 = arith.constant 9.99999974E-6 : f32
    %1541 = vector.broadcast %cst_406 : f32 to vector<1x1xf32>
    %1542 = arith.addf %1540, %1541 : vector<1x1xf32>
    %1543 = math.rsqrt %1542 : vector<1x1xf32>
    %1544 = vector.broadcast %1528 : vector<1x1xf32> to vector<1x32xf32>
    %1545 = arith.mulf %1544, %1520 : vector<1x32xf32>
    %1546 = arith.addf %1510, %1545 : vector<1x32xf32>
    %1547 = vector.broadcast %1543 : vector<1x1xf32> to vector<1x32xf32>
    %1548 = arith.mulf %1547, %1520 : vector<1x32xf32>
    %1549 = arith.addf %1513, %1548 : vector<1x32xf32>
    %c14_i32_407 = arith.constant 14 : i32
    %1550 = vector.broadcast %c14_i32_407 : i32 to vector<1x32xi32>
    %1551 = arith.cmpi sge, %15, %1550 : vector<1x32xi32>
    %c16_i32_408 = arith.constant 16 : i32
    %1552 = vector.broadcast %c16_i32_408 : i32 to vector<1x32xi32>
    %1553 = arith.cmpi slt, %15, %1552 : vector<1x32xi32>
    %1554 = arith.andi %1551, %1553 : vector<1x32xi1>
    %1555 = arith.extui %1554 : vector<1x32xi1> to vector<1x32xi32>
    %1556 = arith.sitofp %1555 : vector<1x32xi32> to vector<1x32xf32>
    %1557 = arith.mulf %1292, %1556 : vector<1x32xf32>
    %1558 = vector.shape_cast %1557 : vector<1x32xf32> to vector<1x1x32xf32>
    %cst_409 = arith.constant dense<0.000000e+00> : vector<1xf32>
    %1559 = vector.multi_reduction <add>, %1558, %cst_409 [1, 2] : vector<1x1x32xf32> to vector<1xf32>
    %1560 = vector.shape_cast %1559 : vector<1xf32> to vector<1x1x1xf32>
    %1561 = vector.extract %1560[0, 0, 0] : f32 from vector<1x1x1xf32>
    %1562 = vector.broadcast %1561 : f32 to vector<1x1xf32>
    %cst_410 = arith.constant 7.812500e-03 : f32
    %1563 = vector.broadcast %cst_410 : f32 to vector<1x1xf32>
    %1564 = arith.mulf %1562, %1563 : vector<1x1xf32>
    %1565 = arith.mulf %1295, %1556 : vector<1x32xf32>
    %1566 = vector.shape_cast %1565 : vector<1x32xf32> to vector<1x1x32xf32>
    %cst_411 = arith.constant dense<0.000000e+00> : vector<1xf32>
    %1567 = vector.multi_reduction <add>, %1566, %cst_411 [1, 2] : vector<1x1x32xf32> to vector<1xf32>
    %1568 = vector.shape_cast %1567 : vector<1xf32> to vector<1x1x1xf32>
    %1569 = vector.extract %1568[0, 0, 0] : f32 from vector<1x1x1xf32>
    %1570 = vector.broadcast %1569 : f32 to vector<1x1xf32>
    %cst_412 = arith.constant 7.812500e-03 : f32
    %1571 = vector.broadcast %cst_412 : f32 to vector<1x1xf32>
    %1572 = arith.mulf %1570, %1571 : vector<1x1xf32>
    %1573 = arith.mulf %1564, %1564 : vector<1x1xf32>
    %1574 = arith.subf %1572, %1573 : vector<1x1xf32>
    %cst_413 = arith.constant 0.000000e+00 : f32
    %1575 = vector.broadcast %cst_413 : f32 to vector<1x1xf32>
    %1576 = arith.maximumf %1574, %1575 : vector<1x1xf32>
    %cst_414 = arith.constant 9.99999974E-6 : f32
    %1577 = vector.broadcast %cst_414 : f32 to vector<1x1xf32>
    %1578 = arith.addf %1576, %1577 : vector<1x1xf32>
    %1579 = math.rsqrt %1578 : vector<1x1xf32>
    %1580 = vector.broadcast %1564 : vector<1x1xf32> to vector<1x32xf32>
    %1581 = arith.mulf %1580, %1556 : vector<1x32xf32>
    %1582 = arith.addf %1546, %1581 : vector<1x32xf32>
    %1583 = vector.broadcast %1579 : vector<1x1xf32> to vector<1x32xf32>
    %1584 = arith.mulf %1583, %1556 : vector<1x32xf32>
    %1585 = arith.addf %1549, %1584 : vector<1x32xf32>
    %c16_i32_415 = arith.constant 16 : i32
    %1586 = vector.broadcast %c16_i32_415 : i32 to vector<1x32xi32>
    %1587 = arith.cmpi sge, %15, %1586 : vector<1x32xi32>
    %c18_i32_416 = arith.constant 18 : i32
    %1588 = vector.broadcast %c18_i32_416 : i32 to vector<1x32xi32>
    %1589 = arith.cmpi slt, %15, %1588 : vector<1x32xi32>
    %1590 = arith.andi %1587, %1589 : vector<1x32xi1>
    %1591 = arith.extui %1590 : vector<1x32xi1> to vector<1x32xi32>
    %1592 = arith.sitofp %1591 : vector<1x32xi32> to vector<1x32xf32>
    %1593 = arith.mulf %1292, %1592 : vector<1x32xf32>
    %1594 = vector.shape_cast %1593 : vector<1x32xf32> to vector<1x1x32xf32>
    %cst_417 = arith.constant dense<0.000000e+00> : vector<1xf32>
    %1595 = vector.multi_reduction <add>, %1594, %cst_417 [1, 2] : vector<1x1x32xf32> to vector<1xf32>
    %1596 = vector.shape_cast %1595 : vector<1xf32> to vector<1x1x1xf32>
    %1597 = vector.extract %1596[0, 0, 0] : f32 from vector<1x1x1xf32>
    %1598 = vector.broadcast %1597 : f32 to vector<1x1xf32>
    %cst_418 = arith.constant 7.812500e-03 : f32
    %1599 = vector.broadcast %cst_418 : f32 to vector<1x1xf32>
    %1600 = arith.mulf %1598, %1599 : vector<1x1xf32>
    %1601 = arith.mulf %1295, %1592 : vector<1x32xf32>
    %1602 = vector.shape_cast %1601 : vector<1x32xf32> to vector<1x1x32xf32>
    %cst_419 = arith.constant dense<0.000000e+00> : vector<1xf32>
    %1603 = vector.multi_reduction <add>, %1602, %cst_419 [1, 2] : vector<1x1x32xf32> to vector<1xf32>
    %1604 = vector.shape_cast %1603 : vector<1xf32> to vector<1x1x1xf32>
    %1605 = vector.extract %1604[0, 0, 0] : f32 from vector<1x1x1xf32>
    %1606 = vector.broadcast %1605 : f32 to vector<1x1xf32>
    %cst_420 = arith.constant 7.812500e-03 : f32
    %1607 = vector.broadcast %cst_420 : f32 to vector<1x1xf32>
    %1608 = arith.mulf %1606, %1607 : vector<1x1xf32>
    %1609 = arith.mulf %1600, %1600 : vector<1x1xf32>
    %1610 = arith.subf %1608, %1609 : vector<1x1xf32>
    %cst_421 = arith.constant 0.000000e+00 : f32
    %1611 = vector.broadcast %cst_421 : f32 to vector<1x1xf32>
    %1612 = arith.maximumf %1610, %1611 : vector<1x1xf32>
    %cst_422 = arith.constant 9.99999974E-6 : f32
    %1613 = vector.broadcast %cst_422 : f32 to vector<1x1xf32>
    %1614 = arith.addf %1612, %1613 : vector<1x1xf32>
    %1615 = math.rsqrt %1614 : vector<1x1xf32>
    %1616 = vector.broadcast %1600 : vector<1x1xf32> to vector<1x32xf32>
    %1617 = arith.mulf %1616, %1592 : vector<1x32xf32>
    %1618 = arith.addf %1582, %1617 : vector<1x32xf32>
    %1619 = vector.broadcast %1615 : vector<1x1xf32> to vector<1x32xf32>
    %1620 = arith.mulf %1619, %1592 : vector<1x32xf32>
    %1621 = arith.addf %1585, %1620 : vector<1x32xf32>
    %c18_i32_423 = arith.constant 18 : i32
    %1622 = vector.broadcast %c18_i32_423 : i32 to vector<1x32xi32>
    %1623 = arith.cmpi sge, %15, %1622 : vector<1x32xi32>
    %c20_i32_424 = arith.constant 20 : i32
    %1624 = vector.broadcast %c20_i32_424 : i32 to vector<1x32xi32>
    %1625 = arith.cmpi slt, %15, %1624 : vector<1x32xi32>
    %1626 = arith.andi %1623, %1625 : vector<1x32xi1>
    %1627 = arith.extui %1626 : vector<1x32xi1> to vector<1x32xi32>
    %1628 = arith.sitofp %1627 : vector<1x32xi32> to vector<1x32xf32>
    %1629 = arith.mulf %1292, %1628 : vector<1x32xf32>
    %1630 = vector.shape_cast %1629 : vector<1x32xf32> to vector<1x1x32xf32>
    %cst_425 = arith.constant dense<0.000000e+00> : vector<1xf32>
    %1631 = vector.multi_reduction <add>, %1630, %cst_425 [1, 2] : vector<1x1x32xf32> to vector<1xf32>
    %1632 = vector.shape_cast %1631 : vector<1xf32> to vector<1x1x1xf32>
    %1633 = vector.extract %1632[0, 0, 0] : f32 from vector<1x1x1xf32>
    %1634 = vector.broadcast %1633 : f32 to vector<1x1xf32>
    %cst_426 = arith.constant 7.812500e-03 : f32
    %1635 = vector.broadcast %cst_426 : f32 to vector<1x1xf32>
    %1636 = arith.mulf %1634, %1635 : vector<1x1xf32>
    %1637 = arith.mulf %1295, %1628 : vector<1x32xf32>
    %1638 = vector.shape_cast %1637 : vector<1x32xf32> to vector<1x1x32xf32>
    %cst_427 = arith.constant dense<0.000000e+00> : vector<1xf32>
    %1639 = vector.multi_reduction <add>, %1638, %cst_427 [1, 2] : vector<1x1x32xf32> to vector<1xf32>
    %1640 = vector.shape_cast %1639 : vector<1xf32> to vector<1x1x1xf32>
    %1641 = vector.extract %1640[0, 0, 0] : f32 from vector<1x1x1xf32>
    %1642 = vector.broadcast %1641 : f32 to vector<1x1xf32>
    %cst_428 = arith.constant 7.812500e-03 : f32
    %1643 = vector.broadcast %cst_428 : f32 to vector<1x1xf32>
    %1644 = arith.mulf %1642, %1643 : vector<1x1xf32>
    %1645 = arith.mulf %1636, %1636 : vector<1x1xf32>
    %1646 = arith.subf %1644, %1645 : vector<1x1xf32>
    %cst_429 = arith.constant 0.000000e+00 : f32
    %1647 = vector.broadcast %cst_429 : f32 to vector<1x1xf32>
    %1648 = arith.maximumf %1646, %1647 : vector<1x1xf32>
    %cst_430 = arith.constant 9.99999974E-6 : f32
    %1649 = vector.broadcast %cst_430 : f32 to vector<1x1xf32>
    %1650 = arith.addf %1648, %1649 : vector<1x1xf32>
    %1651 = math.rsqrt %1650 : vector<1x1xf32>
    %1652 = vector.broadcast %1636 : vector<1x1xf32> to vector<1x32xf32>
    %1653 = arith.mulf %1652, %1628 : vector<1x32xf32>
    %1654 = arith.addf %1618, %1653 : vector<1x32xf32>
    %1655 = vector.broadcast %1651 : vector<1x1xf32> to vector<1x32xf32>
    %1656 = arith.mulf %1655, %1628 : vector<1x32xf32>
    %1657 = arith.addf %1621, %1656 : vector<1x32xf32>
    %c20_i32_431 = arith.constant 20 : i32
    %1658 = vector.broadcast %c20_i32_431 : i32 to vector<1x32xi32>
    %1659 = arith.cmpi sge, %15, %1658 : vector<1x32xi32>
    %c22_i32_432 = arith.constant 22 : i32
    %1660 = vector.broadcast %c22_i32_432 : i32 to vector<1x32xi32>
    %1661 = arith.cmpi slt, %15, %1660 : vector<1x32xi32>
    %1662 = arith.andi %1659, %1661 : vector<1x32xi1>
    %1663 = arith.extui %1662 : vector<1x32xi1> to vector<1x32xi32>
    %1664 = arith.sitofp %1663 : vector<1x32xi32> to vector<1x32xf32>
    %1665 = arith.mulf %1292, %1664 : vector<1x32xf32>
    %1666 = vector.shape_cast %1665 : vector<1x32xf32> to vector<1x1x32xf32>
    %cst_433 = arith.constant dense<0.000000e+00> : vector<1xf32>
    %1667 = vector.multi_reduction <add>, %1666, %cst_433 [1, 2] : vector<1x1x32xf32> to vector<1xf32>
    %1668 = vector.shape_cast %1667 : vector<1xf32> to vector<1x1x1xf32>
    %1669 = vector.extract %1668[0, 0, 0] : f32 from vector<1x1x1xf32>
    %1670 = vector.broadcast %1669 : f32 to vector<1x1xf32>
    %cst_434 = arith.constant 7.812500e-03 : f32
    %1671 = vector.broadcast %cst_434 : f32 to vector<1x1xf32>
    %1672 = arith.mulf %1670, %1671 : vector<1x1xf32>
    %1673 = arith.mulf %1295, %1664 : vector<1x32xf32>
    %1674 = vector.shape_cast %1673 : vector<1x32xf32> to vector<1x1x32xf32>
    %cst_435 = arith.constant dense<0.000000e+00> : vector<1xf32>
    %1675 = vector.multi_reduction <add>, %1674, %cst_435 [1, 2] : vector<1x1x32xf32> to vector<1xf32>
    %1676 = vector.shape_cast %1675 : vector<1xf32> to vector<1x1x1xf32>
    %1677 = vector.extract %1676[0, 0, 0] : f32 from vector<1x1x1xf32>
    %1678 = vector.broadcast %1677 : f32 to vector<1x1xf32>
    %cst_436 = arith.constant 7.812500e-03 : f32
    %1679 = vector.broadcast %cst_436 : f32 to vector<1x1xf32>
    %1680 = arith.mulf %1678, %1679 : vector<1x1xf32>
    %1681 = arith.mulf %1672, %1672 : vector<1x1xf32>
    %1682 = arith.subf %1680, %1681 : vector<1x1xf32>
    %cst_437 = arith.constant 0.000000e+00 : f32
    %1683 = vector.broadcast %cst_437 : f32 to vector<1x1xf32>
    %1684 = arith.maximumf %1682, %1683 : vector<1x1xf32>
    %cst_438 = arith.constant 9.99999974E-6 : f32
    %1685 = vector.broadcast %cst_438 : f32 to vector<1x1xf32>
    %1686 = arith.addf %1684, %1685 : vector<1x1xf32>
    %1687 = math.rsqrt %1686 : vector<1x1xf32>
    %1688 = vector.broadcast %1672 : vector<1x1xf32> to vector<1x32xf32>
    %1689 = arith.mulf %1688, %1664 : vector<1x32xf32>
    %1690 = arith.addf %1654, %1689 : vector<1x32xf32>
    %1691 = vector.broadcast %1687 : vector<1x1xf32> to vector<1x32xf32>
    %1692 = arith.mulf %1691, %1664 : vector<1x32xf32>
    %1693 = arith.addf %1657, %1692 : vector<1x32xf32>
    %c22_i32_439 = arith.constant 22 : i32
    %1694 = vector.broadcast %c22_i32_439 : i32 to vector<1x32xi32>
    %1695 = arith.cmpi sge, %15, %1694 : vector<1x32xi32>
    %c24_i32_440 = arith.constant 24 : i32
    %1696 = vector.broadcast %c24_i32_440 : i32 to vector<1x32xi32>
    %1697 = arith.cmpi slt, %15, %1696 : vector<1x32xi32>
    %1698 = arith.andi %1695, %1697 : vector<1x32xi1>
    %1699 = arith.extui %1698 : vector<1x32xi1> to vector<1x32xi32>
    %1700 = arith.sitofp %1699 : vector<1x32xi32> to vector<1x32xf32>
    %1701 = arith.mulf %1292, %1700 : vector<1x32xf32>
    %1702 = vector.shape_cast %1701 : vector<1x32xf32> to vector<1x1x32xf32>
    %cst_441 = arith.constant dense<0.000000e+00> : vector<1xf32>
    %1703 = vector.multi_reduction <add>, %1702, %cst_441 [1, 2] : vector<1x1x32xf32> to vector<1xf32>
    %1704 = vector.shape_cast %1703 : vector<1xf32> to vector<1x1x1xf32>
    %1705 = vector.extract %1704[0, 0, 0] : f32 from vector<1x1x1xf32>
    %1706 = vector.broadcast %1705 : f32 to vector<1x1xf32>
    %cst_442 = arith.constant 7.812500e-03 : f32
    %1707 = vector.broadcast %cst_442 : f32 to vector<1x1xf32>
    %1708 = arith.mulf %1706, %1707 : vector<1x1xf32>
    %1709 = arith.mulf %1295, %1700 : vector<1x32xf32>
    %1710 = vector.shape_cast %1709 : vector<1x32xf32> to vector<1x1x32xf32>
    %cst_443 = arith.constant dense<0.000000e+00> : vector<1xf32>
    %1711 = vector.multi_reduction <add>, %1710, %cst_443 [1, 2] : vector<1x1x32xf32> to vector<1xf32>
    %1712 = vector.shape_cast %1711 : vector<1xf32> to vector<1x1x1xf32>
    %1713 = vector.extract %1712[0, 0, 0] : f32 from vector<1x1x1xf32>
    %1714 = vector.broadcast %1713 : f32 to vector<1x1xf32>
    %cst_444 = arith.constant 7.812500e-03 : f32
    %1715 = vector.broadcast %cst_444 : f32 to vector<1x1xf32>
    %1716 = arith.mulf %1714, %1715 : vector<1x1xf32>
    %1717 = arith.mulf %1708, %1708 : vector<1x1xf32>
    %1718 = arith.subf %1716, %1717 : vector<1x1xf32>
    %cst_445 = arith.constant 0.000000e+00 : f32
    %1719 = vector.broadcast %cst_445 : f32 to vector<1x1xf32>
    %1720 = arith.maximumf %1718, %1719 : vector<1x1xf32>
    %cst_446 = arith.constant 9.99999974E-6 : f32
    %1721 = vector.broadcast %cst_446 : f32 to vector<1x1xf32>
    %1722 = arith.addf %1720, %1721 : vector<1x1xf32>
    %1723 = math.rsqrt %1722 : vector<1x1xf32>
    %1724 = vector.broadcast %1708 : vector<1x1xf32> to vector<1x32xf32>
    %1725 = arith.mulf %1724, %1700 : vector<1x32xf32>
    %1726 = arith.addf %1690, %1725 : vector<1x32xf32>
    %1727 = vector.broadcast %1723 : vector<1x1xf32> to vector<1x32xf32>
    %1728 = arith.mulf %1727, %1700 : vector<1x32xf32>
    %1729 = arith.addf %1693, %1728 : vector<1x32xf32>
    %c24_i32_447 = arith.constant 24 : i32
    %1730 = vector.broadcast %c24_i32_447 : i32 to vector<1x32xi32>
    %1731 = arith.cmpi sge, %15, %1730 : vector<1x32xi32>
    %c26_i32_448 = arith.constant 26 : i32
    %1732 = vector.broadcast %c26_i32_448 : i32 to vector<1x32xi32>
    %1733 = arith.cmpi slt, %15, %1732 : vector<1x32xi32>
    %1734 = arith.andi %1731, %1733 : vector<1x32xi1>
    %1735 = arith.extui %1734 : vector<1x32xi1> to vector<1x32xi32>
    %1736 = arith.sitofp %1735 : vector<1x32xi32> to vector<1x32xf32>
    %1737 = arith.mulf %1292, %1736 : vector<1x32xf32>
    %1738 = vector.shape_cast %1737 : vector<1x32xf32> to vector<1x1x32xf32>
    %cst_449 = arith.constant dense<0.000000e+00> : vector<1xf32>
    %1739 = vector.multi_reduction <add>, %1738, %cst_449 [1, 2] : vector<1x1x32xf32> to vector<1xf32>
    %1740 = vector.shape_cast %1739 : vector<1xf32> to vector<1x1x1xf32>
    %1741 = vector.extract %1740[0, 0, 0] : f32 from vector<1x1x1xf32>
    %1742 = vector.broadcast %1741 : f32 to vector<1x1xf32>
    %cst_450 = arith.constant 7.812500e-03 : f32
    %1743 = vector.broadcast %cst_450 : f32 to vector<1x1xf32>
    %1744 = arith.mulf %1742, %1743 : vector<1x1xf32>
    %1745 = arith.mulf %1295, %1736 : vector<1x32xf32>
    %1746 = vector.shape_cast %1745 : vector<1x32xf32> to vector<1x1x32xf32>
    %cst_451 = arith.constant dense<0.000000e+00> : vector<1xf32>
    %1747 = vector.multi_reduction <add>, %1746, %cst_451 [1, 2] : vector<1x1x32xf32> to vector<1xf32>
    %1748 = vector.shape_cast %1747 : vector<1xf32> to vector<1x1x1xf32>
    %1749 = vector.extract %1748[0, 0, 0] : f32 from vector<1x1x1xf32>
    %1750 = vector.broadcast %1749 : f32 to vector<1x1xf32>
    %cst_452 = arith.constant 7.812500e-03 : f32
    %1751 = vector.broadcast %cst_452 : f32 to vector<1x1xf32>
    %1752 = arith.mulf %1750, %1751 : vector<1x1xf32>
    %1753 = arith.mulf %1744, %1744 : vector<1x1xf32>
    %1754 = arith.subf %1752, %1753 : vector<1x1xf32>
    %cst_453 = arith.constant 0.000000e+00 : f32
    %1755 = vector.broadcast %cst_453 : f32 to vector<1x1xf32>
    %1756 = arith.maximumf %1754, %1755 : vector<1x1xf32>
    %cst_454 = arith.constant 9.99999974E-6 : f32
    %1757 = vector.broadcast %cst_454 : f32 to vector<1x1xf32>
    %1758 = arith.addf %1756, %1757 : vector<1x1xf32>
    %1759 = math.rsqrt %1758 : vector<1x1xf32>
    %1760 = vector.broadcast %1744 : vector<1x1xf32> to vector<1x32xf32>
    %1761 = arith.mulf %1760, %1736 : vector<1x32xf32>
    %1762 = arith.addf %1726, %1761 : vector<1x32xf32>
    %1763 = vector.broadcast %1759 : vector<1x1xf32> to vector<1x32xf32>
    %1764 = arith.mulf %1763, %1736 : vector<1x32xf32>
    %1765 = arith.addf %1729, %1764 : vector<1x32xf32>
    %c26_i32_455 = arith.constant 26 : i32
    %1766 = vector.broadcast %c26_i32_455 : i32 to vector<1x32xi32>
    %1767 = arith.cmpi sge, %15, %1766 : vector<1x32xi32>
    %c28_i32_456 = arith.constant 28 : i32
    %1768 = vector.broadcast %c28_i32_456 : i32 to vector<1x32xi32>
    %1769 = arith.cmpi slt, %15, %1768 : vector<1x32xi32>
    %1770 = arith.andi %1767, %1769 : vector<1x32xi1>
    %1771 = arith.extui %1770 : vector<1x32xi1> to vector<1x32xi32>
    %1772 = arith.sitofp %1771 : vector<1x32xi32> to vector<1x32xf32>
    %1773 = arith.mulf %1292, %1772 : vector<1x32xf32>
    %1774 = vector.shape_cast %1773 : vector<1x32xf32> to vector<1x1x32xf32>
    %cst_457 = arith.constant dense<0.000000e+00> : vector<1xf32>
    %1775 = vector.multi_reduction <add>, %1774, %cst_457 [1, 2] : vector<1x1x32xf32> to vector<1xf32>
    %1776 = vector.shape_cast %1775 : vector<1xf32> to vector<1x1x1xf32>
    %1777 = vector.extract %1776[0, 0, 0] : f32 from vector<1x1x1xf32>
    %1778 = vector.broadcast %1777 : f32 to vector<1x1xf32>
    %cst_458 = arith.constant 7.812500e-03 : f32
    %1779 = vector.broadcast %cst_458 : f32 to vector<1x1xf32>
    %1780 = arith.mulf %1778, %1779 : vector<1x1xf32>
    %1781 = arith.mulf %1295, %1772 : vector<1x32xf32>
    %1782 = vector.shape_cast %1781 : vector<1x32xf32> to vector<1x1x32xf32>
    %cst_459 = arith.constant dense<0.000000e+00> : vector<1xf32>
    %1783 = vector.multi_reduction <add>, %1782, %cst_459 [1, 2] : vector<1x1x32xf32> to vector<1xf32>
    %1784 = vector.shape_cast %1783 : vector<1xf32> to vector<1x1x1xf32>
    %1785 = vector.extract %1784[0, 0, 0] : f32 from vector<1x1x1xf32>
    %1786 = vector.broadcast %1785 : f32 to vector<1x1xf32>
    %cst_460 = arith.constant 7.812500e-03 : f32
    %1787 = vector.broadcast %cst_460 : f32 to vector<1x1xf32>
    %1788 = arith.mulf %1786, %1787 : vector<1x1xf32>
    %1789 = arith.mulf %1780, %1780 : vector<1x1xf32>
    %1790 = arith.subf %1788, %1789 : vector<1x1xf32>
    %cst_461 = arith.constant 0.000000e+00 : f32
    %1791 = vector.broadcast %cst_461 : f32 to vector<1x1xf32>
    %1792 = arith.maximumf %1790, %1791 : vector<1x1xf32>
    %cst_462 = arith.constant 9.99999974E-6 : f32
    %1793 = vector.broadcast %cst_462 : f32 to vector<1x1xf32>
    %1794 = arith.addf %1792, %1793 : vector<1x1xf32>
    %1795 = math.rsqrt %1794 : vector<1x1xf32>
    %1796 = vector.broadcast %1780 : vector<1x1xf32> to vector<1x32xf32>
    %1797 = arith.mulf %1796, %1772 : vector<1x32xf32>
    %1798 = arith.addf %1762, %1797 : vector<1x32xf32>
    %1799 = vector.broadcast %1795 : vector<1x1xf32> to vector<1x32xf32>
    %1800 = arith.mulf %1799, %1772 : vector<1x32xf32>
    %1801 = arith.addf %1765, %1800 : vector<1x32xf32>
    %c28_i32_463 = arith.constant 28 : i32
    %1802 = vector.broadcast %c28_i32_463 : i32 to vector<1x32xi32>
    %1803 = arith.cmpi sge, %15, %1802 : vector<1x32xi32>
    %c30_i32_464 = arith.constant 30 : i32
    %1804 = vector.broadcast %c30_i32_464 : i32 to vector<1x32xi32>
    %1805 = arith.cmpi slt, %15, %1804 : vector<1x32xi32>
    %1806 = arith.andi %1803, %1805 : vector<1x32xi1>
    %1807 = arith.extui %1806 : vector<1x32xi1> to vector<1x32xi32>
    %1808 = arith.sitofp %1807 : vector<1x32xi32> to vector<1x32xf32>
    %1809 = arith.mulf %1292, %1808 : vector<1x32xf32>
    %1810 = vector.shape_cast %1809 : vector<1x32xf32> to vector<1x1x32xf32>
    %cst_465 = arith.constant dense<0.000000e+00> : vector<1xf32>
    %1811 = vector.multi_reduction <add>, %1810, %cst_465 [1, 2] : vector<1x1x32xf32> to vector<1xf32>
    %1812 = vector.shape_cast %1811 : vector<1xf32> to vector<1x1x1xf32>
    %1813 = vector.extract %1812[0, 0, 0] : f32 from vector<1x1x1xf32>
    %1814 = vector.broadcast %1813 : f32 to vector<1x1xf32>
    %cst_466 = arith.constant 7.812500e-03 : f32
    %1815 = vector.broadcast %cst_466 : f32 to vector<1x1xf32>
    %1816 = arith.mulf %1814, %1815 : vector<1x1xf32>
    %1817 = arith.mulf %1295, %1808 : vector<1x32xf32>
    %1818 = vector.shape_cast %1817 : vector<1x32xf32> to vector<1x1x32xf32>
    %cst_467 = arith.constant dense<0.000000e+00> : vector<1xf32>
    %1819 = vector.multi_reduction <add>, %1818, %cst_467 [1, 2] : vector<1x1x32xf32> to vector<1xf32>
    %1820 = vector.shape_cast %1819 : vector<1xf32> to vector<1x1x1xf32>
    %1821 = vector.extract %1820[0, 0, 0] : f32 from vector<1x1x1xf32>
    %1822 = vector.broadcast %1821 : f32 to vector<1x1xf32>
    %cst_468 = arith.constant 7.812500e-03 : f32
    %1823 = vector.broadcast %cst_468 : f32 to vector<1x1xf32>
    %1824 = arith.mulf %1822, %1823 : vector<1x1xf32>
    %1825 = arith.mulf %1816, %1816 : vector<1x1xf32>
    %1826 = arith.subf %1824, %1825 : vector<1x1xf32>
    %cst_469 = arith.constant 0.000000e+00 : f32
    %1827 = vector.broadcast %cst_469 : f32 to vector<1x1xf32>
    %1828 = arith.maximumf %1826, %1827 : vector<1x1xf32>
    %cst_470 = arith.constant 9.99999974E-6 : f32
    %1829 = vector.broadcast %cst_470 : f32 to vector<1x1xf32>
    %1830 = arith.addf %1828, %1829 : vector<1x1xf32>
    %1831 = math.rsqrt %1830 : vector<1x1xf32>
    %1832 = vector.broadcast %1816 : vector<1x1xf32> to vector<1x32xf32>
    %1833 = arith.mulf %1832, %1808 : vector<1x32xf32>
    %1834 = arith.addf %1798, %1833 : vector<1x32xf32>
    %1835 = vector.broadcast %1831 : vector<1x1xf32> to vector<1x32xf32>
    %1836 = arith.mulf %1835, %1808 : vector<1x32xf32>
    %1837 = arith.addf %1801, %1836 : vector<1x32xf32>
    %c30_i32_471 = arith.constant 30 : i32
    %1838 = vector.broadcast %c30_i32_471 : i32 to vector<1x32xi32>
    %1839 = arith.cmpi sge, %15, %1838 : vector<1x32xi32>
    %c32_i32_472 = arith.constant 32 : i32
    %1840 = vector.broadcast %c32_i32_472 : i32 to vector<1x32xi32>
    %1841 = arith.cmpi slt, %15, %1840 : vector<1x32xi32>
    %1842 = arith.andi %1839, %1841 : vector<1x32xi1>
    %1843 = arith.extui %1842 : vector<1x32xi1> to vector<1x32xi32>
    %1844 = arith.sitofp %1843 : vector<1x32xi32> to vector<1x32xf32>
    %1845 = arith.mulf %1292, %1844 : vector<1x32xf32>
    %1846 = vector.shape_cast %1845 : vector<1x32xf32> to vector<1x1x32xf32>
    %cst_473 = arith.constant dense<0.000000e+00> : vector<1xf32>
    %1847 = vector.multi_reduction <add>, %1846, %cst_473 [1, 2] : vector<1x1x32xf32> to vector<1xf32>
    %1848 = vector.shape_cast %1847 : vector<1xf32> to vector<1x1x1xf32>
    %1849 = vector.extract %1848[0, 0, 0] : f32 from vector<1x1x1xf32>
    %1850 = vector.broadcast %1849 : f32 to vector<1x1xf32>
    %cst_474 = arith.constant 7.812500e-03 : f32
    %1851 = vector.broadcast %cst_474 : f32 to vector<1x1xf32>
    %1852 = arith.mulf %1850, %1851 : vector<1x1xf32>
    %1853 = arith.mulf %1295, %1844 : vector<1x32xf32>
    %1854 = vector.shape_cast %1853 : vector<1x32xf32> to vector<1x1x32xf32>
    %cst_475 = arith.constant dense<0.000000e+00> : vector<1xf32>
    %1855 = vector.multi_reduction <add>, %1854, %cst_475 [1, 2] : vector<1x1x32xf32> to vector<1xf32>
    %1856 = vector.shape_cast %1855 : vector<1xf32> to vector<1x1x1xf32>
    %1857 = vector.extract %1856[0, 0, 0] : f32 from vector<1x1x1xf32>
    %1858 = vector.broadcast %1857 : f32 to vector<1x1xf32>
    %cst_476 = arith.constant 7.812500e-03 : f32
    %1859 = vector.broadcast %cst_476 : f32 to vector<1x1xf32>
    %1860 = arith.mulf %1858, %1859 : vector<1x1xf32>
    %1861 = arith.mulf %1852, %1852 : vector<1x1xf32>
    %1862 = arith.subf %1860, %1861 : vector<1x1xf32>
    %cst_477 = arith.constant 0.000000e+00 : f32
    %1863 = vector.broadcast %cst_477 : f32 to vector<1x1xf32>
    %1864 = arith.maximumf %1862, %1863 : vector<1x1xf32>
    %cst_478 = arith.constant 9.99999974E-6 : f32
    %1865 = vector.broadcast %cst_478 : f32 to vector<1x1xf32>
    %1866 = arith.addf %1864, %1865 : vector<1x1xf32>
    %1867 = math.rsqrt %1866 : vector<1x1xf32>
    %1868 = vector.broadcast %1852 : vector<1x1xf32> to vector<1x32xf32>
    %1869 = arith.mulf %1868, %1844 : vector<1x32xf32>
    %1870 = arith.addf %1834, %1869 : vector<1x32xf32>
    %1871 = vector.broadcast %1867 : vector<1x1xf32> to vector<1x32xf32>
    %1872 = arith.mulf %1871, %1844 : vector<1x32xf32>
    %1873 = arith.addf %1837, %1872 : vector<1x32xf32>
    %1874 = vector.broadcast %1870 : vector<1x32xf32> to vector<80x32xf32>
    %1875 = arith.subf %1286, %1874 : vector<80x32xf32>
    %1876 = arith.mulf %1873, %1287 : vector<1x32xf32>
    %1877 = vector.broadcast %1876 : vector<1x32xf32> to vector<80x32xf32>
    %1878 = arith.mulf %1875, %1877 : vector<80x32xf32>
    %1879 = vector.broadcast %1288 : vector<1x32xf32> to vector<80x32xf32>
    %1880 = arith.addf %1878, %1879 : vector<80x32xf32>
    %cst_479 = arith.constant 0.000000e+00 : f32
    %1881 = vector.broadcast %cst_479 : f32 to vector<80x32xf32>
    %1882 = arith.cmpf ogt, %1880, %1881 : vector<80x32xf32>
    %1883 = math.exp %1880 : vector<80x32xf32>
    %cst_480 = arith.constant 1.000000e+00 : f32
    %1884 = vector.broadcast %cst_480 : f32 to vector<80x32xf32>
    %1885 = arith.subf %1883, %1884 : vector<80x32xf32>
    %1886 = arith.select %1882, %1880, %1885 : vector<80x32xi1>, vector<80x32xf32>
    %1887 = tpu.transpose %1886, [1, 0] : vector<80x32xf32> -> vector<32x80xf32>
    %c0_481 = arith.constant 0 : index
    %c0_482 = arith.constant 0 : index
    %c0_483 = arith.constant 0 : index
    %1888 = vector.load %arg15[%c0_481, %c0_482, %c0_483] : memref<1x32x80xf32, #tpu.memory_space<vmem>>, vector<1x32x80xf32>
    %1889 = vector.shape_cast %1888 : vector<1x32x80xf32> to vector<32x80xf32>
    %1890 = vector.shape_cast %1887 : vector<32x80xf32> to vector<1x32x80xf32>
    tpu.vector_store %arg15[%c0_481, %c0_482, %c0_483], %1890 {strides = array<i32>} : memref<1x32x80xf32, #tpu.memory_space<vmem>>, vector<1x32x80xf32>,
    return
  }
  func.func @transform_0(%arg0: i32) -> (i32, i32, i32) {
    %c0_i32 = arith.constant 0 : i32
    %c0_i32_0 = arith.constant 0 : i32
    %c0_i32_1 = arith.constant 0 : i32
    return %arg0, %c0_i32, %c0_i32_0 : i32, i32, i32
  }
  func.func @transform_1(%arg0: i32) -> (i32, i32, i32) {
    %c0_i32 = arith.constant 0 : i32
    %c0_i32_0 = arith.constant 0 : i32
    %c0_i32_1 = arith.constant 0 : i32
    return %arg0, %c0_i32, %c0_i32_0 : i32, i32, i32
  }
  func.func @transform_2(%arg0: i32) -> (i32, i32) {
    %c0_i32 = arith.constant 0 : i32
    %c0_i32_0 = arith.constant 0 : i32
    %c0_i32_1 = arith.constant 0 : i32
    return %c0_i32, %c0_i32_0 : i32, i32
  }
  func.func @transform_3(%arg0: i32) -> (i32, i32) {
    %c0_i32 = arith.constant 0 : i32
    %c0_i32_0 = arith.constant 0 : i32
    %c0_i32_1 = arith.constant 0 : i32
    return %c0_i32, %c0_i32_0 : i32, i32
  }
  func.func @transform_4(%arg0: i32) -> (i32, i32) {
    %c0_i32 = arith.constant 0 : i32
    %c0_i32_0 = arith.constant 0 : i32
    %c0_i32_1 = arith.constant 0 : i32
    return %c0_i32, %c0_i32_0 : i32, i32
  }
  func.func @transform_5(%arg0: i32) -> (i32, i32) {
    %c0_i32 = arith.constant 0 : i32
    %c0_i32_0 = arith.constant 0 : i32
    %c0_i32_1 = arith.constant 0 : i32
    return %c0_i32, %c0_i32_0 : i32, i32
  }
  func.func @transform_6(%arg0: i32) -> (i32, i32) {
    %c0_i32 = arith.constant 0 : i32
    %c0_i32_0 = arith.constant 0 : i32
    %c0_i32_1 = arith.constant 0 : i32
    return %c0_i32, %c0_i32_0 : i32, i32
  }
  func.func @transform_7(%arg0: i32) -> (i32, i32) {
    %c0_i32 = arith.constant 0 : i32
    %c0_i32_0 = arith.constant 0 : i32
    %c0_i32_1 = arith.constant 0 : i32
    return %c0_i32, %c0_i32_0 : i32, i32
  }
  func.func @transform_8(%arg0: i32) -> (i32, i32) {
    %c0_i32 = arith.constant 0 : i32
    %c0_i32_0 = arith.constant 0 : i32
    %c0_i32_1 = arith.constant 0 : i32
    return %c0_i32, %c0_i32_0 : i32, i32
  }
  func.func @transform_9(%arg0: i32) -> (i32, i32) {
    %c0_i32 = arith.constant 0 : i32
    %c0_i32_0 = arith.constant 0 : i32
    %c0_i32_1 = arith.constant 0 : i32
    return %c0_i32, %c0_i32_0 : i32, i32
  }
  func.func @transform_10(%arg0: i32) -> (i32, i32) {
    %c0_i32 = arith.constant 0 : i32
    %c0_i32_0 = arith.constant 0 : i32
    %c0_i32_1 = arith.constant 0 : i32
    return %c0_i32, %c0_i32_0 : i32, i32
  }
  func.func @transform_11(%arg0: i32) -> (i32, i32) {
    %c0_i32 = arith.constant 0 : i32
    %c0_i32_0 = arith.constant 0 : i32
    %c0_i32_1 = arith.constant 0 : i32
    return %c0_i32, %c0_i32_0 : i32, i32
  }
  func.func @transform_12(%arg0: i32) -> (i32, i32) {
    %c0_i32 = arith.constant 0 : i32
    %c0_i32_0 = arith.constant 0 : i32
    %c0_i32_1 = arith.constant 0 : i32
    return %c0_i32, %c0_i32_0 : i32, i32
  }
  func.func @transform_13(%arg0: i32) -> (i32, i32) {
    %c0_i32 = arith.constant 0 : i32
    %c0_i32_0 = arith.constant 0 : i32
    %c0_i32_1 = arith.constant 0 : i32
    return %c0_i32, %c0_i32_0 : i32, i32
  }
  func.func @transform_14(%arg0: i32) -> (i32, i32, i32) {
    %c0_i32 = arith.constant 0 : i32
    %c0_i32_0 = arith.constant 0 : i32
    %c0_i32_1 = arith.constant 0 : i32
    return %arg0, %c0_i32, %c0_i32_0 : i32, i32, i32
  }
}

</mosaic_0001>

<llo_original>
// kernel: resconv_basic_forward.1
$region0: #{resconv_basic_forward.1}
  #allocation0 [shape = 'u32[]', space=smem, size = 0x4, offset = 0x4, fixed_abs, tag = 'smem constant byte address 0x4 - core index']
  #allocation1 [shape = 'u32[144,128]{1,0:T(1,128)}', space=vmem, size = 0x12000, scoped, tag = 'internal scratch']
  #allocation2 [shape = 'bf16[80,288]{1,0:T(8,128)(2,1)}', space=vmem, size = 0xf000, scoped, tag = 'scratch operand']
  #allocation3 [shape = 'bf16[112,32]{1,0:T(8,128)(2,1)}', space=vmem, size = 0x7000, scoped, tag = 'scratch operand']
  %s0 = inlined_call_operand.vmem [shape: bf16[2,384,16], index: 0, kind: input, shape index: {}]
  %s1 = inlined_call_operand.vmem [shape: bf16[2,80,16], index: 1, kind: input, shape index: {}]
  %s2 = inlined_call_operand.vmem [shape: bf16[144,32], index: 2, kind: input, shape index: {}]
  %s3 = inlined_call_operand.vmem [shape: f32[1,32], index: 3, kind: input, shape index: {}]
  %s4 = inlined_call_operand.vmem [shape: f32[1,32], index: 4, kind: input, shape index: {}]
  %s5 = inlined_call_operand.vmem [shape: f32[1,32], index: 5, kind: input, shape index: {}]
  %s6 = inlined_call_operand.vmem [shape: bf16[288,32], index: 6, kind: input, shape index: {}]
  %s7 = inlined_call_operand.vmem [shape: f32[1,32], index: 7, kind: input, shape index: {}]
  %s8 = inlined_call_operand.vmem [shape: f32[1,32], index: 8, kind: input, shape index: {}]
  %s9 = inlined_call_operand.vmem [shape: f32[1,32], index: 9, kind: input, shape index: {}]
  %s10 = inlined_call_operand.vmem [shape: bf16[16,32], index: 10, kind: input, shape index: {}]
  %s11 = inlined_call_operand.vmem [shape: f32[1,32], index: 11, kind: input, shape index: {}]
  %s12 = inlined_call_operand.vmem [shape: f32[1,32], index: 12, kind: input, shape index: {}]
  %s13 = inlined_call_operand.vmem [shape: f32[1,32], index: 13, kind: input, shape index: {}]
  %s14 = inlined_call_operand.vmem [shape: f32[2,32,80], index: 14, kind: output, shape index: {}]
  %s15 = sld [smem:[#allocation0]]
  $region89: #{resconv_basic_forward.1} parent=0
    _
  %s17 = ssub.s32 1, %s15
  %s18 = scalar_select 0, %s17, %s15
  loop: start=0, step=1, limit=4
  $region2: #{resconv_basic_forward.1} parent=0 // loop_pre_header
    _
  $region3: #{resconv_basic_forward.1} parent=0 // loop_header
    %s20 = sphi 0, %s24
    %p21 = scmp.ge.s32.totalorder %s20, 4
    %s30 = sphi 0, %s32
    %s33 = sphi 0, %s30
    %s34 = sphi 0, %s33
    %s50 = sphi 0, %s34
    %s56 = sphi 0, %s58
    %s59 = sphi 0, %s56
    %s60 = sphi 0, %s59
    %s76 = sphi 0, %s60
    %s80 = sphi 0, %s80
    %s82 = sphi 0, %s80
    %s83 = sphi 0, %s82
    %s97 = sphi 0, %s83
    %s101 = sphi 0, %s101
    %s103 = sphi 0, %s101
    %s104 = sphi 0, %s103
    %s118 = sphi 0, %s104
    %s122 = sphi 0, %s122
    %s124 = sphi 0, %s122
    %s125 = sphi 0, %s124
    %s139 = sphi 0, %s125
    %s143 = sphi 0, %s143
    %s145 = sphi 0, %s143
    %s146 = sphi 0, %s145
    %s160 = sphi 0, %s146
    %s164 = sphi 0, %s164
    %s166 = sphi 0, %s164
    %s167 = sphi 0, %s166
    %s181 = sphi 0, %s167
    %s185 = sphi 0, %s185
    %s187 = sphi 0, %s185
    %s188 = sphi 0, %s187
    %s202 = sphi 0, %s188
    %s206 = sphi 0, %s206
    %s208 = sphi 0, %s206
    %s209 = sphi 0, %s208
    %s223 = sphi 0, %s209
    %s227 = sphi 0, %s227
    %s229 = sphi 0, %s227
    %s230 = sphi 0, %s229
    %s244 = sphi 0, %s230
    %s248 = sphi 0, %s248
    %s250 = sphi 0, %s248
    %s251 = sphi 0, %s250
    %s265 = sphi 0, %s251
    %s269 = sphi 0, %s269
    %s271 = sphi 0, %s269
    %s272 = sphi 0, %s271
    %s286 = sphi 0, %s272
    %s290 = sphi 0, %s290
    %s292 = sphi 0, %s290
    %s293 = sphi 0, %s292
    %s307 = sphi 0, %s293
    %s311 = sphi 0, %s311
    %s313 = sphi 0, %s311
    %s314 = sphi 0, %s313
    %s328 = sphi 0, %s314
    %s334 = sphi 0, %s336
    %s337 = sphi 0, %s334
    %s338 = sphi 0, %s337
    %s354 = sphi 0, %s338
  $region4: #{resconv_basic_forward.1} parent=0 // loop_header_branch
    %23 = sbr.rel (%p21) target = $region8
  $region5: #{resconv_basic_forward.1} parent=0 // loop_body
    %s25 = ssub.s32 %s20, 1
    %s26 = ssub.s32 %s20, 2
    %s27 = sadd.s32 %s20, 1
    %s28 = ssub.s32 %s20, %s27
    %p29 = scmp.eq.s32.totalorder %s28, 0
    %s31 = sadd.s32 %s30, 1
    %s32 = scalar_select %p29, %s30, %s31
    %p35 = pneg %p29
    %p36 = scmp.eq.s32.totalorder %s20, 1
    %p37 = por %p35, %p36
    %p38 = scmp.ne.s32.totalorder %s30, %s33
    %p39 = scmp.eq.s32.totalorder %s20, 0
    %p40 = por %p38, %p39
    %p41 = scmp.ne.s32.totalorder %s30, %s33
    %p42 = scmp.eq.s32.totalorder %s25, 1
    %p43 = por %p41, %p42
    %p44 = scmp.ne.s32.totalorder %s33, %s34
    %p45 = scmp.eq.s32.totalorder %s25, 0
    %p46 = por %p44, %p45
    %p47 = scmp.ne.s32.totalorder %s33, %s34
    %p48 = scmp.eq.s32.totalorder %s26, 1
    %p49 = por %p47, %p48
    %p51 = scmp.ne.s32.totalorder %s34, %s50
    %p52 = scmp.eq.s32.totalorder %s26, 0
    %p53 = por %p51, %p52
    %s54 = ssub.s32 %s20, %s27
    %p55 = scmp.eq.s32.totalorder %s54, 0
    %s57 = sadd.s32 %s56, 1
    %s58 = scalar_select %p55, %s56, %s57
    %p61 = pneg %p55
    %p62 = scmp.eq.s32.totalorder %s20, 1
    %p63 = por %p61, %p62
    %p64 = scmp.ne.s32.totalorder %s56, %s59
    %p65 = scmp.eq.s32.totalorder %s20, 0
    %p66 = por %p64, %p65
    %p67 = scmp.ne.s32.totalorder %s56, %s59
    %p68 = scmp.eq.s32.totalorder %s25, 1
    %p69 = por %p67, %p68
    %p70 = scmp.ne.s32.totalorder %s59, %s60
    %p71 = scmp.eq.s32.totalorder %s25, 0
    %p72 = por %p70, %p71
    %p73 = scmp.ne.s32.totalorder %s59, %s60
    %p74 = scmp.eq.s32.totalorder %s26, 1
    %p75 = por %p73, %p74
    %p77 = scmp.ne.s32.totalorder %s60, %s76
    %p78 = scmp.eq.s32.totalorder %s26, 0
    %p79 = por %p77, %p78
    %s81 = sadd.s32 %s80, 1
    %p84 = scmp.eq.s32.totalorder %s20, 1
    %p85 = scmp.ne.s32.totalorder %s80, %s82
    %p86 = scmp.eq.s32.totalorder %s20, 0
    %p87 = por %p85, %p86
    %p88 = scmp.ne.s32.totalorder %s80, %s82
    %p89 = scmp.eq.s32.totalorder %s25, 1
    %p90 = por %p88, %p89
    %p91 = scmp.ne.s32.totalorder %s82, %s83
    %p92 = scmp.eq.s32.totalorder %s25, 0
    %p93 = por %p91, %p92
    %p94 = scmp.ne.s32.totalorder %s82, %s83
    %p95 = scmp.eq.s32.totalorder %s26, 1
    %p96 = por %p94, %p95
    %p98 = scmp.ne.s32.totalorder %s83, %s97
    %p99 = scmp.eq.s32.totalorder %s26, 0
    %p100 = por %p98, %p99
    %s102 = sadd.s32 %s101, 1
    %p105 = scmp.eq.s32.totalorder %s20, 1
    %p106 = scmp.ne.s32.totalorder %s101, %s103
    %p107 = scmp.eq.s32.totalorder %s20, 0
    %p108 = por %p106, %p107
    %p109 = scmp.ne.s32.totalorder %s101, %s103
    %p110 = scmp.eq.s32.totalorder %s25, 1
    %p111 = por %p109, %p110
    %p112 = scmp.ne.s32.totalorder %s103, %s104
    %p113 = scmp.eq.s32.totalorder %s25, 0
    %p114 = por %p112, %p113
    %p115 = scmp.ne.s32.totalorder %s103, %s104
    %p116 = scmp.eq.s32.totalorder %s26, 1
    %p117 = por %p115, %p116
    %p119 = scmp.ne.s32.totalorder %s104, %s118
    %p120 = scmp.eq.s32.totalorder %s26, 0
    %p121 = por %p119, %p120
    %s123 = sadd.s32 %s122, 1
    %p126 = scmp.eq.s32.totalorder %s20, 1
    %p127 = scmp.ne.s32.totalorder %s122, %s124
    %p128 = scmp.eq.s32.totalorder %s20, 0
    %p129 = por %p127, %p128
    %p130 = scmp.ne.s32.totalorder %s122, %s124
    %p131 = scmp.eq.s32.totalorder %s25, 1
    %p132 = por %p130, %p131
    %p133 = scmp.ne.s32.totalorder %s124, %s125
    %p134 = scmp.eq.s32.totalorder %s25, 0
    %p135 = por %p133, %p134
    %p136 = scmp.ne.s32.totalorder %s124, %s125
    %p137 = scmp.eq.s32.totalorder %s26, 1
    %p138 = por %p136, %p137
    %p140 = scmp.ne.s32.totalorder %s125, %s139
    %p141 = scmp.eq.s32.totalorder %s26, 0
    %p142 = por %p140, %p141
    %s144 = sadd.s32 %s143, 1
    %p147 = scmp.eq.s32.totalorder %s20, 1
    %p148 = scmp.ne.s32.totalorder %s143, %s145
    %p149 = scmp.eq.s32.totalorder %s20, 0
    %p150 = por %p148, %p149
    %p151 = scmp.ne.s32.totalorder %s143, %s145
    %p152 = scmp.eq.s32.totalorder %s25, 1
    %p153 = por %p151, %p152
    %p154 = scmp.ne.s32.totalorder %s145, %s146
    %p155 = scmp.eq.s32.totalorder %s25, 0
    %p156 = por %p154, %p155
    %p157 = scmp.ne.s32.totalorder %s145, %s146
    %p158 = scmp.eq.s32.totalorder %s26, 1
    %p159 = por %p157, %p158
    %p161 = scmp.ne.s32.totalorder %s146, %s160
    %p162 = scmp.eq.s32.totalorder %s26, 0
    %p163 = por %p161, %p162
    %s165 = sadd.s32 %s164, 1
    %p168 = scmp.eq.s32.totalorder %s20, 1
    %p169 = scmp.ne.s32.totalorder %s164, %s166
    %p170 = scmp.eq.s32.totalorder %s20, 0
    %p171 = por %p169, %p170
    %p172 = scmp.ne.s32.totalorder %s164, %s166
    %p173 = scmp.eq.s32.totalorder %s25, 1
    %p174 = por %p172, %p173
    %p175 = scmp.ne.s32.totalorder %s166, %s167
    %p176 = scmp.eq.s32.totalorder %s25, 0
    %p177 = por %p175, %p176
    %p178 = scmp.ne.s32.totalorder %s166, %s167
    %p179 = scmp.eq.s32.totalorder %s26, 1
    %p180 = por %p178, %p179
    %p182 = scmp.ne.s32.totalorder %s167, %s181
    %p183 = scmp.eq.s32.totalorder %s26, 0
    %p184 = por %p182, %p183
    %s186 = sadd.s32 %s185, 1
    %p189 = scmp.eq.s32.totalorder %s20, 1
    %p190 = scmp.ne.s32.totalorder %s185, %s187
    %p191 = scmp.eq.s32.totalorder %s20, 0
    %p192 = por %p190, %p191
    %p193 = scmp.ne.s32.totalorder %s185, %s187
    %p194 = scmp.eq.s32.totalorder %s25, 1
    %p195 = por %p193, %p194
    %p196 = scmp.ne.s32.totalorder %s187, %s188
    %p197 = scmp.eq.s32.totalorder %s25, 0
    %p198 = por %p196, %p197
    %p199 = scmp.ne.s32.totalorder %s187, %s188
    %p200 = scmp.eq.s32.totalorder %s26, 1
    %p201 = por %p199, %p200
    %p203 = scmp.ne.s32.totalorder %s188, %s202
    %p204 = scmp.eq.s32.totalorder %s26, 0
    %p205 = por %p203, %p204
    %s207 = sadd.s32 %s206, 1
    %p210 = scmp.eq.s32.totalorder %s20, 1
    %p211 = scmp.ne.s32.totalorder %s206, %s208
    %p212 = scmp.eq.s32.totalorder %s20, 0
    %p213 = por %p211, %p212
    %p214 = scmp.ne.s32.totalorder %s206, %s208
    %p215 = scmp.eq.s32.totalorder %s25, 1
    %p216 = por %p214, %p215
    %p217 = scmp.ne.s32.totalorder %s208, %s209
    %p218 = scmp.eq.s32.totalorder %s25, 0
    %p219 = por %p217, %p218
    %p220 = scmp.ne.s32.totalorder %s208, %s209
    %p221 = scmp.eq.s32.totalorder %s26, 1
    %p222 = por %p220, %p221
    %p224 = scmp.ne.s32.totalorder %s209, %s223
    %p225 = scmp.eq.s32.totalorder %s26, 0
    %p226 = por %p224, %p225
    %s228 = sadd.s32 %s227, 1
    %p231 = scmp.eq.s32.totalorder %s20, 1
    %p232 = scmp.ne.s32.totalorder %s227, %s229
    %p233 = scmp.eq.s32.totalorder %s20, 0
    %p234 = por %p232, %p233
    %p235 = scmp.ne.s32.totalorder %s227, %s229
    %p236 = scmp.eq.s32.totalorder %s25, 1
    %p237 = por %p235, %p236
    %p238 = scmp.ne.s32.totalorder %s229, %s230
    %p239 = scmp.eq.s32.totalorder %s25, 0
    %p240 = por %p238, %p239
    %p241 = scmp.ne.s32.totalorder %s229, %s230
    %p242 = scmp.eq.s32.totalorder %s26, 1
    %p243 = por %p241, %p242
    %p245 = scmp.ne.s32.totalorder %s230, %s244
    %p246 = scmp.eq.s32.totalorder %s26, 0
    %p247 = por %p245, %p246
    %s249 = sadd.s32 %s248, 1
    %p252 = scmp.eq.s32.totalorder %s20, 1
    %p253 = scmp.ne.s32.totalorder %s248, %s250
    %p254 = scmp.eq.s32.totalorder %s20, 0
    %p255 = por %p253, %p254
    %p256 = scmp.ne.s32.totalorder %s248, %s250
    %p257 = scmp.eq.s32.totalorder %s25, 1
    %p258 = por %p256, %p257
    %p259 = scmp.ne.s32.totalorder %s250, %s251
    %p260 = scmp.eq.s32.totalorder %s25, 0
    %p261 = por %p259, %p260
    %p262 = scmp.ne.s32.totalorder %s250, %s251
    %p263 = scmp.eq.s32.totalorder %s26, 1
    %p264 = por %p262, %p263
    %p266 = scmp.ne.s32.totalorder %s251, %s265
    %p267 = scmp.eq.s32.totalorder %s26, 0
    %p268 = por %p266, %p267
    %s270 = sadd.s32 %s269, 1
    %p273 = scmp.eq.s32.totalorder %s20, 1
    %p274 = scmp.ne.s32.totalorder %s269, %s271
    %p275 = scmp.eq.s32.totalorder %s20, 0
    %p276 = por %p274, %p275
    %p277 = scmp.ne.s32.totalorder %s269, %s271
    %p278 = scmp.eq.s32.totalorder %s25, 1
    %p279 = por %p277, %p278
    %p280 = scmp.ne.s32.totalorder %s271, %s272
    %p281 = scmp.eq.s32.totalorder %s25, 0
    %p282 = por %p280, %p281
    %p283 = scmp.ne.s32.totalorder %s271, %s272
    %p284 = scmp.eq.s32.totalorder %s26, 1
    %p285 = por %p283, %p284
    %p287 = scmp.ne.s32.totalorder %s272, %s286
    %p288 = scmp.eq.s32.totalorder %s26, 0
    %p289 = por %p287, %p288
    %s291 = sadd.s32 %s290, 1
    %p294 = scmp.eq.s32.totalorder %s20, 1
    %p295 = scmp.ne.s32.totalorder %s290, %s292
    %p296 = scmp.eq.s32.totalorder %s20, 0
    %p297 = por %p295, %p296
    %p298 = scmp.ne.s32.totalorder %s290, %s292
    %p299 = scmp.eq.s32.totalorder %s25, 1
    %p300 = por %p298, %p299
    %p301 = scmp.ne.s32.totalorder %s292, %s293
    %p302 = scmp.eq.s32.totalorder %s25, 0
    %p303 = por %p301, %p302
    %p304 = scmp.ne.s32.totalorder %s292, %s293
    %p305 = scmp.eq.s32.totalorder %s26, 1
    %p306 = por %p304, %p305
    %p308 = scmp.ne.s32.totalorder %s293, %s307
    %p309 = scmp.eq.s32.totalorder %s26, 0
    %p310 = por %p308, %p309
    %s312 = sadd.s32 %s311, 1
    %p315 = scmp.eq.s32.totalorder %s20, 1
    %p316 = scmp.ne.s32.totalorder %s311, %s313
    %p317 = scmp.eq.s32.totalorder %s20, 0
    %p318 = por %p316, %p317
    %p319 = scmp.ne.s32.totalorder %s311, %s313
    %p320 = scmp.eq.s32.totalorder %s25, 1
    %p321 = por %p319, %p320
    %p322 = scmp.ne.s32.totalorder %s313, %s314
    %p323 = scmp.eq.s32.totalorder %s25, 0
    %p324 = por %p322, %p323
    %p325 = scmp.ne.s32.totalorder %s313, %s314
    %p326 = scmp.eq.s32.totalorder %s26, 1
    %p327 = por %p325, %p326
    %p329 = scmp.ne.s32.totalorder %s314, %s328
    %p330 = scmp.eq.s32.totalorder %s26, 0
    %p331 = por %p329, %p330
    %s332 = ssub.s32 %s20, %s27
    %p333 = scmp.eq.s32.totalorder %s332, 0
    %s335 = sadd.s32 %s334, 1
    %s336 = scalar_select %p333, %s334, %s335
    %p339 = pneg %p333
    %p340 = scmp.eq.s32.totalorder %s20, 1
    %p341 = por %p339, %p340
    %p342 = scmp.ne.s32.totalorder %s334, %s337
    %p343 = scmp.eq.s32.totalorder %s20, 0
    %p344 = por %p342, %p343
    %p345 = scmp.ne.s32.totalorder %s334, %s337
    %p346 = scmp.eq.s32.totalorder %s25, 1
    %p347 = por %p345, %p346
    %p348 = scmp.ne.s32.totalorder %s337, %s338
    %p349 = scmp.eq.s32.totalorder %s25, 0
    %p350 = por %p348, %p349
    %p351 = scmp.ne.s32.totalorder %s337, %s338
    %p352 = scmp.eq.s32.totalorder %s26, 1
    %p353 = por %p351, %p352
    %p355 = scmp.ne.s32.totalorder %s338, %s354
    %p356 = scmp.eq.s32.totalorder %s26, 0
    %p357 = por %p355, %p356
    %p358 = scmp.le.s32.totalorder 1, %s20
    %p359 = scmp.lt.s32.totalorder %s20, 3
    %p360 = pnand %p358, %p359
    %p361 = pneg %p360
    // Predicated region
    $region9: #{resconv_basic_forward.1} parent=5 // pred_check
      _
    $region10: #{resconv_basic_forward.1} parent=5 // pred_check_branch
      %363 = sbr.rel (%p360) target = $region12
    $region11: #{resconv_basic_forward.1} parent=5 // pred_region
      %s364 = ssub.s32 %s20, 1
      // Predicated region
      $region13: #{resconv_basic_forward.1} parent=11 // pred_check
        %p365 = pneg %p93
      $region14: #{resconv_basic_forward.1} parent=11 // pred_check_branch
        %367 = sbr.rel (%p365) target = $region16
      $region15: #{resconv_basic_forward.1} parent=11 // pred_region
        _
      $region16: #{resconv_basic_forward.1} parent=11 // pred_fallthru
        _
      // Predicated region
      $region17: #{resconv_basic_forward.1} parent=11 // pred_check
        %p368 = pneg %p114
      $region18: #{resconv_basic_forward.1} parent=11 // pred_check_branch
        %370 = sbr.rel (%p368) target = $region20
      $region19: #{resconv_basic_forward.1} parent=11 // pred_region
        _
      $region20: #{resconv_basic_forward.1} parent=11 // pred_fallthru
        _
      // Predicated region
      $region21: #{resconv_basic_forward.1} parent=11 // pred_check
        %p371 = pneg %p135
      $region22: #{resconv_basic_forward.1} parent=11 // pred_check_branch
        %373 = sbr.rel (%p371) target = $region24
      $region23: #{resconv_basic_forward.1} parent=11 // pred_region
        _
      $region24: #{resconv_basic_forward.1} parent=11 // pred_fallthru
        _
      // Predicated region
      $region25: #{resconv_basic_forward.1} parent=11 // pred_check
        %p374 = pneg %p156
      $region26: #{resconv_basic_forward.1} parent=11 // pred_check_branch
        %376 = sbr.rel (%p374) target = $region28
      $region27: #{resconv_basic_forward.1} parent=11 // pred_region
        _
      $region28: #{resconv_basic_forward.1} parent=11 // pred_fallthru
        _
      // Predicated region
      $region29: #{resconv_basic_forward.1} parent=11 // pred_check
        %p377 = pneg %p177
      $region30: #{resconv_basic_forward.1} parent=11 // pred_check_branch
        %379 = sbr.rel (%p377) target = $region32
      $region31: #{resconv_basic_forward.1} parent=11 // pred_region
        _
      $region32: #{resconv_basic_forward.1} parent=11 // pred_fallthru
        _
      // Predicated region
      $region33: #{resconv_basic_forward.1} parent=11 // pred_check
        %p380 = pneg %p198
      $region34: #{resconv_basic_forward.1} parent=11 // pred_check_branch
        %382 = sbr.rel (%p380) target = $region36
      $region35: #{resconv_basic_forward.1} parent=11 // pred_region
        _
      $region36: #{resconv_basic_forward.1} parent=11 // pred_fallthru
        _
      // Predicated region
      $region37: #{resconv_basic_forward.1} parent=11 // pred_check
        %p383 = pneg %p219
      $region38: #{resconv_basic_forward.1} parent=11 // pred_check_branch
        %385 = sbr.rel (%p383) target = $region40
      $region39: #{resconv_basic_forward.1} parent=11 // pred_region
        _
      $region40: #{resconv_basic_forward.1} parent=11 // pred_fallthru
        _
      // Predicated region
      $region41: #{resconv_basic_forward.1} parent=11 // pred_check
        %p386 = pneg %p240
      $region42: #{resconv_basic_forward.1} parent=11 // pred_check_branch
        %388 = sbr.rel (%p386) target = $region44
      $region43: #{resconv_basic_forward.1} parent=11 // pred_region
        _
      $region44: #{resconv_basic_forward.1} parent=11 // pred_fallthru
        _
      // Predicated region
      $region45: #{resconv_basic_forward.1} parent=11 // pred_check
        %p389 = pneg %p261
      $region46: #{resconv_basic_forward.1} parent=11 // pred_check_branch
        %391 = sbr.rel (%p389) target = $region48
      $region47: #{resconv_basic_forward.1} parent=11 // pred_region
        _
      $region48: #{resconv_basic_forward.1} parent=11 // pred_fallthru
        _
      // Predicated region
      $region49: #{resconv_basic_forward.1} parent=11 // pred_check
        %p392 = pneg %p282
      $region50: #{resconv_basic_forward.1} parent=11 // pred_check_branch
        %394 = sbr.rel (%p392) target = $region52
      $region51: #{resconv_basic_forward.1} parent=11 // pred_region
        _
      $region52: #{resconv_basic_forward.1} parent=11 // pred_fallthru
        _
      // Predicated region
      $region53: #{resconv_basic_forward.1} parent=11 // pred_check
        %p395 = pneg %p303
      $region54: #{resconv_basic_forward.1} parent=11 // pred_check_branch
        %397 = sbr.rel (%p395) target = $region56
      $region55: #{resconv_basic_forward.1} parent=11 // pred_region
        _
      $region56: #{resconv_basic_forward.1} parent=11 // pred_fallthru
        _
      // Predicated region
      $region57: #{resconv_basic_forward.1} parent=11 // pred_check
        %p398 = pneg %p324
      $region58: #{resconv_basic_forward.1} parent=11 // pred_check_branch
        %400 = sbr.rel (%p398) target = $region60
      $region59: #{resconv_basic_forward.1} parent=11 // pred_region
        _
      $region60: #{resconv_basic_forward.1} parent=11 // pred_fallthru
        _
    $region12: #{resconv_basic_forward.1} parent=5 // pred_fallthru
      _
    %p401 = scmp.lt.s32.totalorder %s20, 2
    // Predicated region
    $region61: #{resconv_basic_forward.1} parent=5 // pred_check
      %p402 = pneg %p401
    $region62: #{resconv_basic_forward.1} parent=5 // pred_check_branch
      %404 = sbr.rel (%p402) target = $region64
    $region63: #{resconv_basic_forward.1} parent=5 // pred_region
      // Predicated region
      $region65: #{resconv_basic_forward.1} parent=63 // pred_check
        %p405 = pneg %p40
      $region66: #{resconv_basic_forward.1} parent=63 // pred_check_branch
        %407 = sbr.rel (%p405) target = $region68
      $region67: #{resconv_basic_forward.1} parent=63 // pred_region
        %p408 = scmp.lt.s32.totalorder %s20, 1
        %s409 = scalar_select %p408, %s20, 1
        %s410 = smul.addr %s409, 48
        %s411 = smul.addr %s410, 4
        %s412 = scalar_lea.vmem %s0, %s411
      $region68: #{resconv_basic_forward.1} parent=63 // pred_fallthru
        _
      // Predicated region
      $region69: #{resconv_basic_forward.1} parent=63 // pred_check
        %p413 = pneg %p66
      $region70: #{resconv_basic_forward.1} parent=63 // pred_check_branch
        %415 = sbr.rel (%p413) target = $region72
      $region71: #{resconv_basic_forward.1} parent=63 // pred_region
        %p416 = scmp.lt.s32.totalorder %s20, 1
        %s417 = scalar_select %p416, %s20, 1
        %s418 = smul.addr %s417, 10
        %s419 = smul.addr %s418, 4
        %s420 = scalar_lea.vmem %s1, %s419
      $region72: #{resconv_basic_forward.1} parent=63 // pred_fallthru
        _
    $region64: #{resconv_basic_forward.1} parent=5 // pred_fallthru
      _
    %p421 = scmp.le.s32.totalorder 1, %s20
    %p422 = scmp.lt.s32.totalorder %s20, 3
    %p423 = pnand %p421, %p422
    %p424 = pneg %p423
    // Predicated region
    $region73: #{resconv_basic_forward.1} parent=5 // pred_check
      _
    $region74: #{resconv_basic_forward.1} parent=5 // pred_check_branch
      %426 = sbr.rel (%p423) target = $region76
    $region75: #{resconv_basic_forward.1} parent=5 // pred_region
      %s427 = ssub.s32 %s20, 1
      %p428 = scmp.lt.s32.totalorder %s25, 1
      %s429 = scalar_select %p428, %s25, 1
      %s430 = smul.addr %s429, 48
      %s431 = smul.addr %s430, 4
      %s432 = scalar_lea.vmem %s0, %s431
      %p433 = pneg %p46
      %p434 = pneg %p43
      %p435 = scmp.lt.s32.totalorder %s25, 1
      %s436 = scalar_select %p435, %s25, 1
      %s437 = smul.addr %s436, 10
      %s438 = smul.addr %s437, 4
      %s439 = scalar_lea.vmem %s1, %s438
      %p440 = pneg %p72
      %p441 = pneg %p69
      %p442 = pneg %p93
      %p443 = pneg %p90
      %p444 = pneg %p114
      %p445 = pneg %p111
      %p446 = pneg %p135
      %p447 = pneg %p132
      %p448 = pneg %p156
      %p449 = pneg %p153
      %p450 = pneg %p177
      %p451 = pneg %p174
      %p452 = pneg %p198
      %p453 = pneg %p195
      %p454 = pneg %p219
      %p455 = pneg %p216
      %p456 = pneg %p240
      %p457 = pneg %p237
      %p458 = pneg %p261
      %p459 = pneg %p258
      %p460 = pneg %p282
      %p461 = pneg %p279
      %p462 = pneg %p303
      %p463 = pneg %p300
      %p464 = pneg %p324
      %p465 = pneg %p321
      %p466 = pneg %p350
      %p467 = pneg %p347
      %p468 = scmp.lt.s32.totalorder %s25, 1
      %s469 = scalar_select %p468, %s25, 1
      %s470 = smul.addr %s469, 4
      %s471 = smul.addr %s470, 8
      %s472 = scalar_lea.vmem %s14, %s471
      %p473 = scmp.lt.s32.totalorder %s25, 1
      %s474 = scalar_select %p473, %s25, 1
      %s475 = smul.addr %s474, 48
      %s476 = smul.addr %s475, 4
      %s477 = scalar_lea.vmem %s0, %s476
      %p478 = scmp.lt.s32.totalorder %s25, 1
      %s479 = scalar_select %p478, %s25, 1
      %s480 = smul.addr %s479, 10
      %s481 = smul.addr %s480, 4
      %s482 = scalar_lea.vmem %s1, %s481
      %p483 = scmp.lt.s32.totalorder %s25, 1
      %s484 = scalar_select %p483, %s25, 1
      %s485 = smul.addr %s484, 4
      %s486 = smul.addr %s485, 8
      %s487 = scalar_lea.vmem %s14, %s486
      %v489 = vlaneseq
      %v490 = vshrl.u32 %v489, 7
      %v491 = vadd.s32 %v490, 8
      %v492 = vadd.s32 %v490, 16
      %v493 = vadd.s32 %v490, 24
      %v494 = vadd.s32 %v490, 32
      %v495 = vadd.s32 %v490, 40
      %v496 = vadd.s32 %v490, 48
      %v497 = vadd.s32 %v490, 56
      %v498 = vadd.s32 %v490, 64
      %v499 = vadd.s32 %v490, 72
      %v500 = vcvt.s32.f32 %v490
      %v501 = vcvt.s32.f32 %v491
      %v502 = vcvt.s32.f32 %v492
      %v503 = vcvt.s32.f32 %v493
      %v504 = vcvt.s32.f32 %v494
      %v505 = vcvt.s32.f32 %v495
      %v506 = vcvt.s32.f32 %v496
      %v507 = vcvt.s32.f32 %v497
      %v508 = vcvt.s32.f32 %v498
      %v509 = vcvt.s32.f32 %v499
      %v510 = vadd.f32 %v500, 0.5
      %v511 = vadd.f32 %v501, 0.5
      %v512 = vadd.f32 %v502, 0.5
      %v513 = vadd.f32 %v503, 0.5
      %v514 = vadd.f32 %v504, 0.5
      %v515 = vadd.f32 %v505, 0.5
      %v516 = vadd.f32 %v506, 0.5
      %v517 = vadd.f32 %v507, 0.5
      %v518 = vadd.f32 %v508, 0.5
      %v519 = vadd.f32 %v509, 0.5
      %v520 = vmul.f32 %v510, 0.1
      %v521 = vmul.f32 %v511, 0.1
      %v522 = vmul.f32 %v512, 0.1
      %v523 = vmul.f32 %v513, 0.1
      %v524 = vmul.f32 %v514, 0.1
      %v525 = vmul.f32 %v515, 0.1
      %v526 = vmul.f32 %v516, 0.1
      %v527 = vmul.f32 %v517, 0.1
      %v528 = vmul.f32 %v518, 0.1
      %v529 = vmul.f32 %v519, 0.1
      %v530 = vfloor.f32 %v520
      %v531 = vfloor.f32 %v521
      %v532 = vfloor.f32 %v522
      %v533 = vfloor.f32 %v523
      %v534 = vfloor.f32 %v524
      %v535 = vfloor.f32 %v525
      %v536 = vfloor.f32 %v526
      %v537 = vfloor.f32 %v527
      %v538 = vfloor.f32 %v528
      %v539 = vfloor.f32 %v529
      %v540 = vcvt.f32.s32.to.zero.pseudo %v530
      %v541 = vcvt.f32.s32.to.zero.pseudo %v531
      %v542 = vcvt.f32.s32.to.zero.pseudo %v532
      %v543 = vcvt.f32.s32.to.zero.pseudo %v533
      %v544 = vcvt.f32.s32.to.zero.pseudo %v534
      %v545 = vcvt.f32.s32.to.zero.pseudo %v535
      %v546 = vcvt.f32.s32.to.zero.pseudo %v536
      %v547 = vcvt.f32.s32.to.zero.pseudo %v537
      %v548 = vcvt.f32.s32.to.zero.pseudo %v538
      %v549 = vcvt.f32.s32.to.zero.pseudo %v539
      %v550 = vmul.u32 %v540, 10
      %v551 = vmul.u32 %v541, 10
      %v552 = vmul.u32 %v542, 10
      %v553 = vmul.u32 %v543, 10
      %v554 = vmul.u32 %v544, 10
      %v555 = vmul.u32 %v545, 10
      %v556 = vmul.u32 %v546, 10
      %v557 = vmul.u32 %v547, 10
      %v558 = vmul.u32 %v548, 10
      %v559 = vmul.u32 %v549, 10
      %v560 = vsub.s32 %v490, %v550
      %v561 = vsub.s32 %v491, %v551
      %v562 = vsub.s32 %v492, %v552
      %v563 = vsub.s32 %v493, %v553
      %v564 = vsub.s32 %v494, %v554
      %v565 = vsub.s32 %v495, %v555
      %v566 = vsub.s32 %v496, %v556
      %v567 = vsub.s32 %v497, %v557
      %v568 = vsub.s32 %v498, %v558
      %v569 = vsub.s32 %v499, %v559
      %vm570 = vcmp.lt.s32.totalorder %v560, 8
      %vm571 = vcmp.lt.s32.totalorder %v561, 8
      %vm572 = vcmp.lt.s32.totalorder %v562, 8
      %vm573 = vcmp.lt.s32.totalorder %v563, 8
      %vm574 = vcmp.lt.s32.totalorder %v564, 8
      %vm575 = vcmp.lt.s32.totalorder %v565, 8
      %vm576 = vcmp.lt.s32.totalorder %v566, 8
      %vm577 = vcmp.lt.s32.totalorder %v567, 8
      %vm578 = vcmp.lt.s32.totalorder %v568, 8
      %vm579 = vcmp.lt.s32.totalorder %v569, 8
      %v580 = vsel %vm570, 1, 0
      %v581 = vsel %vm571, 1, 0
      %v582 = vsel %vm572, 1, 0
      %v583 = vsel %vm573, 1, 0
      %v584 = vsel %vm574, 1, 0
      %v585 = vsel %vm575, 1, 0
      %v586 = vsel %vm576, 1, 0
      %v587 = vsel %vm577, 1, 0
      %v588 = vsel %vm578, 1, 0
      %v589 = vsel %vm579, 1, 0
      %v590 = vcvt.s32.f32 %v580
      %v591 = vcvt.s32.f32 %v581
      %v592 = vcvt.s32.f32 %v582
      %v593 = vcvt.s32.f32 %v583
      %v594 = vcvt.s32.f32 %v584
      %v595 = vcvt.s32.f32 %v585
      %v596 = vcvt.s32.f32 %v586
      %v597 = vcvt.s32.f32 %v587
      %v598 = vcvt.s32.f32 %v588
      %v599 = vcvt.s32.f32 %v589
      %v600 = vlaneseq
      %v601 = vand.u32 %v600, 127
      %v602 = vld [vmem:[%s477] sm:$0xf]
      %v603 = vld [vmem:[%s477 + $0x4] sm:$0xf]
      %v604 = vld [vmem:[%s477 + $0x8] sm:$0xf]
      %v605 = vld [vmem:[%s477 + $0xc] sm:$0xf]
      %v606 = vld [vmem:[%s477 + $0x10] sm:$0xf]
      %v607 = vld [vmem:[%s477 + $0x14] sm:$0xf]
      %v608 = vld [vmem:[%s477 + $0x18] sm:$0xf]
      %v609 = vld [vmem:[%s477 + $0x1c] sm:$0xf]
      %v610 = vld [vmem:[%s477 + $0x20] sm:$0xf]
      %v611 = vld [vmem:[%s477 + $0x24] sm:$0xf]
      %vm612 = vcmask 125952
      %613 = vst.msk [vmem:[#allocation2] sm:$0xf] %vm612, %v602
      %614 = vst.msk [vmem:[#allocation2 + $0xc] sm:$0xf] %vm612, %v603
      %615 = vst.msk [vmem:[#allocation2 + $0x18] sm:$0xf] %vm612, %v604
      %616 = vst.msk [vmem:[#allocation2 + $0x24] sm:$0xf] %vm612, %v605
      %617 = vst.msk [vmem:[#allocation2 + $0x30] sm:$0xf] %vm612, %v606
      %618 = vst.msk [vmem:[#allocation2 + $0x3c] sm:$0xf] %vm612, %v607
      %619 = vst.msk [vmem:[#allocation2 + $0x48] sm:$0xf] %vm612, %v608
      %620 = vst.msk [vmem:[#allocation2 + $0x54] sm:$0xf] %vm612, %v609
      %621 = vst.msk [vmem:[#allocation2 + $0x60] sm:$0xf] %vm612, %v610
      %622 = vst.msk [vmem:[#allocation2 + $0x6c] sm:$0xf] %vm612, %v611
      %v623 = vld [vmem:[%s477 + $0x30] sm:$0xf]
      %v624 = vld [vmem:[%s477 + $0x34] sm:$0xf]
      %v625 = vld [vmem:[%s477 + $0x38] sm:$0xf]
      %v626 = vld [vmem:[%s477 + $0x3c] sm:$0xf]
      %v627 = vld [vmem:[%s477 + $0x40] sm:$0xf]
      %v628 = vld [vmem:[%s477 + $0x44] sm:$0xf]
      %v629 = vld [vmem:[%s477 + $0x48] sm:$0xf]
      %v630 = vld [vmem:[%s477 + $0x4c] sm:$0xf]
      %v631 = vld [vmem:[%s477 + $0x50] sm:$0xf]
      %v632 = vld [vmem:[%s477 + $0x54] sm:$0xf]
      %643 = vrot.lane.b32.xlu0 %v623, 16
      %v644 = vpop.permute.xlu0 %643
      %645 = vrot.lane.b32.xlu0 %v624, 16
      %v646 = vpop.permute.xlu0 %645
      %647 = vrot.lane.b32.xlu0 %v625, 16
      %v648 = vpop.permute.xlu0 %647
      %649 = vrot.lane.b32.xlu0 %v626, 16
      %v650 = vpop.permute.xlu0 %649
      %651 = vrot.lane.b32.xlu0 %v627, 16
      %v652 = vpop.permute.xlu0 %651
      %653 = vrot.lane.b32.xlu0 %v628, 16
      %v654 = vpop.permute.xlu0 %653
      %655 = vrot.lane.b32.xlu0 %v629, 16
      %v656 = vpop.permute.xlu0 %655
      %657 = vrot.lane.b32.xlu0 %v630, 16
      %v658 = vpop.permute.xlu0 %657
      %659 = vrot.lane.b32.xlu0 %v631, 16
      %v660 = vpop.permute.xlu0 %659
      %661 = vrot.lane.b32.xlu0 %v632, 16
      %v662 = vpop.permute.xlu0 %661
      %vm673 = vcmask 257152
      %674 = vst.msk [vmem:[#allocation2] sm:$0xf] %vm673, %v644
      %675 = vst.msk [vmem:[#allocation2 + $0xc] sm:$0xf] %vm673, %v646
      %676 = vst.msk [vmem:[#allocation2 + $0x18] sm:$0xf] %vm673, %v648
      %677 = vst.msk [vmem:[#allocation2 + $0x24] sm:$0xf] %vm673, %v650
      %678 = vst.msk [vmem:[#allocation2 + $0x30] sm:$0xf] %vm673, %v652
      %679 = vst.msk [vmem:[#allocation2 + $0x3c] sm:$0xf] %vm673, %v654
      %680 = vst.msk [vmem:[#allocation2 + $0x48] sm:$0xf] %vm673, %v656
      %681 = vst.msk [vmem:[#allocation2 + $0x54] sm:$0xf] %vm673, %v658
      %682 = vst.msk [vmem:[#allocation2 + $0x60] sm:$0xf] %vm673, %v660
      %683 = vst.msk [vmem:[#allocation2 + $0x6c] sm:$0xf] %vm673, %v662
      %v684 = vld [vmem:[%s477] sm:$0xf]
      %v685 = vld [vmem:[%s477 + $0x4] sm:$0xf]
      %v686 = vld [vmem:[%s477 + $0x8] sm:$0xf]
      %v687 = vld [vmem:[%s477 + $0xc] sm:$0xf]
      %v688 = vld [vmem:[%s477 + $0x10] sm:$0xf]
      %v689 = vld [vmem:[%s477 + $0x14] sm:$0xf]
      %v690 = vld [vmem:[%s477 + $0x18] sm:$0xf]
      %v691 = vld [vmem:[%s477 + $0x1c] sm:$0xf]
      %v692 = vld [vmem:[%s477 + $0x20] sm:$0xf]
      %v693 = vld [vmem:[%s477 + $0x24] sm:$0xf]
      %v694 = vld [vmem:[%s477 + $0x28] sm:$0x1]
      %vm695 = vsmask.f32 3328
      %vm696 = vsmask.f32 7440
      %vm697 = vmor %vm695, %vm696
      %v699 = vshrl.u32 %v684, 16
      %v701 = vrot.slane %v699, 4
      %v702 = vshll.u32 %v684, 16
      %v704 = vrot.slane %v702, 5
      %v705 = vor.u32 %v701, %v704
      %v706 = vrot.slane %v705, 4
      %v708 = vshll.u32 %v685, 16
      %v710 = vrot.slane %v708, 5
      %v711 = vsel %vm697, %v706, %v710
      %v712 = vshrl.u32 %v685, 16
      %v714 = vrot.slane %v712, 4
      %v715 = vor.u32 %v714, %v710
      %v716 = vrot.slane %v715, 4
      %v718 = vshll.u32 %v686, 16
      %v720 = vrot.slane %v718, 5
      %v721 = vsel %vm697, %v716, %v720
      %v722 = vshrl.u32 %v686, 16
      %v724 = vrot.slane %v722, 4
      %v725 = vor.u32 %v724, %v720
      %v726 = vrot.slane %v725, 4
      %v728 = vshll.u32 %v687, 16
      %v730 = vrot.slane %v728, 5
      %v731 = vsel %vm697, %v726, %v730
      %v732 = vshrl.u32 %v687, 16
      %v734 = vrot.slane %v732, 4
      %v735 = vor.u32 %v734, %v730
      %v736 = vrot.slane %v735, 4
      %v738 = vshll.u32 %v688, 16
      %v740 = vrot.slane %v738, 5
      %v741 = vsel %vm697, %v736, %v740
      %v742 = vshrl.u32 %v688, 16
      %v744 = vrot.slane %v742, 4
      %v745 = vor.u32 %v744, %v740
      %v746 = vrot.slane %v745, 4
      %v748 = vshll.u32 %v689, 16
      %v750 = vrot.slane %v748, 5
      %v751 = vsel %vm697, %v746, %v750
      %v752 = vshrl.u32 %v689, 16
      %v754 = vrot.slane %v752, 4
      %v755 = vor.u32 %v754, %v750
      %v756 = vrot.slane %v755, 4
      %v758 = vshll.u32 %v690, 16
      %v760 = vrot.slane %v758, 5
      %v761 = vsel %vm697, %v756, %v760
      %v762 = vshrl.u32 %v690, 16
      %v764 = vrot.slane %v762, 4
      %v765 = vor.u32 %v764, %v760
      %v766 = vrot.slane %v765, 4
      %v768 = vshll.u32 %v691, 16
      %v770 = vrot.slane %v768, 5
      %v771 = vsel %vm697, %v766, %v770
      %v772 = vshrl.u32 %v691, 16
      %v774 = vrot.slane %v772, 4
      %v775 = vor.u32 %v774, %v770
      %v776 = vrot.slane %v775, 4
      %v778 = vshll.u32 %v692, 16
      %v780 = vrot.slane %v778, 5
      %v781 = vsel %vm697, %v776, %v780
      %v782 = vshrl.u32 %v692, 16
      %v784 = vrot.slane %v782, 4
      %v785 = vor.u32 %v784, %v780
      %v786 = vrot.slane %v785, 4
      %v788 = vshll.u32 %v693, 16
      %v790 = vrot.slane %v788, 5
      %v791 = vsel %vm697, %v786, %v790
      %v792 = vshrl.u32 %v693, 16
      %v794 = vrot.slane %v792, 4
      %v795 = vor.u32 %v794, %v790
      %v796 = vrot.slane %v795, 4
      %v798 = vshll.u32 %v694, 16
      %v800 = vrot.slane %v798, 5
      %v801 = vsel %vm697, %v796, %v800
      %802 = vrot.lane.b32.xlu0 %v711, 32
      %v803 = vpop.permute.xlu0 %802
      %804 = vrot.lane.b32.xlu0 %v721, 32
      %v805 = vpop.permute.xlu0 %804
      %806 = vrot.lane.b32.xlu0 %v731, 32
      %v807 = vpop.permute.xlu0 %806
      %808 = vrot.lane.b32.xlu0 %v741, 32
      %v809 = vpop.permute.xlu0 %808
      %810 = vrot.lane.b32.xlu0 %v751, 32
      %v811 = vpop.permute.xlu0 %810
      %812 = vrot.lane.b32.xlu0 %v761, 32
      %v813 = vpop.permute.xlu0 %812
      %814 = vrot.lane.b32.xlu0 %v771, 32
      %v815 = vpop.permute.xlu0 %814
      %816 = vrot.lane.b32.xlu0 %v781, 32
      %v817 = vpop.permute.xlu0 %816
      %818 = vrot.lane.b32.xlu0 %v791, 32
      %v819 = vpop.permute.xlu0 %818
      %820 = vrot.lane.b32.xlu0 %v801, 32
      %v821 = vpop.permute.xlu0 %820
      %vm832 = vcmask 388352
      %833 = vst.msk [vmem:[#allocation2] sm:$0xf] %vm832, %v803
      %834 = vst.msk [vmem:[#allocation2 + $0xc] sm:$0xf] %vm832, %v805
      %835 = vst.msk [vmem:[#allocation2 + $0x18] sm:$0xf] %vm832, %v807
      %836 = vst.msk [vmem:[#allocation2 + $0x24] sm:$0xf] %vm832, %v809
      %837 = vst.msk [vmem:[#allocation2 + $0x30] sm:$0xf] %vm832, %v811
      %838 = vst.msk [vmem:[#allocation2 + $0x3c] sm:$0xf] %vm832, %v813
      %839 = vst.msk [vmem:[#allocation2 + $0x48] sm:$0xf] %vm832, %v815
      %840 = vst.msk [vmem:[#allocation2 + $0x54] sm:$0xf] %vm832, %v817
      %841 = vst.msk [vmem:[#allocation2 + $0x60] sm:$0xf] %vm832, %v819
      %842 = vst.msk [vmem:[#allocation2 + $0x6c] sm:$0xf] %vm832, %v821
      %v843 = vld [vmem:[%s477 + $0x60] sm:$0xf]
      %v844 = vld [vmem:[%s477 + $0x64] sm:$0xf]
      %v845 = vld [vmem:[%s477 + $0x68] sm:$0xf]
      %v846 = vld [vmem:[%s477 + $0x6c] sm:$0xf]
      %v847 = vld [vmem:[%s477 + $0x70] sm:$0xf]
      %v848 = vld [vmem:[%s477 + $0x74] sm:$0xf]
      %v849 = vld [vmem:[%s477 + $0x78] sm:$0xf]
      %v850 = vld [vmem:[%s477 + $0x7c] sm:$0xf]
      %v851 = vld [vmem:[%s477 + $0x80] sm:$0xf]
      %v852 = vld [vmem:[%s477 + $0x84] sm:$0xf]
      %863 = vrot.lane.b32.xlu0 %v843, 48
      %v864 = vpop.permute.xlu0 %863
      %865 = vrot.lane.b32.xlu0 %v844, 48
      %v866 = vpop.permute.xlu0 %865
      %867 = vrot.lane.b32.xlu0 %v845, 48
      %v868 = vpop.permute.xlu0 %867
      %869 = vrot.lane.b32.xlu0 %v846, 48
      %v870 = vpop.permute.xlu0 %869
      %871 = vrot.lane.b32.xlu0 %v847, 48
      %v872 = vpop.permute.xlu0 %871
      %873 = vrot.lane.b32.xlu0 %v848, 48
      %v874 = vpop.permute.xlu0 %873
      %875 = vrot.lane.b32.xlu0 %v849, 48
      %v876 = vpop.permute.xlu0 %875
      %877 = vrot.lane.b32.xlu0 %v850, 48
      %v878 = vpop.permute.xlu0 %877
      %879 = vrot.lane.b32.xlu0 %v851, 48
      %v880 = vpop.permute.xlu0 %879
      %881 = vrot.lane.b32.xlu0 %v852, 48
      %v882 = vpop.permute.xlu0 %881
      %vm893 = vcmask 519552
      %894 = vst.msk [vmem:[#allocation2] sm:$0xf] %vm893, %v864
      %895 = vst.msk [vmem:[#allocation2 + $0xc] sm:$0xf] %vm893, %v866
      %896 = vst.msk [vmem:[#allocation2 + $0x18] sm:$0xf] %vm893, %v868
      %897 = vst.msk [vmem:[#allocation2 + $0x24] sm:$0xf] %vm893, %v870
      %898 = vst.msk [vmem:[#allocation2 + $0x30] sm:$0xf] %vm893, %v872
      %899 = vst.msk [vmem:[#allocation2 + $0x3c] sm:$0xf] %vm893, %v874
      %900 = vst.msk [vmem:[#allocation2 + $0x48] sm:$0xf] %vm893, %v876
      %901 = vst.msk [vmem:[#allocation2 + $0x54] sm:$0xf] %vm893, %v878
      %902 = vst.msk [vmem:[#allocation2 + $0x60] sm:$0xf] %vm893, %v880
      %903 = vst.msk [vmem:[#allocation2 + $0x6c] sm:$0xf] %vm893, %v882
      %v904 = vld [vmem:[%s477 + $0x90] sm:$0xf]
      %v905 = vld [vmem:[%s477 + $0x94] sm:$0xf]
      %v906 = vld [vmem:[%s477 + $0x98] sm:$0xf]
      %v907 = vld [vmem:[%s477 + $0x9c] sm:$0xf]
      %v908 = vld [vmem:[%s477 + $0xa0] sm:$0xf]
      %v909 = vld [vmem:[%s477 + $0xa4] sm:$0xf]
      %v910 = vld [vmem:[%s477 + $0xa8] sm:$0xf]
      %v911 = vld [vmem:[%s477 + $0xac] sm:$0xf]
      %v912 = vld [vmem:[%s477 + $0xb0] sm:$0xf]
      %v913 = vld [vmem:[%s477 + $0xb4] sm:$0xf]
      %924 = vrot.lane.b32.xlu0 %v904, 64
      %v925 = vpop.permute.xlu0 %924
      %926 = vrot.lane.b32.xlu0 %v905, 64
      %v927 = vpop.permute.xlu0 %926
      %928 = vrot.lane.b32.xlu0 %v906, 64
      %v929 = vpop.permute.xlu0 %928
      %930 = vrot.lane.b32.xlu0 %v907, 64
      %v931 = vpop.permute.xlu0 %930
      %932 = vrot.lane.b32.xlu0 %v908, 64
      %v933 = vpop.permute.xlu0 %932
      %934 = vrot.lane.b32.xlu0 %v909, 64
      %v935 = vpop.permute.xlu0 %934
      %936 = vrot.lane.b32.xlu0 %v910, 64
      %v937 = vpop.permute.xlu0 %936
      %938 = vrot.lane.b32.xlu0 %v911, 64
      %v939 = vpop.permute.xlu0 %938
      %940 = vrot.lane.b32.xlu0 %v912, 64
      %v941 = vpop.permute.xlu0 %940
      %942 = vrot.lane.b32.xlu0 %v913, 64
      %v943 = vpop.permute.xlu0 %942
      %vm954 = vcmask 650752
      %955 = vst.msk [vmem:[#allocation2] sm:$0xf] %vm954, %v925
      %956 = vst.msk [vmem:[#allocation2 + $0xc] sm:$0xf] %vm954, %v927
      %957 = vst.msk [vmem:[#allocation2 + $0x18] sm:$0xf] %vm954, %v929
      %958 = vst.msk [vmem:[#allocation2 + $0x24] sm:$0xf] %vm954, %v931
      %959 = vst.msk [vmem:[#allocation2 + $0x30] sm:$0xf] %vm954, %v933
      %960 = vst.msk [vmem:[#allocation2 + $0x3c] sm:$0xf] %vm954, %v935
      %961 = vst.msk [vmem:[#allocation2 + $0x48] sm:$0xf] %vm954, %v937
      %962 = vst.msk [vmem:[#allocation2 + $0x54] sm:$0xf] %vm954, %v939
      %963 = vst.msk [vmem:[#allocation2 + $0x60] sm:$0xf] %vm954, %v941
      %964 = vst.msk [vmem:[#allocation2 + $0x6c] sm:$0xf] %vm954, %v943
      %v965 = vld [vmem:[%s477 + $0x60] sm:$0xf]
      %v966 = vld [vmem:[%s477 + $0x64] sm:$0xf]
      %v967 = vld [vmem:[%s477 + $0x68] sm:$0xf]
      %v968 = vld [vmem:[%s477 + $0x6c] sm:$0xf]
      %v969 = vld [vmem:[%s477 + $0x70] sm:$0xf]
      %v970 = vld [vmem:[%s477 + $0x74] sm:$0xf]
      %v971 = vld [vmem:[%s477 + $0x78] sm:$0xf]
      %v972 = vld [vmem:[%s477 + $0x7c] sm:$0xf]
      %v973 = vld [vmem:[%s477 + $0x80] sm:$0xf]
      %v974 = vld [vmem:[%s477 + $0x84] sm:$0xf]
      %v975 = vld [vmem:[%s477 + $0x88] sm:$0x1]
      %v977 = vshrl.u32 %v965, 16
      %v979 = vrot.slane %v977, 4
      %v980 = vshll.u32 %v965, 16
      %v982 = vrot.slane %v980, 5
      %v983 = vor.u32 %v979, %v982
      %v984 = vrot.slane %v983, 4
      %v986 = vshll.u32 %v966, 16
      %v988 = vrot.slane %v986, 5
      %v989 = vsel %vm697, %v984, %v988
      %v990 = vshrl.u32 %v966, 16
      %v992 = vrot.slane %v990, 4
      %v993 = vor.u32 %v992, %v988
      %v994 = vrot.slane %v993, 4
      %v996 = vshll.u32 %v967, 16
      %v998 = vrot.slane %v996, 5
      %v999 = vsel %vm697, %v994, %v998
      %v1000 = vshrl.u32 %v967, 16
      %v1002 = vrot.slane %v1000, 4
      %v1003 = vor.u32 %v1002, %v998
      %v1004 = vrot.slane %v1003, 4
      %v1006 = vshll.u32 %v968, 16
      %v1008 = vrot.slane %v1006, 5
      %v1009 = vsel %vm697, %v1004, %v1008
      %v1010 = vshrl.u32 %v968, 16
      %v1012 = vrot.slane %v1010, 4
      %v1013 = vor.u32 %v1012, %v1008
      %v1014 = vrot.slane %v1013, 4
      %v1016 = vshll.u32 %v969, 16
      %v1018 = vrot.slane %v1016, 5
      %v1019 = vsel %vm697, %v1014, %v1018
      %v1020 = vshrl.u32 %v969, 16
      %v1022 = vrot.slane %v1020, 4
      %v1023 = vor.u32 %v1022, %v1018
      %v1024 = vrot.slane %v1023, 4
      %v1026 = vshll.u32 %v970, 16
      %v1028 = vrot.slane %v1026, 5
      %v1029 = vsel %vm697, %v1024, %v1028
      %v1030 = vshrl.u32 %v970, 16
      %v1032 = vrot.slane %v1030, 4
      %v1033 = vor.u32 %v1032, %v1028
      %v1034 = vrot.slane %v1033, 4
      %v1036 = vshll.u32 %v971, 16
      %v1038 = vrot.slane %v1036, 5
      %v1039 = vsel %vm697, %v1034, %v1038
      %v1040 = vshrl.u32 %v971, 16
      %v1042 = vrot.slane %v1040, 4
      %v1043 = vor.u32 %v1042, %v1038
      %v1044 = vrot.slane %v1043, 4
      %v1046 = vshll.u32 %v972, 16
      %v1048 = vrot.slane %v1046, 5
      %v1049 = vsel %vm697, %v1044, %v1048
      %v1050 = vshrl.u32 %v972, 16
      %v1052 = vrot.slane %v1050, 4
      %v1053 = vor.u32 %v1052, %v1048
      %v1054 = vrot.slane %v1053, 4
      %v1056 = vshll.u32 %v973, 16
      %v1058 = vrot.slane %v1056, 5
      %v1059 = vsel %vm697, %v1054, %v1058
      %v1060 = vshrl.u32 %v973, 16
      %v1062 = vrot.slane %v1060, 4
      %v1063 = vor.u32 %v1062, %v1058
      %v1064 = vrot.slane %v1063, 4
      %v1066 = vshll.u32 %v974, 16
      %v1068 = vrot.slane %v1066, 5
      %v1069 = vsel %vm697, %v1064, %v1068
      %v1070 = vshrl.u32 %v974, 16
      %v1072 = vrot.slane %v1070, 4
      %v1073 = vor.u32 %v1072, %v1068
      %v1074 = vrot.slane %v1073, 4
      %v1076 = vshll.u32 %v975, 16
      %v1078 = vrot.slane %v1076, 5
      %v1079 = vsel %vm697, %v1074, %v1078
      %1080 = vrot.lane.b32.xlu0 %v989, 80
      %v1081 = vpop.permute.xlu0 %1080
      %1082 = vrot.lane.b32.xlu0 %v999, 80
      %v1083 = vpop.permute.xlu0 %1082
      %1084 = vrot.lane.b32.xlu0 %v1009, 80
      %v1085 = vpop.permute.xlu0 %1084
      %1086 = vrot.lane.b32.xlu0 %v1019, 80
      %v1087 = vpop.permute.xlu0 %1086
      %1088 = vrot.lane.b32.xlu0 %v1029, 80
      %v1089 = vpop.permute.xlu0 %1088
      %1090 = vrot.lane.b32.xlu0 %v1039, 80
      %v1091 = vpop.permute.xlu0 %1090
      %1092 = vrot.lane.b32.xlu0 %v1049, 80
      %v1093 = vpop.permute.xlu0 %1092
      %1094 = vrot.lane.b32.xlu0 %v1059, 80
      %v1095 = vpop.permute.xlu0 %1094
      %1096 = vrot.lane.b32.xlu0 %v1069, 80
      %v1097 = vpop.permute.xlu0 %1096
      %1098 = vrot.lane.b32.xlu0 %v1079, 80
      %v1099 = vpop.permute.xlu0 %1098
      %vm1110 = vcmask 781952
      %1111 = vst.msk [vmem:[#allocation2] sm:$0xf] %vm1110, %v1081
      %1112 = vst.msk [vmem:[#allocation2 + $0xc] sm:$0xf] %vm1110, %v1083
      %1113 = vst.msk [vmem:[#allocation2 + $0x18] sm:$0xf] %vm1110, %v1085
      %1114 = vst.msk [vmem:[#allocation2 + $0x24] sm:$0xf] %vm1110, %v1087
      %1115 = vst.msk [vmem:[#allocation2 + $0x30] sm:$0xf] %vm1110, %v1089
      %1116 = vst.msk [vmem:[#allocation2 + $0x3c] sm:$0xf] %vm1110, %v1091
      %1117 = vst.msk [vmem:[#allocation2 + $0x48] sm:$0xf] %vm1110, %v1093
      %1118 = vst.msk [vmem:[#allocation2 + $0x54] sm:$0xf] %vm1110, %v1095
      %1119 = vst.msk [vmem:[#allocation2 + $0x60] sm:$0xf] %vm1110, %v1097
      %1120 = vst.msk [vmem:[#allocation2 + $0x6c] sm:$0xf] %vm1110, %v1099
      %v1121 = vld [vmem:[%s477 + $0x4] sm:$0xe]
      %v1122 = vld [vmem:[%s477 + $0x8] sm:$0xf]
      %v1123 = vld [vmem:[%s477 + $0xc] sm:$0xf]
      %v1124 = vld [vmem:[%s477 + $0x10] sm:$0xf]
      %v1125 = vld [vmem:[%s477 + $0x14] sm:$0xf]
      %v1126 = vld [vmem:[%s477 + $0x18] sm:$0xf]
      %v1127 = vld [vmem:[%s477 + $0x1c] sm:$0xf]
      %v1128 = vld [vmem:[%s477 + $0x20] sm:$0xf]
      %v1129 = vld [vmem:[%s477 + $0x24] sm:$0xf]
      %v1130 = vld [vmem:[%s477 + $0x28] sm:$0xf]
      %v1131 = vld [vmem:[%s477 + $0x2c] sm:$0x1]
      %vm1143 = vcmask 1042432
      %vm1144 = vcmask 1046532
      %vm1145 = vmor %vm1143, %vm1144
      %v1146 = vrot.slane %v1121, 5
      %v1147 = vrot.slane %v1146, 4
      %v1148 = vrot.slane %v1122, 5
      %v1149 = vsel %vm1145, %v1147, %v1148
      %v1150 = vrot.slane %v1148, 4
      %v1151 = vrot.slane %v1123, 5
      %v1152 = vsel %vm1145, %v1150, %v1151
      %v1153 = vrot.slane %v1151, 4
      %v1154 = vrot.slane %v1124, 5
      %v1155 = vsel %vm1145, %v1153, %v1154
      %v1156 = vrot.slane %v1154, 4
      %v1157 = vrot.slane %v1125, 5
      %v1158 = vsel %vm1145, %v1156, %v1157
      %v1159 = vrot.slane %v1157, 4
      %v1160 = vrot.slane %v1126, 5
      %v1161 = vsel %vm1145, %v1159, %v1160
      %v1162 = vrot.slane %v1160, 4
      %v1163 = vrot.slane %v1127, 5
      %v1164 = vsel %vm1145, %v1162, %v1163
      %v1165 = vrot.slane %v1163, 4
      %v1166 = vrot.slane %v1128, 5
      %v1167 = vsel %vm1145, %v1165, %v1166
      %v1168 = vrot.slane %v1166, 4
      %v1169 = vrot.slane %v1129, 5
      %v1170 = vsel %vm1145, %v1168, %v1169
      %v1171 = vrot.slane %v1169, 4
      %v1172 = vrot.slane %v1130, 5
      %v1173 = vsel %vm1145, %v1171, %v1172
      %v1174 = vrot.slane %v1172, 4
      %v1175 = vrot.slane %v1131, 5
      %v1176 = vsel %vm1145, %v1174, %v1175
      %1177 = vrot.lane.b32.xlu0 %v1149, 96
      %v1178 = vpop.permute.xlu0 %1177
      %1179 = vrot.lane.b32.xlu0 %v1152, 96
      %v1180 = vpop.permute.xlu0 %1179
      %1181 = vrot.lane.b32.xlu0 %v1155, 96
      %v1182 = vpop.permute.xlu0 %1181
      %1183 = vrot.lane.b32.xlu0 %v1158, 96
      %v1184 = vpop.permute.xlu0 %1183
      %1185 = vrot.lane.b32.xlu0 %v1161, 96
      %v1186 = vpop.permute.xlu0 %1185
      %1187 = vrot.lane.b32.xlu0 %v1164, 96
      %v1188 = vpop.permute.xlu0 %1187
      %1189 = vrot.lane.b32.xlu0 %v1167, 96
      %v1190 = vpop.permute.xlu0 %1189
      %1191 = vrot.lane.b32.xlu0 %v1170, 96
      %v1192 = vpop.permute.xlu0 %1191
      %1193 = vrot.lane.b32.xlu0 %v1173, 96
      %v1194 = vpop.permute.xlu0 %1193
      %1195 = vrot.lane.b32.xlu0 %v1176, 96
      %v1196 = vpop.permute.xlu0 %1195
      %vm1207 = vcmask 913152
      %1208 = vst.msk [vmem:[#allocation2] sm:$0xf] %vm1207, %v1178
      %1209 = vst.msk [vmem:[#allocation2 + $0xc] sm:$0xf] %vm1207, %v1180
      %1210 = vst.msk [vmem:[#allocation2 + $0x18] sm:$0xf] %vm1207, %v1182
      %1211 = vst.msk [vmem:[#allocation2 + $0x24] sm:$0xf] %vm1207, %v1184
      %1212 = vst.msk [vmem:[#allocation2 + $0x30] sm:$0xf] %vm1207, %v1186
      %1213 = vst.msk [vmem:[#allocation2 + $0x3c] sm:$0xf] %vm1207, %v1188
      %1214 = vst.msk [vmem:[#allocation2 + $0x48] sm:$0xf] %vm1207, %v1190
      %1215 = vst.msk [vmem:[#allocation2 + $0x54] sm:$0xf] %vm1207, %v1192
      %1216 = vst.msk [vmem:[#allocation2 + $0x60] sm:$0xf] %vm1207, %v1194
      %1217 = vst.msk [vmem:[#allocation2 + $0x6c] sm:$0xf] %vm1207, %v1196
      %v1218 = vld [vmem:[%s477 + $0x34] sm:$0xe]
      %v1219 = vld [vmem:[%s477 + $0x38] sm:$0xf]
      %v1220 = vld [vmem:[%s477 + $0x3c] sm:$0xf]
      %v1221 = vld [vmem:[%s477 + $0x40] sm:$0xf]
      %v1222 = vld [vmem:[%s477 + $0x44] sm:$0xf]
      %v1223 = vld [vmem:[%s477 + $0x48] sm:$0xf]
      %v1224 = vld [vmem:[%s477 + $0x4c] sm:$0xf]
      %v1225 = vld [vmem:[%s477 + $0x50] sm:$0xf]
      %v1226 = vld [vmem:[%s477 + $0x54] sm:$0xf]
      %v1227 = vld [vmem:[%s477 + $0x58] sm:$0xf]
      %v1228 = vld [vmem:[%s477 + $0x5c] sm:$0x1]
      %v1240 = vrot.slane %v1218, 5
      %v1241 = vrot.slane %v1240, 4
      %v1242 = vrot.slane %v1219, 5
      %v1243 = vsel %vm1145, %v1241, %v1242
      %v1244 = vrot.slane %v1242, 4
      %v1245 = vrot.slane %v1220, 5
      %v1246 = vsel %vm1145, %v1244, %v1245
      %v1247 = vrot.slane %v1245, 4
      %v1248 = vrot.slane %v1221, 5
      %v1249 = vsel %vm1145, %v1247, %v1248
      %v1250 = vrot.slane %v1248, 4
      %v1251 = vrot.slane %v1222, 5
      %v1252 = vsel %vm1145, %v1250, %v1251
      %v1253 = vrot.slane %v1251, 4
      %v1254 = vrot.slane %v1223, 5
      %v1255 = vsel %vm1145, %v1253, %v1254
      %v1256 = vrot.slane %v1254, 4
      %v1257 = vrot.slane %v1224, 5
      %v1258 = vsel %vm1145, %v1256, %v1257
      %v1259 = vrot.slane %v1257, 4
      %v1260 = vrot.slane %v1225, 5
      %v1261 = vsel %vm1145, %v1259, %v1260
      %v1262 = vrot.slane %v1260, 4
      %v1263 = vrot.slane %v1226, 5
      %v1264 = vsel %vm1145, %v1262, %v1263
      %v1265 = vrot.slane %v1263, 4
      %v1266 = vrot.slane %v1227, 5
      %v1267 = vsel %vm1145, %v1265, %v1266
      %v1268 = vrot.slane %v1266, 4
      %v1269 = vrot.slane %v1228, 5
      %v1270 = vsel %vm1145, %v1268, %v1269
      %1271 = vrot.lane.b32.xlu0 %v1243, 112
      %v1272 = vpop.permute.xlu0 %1271
      %1273 = vrot.lane.b32.xlu0 %v1246, 112
      %v1274 = vpop.permute.xlu0 %1273
      %1275 = vrot.lane.b32.xlu0 %v1249, 112
      %v1276 = vpop.permute.xlu0 %1275
      %1277 = vrot.lane.b32.xlu0 %v1252, 112
      %v1278 = vpop.permute.xlu0 %1277
      %1279 = vrot.lane.b32.xlu0 %v1255, 112
      %v1280 = vpop.permute.xlu0 %1279
      %1281 = vrot.lane.b32.xlu0 %v1258, 112
      %v1282 = vpop.permute.xlu0 %1281
      %1283 = vrot.lane.b32.xlu0 %v1261, 112
      %v1284 = vpop.permute.xlu0 %1283
      %1285 = vrot.lane.b32.xlu0 %v1264, 112
      %v1286 = vpop.permute.xlu0 %1285
      %1287 = vrot.lane.b32.xlu0 %v1267, 112
      %v1288 = vpop.permute.xlu0 %1287
      %1289 = vrot.lane.b32.xlu0 %v1270, 112
      %v1290 = vpop.permute.xlu0 %1289
      %vm1301 = vcmask 1044352
      %1302 = vst.msk [vmem:[#allocation2] sm:$0xf] %vm1301, %v1272
      %1303 = vst.msk [vmem:[#allocation2 + $0xc] sm:$0xf] %vm1301, %v1274
      %1304 = vst.msk [vmem:[#allocation2 + $0x18] sm:$0xf] %vm1301, %v1276
      %1305 = vst.msk [vmem:[#allocation2 + $0x24] sm:$0xf] %vm1301, %v1278
      %1306 = vst.msk [vmem:[#allocation2 + $0x30] sm:$0xf] %vm1301, %v1280
      %1307 = vst.msk [vmem:[#allocation2 + $0x3c] sm:$0xf] %vm1301, %v1282
      %1308 = vst.msk [vmem:[#allocation2 + $0x48] sm:$0xf] %vm1301, %v1284
      %1309 = vst.msk [vmem:[#allocation2 + $0x54] sm:$0xf] %vm1301, %v1286
      %1310 = vst.msk [vmem:[#allocation2 + $0x60] sm:$0xf] %vm1301, %v1288
      %1311 = vst.msk [vmem:[#allocation2 + $0x6c] sm:$0xf] %vm1301, %v1290
      %v1312 = vld [vmem:[%s477 + $0x4] sm:$0xe]
      %v1313 = vld [vmem:[%s477 + $0x8] sm:$0xf]
      %v1314 = vld [vmem:[%s477 + $0xc] sm:$0xf]
      %v1315 = vld [vmem:[%s477 + $0x10] sm:$0xf]
      %v1316 = vld [vmem:[%s477 + $0x14] sm:$0xf]
      %v1317 = vld [vmem:[%s477 + $0x18] sm:$0xf]
      %v1318 = vld [vmem:[%s477 + $0x1c] sm:$0xf]
      %v1319 = vld [vmem:[%s477 + $0x20] sm:$0xf]
      %v1320 = vld [vmem:[%s477 + $0x24] sm:$0xf]
      %v1321 = vld [vmem:[%s477 + $0x28] sm:$0xf]
      %v1322 = vld [vmem:[%s477 + $0x2c] sm:$0x3]
      %vm1323 = vsmask.f32 2304
      %vm1324 = vsmask.f32 6416
      %vm1325 = vmor %vm1323, %vm1324
      %v1327 = vshrl.u32 %v1312, 16
      %v1329 = vrot.slane %v1327, 5
      %v1330 = vshll.u32 %v1312, 16
      %v1332 = vrot.slane %v1330, 6
      %v1333 = vor.u32 %v1329, %v1332
      %v1334 = vrot.slane %v1333, 4
      %v1336 = vshrl.u32 %v1313, 16
      %v1338 = vrot.slane %v1336, 5
      %v1339 = vshll.u32 %v1313, 16
      %v1341 = vrot.slane %v1339, 6
      %v1342 = vor.u32 %v1338, %v1341
      %v1343 = vsel %vm1325, %v1334, %v1342
      %v1344 = vrot.slane %v1342, 4
      %v1346 = vshrl.u32 %v1314, 16
      %v1348 = vrot.slane %v1346, 5
      %v1349 = vshll.u32 %v1314, 16
      %v1351 = vrot.slane %v1349, 6
      %v1352 = vor.u32 %v1348, %v1351
      %v1353 = vsel %vm1325, %v1344, %v1352
      %v1354 = vrot.slane %v1352, 4
      %v1356 = vshrl.u32 %v1315, 16
      %v1358 = vrot.slane %v1356, 5
      %v1359 = vshll.u32 %v1315, 16
      %v1361 = vrot.slane %v1359, 6
      %v1362 = vor.u32 %v1358, %v1361
      %v1363 = vsel %vm1325, %v1354, %v1362
      %v1364 = vrot.slane %v1362, 4
      %v1366 = vshrl.u32 %v1316, 16
      %v1368 = vrot.slane %v1366, 5
      %v1369 = vshll.u32 %v1316, 16
      %v1371 = vrot.slane %v1369, 6
      %v1372 = vor.u32 %v1368, %v1371
      %v1373 = vsel %vm1325, %v1364, %v1372
      %v1374 = vrot.slane %v1372, 4
      %v1376 = vshrl.u32 %v1317, 16
      %v1378 = vrot.slane %v1376, 5
      %v1379 = vshll.u32 %v1317, 16
      %v1381 = vrot.slane %v1379, 6
      %v1382 = vor.u32 %v1378, %v1381
      %v1383 = vsel %vm1325, %v1374, %v1382
      %v1384 = vrot.slane %v1382, 4
      %v1386 = vshrl.u32 %v1318, 16
      %v1388 = vrot.slane %v1386, 5
      %v1389 = vshll.u32 %v1318, 16
      %v1391 = vrot.slane %v1389, 6
      %v1392 = vor.u32 %v1388, %v1391
      %v1393 = vsel %vm1325, %v1384, %v1392
      %v1394 = vrot.slane %v1392, 4
      %v1396 = vshrl.u32 %v1319, 16
      %v1398 = vrot.slane %v1396, 5
      %v1399 = vshll.u32 %v1319, 16
      %v1401 = vrot.slane %v1399, 6
      %v1402 = vor.u32 %v1398, %v1401
      %v1403 = vsel %vm1325, %v1394, %v1402
      %v1404 = vrot.slane %v1402, 4
      %v1406 = vshrl.u32 %v1320, 16
      %v1408 = vrot.slane %v1406, 5
      %v1409 = vshll.u32 %v1320, 16
      %v1411 = vrot.slane %v1409, 6
      %v1412 = vor.u32 %v1408, %v1411
      %v1413 = vsel %vm1325, %v1404, %v1412
      %v1414 = vrot.slane %v1412, 4
      %v1416 = vshrl.u32 %v1321, 16
      %v1418 = vrot.slane %v1416, 5
      %v1419 = vshll.u32 %v1321, 16
      %v1421 = vrot.slane %v1419, 6
      %v1422 = vor.u32 %v1418, %v1421
      %v1423 = vsel %vm1325, %v1414, %v1422
      %v1424 = vrot.slane %v1422, 4
      %v1426 = vshrl.u32 %v1322, 16
      %v1428 = vrot.slane %v1426, 5
      %v1429 = vshll.u32 %v1322, 16
      %v1431 = vrot.slane %v1429, 6
      %v1432 = vor.u32 %v1428, %v1431
      %v1433 = vsel %vm1325, %v1424, %v1432
      %1444 = vst.msk [vmem:[#allocation2 + $0x4] sm:$0xf] %vm612, %v1343
      %1445 = vst.msk [vmem:[#allocation2 + $0x10] sm:$0xf] %vm612, %v1353
      %1446 = vst.msk [vmem:[#allocation2 + $0x1c] sm:$0xf] %vm612, %v1363
      %1447 = vst.msk [vmem:[#allocation2 + $0x28] sm:$0xf] %vm612, %v1373
      %1448 = vst.msk [vmem:[#allocation2 + $0x34] sm:$0xf] %vm612, %v1383
      %1449 = vst.msk [vmem:[#allocation2 + $0x40] sm:$0xf] %vm612, %v1393
      %1450 = vst.msk [vmem:[#allocation2 + $0x4c] sm:$0xf] %vm612, %v1403
      %1451 = vst.msk [vmem:[#allocation2 + $0x58] sm:$0xf] %vm612, %v1413
      %1452 = vst.msk [vmem:[#allocation2 + $0x64] sm:$0xf] %vm612, %v1423
      %1453 = vst.msk [vmem:[#allocation2 + $0x70] sm:$0xf] %vm612, %v1433
      %v1454 = vld [vmem:[#allocation2] sm:$0xff]
      %v1455 = vld [vmem:[#allocation2 + $0xc] sm:$0xff]
      %v1456 = vld [vmem:[#allocation2 + $0x18] sm:$0xff]
      %v1457 = vld [vmem:[#allocation2 + $0x24] sm:$0xff]
      %v1458 = vld [vmem:[#allocation2 + $0x30] sm:$0xff]
      %v1459 = vld [vmem:[#allocation2 + $0x3c] sm:$0xff]
      %v1460 = vld [vmem:[#allocation2 + $0x48] sm:$0xff]
      %v1461 = vld [vmem:[#allocation2 + $0x54] sm:$0xff]
      %v1462 = vld [vmem:[#allocation2 + $0x60] sm:$0xff]
      %v1463 = vld [vmem:[#allocation2 + $0x6c] sm:$0xff]
      %v1464 = vld [vmem:[%s2] sm:$0xf]
      %v1465 = vld [vmem:[%s2 + $0x4] sm:$0xf]
      %v1466 = vld [vmem:[%s2 + $0x8] sm:$0xf]
      %v1467 = vld [vmem:[%s2 + $0xc] sm:$0xf]
      %v1468 = vld [vmem:[%s2 + $0x10] sm:$0xf]
      %v1469 = vld [vmem:[%s2 + $0x14] sm:$0xf]
      %v1470 = vld [vmem:[%s2 + $0x18] sm:$0xf]
      %v1471 = vld [vmem:[%s2 + $0x1c] sm:$0xf]
      %v1472 = vld [vmem:[%s2 + $0x20] sm:$0xf]
      %v1473 = vld [vmem:[%s2 + $0x24] sm:$0xf]
      %v1474 = vld [vmem:[%s2 + $0x28] sm:$0xf]
      %v1475 = vld [vmem:[%s2 + $0x2c] sm:$0xf]
      %v1476 = vld [vmem:[%s2 + $0x30] sm:$0xf]
      %v1477 = vld [vmem:[%s2 + $0x34] sm:$0xf]
      %v1478 = vld [vmem:[%s2 + $0x38] sm:$0xf]
      %v1479 = vld [vmem:[%s2 + $0x3c] sm:$0xf]
      %v1480 = vld [vmem:[%s2 + $0x40] sm:$0xf]
      %v1481 = vld [vmem:[%s2 + $0x44] sm:$0xf]
      %v1482 = vld [vmem:[%s3] sm:$0x1]
      %v1484 = vlaneseq
      %v1485 = vshrl.u32 %v1484, 7
      %v1486 = vsub.s32 0, %v1485
      %v1487 = vrot.slane %v1482, %v1486
      %v1499 = vunpack.c.l.b16 %v1454
      %v1500 = vunpack.c.h.b16 %v1454
      %v1501 = vunpack.c.l.b16 %v1455
      %v1502 = vunpack.c.h.b16 %v1455
      %v1503 = vunpack.c.l.b16 %v1456
      %v1504 = vunpack.c.h.b16 %v1456
      %v1505 = vunpack.c.l.b16 %v1457
      %v1506 = vunpack.c.h.b16 %v1457
      %v1507 = vunpack.c.l.b16 %v1458
      %v1508 = vunpack.c.h.b16 %v1458
      %v1509 = vunpack.c.l.b16 %v1459
      %v1510 = vunpack.c.h.b16 %v1459
      %v1511 = vunpack.c.l.b16 %v1460
      %v1512 = vunpack.c.h.b16 %v1460
      %v1513 = vunpack.c.l.b16 %v1461
      %v1514 = vunpack.c.h.b16 %v1461
      %v1515 = vunpack.c.l.b16 %v1462
      %v1516 = vunpack.c.h.b16 %v1462
      %v1517 = vunpack.c.l.b16 %v1463
      %v1518 = vunpack.c.h.b16 %v1463
      %v1519 = vpack.c.b16 %v1501, %v1499
      %v1520 = vpack.c.b16 %v1502, %v1500
      %v1521 = vpack.c.b16 %v1505, %v1503
      %v1522 = vpack.c.b16 %v1506, %v1504
      %v1523 = vpack.c.b16 %v1509, %v1507
      %v1524 = vpack.c.b16 %v1510, %v1508
      %v1525 = vpack.c.b16 %v1513, %v1511
      %v1526 = vpack.c.b16 %v1514, %v1512
      %v1527 = vpack.c.b16 %v1517, %v1515
      %v1528 = vpack.c.b16 %v1518, %v1516
      %v1552 = vunpack.c.l.b16 %v1464
      %v1553 = vunpack.c.l.b16 %v1465
      %v1554 = vunpack.c.l.b16 %v1466
      %v1555 = vunpack.c.l.b16 %v1467
      %v1556 = vunpack.c.l.b16 %v1468
      %v1557 = vunpack.c.l.b16 %v1469
      %v1558 = vunpack.c.l.b16 %v1470
      %v1559 = vunpack.c.l.b16 %v1471
      %v1560 = vunpack.c.l.b16 %v1472
      %v1561 = vunpack.c.l.b16 %v1473
      %v1562 = vunpack.c.l.b16 %v1474
      %v1563 = vunpack.c.l.b16 %v1475
      %v1564 = vunpack.c.l.b16 %v1476
      %v1565 = vunpack.c.l.b16 %v1477
      %v1566 = vunpack.c.l.b16 %v1478
      %v1567 = vunpack.c.l.b16 %v1479
      %v1568 = vunpack.c.l.b16 %v1480
      %v1569 = vunpack.c.l.b16 %v1481
      %v1570 = vpack.c.b16 %v1553, %v1552
      %v1571 = vpack.c.b16 %v1555, %v1554
      %v1572 = vpack.c.b16 %v1557, %v1556
      %v1573 = vpack.c.b16 %v1559, %v1558
      %v1574 = vpack.c.b16 %v1561, %v1560
      %v1575 = vpack.c.b16 %v1563, %v1562
      %v1576 = vpack.c.b16 %v1565, %v1564
      %v1577 = vpack.c.b16 %v1567, %v1566
      %v1578 = vpack.c.b16 %v1569, %v1568
      %vm1588 = vcmask 130048
      %v1590 = vsel %vm1588, %v1520, 0
      %v1593 = vsel %vm1588, %v1522, 0
      %v1596 = vsel %vm1588, %v1524, 0
      %v1599 = vsel %vm1588, %v1526, 0
      %v1602 = vsel %vm1588, %v1528, 0
      %1604 = vmatprep.subr.bf16.mxu0 0
      %1605 = vmatpush1.bf16.msra.mxu0 %v1577
      %1606 = vmatprep.subr.bf16.mxu0 0
      %1607 = vmatpush1.bf16.msra.mxu0 %v1576
      %1608 = vmatprep.subr.bf16.mxu0 0
      %1609 = vmatpush1.bf16.msra.mxu0 %v1575
      %1610 = vmatprep.subr.bf16.mxu0 0
      %1611 = vmatpush1.bf16.msra.mxu0 %v1574
      %1612 = vmatprep.subr.bf16.mxu0 0
      %1613 = vmatpush1.bf16.msra.mxu0 %v1573
      %1614 = vmatprep.subr.bf16.mxu0 0
      %1615 = vmatpush1.bf16.msra.mxu0 %v1572
      %1616 = vmatprep.subr.bf16.mxu0 0
      %1617 = vmatpush1.bf16.msra.mxu0 %v1571
      %1618 = vmatprep.subr.bf16.mxu0 0
      %1619 = vmatpush1.bf16.msra.mxu0 %v1570
      %1620 = vmatprep.subr.bf16.mxu0 0
      %1621 = vmatpush2.bf16.msra.mxu0 0
      %1622 = vmatprep.subr.bf16.mxu0 0
      %1623 = vmatpush2.bf16.msra.mxu0 0
      %1624 = vmatprep.subr.bf16.mxu0 0
      %1625 = vmatpush2.bf16.msra.mxu0 0
      %1626 = vmatprep.subr.bf16.mxu0 0
      %1627 = vmatpush2.bf16.msra.mxu0 0
      %1628 = vmatprep.subr.bf16.mxu0 0
      %1629 = vmatpush2.bf16.msra.mxu0 0
      %1630 = vmatprep.subr.bf16.mxu0 0
      %1631 = vmatpush2.bf16.msra.mxu0 0
      %1632 = vmatprep.subr.bf16.mxu0 0
      %1633 = vmatpush2.bf16.msra.mxu0 0
      %1634 = vmatprep.subr.bf16.mxu0 0
      %1635 = vmatpush2.bf16.msra.mxu0 %v1578
      %1636 = vmatprep.mubr.bf16.mxu0 %v1590
      %1637 = vmatmul.mubr.bf16.gmra.mxu0 %v1519
      %v1638 = vpop.f32.mrf.mxu0
      %v1639 = vadd.f32 %v1487, %v1638
      %v1640 = vpop.f32.mrf.mxu0
      %v1641 = vpop.f32.mrf.mxu0
      %v1642 = vadd.f32 %v1487, %v1641
      %v1643 = vpop.f32.mrf.mxu0
      %1644 = vmatprep.mubr.bf16.mxu0 %v1593
      %1645 = vmatmul.mubr.bf16.gmra.mxu0 %v1521
      %v1646 = vpop.f32.mrf.mxu0
      %v1647 = vadd.f32 %v1487, %v1646
      %v1648 = vpop.f32.mrf.mxu0
      %v1649 = vpop.f32.mrf.mxu0
      %v1650 = vadd.f32 %v1487, %v1649
      %v1651 = vpop.f32.mrf.mxu0
      %1652 = vmatprep.mubr.bf16.mxu0 %v1596
      %1653 = vmatmul.mubr.bf16.gmra.mxu0 %v1523
      %v1654 = vpop.f32.mrf.mxu0
      %v1655 = vadd.f32 %v1487, %v1654
      %v1656 = vpop.f32.mrf.mxu0
      %v1657 = vpop.f32.mrf.mxu0
      %v1658 = vadd.f32 %v1487, %v1657
      %v1659 = vpop.f32.mrf.mxu0
      %1660 = vmatprep.mubr.bf16.mxu0 %v1599
      %1661 = vmatmul.mubr.bf16.gmra.mxu0 %v1525
      %v1662 = vpop.f32.mrf.mxu0
      %v1663 = vadd.f32 %v1487, %v1662
      %v1664 = vpop.f32.mrf.mxu0
      %v1665 = vpop.f32.mrf.mxu0
      %v1666 = vadd.f32 %v1487, %v1665
      %v1667 = vpop.f32.mrf.mxu0
      %1668 = vmatprep.mubr.bf16.mxu0 %v1602
      %1669 = vmatmul.mubr.bf16.gmra.mxu0 %v1527
      %v1670 = vpop.f32.mrf.mxu0
      %v1671 = vadd.f32 %v1487, %v1670
      %v1672 = vpop.f32.mrf.mxu0
      %v1673 = vpop.f32.mrf.mxu0
      %v1674 = vadd.f32 %v1487, %v1673
      %v1675 = vpop.f32.mrf.mxu0
      %1676 = vdwg.mxu0
      %v1677 = vld [vmem:[%s4] sm:$0x1]
      %v1678 = vld [vmem:[%s5] sm:$0x1]
      %v1679 = vmul.f32 %v1639, %v590
      %v1680 = vmul.f32 %v1642, %v591
      %v1681 = vmul.f32 %v1647, %v592
      %v1682 = vmul.f32 %v1650, %v593
      %v1683 = vmul.f32 %v1655, %v594
      %v1684 = vmul.f32 %v1658, %v595
      %v1685 = vmul.f32 %v1663, %v596
      %v1686 = vmul.f32 %v1666, %v597
      %v1687 = vmul.f32 %v1671, %v598
      %v1688 = vmul.f32 %v1674, %v599
      %vm1689 = vcmask 261120
      %v1690 = vsel %vm1689, %v1679, 0.0
      %v1691 = vsel %vm1689, %v1680, 0.0
      %v1692 = vadd.f32 %v1690, %v1691
      %v1693 = vsel %vm1689, %v1681, 0.0
      %v1694 = vadd.f32 %v1692, %v1693
      %v1695 = vsel %vm1689, %v1682, 0.0
      %v1696 = vadd.f32 %v1694, %v1695
      %v1697 = vsel %vm1689, %v1683, 0.0
      %v1698 = vadd.f32 %v1696, %v1697
      %v1699 = vsel %vm1689, %v1684, 0.0
      %v1700 = vadd.f32 %v1698, %v1699
      %v1701 = vsel %vm1689, %v1685, 0.0
      %v1702 = vadd.f32 %v1700, %v1701
      %v1703 = vsel %vm1689, %v1686, 0.0
      %v1704 = vadd.f32 %v1702, %v1703
      %v1705 = vsel %vm1689, %v1687, 0.0
      %v1706 = vadd.f32 %v1704, %v1705
      %v1707 = vsel %vm1689, %v1688, 0.0
      %v1708 = vadd.f32 %v1706, %v1707
      %v1709 = vrot.slane %v1708, 4
      %v1710 = vadd.f32 %v1708, %v1709
      %v1711 = vrot.slane %v1710, 2
      %v1712 = vadd.f32 %v1710, %v1711
      %v1713 = vrot.slane %v1712, 1
      %v1714 = vadd.f32 %v1712, %v1713
      %v1715 = vmul.f32 %v1679, %v1639
      %v1716 = vmul.f32 %v1680, %v1642
      %v1717 = vmul.f32 %v1681, %v1647
      %v1718 = vmul.f32 %v1682, %v1650
      %v1719 = vmul.f32 %v1683, %v1655
      %v1720 = vmul.f32 %v1684, %v1658
      %v1721 = vmul.f32 %v1685, %v1663
      %v1722 = vmul.f32 %v1686, %v1666
      %v1723 = vmul.f32 %v1687, %v1671
      %v1724 = vmul.f32 %v1688, %v1674
      %v1725 = vsel %vm1689, %v1715, 0.0
      %v1726 = vsel %vm1689, %v1716, 0.0
      %v1727 = vadd.f32 %v1725, %v1726
      %v1728 = vsel %vm1689, %v1717, 0.0
      %v1729 = vadd.f32 %v1727, %v1728
      %v1730 = vsel %vm1689, %v1718, 0.0
      %v1731 = vadd.f32 %v1729, %v1730
      %v1732 = vsel %vm1689, %v1719, 0.0
      %v1733 = vadd.f32 %v1731, %v1732
      %v1734 = vsel %vm1689, %v1720, 0.0
      %v1735 = vadd.f32 %v1733, %v1734
      %v1736 = vsel %vm1689, %v1721, 0.0
      %v1737 = vadd.f32 %v1735, %v1736
      %v1738 = vsel %vm1689, %v1722, 0.0
      %v1739 = vadd.f32 %v1737, %v1738
      %v1740 = vsel %vm1689, %v1723, 0.0
      %v1741 = vadd.f32 %v1739, %v1740
      %v1742 = vsel %vm1689, %v1724, 0.0
      %v1743 = vadd.f32 %v1741, %v1742
      %v1744 = vrot.slane %v1743, 4
      %v1745 = vadd.f32 %v1743, %v1744
      %v1746 = vrot.slane %v1745, 2
      %v1747 = vadd.f32 %v1745, %v1746
      %v1748 = vrot.slane %v1747, 1
      %v1749 = vadd.f32 %v1747, %v1748
      %vm1750 = vcmp.ge.s32.totalorder %v601, 0
      %vm1751 = vcmp.lt.s32.totalorder %v601, 2
      %vm1752 = vmand %vm1750, %vm1751
      %v1753 = vsel %vm1752, 1, 0
      %v1754 = vcvt.s32.f32 %v1753
      %v1755 = vmul.f32 %v1714, %v1754
      %vm1756 = vcmask 253952
      %v1757 = vsel %vm1756, %v1755, 0.0
      %1758 = vadd.xlane.f32.xlu0 %v1757
      %v1759 = vpop.xlane.xlu0 %1758
      %v1760 = vrot.slane %v1759, 4
      %v1761 = vadd.f32 %v1759, %v1760
      %v1762 = vrot.slane %v1761, 2
      %v1763 = vadd.f32 %v1761, %v1762
      %v1764 = vrot.slane %v1763, 1
      %v1765 = vadd.f32 %v1763, %v1764
      %s1766 = vtos %v1765
      %v1767 = vstv %s1766
      %v1768 = vmul.f32 %v1767, 0.0078125
      %v1769 = vmul.f32 %v1749, %v1754
      %v1770 = vsel %vm1756, %v1769, 0.0
      %1771 = vadd.xlane.f32.xlu0 %v1770
      %v1772 = vpop.xlane.xlu0 %1771
      %v1773 = vrot.slane %v1772, 4
      %v1774 = vadd.f32 %v1772, %v1773
      %v1775 = vrot.slane %v1774, 2
      %v1776 = vadd.f32 %v1774, %v1775
      %v1777 = vrot.slane %v1776, 1
      %v1778 = vadd.f32 %v1776, %v1777
      %s1779 = vtos %v1778
      %v1780 = vstv %s1779
      %v1781 = vmul.f32 %v1780, 0.0078125
      %v1782 = vmul.f32 %v1768, %v1768
      %v1783 = vsub.f32 %v1781, %v1782
      %v1784 = vmax.f32 %v1783, 0.0
      %v1785 = vadd.f32 %v1784, 1e-05
      %v1786 = vrsqrt.pop %v1785
      %v1787 = vmul.f32 %v1768, %v1754
      %v1788 = vadd.f32 %v1787, 0.0
      %v1789 = vmul.f32 %v1786, %v1754
      %v1790 = vadd.f32 %v1789, 0.0
      %vm1791 = vcmp.ge.s32.totalorder %v601, 2
      %vm1792 = vcmp.lt.s32.totalorder %v601, 4
      %vm1793 = vmand %vm1791, %vm1792
      %v1794 = vsel %vm1793, 1, 0
      %v1795 = vcvt.s32.f32 %v1794
      %v1796 = vmul.f32 %v1714, %v1795
      %v1797 = vsel %vm1756, %v1796, 0.0
      %1798 = vadd.xlane.f32.xlu0 %v1797
      %v1799 = vpop.xlane.xlu0 %1798
      %v1800 = vrot.slane %v1799, 4
      %v1801 = vadd.f32 %v1799, %v1800
      %v1802 = vrot.slane %v1801, 2
      %v1803 = vadd.f32 %v1801, %v1802
      %v1804 = vrot.slane %v1803, 1
      %v1805 = vadd.f32 %v1803, %v1804
      %s1806 = vtos %v1805
      %v1807 = vstv %s1806
      %v1808 = vmul.f32 %v1807, 0.0078125
      %v1809 = vmul.f32 %v1749, %v1795
      %v1810 = vsel %vm1756, %v1809, 0.0
      %1811 = vadd.xlane.f32.xlu0 %v1810
      %v1812 = vpop.xlane.xlu0 %1811
      %v1813 = vrot.slane %v1812, 4
      %v1814 = vadd.f32 %v1812, %v1813
      %v1815 = vrot.slane %v1814, 2
      %v1816 = vadd.f32 %v1814, %v1815
      %v1817 = vrot.slane %v1816, 1
      %v1818 = vadd.f32 %v1816, %v1817
      %s1819 = vtos %v1818
      %v1820 = vstv %s1819
      %v1821 = vmul.f32 %v1820, 0.0078125
      %v1822 = vmul.f32 %v1808, %v1808
      %v1823 = vsub.f32 %v1821, %v1822
      %v1824 = vmax.f32 %v1823, 0.0
      %v1825 = vadd.f32 %v1824, 1e-05
      %v1826 = vrsqrt.pop %v1825
      %v1827 = vmul.f32 %v1808, %v1795
      %v1828 = vadd.f32 %v1788, %v1827
      %v1829 = vmul.f32 %v1826, %v1795
      %v1830 = vadd.f32 %v1790, %v1829
      %vm1831 = vcmp.ge.s32.totalorder %v601, 4
      %vm1832 = vcmp.lt.s32.totalorder %v601, 6
      %vm1833 = vmand %vm1831, %vm1832
      %v1834 = vsel %vm1833, 1, 0
      %v1835 = vcvt.s32.f32 %v1834
      %v1836 = vmul.f32 %v1714, %v1835
      %v1837 = vsel %vm1756, %v1836, 0.0
      %1838 = vadd.xlane.f32.xlu0 %v1837
      %v1839 = vpop.xlane.xlu0 %1838
      %v1840 = vrot.slane %v1839, 4
      %v1841 = vadd.f32 %v1839, %v1840
      %v1842 = vrot.slane %v1841, 2
      %v1843 = vadd.f32 %v1841, %v1842
      %v1844 = vrot.slane %v1843, 1
      %v1845 = vadd.f32 %v1843, %v1844
      %s1846 = vtos %v1845
      %v1847 = vstv %s1846
      %v1848 = vmul.f32 %v1847, 0.0078125
      %v1849 = vmul.f32 %v1749, %v1835
      %v1850 = vsel %vm1756, %v1849, 0.0
      %1851 = vadd.xlane.f32.xlu0 %v1850
      %v1852 = vpop.xlane.xlu0 %1851
      %v1853 = vrot.slane %v1852, 4
      %v1854 = vadd.f32 %v1852, %v1853
      %v1855 = vrot.slane %v1854, 2
      %v1856 = vadd.f32 %v1854, %v1855
      %v1857 = vrot.slane %v1856, 1
      %v1858 = vadd.f32 %v1856, %v1857
      %s1859 = vtos %v1858
      %v1860 = vstv %s1859
      %v1861 = vmul.f32 %v1860, 0.0078125
      %v1862 = vmul.f32 %v1848, %v1848
      %v1863 = vsub.f32 %v1861, %v1862
      %v1864 = vmax.f32 %v1863, 0.0
      %v1865 = vadd.f32 %v1864, 1e-05
      %v1866 = vrsqrt.pop %v1865
      %v1867 = vmul.f32 %v1848, %v1835
      %v1868 = vadd.f32 %v1828, %v1867
      %v1869 = vmul.f32 %v1866, %v1835
      %v1870 = vadd.f32 %v1830, %v1869
      %vm1871 = vcmp.ge.s32.totalorder %v601, 6
      %vm1872 = vcmp.lt.s32.totalorder %v601, 8
      %vm1873 = vmand %vm1871, %vm1872
      %v1874 = vsel %vm1873, 1, 0
      %v1875 = vcvt.s32.f32 %v1874
      %v1876 = vmul.f32 %v1714, %v1875
      %v1877 = vsel %vm1756, %v1876, 0.0
      %1878 = vadd.xlane.f32.xlu0 %v1877
      %v1879 = vpop.xlane.xlu0 %1878
      %v1880 = vrot.slane %v1879, 4
      %v1881 = vadd.f32 %v1879, %v1880
      %v1882 = vrot.slane %v1881, 2
      %v1883 = vadd.f32 %v1881, %v1882
      %v1884 = vrot.slane %v1883, 1
      %v1885 = vadd.f32 %v1883, %v1884
      %s1886 = vtos %v1885
      %v1887 = vstv %s1886
      %v1888 = vmul.f32 %v1887, 0.0078125
      %v1889 = vmul.f32 %v1749, %v1875
      %v1890 = vsel %vm1756, %v1889, 0.0
      %1891 = vadd.xlane.f32.xlu0 %v1890
      %v1892 = vpop.xlane.xlu0 %1891
      %v1893 = vrot.slane %v1892, 4
      %v1894 = vadd.f32 %v1892, %v1893
      %v1895 = vrot.slane %v1894, 2
      %v1896 = vadd.f32 %v1894, %v1895
      %v1897 = vrot.slane %v1896, 1
      %v1898 = vadd.f32 %v1896, %v1897
      %s1899 = vtos %v1898
      %v1900 = vstv %s1899
      %v1901 = vmul.f32 %v1900, 0.0078125
      %v1902 = vmul.f32 %v1888, %v1888
      %v1903 = vsub.f32 %v1901, %v1902
      %v1904 = vmax.f32 %v1903, 0.0
      %v1905 = vadd.f32 %v1904, 1e-05
      %v1906 = vrsqrt.pop %v1905
      %v1907 = vmul.f32 %v1888, %v1875
      %v1908 = vadd.f32 %v1868, %v1907
      %v1909 = vmul.f32 %v1906, %v1875
      %v1910 = vadd.f32 %v1870, %v1909
      %vm1911 = vcmp.ge.s32.totalorder %v601, 8
      %vm1912 = vcmp.lt.s32.totalorder %v601, 10
      %vm1913 = vmand %vm1911, %vm1912
      %v1914 = vsel %vm1913, 1, 0
      %v1915 = vcvt.s32.f32 %v1914
      %v1916 = vmul.f32 %v1714, %v1915
      %v1917 = vsel %vm1756, %v1916, 0.0
      %1918 = vadd.xlane.f32.xlu0 %v1917
      %v1919 = vpop.xlane.xlu0 %1918
      %v1920 = vrot.slane %v1919, 4
      %v1921 = vadd.f32 %v1919, %v1920
      %v1922 = vrot.slane %v1921, 2
      %v1923 = vadd.f32 %v1921, %v1922
      %v1924 = vrot.slane %v1923, 1
      %v1925 = vadd.f32 %v1923, %v1924
      %s1926 = vtos %v1925
      %v1927 = vstv %s1926
      %v1928 = vmul.f32 %v1927, 0.0078125
      %v1929 = vmul.f32 %v1749, %v1915
      %v1930 = vsel %vm1756, %v1929, 0.0
      %1931 = vadd.xlane.f32.xlu0 %v1930
      %v1932 = vpop.xlane.xlu0 %1931
      %v1933 = vrot.slane %v1932, 4
      %v1934 = vadd.f32 %v1932, %v1933
      %v1935 = vrot.slane %v1934, 2
      %v1936 = vadd.f32 %v1934, %v1935
      %v1937 = vrot.slane %v1936, 1
      %v1938 = vadd.f32 %v1936, %v1937
      %s1939 = vtos %v1938
      %v1940 = vstv %s1939
      %v1941 = vmul.f32 %v1940, 0.0078125
      %v1942 = vmul.f32 %v1928, %v1928
      %v1943 = vsub.f32 %v1941, %v1942
      %v1944 = vmax.f32 %v1943, 0.0
      %v1945 = vadd.f32 %v1944, 1e-05
      %v1946 = vrsqrt.pop %v1945
      %v1947 = vmul.f32 %v1928, %v1915
      %v1948 = vadd.f32 %v1908, %v1947
      %v1949 = vmul.f32 %v1946, %v1915
      %v1950 = vadd.f32 %v1910, %v1949
      %vm1951 = vcmp.ge.s32.totalorder %v601, 10
      %vm1952 = vcmp.lt.s32.totalorder %v601, 12
      %vm1953 = vmand %vm1951, %vm1952
      %v1954 = vsel %vm1953, 1, 0
      %v1955 = vcvt.s32.f32 %v1954
      %v1956 = vmul.f32 %v1714, %v1955
      %v1957 = vsel %vm1756, %v1956, 0.0
      %1958 = vadd.xlane.f32.xlu0 %v1957
      %v1959 = vpop.xlane.xlu0 %1958
      %v1960 = vrot.slane %v1959, 4
      %v1961 = vadd.f32 %v1959, %v1960
      %v1962 = vrot.slane %v1961, 2
      %v1963 = vadd.f32 %v1961, %v1962
      %v1964 = vrot.slane %v1963, 1
      %v1965 = vadd.f32 %v1963, %v1964
      %s1966 = vtos %v1965
      %v1967 = vstv %s1966
      %v1968 = vmul.f32 %v1967, 0.0078125
      %v1969 = vmul.f32 %v1749, %v1955
      %v1970 = vsel %vm1756, %v1969, 0.0
      %1971 = vadd.xlane.f32.xlu0 %v1970
      %v1972 = vpop.xlane.xlu0 %1971
      %v1973 = vrot.slane %v1972, 4
      %v1974 = vadd.f32 %v1972, %v1973
      %v1975 = vrot.slane %v1974, 2
      %v1976 = vadd.f32 %v1974, %v1975
      %v1977 = vrot.slane %v1976, 1
      %v1978 = vadd.f32 %v1976, %v1977
      %s1979 = vtos %v1978
      %v1980 = vstv %s1979
      %v1981 = vmul.f32 %v1980, 0.0078125
      %v1982 = vmul.f32 %v1968, %v1968
      %v1983 = vsub.f32 %v1981, %v1982
      %v1984 = vmax.f32 %v1983, 0.0
      %v1985 = vadd.f32 %v1984, 1e-05
      %v1986 = vrsqrt.pop %v1985
      %v1987 = vmul.f32 %v1968, %v1955
      %v1988 = vadd.f32 %v1948, %v1987
      %v1989 = vmul.f32 %v1986, %v1955
      %v1990 = vadd.f32 %v1950, %v1989
      %vm1991 = vcmp.ge.s32.totalorder %v601, 12
      %vm1992 = vcmp.lt.s32.totalorder %v601, 14
      %vm1993 = vmand %vm1991, %vm1992
      %v1994 = vsel %vm1993, 1, 0
      %v1995 = vcvt.s32.f32 %v1994
      %v1996 = vmul.f32 %v1714, %v1995
      %v1997 = vsel %vm1756, %v1996, 0.0
      %1998 = vadd.xlane.f32.xlu0 %v1997
      %v1999 = vpop.xlane.xlu0 %1998
      %v2000 = vrot.slane %v1999, 4
      %v2001 = vadd.f32 %v1999, %v2000
      %v2002 = vrot.slane %v2001, 2
      %v2003 = vadd.f32 %v2001, %v2002
      %v2004 = vrot.slane %v2003, 1
      %v2005 = vadd.f32 %v2003, %v2004
      %s2006 = vtos %v2005
      %v2007 = vstv %s2006
      %v2008 = vmul.f32 %v2007, 0.0078125
      %v2009 = vmul.f32 %v1749, %v1995
      %v2010 = vsel %vm1756, %v2009, 0.0
      %2011 = vadd.xlane.f32.xlu0 %v2010
      %v2012 = vpop.xlane.xlu0 %2011
      %v2013 = vrot.slane %v2012, 4
      %v2014 = vadd.f32 %v2012, %v2013
      %v2015 = vrot.slane %v2014, 2
      %v2016 = vadd.f32 %v2014, %v2015
      %v2017 = vrot.slane %v2016, 1
      %v2018 = vadd.f32 %v2016, %v2017
      %s2019 = vtos %v2018
      %v2020 = vstv %s2019
      %v2021 = vmul.f32 %v2020, 0.0078125
      %v2022 = vmul.f32 %v2008, %v2008
      %v2023 = vsub.f32 %v2021, %v2022
      %v2024 = vmax.f32 %v2023, 0.0
      %v2025 = vadd.f32 %v2024, 1e-05
      %v2026 = vrsqrt.pop %v2025
      %v2027 = vmul.f32 %v2008, %v1995
      %v2028 = vadd.f32 %v1988, %v2027
      %v2029 = vmul.f32 %v2026, %v1995
      %v2030 = vadd.f32 %v1990, %v2029
      %vm2031 = vcmp.ge.s32.totalorder %v601, 14
      %vm2032 = vcmp.lt.s32.totalorder %v601, 16
      %vm2033 = vmand %vm2031, %vm2032
      %v2034 = vsel %vm2033, 1, 0
      %v2035 = vcvt.s32.f32 %v2034
      %v2036 = vmul.f32 %v1714, %v2035
      %v2037 = vsel %vm1756, %v2036, 0.0
      %2038 = vadd.xlane.f32.xlu0 %v2037
      %v2039 = vpop.xlane.xlu0 %2038
      %v2040 = vrot.slane %v2039, 4
      %v2041 = vadd.f32 %v2039, %v2040
      %v2042 = vrot.slane %v2041, 2
      %v2043 = vadd.f32 %v2041, %v2042
      %v2044 = vrot.slane %v2043, 1
      %v2045 = vadd.f32 %v2043, %v2044
      %s2046 = vtos %v2045
      %v2047 = vstv %s2046
      %v2048 = vmul.f32 %v2047, 0.0078125
      %v2049 = vmul.f32 %v1749, %v2035
      %v2050 = vsel %vm1756, %v2049, 0.0
      %2051 = vadd.xlane.f32.xlu0 %v2050
      %v2052 = vpop.xlane.xlu0 %2051
      %v2053 = vrot.slane %v2052, 4
      %v2054 = vadd.f32 %v2052, %v2053
      %v2055 = vrot.slane %v2054, 2
      %v2056 = vadd.f32 %v2054, %v2055
      %v2057 = vrot.slane %v2056, 1
      %v2058 = vadd.f32 %v2056, %v2057
      %s2059 = vtos %v2058
      %v2060 = vstv %s2059
      %v2061 = vmul.f32 %v2060, 0.0078125
      %v2062 = vmul.f32 %v2048, %v2048
      %v2063 = vsub.f32 %v2061, %v2062
      %v2064 = vmax.f32 %v2063, 0.0
      %v2065 = vadd.f32 %v2064, 1e-05
      %v2066 = vrsqrt.pop %v2065
      %v2067 = vmul.f32 %v2048, %v2035
      %v2068 = vadd.f32 %v2028, %v2067
      %v2069 = vmul.f32 %v2066, %v2035
      %v2070 = vadd.f32 %v2030, %v2069
      %vm2071 = vcmp.ge.s32.totalorder %v601, 16
      %vm2072 = vcmp.lt.s32.totalorder %v601, 18
      %vm2073 = vmand %vm2071, %vm2072
      %v2074 = vsel %vm2073, 1, 0
      %v2075 = vcvt.s32.f32 %v2074
      %v2076 = vmul.f32 %v1714, %v2075
      %v2077 = vsel %vm1756, %v2076, 0.0
      %2078 = vadd.xlane.f32.xlu0 %v2077
      %v2079 = vpop.xlane.xlu0 %2078
      %v2080 = vrot.slane %v2079, 4
      %v2081 = vadd.f32 %v2079, %v2080
      %v2082 = vrot.slane %v2081, 2
      %v2083 = vadd.f32 %v2081, %v2082
      %v2084 = vrot.slane %v2083, 1
      %v2085 = vadd.f32 %v2083, %v2084
      %s2086 = vtos %v2085
      %v2087 = vstv %s2086
      %v2088 = vmul.f32 %v2087, 0.0078125
      %v2089 = vmul.f32 %v1749, %v2075
      %v2090 = vsel %vm1756, %v2089, 0.0
      %2091 = vadd.xlane.f32.xlu0 %v2090
      %v2092 = vpop.xlane.xlu0 %2091
      %v2093 = vrot.slane %v2092, 4
      %v2094 = vadd.f32 %v2092, %v2093
      %v2095 = vrot.slane %v2094, 2
      %v2096 = vadd.f32 %v2094, %v2095
      %v2097 = vrot.slane %v2096, 1
      %v2098 = vadd.f32 %v2096, %v2097
      %s2099 = vtos %v2098
      %v2100 = vstv %s2099
      %v2101 = vmul.f32 %v2100, 0.0078125
      %v2102 = vmul.f32 %v2088, %v2088
      %v2103 = vsub.f32 %v2101, %v2102
      %v2104 = vmax.f32 %v2103, 0.0
      %v2105 = vadd.f32 %v2104, 1e-05
      %v2106 = vrsqrt.pop %v2105
      %v2107 = vmul.f32 %v2088, %v2075
      %v2108 = vadd.f32 %v2068, %v2107
      %v2109 = vmul.f32 %v2106, %v2075
      %v2110 = vadd.f32 %v2070, %v2109
      %vm2111 = vcmp.ge.s32.totalorder %v601, 18
      %vm2112 = vcmp.lt.s32.totalorder %v601, 20
      %vm2113 = vmand %vm2111, %vm2112
      %v2114 = vsel %vm2113, 1, 0
      %v2115 = vcvt.s32.f32 %v2114
      %v2116 = vmul.f32 %v1714, %v2115
      %v2117 = vsel %vm1756, %v2116, 0.0
      %2118 = vadd.xlane.f32.xlu0 %v2117
      %v2119 = vpop.xlane.xlu0 %2118
      %v2120 = vrot.slane %v2119, 4
      %v2121 = vadd.f32 %v2119, %v2120
      %v2122 = vrot.slane %v2121, 2
      %v2123 = vadd.f32 %v2121, %v2122
      %v2124 = vrot.slane %v2123, 1
      %v2125 = vadd.f32 %v2123, %v2124
      %s2126 = vtos %v2125
      %v2127 = vstv %s2126
      %v2128 = vmul.f32 %v2127, 0.0078125
      %v2129 = vmul.f32 %v1749, %v2115
      %v2130 = vsel %vm1756, %v2129, 0.0
      %2131 = vadd.xlane.f32.xlu0 %v2130
      %v2132 = vpop.xlane.xlu0 %2131
      %v2133 = vrot.slane %v2132, 4
      %v2134 = vadd.f32 %v2132, %v2133
      %v2135 = vrot.slane %v2134, 2
      %v2136 = vadd.f32 %v2134, %v2135
      %v2137 = vrot.slane %v2136, 1
      %v2138 = vadd.f32 %v2136, %v2137
      %s2139 = vtos %v2138
      %v2140 = vstv %s2139
      %v2141 = vmul.f32 %v2140, 0.0078125
      %v2142 = vmul.f32 %v2128, %v2128
      %v2143 = vsub.f32 %v2141, %v2142
      %v2144 = vmax.f32 %v2143, 0.0
      %v2145 = vadd.f32 %v2144, 1e-05
      %v2146 = vrsqrt.pop %v2145
      %v2147 = vmul.f32 %v2128, %v2115
      %v2148 = vadd.f32 %v2108, %v2147
      %v2149 = vmul.f32 %v2146, %v2115
      %v2150 = vadd.f32 %v2110, %v2149
      %vm2151 = vcmp.ge.s32.totalorder %v601, 20
      %vm2152 = vcmp.lt.s32.totalorder %v601, 22
      %vm2153 = vmand %vm2151, %vm2152
      %v2154 = vsel %vm2153, 1, 0
      %v2155 = vcvt.s32.f32 %v2154
      %v2156 = vmul.f32 %v1714, %v2155
      %v2157 = vsel %vm1756, %v2156, 0.0
      %2158 = vadd.xlane.f32.xlu0 %v2157
      %v2159 = vpop.xlane.xlu0 %2158
      %v2160 = vrot.slane %v2159, 4
      %v2161 = vadd.f32 %v2159, %v2160
      %v2162 = vrot.slane %v2161, 2
      %v2163 = vadd.f32 %v2161, %v2162
      %v2164 = vrot.slane %v2163, 1
      %v2165 = vadd.f32 %v2163, %v2164
      %s2166 = vtos %v2165
      %v2167 = vstv %s2166
      %v2168 = vmul.f32 %v2167, 0.0078125
      %v2169 = vmul.f32 %v1749, %v2155
      %v2170 = vsel %vm1756, %v2169, 0.0
      %2171 = vadd.xlane.f32.xlu0 %v2170
      %v2172 = vpop.xlane.xlu0 %2171
      %v2173 = vrot.slane %v2172, 4
      %v2174 = vadd.f32 %v2172, %v2173
      %v2175 = vrot.slane %v2174, 2
      %v2176 = vadd.f32 %v2174, %v2175
      %v2177 = vrot.slane %v2176, 1
      %v2178 = vadd.f32 %v2176, %v2177
      %s2179 = vtos %v2178
      %v2180 = vstv %s2179
      %v2181 = vmul.f32 %v2180, 0.0078125
      %v2182 = vmul.f32 %v2168, %v2168
      %v2183 = vsub.f32 %v2181, %v2182
      %v2184 = vmax.f32 %v2183, 0.0
      %v2185 = vadd.f32 %v2184, 1e-05
      %v2186 = vrsqrt.pop %v2185
      %v2187 = vmul.f32 %v2168, %v2155
      %v2188 = vadd.f32 %v2148, %v2187
      %v2189 = vmul.f32 %v2186, %v2155
      %v2190 = vadd.f32 %v2150, %v2189
      %vm2191 = vcmp.ge.s32.totalorder %v601, 22
      %vm2192 = vcmp.lt.s32.totalorder %v601, 24
      %vm2193 = vmand %vm2191, %vm2192
      %v2194 = vsel %vm2193, 1, 0
      %v2195 = vcvt.s32.f32 %v2194
      %v2196 = vmul.f32 %v1714, %v2195
      %v2197 = vsel %vm1756, %v2196, 0.0
      %2198 = vadd.xlane.f32.xlu0 %v2197
      %v2199 = vpop.xlane.xlu0 %2198
      %v2200 = vrot.slane %v2199, 4
      %v2201 = vadd.f32 %v2199, %v2200
      %v2202 = vrot.slane %v2201, 2
      %v2203 = vadd.f32 %v2201, %v2202
      %v2204 = vrot.slane %v2203, 1
      %v2205 = vadd.f32 %v2203, %v2204
      %s2206 = vtos %v2205
      %v2207 = vstv %s2206
      %v2208 = vmul.f32 %v2207, 0.0078125
      %v2209 = vmul.f32 %v1749, %v2195
      %v2210 = vsel %vm1756, %v2209, 0.0
      %2211 = vadd.xlane.f32.xlu0 %v2210
      %v2212 = vpop.xlane.xlu0 %2211
      %v2213 = vrot.slane %v2212, 4
      %v2214 = vadd.f32 %v2212, %v2213
      %v2215 = vrot.slane %v2214, 2
      %v2216 = vadd.f32 %v2214, %v2215
      %v2217 = vrot.slane %v2216, 1
      %v2218 = vadd.f32 %v2216, %v2217
      %s2219 = vtos %v2218
      %v2220 = vstv %s2219
      %v2221 = vmul.f32 %v2220, 0.0078125
      %v2222 = vmul.f32 %v2208, %v2208
      %v2223 = vsub.f32 %v2221, %v2222
      %v2224 = vmax.f32 %v2223, 0.0
      %v2225 = vadd.f32 %v2224, 1e-05
      %v2226 = vrsqrt.pop %v2225
      %v2227 = vmul.f32 %v2208, %v2195
      %v2228 = vadd.f32 %v2188, %v2227
      %v2229 = vmul.f32 %v2226, %v2195
      %v2230 = vadd.f32 %v2190, %v2229
      %vm2231 = vcmp.ge.s32.totalorder %v601, 24
      %vm2232 = vcmp.lt.s32.totalorder %v601, 26
      %vm2233 = vmand %vm2231, %vm2232
      %v2234 = vsel %vm2233, 1, 0
      %v2235 = vcvt.s32.f32 %v2234
      %v2236 = vmul.f32 %v1714, %v2235
      %v2237 = vsel %vm1756, %v2236, 0.0
      %2238 = vadd.xlane.f32.xlu0 %v2237
      %v2239 = vpop.xlane.xlu0 %2238
      %v2240 = vrot.slane %v2239, 4
      %v2241 = vadd.f32 %v2239, %v2240
      %v2242 = vrot.slane %v2241, 2
      %v2243 = vadd.f32 %v2241, %v2242
      %v2244 = vrot.slane %v2243, 1
      %v2245 = vadd.f32 %v2243, %v2244
      %s2246 = vtos %v2245
      %v2247 = vstv %s2246
      %v2248 = vmul.f32 %v2247, 0.0078125
      %v2249 = vmul.f32 %v1749, %v2235
      %v2250 = vsel %vm1756, %v2249, 0.0
      %2251 = vadd.xlane.f32.xlu0 %v2250
      %v2252 = vpop.xlane.xlu0 %2251
      %v2253 = vrot.slane %v2252, 4
      %v2254 = vadd.f32 %v2252, %v2253
      %v2255 = vrot.slane %v2254, 2
      %v2256 = vadd.f32 %v2254, %v2255
      %v2257 = vrot.slane %v2256, 1
      %v2258 = vadd.f32 %v2256, %v2257
      %s2259 = vtos %v2258
      %v2260 = vstv %s2259
      %v2261 = vmul.f32 %v2260, 0.0078125
      %v2262 = vmul.f32 %v2248, %v2248
      %v2263 = vsub.f32 %v2261, %v2262
      %v2264 = vmax.f32 %v2263, 0.0
      %v2265 = vadd.f32 %v2264, 1e-05
      %v2266 = vrsqrt.pop %v2265
      %v2267 = vmul.f32 %v2248, %v2235
      %v2268 = vadd.f32 %v2228, %v2267
      %v2269 = vmul.f32 %v2266, %v2235
      %v2270 = vadd.f32 %v2230, %v2269
      %vm2271 = vcmp.ge.s32.totalorder %v601, 26
      %vm2272 = vcmp.lt.s32.totalorder %v601, 28
      %vm2273 = vmand %vm2271, %vm2272
      %v2274 = vsel %vm2273, 1, 0
      %v2275 = vcvt.s32.f32 %v2274
      %v2276 = vmul.f32 %v1714, %v2275
      %v2277 = vsel %vm1756, %v2276, 0.0
      %2278 = vadd.xlane.f32.xlu0 %v2277
      %v2279 = vpop.xlane.xlu0 %2278
      %v2280 = vrot.slane %v2279, 4
      %v2281 = vadd.f32 %v2279, %v2280
      %v2282 = vrot.slane %v2281, 2
      %v2283 = vadd.f32 %v2281, %v2282
      %v2284 = vrot.slane %v2283, 1
      %v2285 = vadd.f32 %v2283, %v2284
      %s2286 = vtos %v2285
      %v2287 = vstv %s2286
      %v2288 = vmul.f32 %v2287, 0.0078125
      %v2289 = vmul.f32 %v1749, %v2275
      %v2290 = vsel %vm1756, %v2289, 0.0
      %2291 = vadd.xlane.f32.xlu0 %v2290
      %v2292 = vpop.xlane.xlu0 %2291
      %v2293 = vrot.slane %v2292, 4
      %v2294 = vadd.f32 %v2292, %v2293
      %v2295 = vrot.slane %v2294, 2
      %v2296 = vadd.f32 %v2294, %v2295
      %v2297 = vrot.slane %v2296, 1
      %v2298 = vadd.f32 %v2296, %v2297
      %s2299 = vtos %v2298
      %v2300 = vstv %s2299
      %v2301 = vmul.f32 %v2300, 0.0078125
      %v2302 = vmul.f32 %v2288, %v2288
      %v2303 = vsub.f32 %v2301, %v2302
      %v2304 = vmax.f32 %v2303, 0.0
      %v2305 = vadd.f32 %v2304, 1e-05
      %v2306 = vrsqrt.pop %v2305
      %v2307 = vmul.f32 %v2288, %v2275
      %v2308 = vadd.f32 %v2268, %v2307
      %v2309 = vmul.f32 %v2306, %v2275
      %v2310 = vadd.f32 %v2270, %v2309
      %vm2311 = vcmp.ge.s32.totalorder %v601, 28
      %vm2312 = vcmp.lt.s32.totalorder %v601, 30
      %vm2313 = vmand %vm2311, %vm2312
      %v2314 = vsel %vm2313, 1, 0
      %v2315 = vcvt.s32.f32 %v2314
      %v2316 = vmul.f32 %v1714, %v2315
      %v2317 = vsel %vm1756, %v2316, 0.0
      %2318 = vadd.xlane.f32.xlu0 %v2317
      %v2319 = vpop.xlane.xlu0 %2318
      %v2320 = vrot.slane %v2319, 4
      %v2321 = vadd.f32 %v2319, %v2320
      %v2322 = vrot.slane %v2321, 2
      %v2323 = vadd.f32 %v2321, %v2322
      %v2324 = vrot.slane %v2323, 1
      %v2325 = vadd.f32 %v2323, %v2324
      %s2326 = vtos %v2325
      %v2327 = vstv %s2326
      %v2328 = vmul.f32 %v2327, 0.0078125
      %v2329 = vmul.f32 %v1749, %v2315
      %v2330 = vsel %vm1756, %v2329, 0.0
      %2331 = vadd.xlane.f32.xlu0 %v2330
      %v2332 = vpop.xlane.xlu0 %2331
      %v2333 = vrot.slane %v2332, 4
      %v2334 = vadd.f32 %v2332, %v2333
      %v2335 = vrot.slane %v2334, 2
      %v2336 = vadd.f32 %v2334, %v2335
      %v2337 = vrot.slane %v2336, 1
      %v2338 = vadd.f32 %v2336, %v2337
      %s2339 = vtos %v2338
      %v2340 = vstv %s2339
      %v2341 = vmul.f32 %v2340, 0.0078125
      %v2342 = vmul.f32 %v2328, %v2328
      %v2343 = vsub.f32 %v2341, %v2342
      %v2344 = vmax.f32 %v2343, 0.0
      %v2345 = vadd.f32 %v2344, 1e-05
      %v2346 = vrsqrt.pop %v2345
      %v2347 = vmul.f32 %v2328, %v2315
      %v2348 = vadd.f32 %v2308, %v2347
      %v2349 = vmul.f32 %v2346, %v2315
      %v2350 = vadd.f32 %v2310, %v2349
      %vm2351 = vcmp.ge.s32.totalorder %v601, 30
      %vm2352 = vcmp.lt.s32.totalorder %v601, 32
      %vm2353 = vmand %vm2351, %vm2352
      %v2354 = vsel %vm2353, 1, 0
      %v2355 = vcvt.s32.f32 %v2354
      %v2356 = vmul.f32 %v1714, %v2355
      %v2357 = vsel %vm1756, %v2356, 0.0
      %2358 = vadd.xlane.f32.xlu0 %v2357
      %v2359 = vpop.xlane.xlu0 %2358
      %v2360 = vrot.slane %v2359, 4
      %v2361 = vadd.f32 %v2359, %v2360
      %v2362 = vrot.slane %v2361, 2
      %v2363 = vadd.f32 %v2361, %v2362
      %v2364 = vrot.slane %v2363, 1
      %v2365 = vadd.f32 %v2363, %v2364
      %s2366 = vtos %v2365
      %v2367 = vstv %s2366
      %v2368 = vmul.f32 %v2367, 0.0078125
      %v2369 = vmul.f32 %v1749, %v2355
      %v2370 = vsel %vm1756, %v2369, 0.0
      %2371 = vadd.xlane.f32.xlu0 %v2370
      %v2372 = vpop.xlane.xlu0 %2371
      %v2373 = vrot.slane %v2372, 4
      %v2374 = vadd.f32 %v2372, %v2373
      %v2375 = vrot.slane %v2374, 2
      %v2376 = vadd.f32 %v2374, %v2375
      %v2377 = vrot.slane %v2376, 1
      %v2378 = vadd.f32 %v2376, %v2377
      %s2379 = vtos %v2378
      %v2380 = vstv %s2379
      %v2381 = vmul.f32 %v2380, 0.0078125
      %v2382 = vmul.f32 %v2368, %v2368
      %v2383 = vsub.f32 %v2381, %v2382
      %v2384 = vmax.f32 %v2383, 0.0
      %v2385 = vadd.f32 %v2384, 1e-05
      %v2386 = vrsqrt.pop %v2385
      %v2387 = vmul.f32 %v2368, %v2355
      %v2388 = vadd.f32 %v2348, %v2387
      %v2389 = vmul.f32 %v2386, %v2355
      %v2390 = vadd.f32 %v2350, %v2389
      %v2391 = vsub.f32 %v1639, %v2388
      %v2392 = vsub.f32 %v1642, %v2388
      %v2393 = vsub.f32 %v1647, %v2388
      %v2394 = vsub.f32 %v1650, %v2388
      %v2395 = vsub.f32 %v1655, %v2388
      %v2396 = vsub.f32 %v1658, %v2388
      %v2397 = vsub.f32 %v1663, %v2388
      %v2398 = vsub.f32 %v1666, %v2388
      %v2399 = vsub.f32 %v1671, %v2388
      %v2400 = vsub.f32 %v1674, %v2388
      %v2401 = vmul.f32 %v2390, %v1677
      %v2402 = vlaneseq
      %v2403 = vshrl.u32 %v2402, 7
      %v2404 = vsub.s32 0, %v2403
      %v2405 = vrot.slane %v2401, %v2404
      %v2406 = vmul.f32 %v2391, %v2405
      %v2407 = vmul.f32 %v2392, %v2405
      %v2408 = vmul.f32 %v2393, %v2405
      %v2409 = vmul.f32 %v2394, %v2405
      %v2410 = vmul.f32 %v2395, %v2405
      %v2411 = vmul.f32 %v2396, %v2405
      %v2412 = vmul.f32 %v2397, %v2405
      %v2413 = vmul.f32 %v2398, %v2405
      %v2414 = vmul.f32 %v2399, %v2405
      %v2415 = vmul.f32 %v2400, %v2405
      %v2417 = vlaneseq
      %v2418 = vshrl.u32 %v2417, 7
      %v2419 = vsub.s32 0, %v2418
      %v2420 = vrot.slane %v1678, %v2419
      %v2422 = vadd.f32 %v2406, %v2420
      %v2423 = vadd.f32 %v2407, %v2420
      %v2424 = vadd.f32 %v2408, %v2420
      %v2425 = vadd.f32 %v2409, %v2420
      %v2426 = vadd.f32 %v2410, %v2420
      %v2427 = vadd.f32 %v2411, %v2420
      %v2428 = vadd.f32 %v2412, %v2420
      %v2429 = vadd.f32 %v2413, %v2420
      %v2430 = vadd.f32 %v2414, %v2420
      %v2431 = vadd.f32 %v2415, %v2420
      %vm2432 = vcmp.gt.f32.partialorder %v2422, 0.0
      %vm2433 = vcmp.gt.f32.partialorder %v2423, 0.0
      %vm2434 = vcmp.gt.f32.partialorder %v2424, 0.0
      %vm2435 = vcmp.gt.f32.partialorder %v2425, 0.0
      %vm2436 = vcmp.gt.f32.partialorder %v2426, 0.0
      %vm2437 = vcmp.gt.f32.partialorder %v2427, 0.0
      %vm2438 = vcmp.gt.f32.partialorder %v2428, 0.0
      %vm2439 = vcmp.gt.f32.partialorder %v2429, 0.0
      %vm2440 = vcmp.gt.f32.partialorder %v2430, 0.0
      %vm2441 = vcmp.gt.f32.partialorder %v2431, 0.0
      %v2442 = vmul.f32 %v2422, 1.442695
      %v2443 = vpow.pop %v2442
      %v2444 = vmul.f32 %v2423, 1.442695
      %v2445 = vpow.pop %v2444
      %v2446 = vmul.f32 %v2424, 1.442695
      %v2447 = vpow.pop %v2446
      %v2448 = vmul.f32 %v2425, 1.442695
      %v2449 = vpow.pop %v2448
      %v2450 = vmul.f32 %v2426, 1.442695
      %v2451 = vpow.pop %v2450
      %v2452 = vmul.f32 %v2427, 1.442695
      %v2453 = vpow.pop %v2452
      %v2454 = vmul.f32 %v2428, 1.442695
      %v2455 = vpow.pop %v2454
      %v2456 = vmul.f32 %v2429, 1.442695
      %v2457 = vpow.pop %v2456
      %v2458 = vmul.f32 %v2430, 1.442695
      %v2459 = vpow.pop %v2458
      %v2460 = vmul.f32 %v2431, 1.442695
      %v2461 = vpow.pop %v2460
      %v2462 = vsub.f32 %v2443, 1.0
      %v2463 = vsub.f32 %v2445, 1.0
      %v2464 = vsub.f32 %v2447, 1.0
      %v2465 = vsub.f32 %v2449, 1.0
      %v2466 = vsub.f32 %v2451, 1.0
      %v2467 = vsub.f32 %v2453, 1.0
      %v2468 = vsub.f32 %v2455, 1.0
      %v2469 = vsub.f32 %v2457, 1.0
      %v2470 = vsub.f32 %v2459, 1.0
      %v2471 = vsub.f32 %v2461, 1.0
      %v2472 = vsel %vm2432, %v2422, %v2462
      %v2473 = vsel %vm2433, %v2423, %v2463
      %v2474 = vsel %vm2434, %v2424, %v2464
      %v2475 = vsel %vm2435, %v2425, %v2465
      %v2476 = vsel %vm2436, %v2426, %v2466
      %v2477 = vsel %vm2437, %v2427, %v2467
      %v2478 = vsel %vm2438, %v2428, %v2468
      %v2479 = vsel %vm2439, %v2429, %v2469
      %v2480 = vsel %vm2440, %v2430, %v2470
      %v2481 = vsel %vm2441, %v2431, %v2471
      %vm2482 = vcmask 257024
      %2483 = vst.msk [vmem:[#allocation3] sm:$0xf] %vm2482, 0
      %2484 = vst.msk [vmem:[#allocation3 + $0x4] sm:$0xf] %vm2482, 0
      %2485 = vst.msk [vmem:[#allocation3 + $0x8] sm:$0xf] %vm2482, 0
      %2486 = vst.msk [vmem:[#allocation3 + $0xc] sm:$0xf] %vm2482, 0
      %2487 = vst.msk [vmem:[#allocation3 + $0x10] sm:$0xf] %vm2482, 0
      %2488 = vst.msk [vmem:[#allocation3 + $0x14] sm:$0xf] %vm2482, 0
      %2489 = vst.msk [vmem:[#allocation3 + $0x18] sm:$0xf] %vm2482, 0
      %2490 = vst.msk [vmem:[#allocation3 + $0x1c] sm:$0xf] %vm2482, 0
      %2491 = vst.msk [vmem:[#allocation3 + $0x20] sm:$0xf] %vm2482, 0
      %2492 = vst.msk [vmem:[#allocation3 + $0x24] sm:$0xf] %vm2482, 0
      %2493 = vst.msk [vmem:[#allocation3 + $0x28] sm:$0xf] %vm2482, 0
      %2494 = vst.msk [vmem:[#allocation3 + $0x2c] sm:$0xf] %vm2482, 0
      %2495 = vst.msk [vmem:[#allocation3 + $0x30] sm:$0xf] %vm2482, 0
      %2496 = vst.msk [vmem:[#allocation3 + $0x34] sm:$0xf] %vm2482, 0
      %v2497 = vmul.f32 %v2472, %v590
      %v2498 = vmul.f32 %v2473, %v591
      %v2499 = vmul.f32 %v2474, %v592
      %v2500 = vmul.f32 %v2475, %v593
      %v2501 = vmul.f32 %v2476, %v594
      %v2502 = vmul.f32 %v2477, %v595
      %v2503 = vmul.f32 %v2478, %v596
      %v2504 = vmul.f32 %v2479, %v597
      %v2505 = vmul.f32 %v2480, %v598
      %v2506 = vmul.f32 %v2481, %v599
      %v2507 = vpack.c.bf16 %v2498, %v2497
      %v2508 = vpack.c.bf16 %v2500, %v2499
      %v2509 = vpack.c.bf16 %v2502, %v2501
      %v2510 = vpack.c.bf16 %v2504, %v2503
      %v2511 = vpack.c.bf16 %v2506, %v2505
      %v2517 = vunpack.c.l.b16 %v2507
      %v2518 = vunpack.c.h.b16 %v2507
      %v2519 = vunpack.c.l.b16 %v2508
      %v2520 = vunpack.c.h.b16 %v2508
      %v2521 = vunpack.c.l.b16 %v2509
      %v2522 = vunpack.c.h.b16 %v2509
      %v2523 = vunpack.c.l.b16 %v2510
      %v2524 = vunpack.c.h.b16 %v2510
      %v2525 = vunpack.c.l.b16 %v2511
      %v2526 = vunpack.c.h.b16 %v2511
      %v2527 = vpack.c.b16 %v2517, %v2517
      %v2528 = vpack.c.b16 %v2518, %v2518
      %v2529 = vpack.c.b16 %v2519, %v2519
      %v2530 = vpack.c.b16 %v2520, %v2520
      %v2531 = vpack.c.b16 %v2521, %v2521
      %v2532 = vpack.c.b16 %v2522, %v2522
      %v2533 = vpack.c.b16 %v2523, %v2523
      %v2534 = vpack.c.b16 %v2524, %v2524
      %v2535 = vpack.c.b16 %v2525, %v2525
      %v2536 = vpack.c.b16 %v2526, %v2526
      %2547 = vst.msk [vmem:[#allocation3 + $0x8] sm:$0xf] %vm2482, %v2527
      %2548 = vst.msk [vmem:[#allocation3 + $0xc] sm:$0xf] %vm2482, %v2528
      %2549 = vst.msk [vmem:[#allocation3 + $0x10] sm:$0xf] %vm2482, %v2529
      %2550 = vst.msk [vmem:[#allocation3 + $0x14] sm:$0xf] %vm2482, %v2530
      %2551 = vst.msk [vmem:[#allocation3 + $0x18] sm:$0xf] %vm2482, %v2531
      %2552 = vst.msk [vmem:[#allocation3 + $0x1c] sm:$0xf] %vm2482, %v2532
      %2553 = vst.msk [vmem:[#allocation3 + $0x20] sm:$0xf] %vm2482, %v2533
      %2554 = vst.msk [vmem:[#allocation3 + $0x24] sm:$0xf] %vm2482, %v2534
      %2555 = vst.msk [vmem:[#allocation3 + $0x28] sm:$0xf] %vm2482, %v2535
      %2556 = vst.msk [vmem:[#allocation3 + $0x2c] sm:$0xf] %vm2482, %v2536
      %v2557 = vld [vmem:[#allocation3] sm:$0xc]
      %v2558 = vld [vmem:[#allocation3 + $0x4] sm:$0xf]
      %v2559 = vld [vmem:[#allocation3 + $0x8] sm:$0xf]
      %v2560 = vld [vmem:[#allocation3 + $0xc] sm:$0xf]
      %v2561 = vld [vmem:[#allocation3 + $0x10] sm:$0xf]
      %v2562 = vld [vmem:[#allocation3 + $0x14] sm:$0xf]
      %v2563 = vld [vmem:[#allocation3 + $0x18] sm:$0xf]
      %v2564 = vld [vmem:[#allocation3 + $0x1c] sm:$0xf]
      %v2565 = vld [vmem:[#allocation3 + $0x20] sm:$0xf]
      %v2566 = vld [vmem:[#allocation3 + $0x24] sm:$0xf]
      %v2567 = vld [vmem:[#allocation3 + $0x28] sm:$0x7]
      %vm2568 = vsmask.f32 1280
      %vm2569 = vsmask.f32 5392
      %vm2570 = vmor %vm2568, %vm2569
      %v2572 = vshrl.u32 %v2557, 16
      %v2574 = vrot.slane %v2572, 6
      %v2575 = vshll.u32 %v2557, 16
      %v2577 = vrot.slane %v2575, 7
      %v2578 = vor.u32 %v2574, %v2577
      %v2579 = vrot.slane %v2578, 4
      %v2581 = vshrl.u32 %v2558, 16
      %v2583 = vrot.slane %v2581, 6
      %v2584 = vshll.u32 %v2558, 16
      %v2586 = vrot.slane %v2584, 7
      %v2587 = vor.u32 %v2583, %v2586
      %v2588 = vsel %vm2570, %v2579, %v2587
      %v2589 = vrot.slane %v2587, 4
      %v2591 = vshrl.u32 %v2559, 16
      %v2593 = vrot.slane %v2591, 6
      %v2594 = vshll.u32 %v2559, 16
      %v2596 = vrot.slane %v2594, 7
      %v2597 = vor.u32 %v2593, %v2596
      %v2598 = vsel %vm2570, %v2589, %v2597
      %v2599 = vrot.slane %v2597, 4
      %v2601 = vshrl.u32 %v2560, 16
      %v2603 = vrot.slane %v2601, 6
      %v2604 = vshll.u32 %v2560, 16
      %v2606 = vrot.slane %v2604, 7
      %v2607 = vor.u32 %v2603, %v2606
      %v2608 = vsel %vm2570, %v2599, %v2607
      %v2609 = vrot.slane %v2607, 4
      %v2611 = vshrl.u32 %v2561, 16
      %v2613 = vrot.slane %v2611, 6
      %v2614 = vshll.u32 %v2561, 16
      %v2616 = vrot.slane %v2614, 7
      %v2617 = vor.u32 %v2613, %v2616
      %v2618 = vsel %vm2570, %v2609, %v2617
      %v2619 = vrot.slane %v2617, 4
      %v2621 = vshrl.u32 %v2562, 16
      %v2623 = vrot.slane %v2621, 6
      %v2624 = vshll.u32 %v2562, 16
      %v2626 = vrot.slane %v2624, 7
      %v2627 = vor.u32 %v2623, %v2626
      %v2628 = vsel %vm2570, %v2619, %v2627
      %v2629 = vrot.slane %v2627, 4
      %v2631 = vshrl.u32 %v2563, 16
      %v2633 = vrot.slane %v2631, 6
      %v2634 = vshll.u32 %v2563, 16
      %v2636 = vrot.slane %v2634, 7
      %v2637 = vor.u32 %v2633, %v2636
      %v2638 = vsel %vm2570, %v2629, %v2637
      %v2639 = vrot.slane %v2637, 4
      %v2641 = vshrl.u32 %v2564, 16
      %v2643 = vrot.slane %v2641, 6
      %v2644 = vshll.u32 %v2564, 16
      %v2646 = vrot.slane %v2644, 7
      %v2647 = vor.u32 %v2643, %v2646
      %v2648 = vsel %vm2570, %v2639, %v2647
      %v2649 = vrot.slane %v2647, 4
      %v2651 = vshrl.u32 %v2565, 16
      %v2653 = vrot.slane %v2651, 6
      %v2654 = vshll.u32 %v2565, 16
      %v2656 = vrot.slane %v2654, 7
      %v2657 = vor.u32 %v2653, %v2656
      %v2658 = vsel %vm2570, %v2649, %v2657
      %v2659 = vrot.slane %v2657, 4
      %v2661 = vshrl.u32 %v2566, 16
      %v2663 = vrot.slane %v2661, 6
      %v2664 = vshll.u32 %v2566, 16
      %v2666 = vrot.slane %v2664, 7
      %v2667 = vor.u32 %v2663, %v2666
      %v2668 = vsel %vm2570, %v2659, %v2667
      %v2669 = vrot.slane %v2667, 4
      %v2671 = vshrl.u32 %v2567, 16
      %v2673 = vrot.slane %v2671, 6
      %v2674 = vshll.u32 %v2567, 16
      %v2676 = vrot.slane %v2674, 7
      %v2677 = vor.u32 %v2673, %v2676
      %v2678 = vsel %vm2570, %v2669, %v2677
      %2689 = vst.msk [vmem:[#allocation2] sm:$0xf] %vm2482, %v2588
      %2690 = vst.msk [vmem:[#allocation2 + $0xc] sm:$0xf] %vm2482, %v2598
      %2691 = vst.msk [vmem:[#allocation2 + $0x18] sm:$0xf] %vm2482, %v2608
      %2692 = vst.msk [vmem:[#allocation2 + $0x24] sm:$0xf] %vm2482, %v2618
      %2693 = vst.msk [vmem:[#allocation2 + $0x30] sm:$0xf] %vm2482, %v2628
      %2694 = vst.msk [vmem:[#allocation2 + $0x3c] sm:$0xf] %vm2482, %v2638
      %2695 = vst.msk [vmem:[#allocation2 + $0x48] sm:$0xf] %vm2482, %v2648
      %2696 = vst.msk [vmem:[#allocation2 + $0x54] sm:$0xf] %vm2482, %v2658
      %2697 = vst.msk [vmem:[#allocation2 + $0x60] sm:$0xf] %vm2482, %v2668
      %2698 = vst.msk [vmem:[#allocation2 + $0x6c] sm:$0xf] %vm2482, %v2678
      %v2699 = vld [vmem:[#allocation3] sm:$0x8]
      %v2700 = vld [vmem:[#allocation3 + $0x4] sm:$0xf]
      %v2701 = vld [vmem:[#allocation3 + $0x8] sm:$0xf]
      %v2702 = vld [vmem:[#allocation3 + $0xc] sm:$0xf]
      %v2703 = vld [vmem:[#allocation3 + $0x10] sm:$0xf]
      %v2704 = vld [vmem:[#allocation3 + $0x14] sm:$0xf]
      %v2705 = vld [vmem:[#allocation3 + $0x18] sm:$0xf]
      %v2706 = vld [vmem:[#allocation3 + $0x1c] sm:$0xf]
      %v2707 = vld [vmem:[#allocation3 + $0x20] sm:$0xf]
      %v2708 = vld [vmem:[#allocation3 + $0x24] sm:$0xf]
      %v2709 = vld [vmem:[#allocation3 + $0x28] sm:$0x7]
      %vm2721 = vcmask 1040384
      %vm2722 = vcmask 1044484
      %vm2723 = vmor %vm2721, %vm2722
      %v2724 = vrot.slane %v2699, 7
      %v2725 = vrot.slane %v2724, 4
      %v2726 = vrot.slane %v2700, 7
      %v2727 = vsel %vm2723, %v2725, %v2726
      %v2728 = vrot.slane %v2726, 4
      %v2729 = vrot.slane %v2701, 7
      %v2730 = vsel %vm2723, %v2728, %v2729
      %v2731 = vrot.slane %v2729, 4
      %v2732 = vrot.slane %v2702, 7
      %v2733 = vsel %vm2723, %v2731, %v2732
      %v2734 = vrot.slane %v2732, 4
      %v2735 = vrot.slane %v2703, 7
      %v2736 = vsel %vm2723, %v2734, %v2735
      %v2737 = vrot.slane %v2735, 4
      %v2738 = vrot.slane %v2704, 7
      %v2739 = vsel %vm2723, %v2737, %v2738
      %v2740 = vrot.slane %v2738, 4
      %v2741 = vrot.slane %v2705, 7
      %v2742 = vsel %vm2723, %v2740, %v2741
      %v2743 = vrot.slane %v2741, 4
      %v2744 = vrot.slane %v2706, 7
      %v2745 = vsel %vm2723, %v2743, %v2744
      %v2746 = vrot.slane %v2744, 4
      %v2747 = vrot.slane %v2707, 7
      %v2748 = vsel %vm2723, %v2746, %v2747
      %v2749 = vrot.slane %v2747, 4
      %v2750 = vrot.slane %v2708, 7
      %v2751 = vsel %vm2723, %v2749, %v2750
      %v2752 = vrot.slane %v2750, 4
      %v2753 = vrot.slane %v2709, 7
      %v2754 = vsel %vm2723, %v2752, %v2753
      %2755 = vrot.lane.b32.xlu0 %v2727, 32
      %v2756 = vpop.permute.xlu0 %2755
      %2757 = vrot.lane.b32.xlu0 %v2730, 32
      %v2758 = vpop.permute.xlu0 %2757
      %2759 = vrot.lane.b32.xlu0 %v2733, 32
      %v2760 = vpop.permute.xlu0 %2759
      %2761 = vrot.lane.b32.xlu0 %v2736, 32
      %v2762 = vpop.permute.xlu0 %2761
      %2763 = vrot.lane.b32.xlu0 %v2739, 32
      %v2764 = vpop.permute.xlu0 %2763
      %2765 = vrot.lane.b32.xlu0 %v2742, 32
      %v2766 = vpop.permute.xlu0 %2765
      %2767 = vrot.lane.b32.xlu0 %v2745, 32
      %v2768 = vpop.permute.xlu0 %2767
      %2769 = vrot.lane.b32.xlu0 %v2748, 32
      %v2770 = vpop.permute.xlu0 %2769
      %2771 = vrot.lane.b32.xlu0 %v2751, 32
      %v2772 = vpop.permute.xlu0 %2771
      %2773 = vrot.lane.b32.xlu0 %v2754, 32
      %v2774 = vpop.permute.xlu0 %2773
      %vm2785 = vcmask 519424
      %2786 = vst.msk [vmem:[#allocation2] sm:$0xf] %vm2785, %v2756
      %2787 = vst.msk [vmem:[#allocation2 + $0xc] sm:$0xf] %vm2785, %v2758
      %2788 = vst.msk [vmem:[#allocation2 + $0x18] sm:$0xf] %vm2785, %v2760
      %2789 = vst.msk [vmem:[#allocation2 + $0x24] sm:$0xf] %vm2785, %v2762
      %2790 = vst.msk [vmem:[#allocation2 + $0x30] sm:$0xf] %vm2785, %v2764
      %2791 = vst.msk [vmem:[#allocation2 + $0x3c] sm:$0xf] %vm2785, %v2766
      %2792 = vst.msk [vmem:[#allocation2 + $0x48] sm:$0xf] %vm2785, %v2768
      %2793 = vst.msk [vmem:[#allocation2 + $0x54] sm:$0xf] %vm2785, %v2770
      %2794 = vst.msk [vmem:[#allocation2 + $0x60] sm:$0xf] %vm2785, %v2772
      %2795 = vst.msk [vmem:[#allocation2 + $0x6c] sm:$0xf] %vm2785, %v2774
      %v2796 = vld [vmem:[#allocation3] sm:$0x8]
      %v2797 = vld [vmem:[#allocation3 + $0x4] sm:$0xf]
      %v2798 = vld [vmem:[#allocation3 + $0x8] sm:$0xf]
      %v2799 = vld [vmem:[#allocation3 + $0xc] sm:$0xf]
      %v2800 = vld [vmem:[#allocation3 + $0x10] sm:$0xf]
      %v2801 = vld [vmem:[#allocation3 + $0x14] sm:$0xf]
      %v2802 = vld [vmem:[#allocation3 + $0x18] sm:$0xf]
      %v2803 = vld [vmem:[#allocation3 + $0x1c] sm:$0xf]
      %v2804 = vld [vmem:[#allocation3 + $0x20] sm:$0xf]
      %v2805 = vld [vmem:[#allocation3 + $0x24] sm:$0xf]
      %v2806 = vld [vmem:[#allocation3 + $0x28] sm:$0xf]
      %vm2807 = vsmask.f32 256
      %vm2808 = vsmask.f32 4368
      %vm2809 = vmor %vm2807, %vm2808
      %v2811 = vshrl.u32 %v2796, 16
      %v2813 = vrot.slane %v2811, 7
      %v2814 = vrot.slane %v2813, 4
      %v2816 = vshrl.u32 %v2797, 16
      %v2818 = vrot.slane %v2816, 7
      %v2819 = vshll.u32 %v2797, 16
      %v2821 = vor.u32 %v2818, %v2819
      %v2822 = vsel %vm2809, %v2814, %v2821
      %v2823 = vrot.slane %v2818, 4
      %v2825 = vshrl.u32 %v2798, 16
      %v2827 = vrot.slane %v2825, 7
      %v2828 = vshll.u32 %v2798, 16
      %v2830 = vor.u32 %v2827, %v2828
      %v2831 = vsel %vm2809, %v2823, %v2830
      %v2832 = vrot.slane %v2827, 4
      %v2834 = vshrl.u32 %v2799, 16
      %v2836 = vrot.slane %v2834, 7
      %v2837 = vshll.u32 %v2799, 16
      %v2839 = vor.u32 %v2836, %v2837
      %v2840 = vsel %vm2809, %v2832, %v2839
      %v2841 = vrot.slane %v2836, 4
      %v2843 = vshrl.u32 %v2800, 16
      %v2845 = vrot.slane %v2843, 7
      %v2846 = vshll.u32 %v2800, 16
      %v2848 = vor.u32 %v2845, %v2846
      %v2849 = vsel %vm2809, %v2841, %v2848
      %v2850 = vrot.slane %v2845, 4
      %v2852 = vshrl.u32 %v2801, 16
      %v2854 = vrot.slane %v2852, 7
      %v2855 = vshll.u32 %v2801, 16
      %v2857 = vor.u32 %v2854, %v2855
      %v2858 = vsel %vm2809, %v2850, %v2857
      %v2859 = vrot.slane %v2854, 4
      %v2861 = vshrl.u32 %v2802, 16
      %v2863 = vrot.slane %v2861, 7
      %v2864 = vshll.u32 %v2802, 16
      %v2866 = vor.u32 %v2863, %v2864
      %v2867 = vsel %vm2809, %v2859, %v2866
      %v2868 = vrot.slane %v2863, 4
      %v2870 = vshrl.u32 %v2803, 16
      %v2872 = vrot.slane %v2870, 7
      %v2873 = vshll.u32 %v2803, 16
      %v2875 = vor.u32 %v2872, %v2873
      %v2876 = vsel %vm2809, %v2868, %v2875
      %v2877 = vrot.slane %v2872, 4
      %v2879 = vshrl.u32 %v2804, 16
      %v2881 = vrot.slane %v2879, 7
      %v2882 = vshll.u32 %v2804, 16
      %v2884 = vor.u32 %v2881, %v2882
      %v2885 = vsel %vm2809, %v2877, %v2884
      %v2886 = vrot.slane %v2881, 4
      %v2888 = vshrl.u32 %v2805, 16
      %v2890 = vrot.slane %v2888, 7
      %v2891 = vshll.u32 %v2805, 16
      %v2893 = vor.u32 %v2890, %v2891
      %v2894 = vsel %vm2809, %v2886, %v2893
      %v2895 = vrot.slane %v2890, 4
      %v2897 = vshrl.u32 %v2806, 16
      %v2899 = vrot.slane %v2897, 7
      %v2900 = vshll.u32 %v2806, 16
      %v2902 = vor.u32 %v2899, %v2900
      %v2903 = vsel %vm2809, %v2895, %v2902
      %2904 = vrot.lane.b32.xlu0 %v2822, 64
      %v2905 = vpop.permute.xlu0 %2904
      %2906 = vrot.lane.b32.xlu0 %v2831, 64
      %v2907 = vpop.permute.xlu0 %2906
      %2908 = vrot.lane.b32.xlu0 %v2840, 64
      %v2909 = vpop.permute.xlu0 %2908
      %2910 = vrot.lane.b32.xlu0 %v2849, 64
      %v2911 = vpop.permute.xlu0 %2910
      %2912 = vrot.lane.b32.xlu0 %v2858, 64
      %v2913 = vpop.permute.xlu0 %2912
      %2914 = vrot.lane.b32.xlu0 %v2867, 64
      %v2915 = vpop.permute.xlu0 %2914
      %2916 = vrot.lane.b32.xlu0 %v2876, 64
      %v2917 = vpop.permute.xlu0 %2916
      %2918 = vrot.lane.b32.xlu0 %v2885, 64
      %v2919 = vpop.permute.xlu0 %2918
      %2920 = vrot.lane.b32.xlu0 %v2894, 64
      %v2921 = vpop.permute.xlu0 %2920
      %2922 = vrot.lane.b32.xlu0 %v2903, 64
      %v2923 = vpop.permute.xlu0 %2922
      %vm2934 = vcmask 781824
      %2935 = vst.msk [vmem:[#allocation2] sm:$0xf] %vm2934, %v2905
      %2936 = vst.msk [vmem:[#allocation2 + $0xc] sm:$0xf] %vm2934, %v2907
      %2937 = vst.msk [vmem:[#allocation2 + $0x18] sm:$0xf] %vm2934, %v2909
      %2938 = vst.msk [vmem:[#allocation2 + $0x24] sm:$0xf] %vm2934, %v2911
      %2939 = vst.msk [vmem:[#allocation2 + $0x30] sm:$0xf] %vm2934, %v2913
      %2940 = vst.msk [vmem:[#allocation2 + $0x3c] sm:$0xf] %vm2934, %v2915
      %2941 = vst.msk [vmem:[#allocation2 + $0x48] sm:$0xf] %vm2934, %v2917
      %2942 = vst.msk [vmem:[#allocation2 + $0x54] sm:$0xf] %vm2934, %v2919
      %2943 = vst.msk [vmem:[#allocation2 + $0x60] sm:$0xf] %vm2934, %v2921
      %2944 = vst.msk [vmem:[#allocation2 + $0x6c] sm:$0xf] %vm2934, %v2923
      %v2945 = vld [vmem:[#allocation3 + $0x4] sm:$0x8]
      %v2946 = vld [vmem:[#allocation3 + $0x8] sm:$0xf]
      %v2947 = vld [vmem:[#allocation3 + $0xc] sm:$0xf]
      %v2948 = vld [vmem:[#allocation3 + $0x10] sm:$0xf]
      %v2949 = vld [vmem:[#allocation3 + $0x14] sm:$0xf]
      %v2950 = vld [vmem:[#allocation3 + $0x18] sm:$0xf]
      %v2951 = vld [vmem:[#allocation3 + $0x1c] sm:$0xf]
      %v2952 = vld [vmem:[#allocation3 + $0x20] sm:$0xf]
      %v2953 = vld [vmem:[#allocation3 + $0x24] sm:$0xf]
      %v2954 = vld [vmem:[#allocation3 + $0x28] sm:$0xf]
      %v2955 = vld [vmem:[#allocation3 + $0x2c] sm:$0xf]
      %v2957 = vshrl.u32 %v2945, 16
      %v2959 = vrot.slane %v2957, 7
      %v2960 = vrot.slane %v2959, 4
      %v2962 = vshrl.u32 %v2946, 16
      %v2964 = vrot.slane %v2962, 7
      %v2965 = vshll.u32 %v2946, 16
      %v2967 = vor.u32 %v2964, %v2965
      %v2968 = vsel %vm2809, %v2960, %v2967
      %v2969 = vrot.slane %v2964, 4
      %v2971 = vshrl.u32 %v2947, 16
      %v2973 = vrot.slane %v2971, 7
      %v2974 = vshll.u32 %v2947, 16
      %v2976 = vor.u32 %v2973, %v2974
      %v2977 = vsel %vm2809, %v2969, %v2976
      %v2978 = vrot.slane %v2973, 4
      %v2980 = vshrl.u32 %v2948, 16
      %v2982 = vrot.slane %v2980, 7
      %v2983 = vshll.u32 %v2948, 16
      %v2985 = vor.u32 %v2982, %v2983
      %v2986 = vsel %vm2809, %v2978, %v2985
      %v2987 = vrot.slane %v2982, 4
      %v2989 = vshrl.u32 %v2949, 16
      %v2991 = vrot.slane %v2989, 7
      %v2992 = vshll.u32 %v2949, 16
      %v2994 = vor.u32 %v2991, %v2992
      %v2995 = vsel %vm2809, %v2987, %v2994
      %v2996 = vrot.slane %v2991, 4
      %v2998 = vshrl.u32 %v2950, 16
      %v3000 = vrot.slane %v2998, 7
      %v3001 = vshll.u32 %v2950, 16
      %v3003 = vor.u32 %v3000, %v3001
      %v3004 = vsel %vm2809, %v2996, %v3003
      %v3005 = vrot.slane %v3000, 4
      %v3007 = vshrl.u32 %v2951, 16
      %v3009 = vrot.slane %v3007, 7
      %v3010 = vshll.u32 %v2951, 16
      %v3012 = vor.u32 %v3009, %v3010
      %v3013 = vsel %vm2809, %v3005, %v3012
      %v3014 = vrot.slane %v3009, 4
      %v3016 = vshrl.u32 %v2952, 16
      %v3018 = vrot.slane %v3016, 7
      %v3019 = vshll.u32 %v2952, 16
      %v3021 = vor.u32 %v3018, %v3019
      %v3022 = vsel %vm2809, %v3014, %v3021
      %v3023 = vrot.slane %v3018, 4
      %v3025 = vshrl.u32 %v2953, 16
      %v3027 = vrot.slane %v3025, 7
      %v3028 = vshll.u32 %v2953, 16
      %v3030 = vor.u32 %v3027, %v3028
      %v3031 = vsel %vm2809, %v3023, %v3030
      %v3032 = vrot.slane %v3027, 4
      %v3034 = vshrl.u32 %v2954, 16
      %v3036 = vrot.slane %v3034, 7
      %v3037 = vshll.u32 %v2954, 16
      %v3039 = vor.u32 %v3036, %v3037
      %v3040 = vsel %vm2809, %v3032, %v3039
      %v3041 = vrot.slane %v3036, 4
      %v3043 = vshrl.u32 %v2955, 16
      %v3045 = vrot.slane %v3043, 7
      %v3046 = vshll.u32 %v2955, 16
      %v3048 = vor.u32 %v3045, %v3046
      %v3049 = vsel %vm2809, %v3041, %v3048
      %3050 = vrot.lane.b32.xlu0 %v2968, 96
      %v3051 = vpop.permute.xlu0 %3050
      %3052 = vrot.lane.b32.xlu0 %v2977, 96
      %v3053 = vpop.permute.xlu0 %3052
      %3054 = vrot.lane.b32.xlu0 %v2986, 96
      %v3055 = vpop.permute.xlu0 %3054
      %3056 = vrot.lane.b32.xlu0 %v2995, 96
      %v3057 = vpop.permute.xlu0 %3056
      %3058 = vrot.lane.b32.xlu0 %v3004, 96
      %v3059 = vpop.permute.xlu0 %3058
      %3060 = vrot.lane.b32.xlu0 %v3013, 96
      %v3061 = vpop.permute.xlu0 %3060
      %3062 = vrot.lane.b32.xlu0 %v3022, 96
      %v3063 = vpop.permute.xlu0 %3062
      %3064 = vrot.lane.b32.xlu0 %v3031, 96
      %v3065 = vpop.permute.xlu0 %3064
      %3066 = vrot.lane.b32.xlu0 %v3040, 96
      %v3067 = vpop.permute.xlu0 %3066
      %3068 = vrot.lane.b32.xlu0 %v3049, 96
      %v3069 = vpop.permute.xlu0 %3068
      %vm3080 = vcmask 1044224
      %3081 = vst.msk [vmem:[#allocation2] sm:$0xf] %vm3080, %v3051
      %3082 = vst.msk [vmem:[#allocation2 + $0xc] sm:$0xf] %vm3080, %v3053
      %3083 = vst.msk [vmem:[#allocation2 + $0x18] sm:$0xf] %vm3080, %v3055
      %3084 = vst.msk [vmem:[#allocation2 + $0x24] sm:$0xf] %vm3080, %v3057
      %3085 = vst.msk [vmem:[#allocation2 + $0x30] sm:$0xf] %vm3080, %v3059
      %3086 = vst.msk [vmem:[#allocation2 + $0x3c] sm:$0xf] %vm3080, %v3061
      %3087 = vst.msk [vmem:[#allocation2 + $0x48] sm:$0xf] %vm3080, %v3063
      %3088 = vst.msk [vmem:[#allocation2 + $0x54] sm:$0xf] %vm3080, %v3065
      %3089 = vst.msk [vmem:[#allocation2 + $0x60] sm:$0xf] %vm3080, %v3067
      %3090 = vst.msk [vmem:[#allocation2 + $0x6c] sm:$0xf] %vm3080, %v3069
      %v3091 = vld [vmem:[#allocation3 + $0x8] sm:$0xf]
      %v3092 = vld [vmem:[#allocation3 + $0xc] sm:$0xf]
      %v3093 = vld [vmem:[#allocation3 + $0x10] sm:$0xf]
      %v3094 = vld [vmem:[#allocation3 + $0x14] sm:$0xf]
      %v3095 = vld [vmem:[#allocation3 + $0x18] sm:$0xf]
      %v3096 = vld [vmem:[#allocation3 + $0x1c] sm:$0xf]
      %v3097 = vld [vmem:[#allocation3 + $0x20] sm:$0xf]
      %v3098 = vld [vmem:[#allocation3 + $0x24] sm:$0xf]
      %v3099 = vld [vmem:[#allocation3 + $0x28] sm:$0xf]
      %v3100 = vld [vmem:[#allocation3 + $0x2c] sm:$0xf]
      %3101 = vst.msk [vmem:[#allocation2 + $0x4] sm:$0xf] %vm2482, %v3091
      %3102 = vst.msk [vmem:[#allocation2 + $0x10] sm:$0xf] %vm2482, %v3092
      %3103 = vst.msk [vmem:[#allocation2 + $0x1c] sm:$0xf] %vm2482, %v3093
      %3104 = vst.msk [vmem:[#allocation2 + $0x28] sm:$0xf] %vm2482, %v3094
      %3105 = vst.msk [vmem:[#allocation2 + $0x34] sm:$0xf] %vm2482, %v3095
      %3106 = vst.msk [vmem:[#allocation2 + $0x40] sm:$0xf] %vm2482, %v3096
      %3107 = vst.msk [vmem:[#allocation2 + $0x4c] sm:$0xf] %vm2482, %v3097
      %3108 = vst.msk [vmem:[#allocation2 + $0x58] sm:$0xf] %vm2482, %v3098
      %3109 = vst.msk [vmem:[#allocation2 + $0x64] sm:$0xf] %vm2482, %v3099
      %3110 = vst.msk [vmem:[#allocation2 + $0x70] sm:$0xf] %vm2482, %v3100
      %v3111 = vld [vmem:[#allocation3 + $0x8] sm:$0xf]
      %v3112 = vld [vmem:[#allocation3 + $0xc] sm:$0xf]
      %v3113 = vld [vmem:[#allocation3 + $0x10] sm:$0xf]
      %v3114 = vld [vmem:[#allocation3 + $0x14] sm:$0xf]
      %v3115 = vld [vmem:[#allocation3 + $0x18] sm:$0xf]
      %v3116 = vld [vmem:[#allocation3 + $0x1c] sm:$0xf]
      %v3117 = vld [vmem:[#allocation3 + $0x20] sm:$0xf]
      %v3118 = vld [vmem:[#allocation3 + $0x24] sm:$0xf]
      %v3119 = vld [vmem:[#allocation3 + $0x28] sm:$0xf]
      %v3120 = vld [vmem:[#allocation3 + $0x2c] sm:$0xf]
      %v3121 = vld [vmem:[#allocation3 + $0x30] sm:$0x1]
      %v3123 = vshrl.u32 %v3111, 16
      %v3125 = vrot.slane %v3123, 4
      %v3126 = vshll.u32 %v3111, 16
      %v3128 = vrot.slane %v3126, 5
      %v3129 = vor.u32 %v3125, %v3128
      %v3130 = vrot.slane %v3129, 4
      %v3132 = vshll.u32 %v3112, 16
      %v3134 = vrot.slane %v3132, 5
      %v3135 = vsel %vm697, %v3130, %v3134
      %v3136 = vshrl.u32 %v3112, 16
      %v3138 = vrot.slane %v3136, 4
      %v3139 = vor.u32 %v3138, %v3134
      %v3140 = vrot.slane %v3139, 4
      %v3142 = vshll.u32 %v3113, 16
      %v3144 = vrot.slane %v3142, 5
      %v3145 = vsel %vm697, %v3140, %v3144
      %v3146 = vshrl.u32 %v3113, 16
      %v3148 = vrot.slane %v3146, 4
      %v3149 = vor.u32 %v3148, %v3144
      %v3150 = vrot.slane %v3149, 4
      %v3152 = vshll.u32 %v3114, 16
      %v3154 = vrot.slane %v3152, 5
      %v3155 = vsel %vm697, %v3150, %v3154
      %v3156 = vshrl.u32 %v3114, 16
      %v3158 = vrot.slane %v3156, 4
      %v3159 = vor.u32 %v3158, %v3154
      %v3160 = vrot.slane %v3159, 4
      %v3162 = vshll.u32 %v3115, 16
      %v3164 = vrot.slane %v3162, 5
      %v3165 = vsel %vm697, %v3160, %v3164
      %v3166 = vshrl.u32 %v3115, 16
      %v3168 = vrot.slane %v3166, 4
      %v3169 = vor.u32 %v3168, %v3164
      %v3170 = vrot.slane %v3169, 4
      %v3172 = vshll.u32 %v3116, 16
      %v3174 = vrot.slane %v3172, 5
      %v3175 = vsel %vm697, %v3170, %v3174
      %v3176 = vshrl.u32 %v3116, 16
      %v3178 = vrot.slane %v3176, 4
      %v3179 = vor.u32 %v3178, %v3174
      %v3180 = vrot.slane %v3179, 4
      %v3182 = vshll.u32 %v3117, 16
      %v3184 = vrot.slane %v3182, 5
      %v3185 = vsel %vm697, %v3180, %v3184
      %v3186 = vshrl.u32 %v3117, 16
      %v3188 = vrot.slane %v3186, 4
      %v3189 = vor.u32 %v3188, %v3184
      %v3190 = vrot.slane %v3189, 4
      %v3192 = vshll.u32 %v3118, 16
      %v3194 = vrot.slane %v3192, 5
      %v3195 = vsel %vm697, %v3190, %v3194
      %v3196 = vshrl.u32 %v3118, 16
      %v3198 = vrot.slane %v3196, 4
      %v3199 = vor.u32 %v3198, %v3194
      %v3200 = vrot.slane %v3199, 4
      %v3202 = vshll.u32 %v3119, 16
      %v3204 = vrot.slane %v3202, 5
      %v3205 = vsel %vm697, %v3200, %v3204
      %v3206 = vshrl.u32 %v3119, 16
      %v3208 = vrot.slane %v3206, 4
      %v3209 = vor.u32 %v3208, %v3204
      %v3210 = vrot.slane %v3209, 4
      %v3212 = vshll.u32 %v3120, 16
      %v3214 = vrot.slane %v3212, 5
      %v3215 = vsel %vm697, %v3210, %v3214
      %v3216 = vshrl.u32 %v3120, 16
      %v3218 = vrot.slane %v3216, 4
      %v3219 = vor.u32 %v3218, %v3214
      %v3220 = vrot.slane %v3219, 4
      %v3222 = vshll.u32 %v3121, 16
      %v3224 = vrot.slane %v3222, 5
      %v3225 = vsel %vm697, %v3220, %v3224
      %3226 = vrot.lane.b32.xlu0 %v3135, 32
      %v3227 = vpop.permute.xlu0 %3226
      %3228 = vrot.lane.b32.xlu0 %v3145, 32
      %v3229 = vpop.permute.xlu0 %3228
      %3230 = vrot.lane.b32.xlu0 %v3155, 32
      %v3231 = vpop.permute.xlu0 %3230
      %3232 = vrot.lane.b32.xlu0 %v3165, 32
      %v3233 = vpop.permute.xlu0 %3232
      %3234 = vrot.lane.b32.xlu0 %v3175, 32
      %v3235 = vpop.permute.xlu0 %3234
      %3236 = vrot.lane.b32.xlu0 %v3185, 32
      %v3237 = vpop.permute.xlu0 %3236
      %3238 = vrot.lane.b32.xlu0 %v3195, 32
      %v3239 = vpop.permute.xlu0 %3238
      %3240 = vrot.lane.b32.xlu0 %v3205, 32
      %v3241 = vpop.permute.xlu0 %3240
      %3242 = vrot.lane.b32.xlu0 %v3215, 32
      %v3243 = vpop.permute.xlu0 %3242
      %3244 = vrot.lane.b32.xlu0 %v3225, 32
      %v3245 = vpop.permute.xlu0 %3244
      %3256 = vst.msk [vmem:[#allocation2 + $0x4] sm:$0xf] %vm2785, %v3227
      %3257 = vst.msk [vmem:[#allocation2 + $0x10] sm:$0xf] %vm2785, %v3229
      %3258 = vst.msk [vmem:[#allocation2 + $0x1c] sm:$0xf] %vm2785, %v3231
      %3259 = vst.msk [vmem:[#allocation2 + $0x28] sm:$0xf] %vm2785, %v3233
      %3260 = vst.msk [vmem:[#allocation2 + $0x34] sm:$0xf] %vm2785, %v3235
      %3261 = vst.msk [vmem:[#allocation2 + $0x40] sm:$0xf] %vm2785, %v3237
      %3262 = vst.msk [vmem:[#allocation2 + $0x4c] sm:$0xf] %vm2785, %v3239
      %3263 = vst.msk [vmem:[#allocation2 + $0x58] sm:$0xf] %vm2785, %v3241
      %3264 = vst.msk [vmem:[#allocation2 + $0x64] sm:$0xf] %vm2785, %v3243
      %3265 = vst.msk [vmem:[#allocation2 + $0x70] sm:$0xf] %vm2785, %v3245
      %v3266 = vld [vmem:[#allocation3 + $0xc] sm:$0xf]
      %v3267 = vld [vmem:[#allocation3 + $0x10] sm:$0xf]
      %v3268 = vld [vmem:[#allocation3 + $0x14] sm:$0xf]
      %v3269 = vld [vmem:[#allocation3 + $0x18] sm:$0xf]
      %v3270 = vld [vmem:[#allocation3 + $0x1c] sm:$0xf]
      %v3271 = vld [vmem:[#allocation3 + $0x20] sm:$0xf]
      %v3272 = vld [vmem:[#allocation3 + $0x24] sm:$0xf]
      %v3273 = vld [vmem:[#allocation3 + $0x28] sm:$0xf]
      %v3274 = vld [vmem:[#allocation3 + $0x2c] sm:$0xf]
      %v3275 = vld [vmem:[#allocation3 + $0x30] sm:$0xf]
      %v3276 = vld [vmem:[#allocation3 + $0x34] sm:$0x1]
      %v3278 = vshrl.u32 %v3266, 16
      %v3280 = vrot.slane %v3278, 4
      %v3281 = vshll.u32 %v3266, 16
      %v3283 = vrot.slane %v3281, 5
      %v3284 = vor.u32 %v3280, %v3283
      %v3285 = vrot.slane %v3284, 4
      %v3287 = vshll.u32 %v3267, 16
      %v3289 = vrot.slane %v3287, 5
      %v3290 = vsel %vm697, %v3285, %v3289
      %v3291 = vshrl.u32 %v3267, 16
      %v3293 = vrot.slane %v3291, 4
      %v3294 = vor.u32 %v3293, %v3289
      %v3295 = vrot.slane %v3294, 4
      %v3297 = vshll.u32 %v3268, 16
      %v3299 = vrot.slane %v3297, 5
      %v3300 = vsel %vm697, %v3295, %v3299
      %v3301 = vshrl.u32 %v3268, 16
      %v3303 = vrot.slane %v3301, 4
      %v3304 = vor.u32 %v3303, %v3299
      %v3305 = vrot.slane %v3304, 4
      %v3307 = vshll.u32 %v3269, 16
      %v3309 = vrot.slane %v3307, 5
      %v3310 = vsel %vm697, %v3305, %v3309
      %v3311 = vshrl.u32 %v3269, 16
      %v3313 = vrot.slane %v3311, 4
      %v3314 = vor.u32 %v3313, %v3309
      %v3315 = vrot.slane %v3314, 4
      %v3317 = vshll.u32 %v3270, 16
      %v3319 = vrot.slane %v3317, 5
      %v3320 = vsel %vm697, %v3315, %v3319
      %v3321 = vshrl.u32 %v3270, 16
      %v3323 = vrot.slane %v3321, 4
      %v3324 = vor.u32 %v3323, %v3319
      %v3325 = vrot.slane %v3324, 4
      %v3327 = vshll.u32 %v3271, 16
      %v3329 = vrot.slane %v3327, 5
      %v3330 = vsel %vm697, %v3325, %v3329
      %v3331 = vshrl.u32 %v3271, 16
      %v3333 = vrot.slane %v3331, 4
      %v3334 = vor.u32 %v3333, %v3329
      %v3335 = vrot.slane %v3334, 4
      %v3337 = vshll.u32 %v3272, 16
      %v3339 = vrot.slane %v3337, 5
      %v3340 = vsel %vm697, %v3335, %v3339
      %v3341 = vshrl.u32 %v3272, 16
      %v3343 = vrot.slane %v3341, 4
      %v3344 = vor.u32 %v3343, %v3339
      %v3345 = vrot.slane %v3344, 4
      %v3347 = vshll.u32 %v3273, 16
      %v3349 = vrot.slane %v3347, 5
      %v3350 = vsel %vm697, %v3345, %v3349
      %v3351 = vshrl.u32 %v3273, 16
      %v3353 = vrot.slane %v3351, 4
      %v3354 = vor.u32 %v3353, %v3349
      %v3355 = vrot.slane %v3354, 4
      %v3357 = vshll.u32 %v3274, 16
      %v3359 = vrot.slane %v3357, 5
      %v3360 = vsel %vm697, %v3355, %v3359
      %v3361 = vshrl.u32 %v3274, 16
      %v3363 = vrot.slane %v3361, 4
      %v3364 = vor.u32 %v3363, %v3359
      %v3365 = vrot.slane %v3364, 4
      %v3367 = vshll.u32 %v3275, 16
      %v3369 = vrot.slane %v3367, 5
      %v3370 = vsel %vm697, %v3365, %v3369
      %v3371 = vshrl.u32 %v3275, 16
      %v3373 = vrot.slane %v3371, 4
      %v3374 = vor.u32 %v3373, %v3369
      %v3375 = vrot.slane %v3374, 4
      %v3377 = vshll.u32 %v3276, 16
      %v3379 = vrot.slane %v3377, 5
      %v3380 = vsel %vm697, %v3375, %v3379
      %3381 = vrot.lane.b32.xlu0 %v3290, 64
      %v3382 = vpop.permute.xlu0 %3381
      %3383 = vrot.lane.b32.xlu0 %v3300, 64
      %v3384 = vpop.permute.xlu0 %3383
      %3385 = vrot.lane.b32.xlu0 %v3310, 64
      %v3386 = vpop.permute.xlu0 %3385
      %3387 = vrot.lane.b32.xlu0 %v3320, 64
      %v3388 = vpop.permute.xlu0 %3387
      %3389 = vrot.lane.b32.xlu0 %v3330, 64
      %v3390 = vpop.permute.xlu0 %3389
      %3391 = vrot.lane.b32.xlu0 %v3340, 64
      %v3392 = vpop.permute.xlu0 %3391
      %3393 = vrot.lane.b32.xlu0 %v3350, 64
      %v3394 = vpop.permute.xlu0 %3393
      %3395 = vrot.lane.b32.xlu0 %v3360, 64
      %v3396 = vpop.permute.xlu0 %3395
      %3397 = vrot.lane.b32.xlu0 %v3370, 64
      %v3398 = vpop.permute.xlu0 %3397
      %3399 = vrot.lane.b32.xlu0 %v3380, 64
      %v3400 = vpop.permute.xlu0 %3399
      %3411 = vst.msk [vmem:[#allocation2 + $0x4] sm:$0xf] %vm2934, %v3382
      %3412 = vst.msk [vmem:[#allocation2 + $0x10] sm:$0xf] %vm2934, %v3384
      %3413 = vst.msk [vmem:[#allocation2 + $0x1c] sm:$0xf] %vm2934, %v3386
      %3414 = vst.msk [vmem:[#allocation2 + $0x28] sm:$0xf] %vm2934, %v3388
      %3415 = vst.msk [vmem:[#allocation2 + $0x34] sm:$0xf] %vm2934, %v3390
      %3416 = vst.msk [vmem:[#allocation2 + $0x40] sm:$0xf] %vm2934, %v3392
      %3417 = vst.msk [vmem:[#allocation2 + $0x4c] sm:$0xf] %vm2934, %v3394
      %3418 = vst.msk [vmem:[#allocation2 + $0x58] sm:$0xf] %vm2934, %v3396
      %3419 = vst.msk [vmem:[#allocation2 + $0x64] sm:$0xf] %vm2934, %v3398
      %3420 = vst.msk [vmem:[#allocation2 + $0x70] sm:$0xf] %vm2934, %v3400
      %v3421 = vld [vmem:[#allocation3 + $0xc] sm:$0xe]
      %v3422 = vld [vmem:[#allocation3 + $0x10] sm:$0xf]
      %v3423 = vld [vmem:[#allocation3 + $0x14] sm:$0xf]
      %v3424 = vld [vmem:[#allocation3 + $0x18] sm:$0xf]
      %v3425 = vld [vmem:[#allocation3 + $0x1c] sm:$0xf]
      %v3426 = vld [vmem:[#allocation3 + $0x20] sm:$0xf]
      %v3427 = vld [vmem:[#allocation3 + $0x24] sm:$0xf]
      %v3428 = vld [vmem:[#allocation3 + $0x28] sm:$0xf]
      %v3429 = vld [vmem:[#allocation3 + $0x2c] sm:$0xf]
      %v3430 = vld [vmem:[#allocation3 + $0x30] sm:$0xf]
      %v3431 = vld [vmem:[#allocation3 + $0x34] sm:$0x1]
      %v3443 = vrot.slane %v3421, 5
      %v3444 = vrot.slane %v3443, 4
      %v3445 = vrot.slane %v3422, 5
      %v3446 = vsel %vm1145, %v3444, %v3445
      %v3447 = vrot.slane %v3445, 4
      %v3448 = vrot.slane %v3423, 5
      %v3449 = vsel %vm1145, %v3447, %v3448
      %v3450 = vrot.slane %v3448, 4
      %v3451 = vrot.slane %v3424, 5
      %v3452 = vsel %vm1145, %v3450, %v3451
      %v3453 = vrot.slane %v3451, 4
      %v3454 = vrot.slane %v3425, 5
      %v3455 = vsel %vm1145, %v3453, %v3454
      %v3456 = vrot.slane %v3454, 4
      %v3457 = vrot.slane %v3426, 5
      %v3458 = vsel %vm1145, %v3456, %v3457
      %v3459 = vrot.slane %v3457, 4
      %v3460 = vrot.slane %v3427, 5
      %v3461 = vsel %vm1145, %v3459, %v3460
      %v3462 = vrot.slane %v3460, 4
      %v3463 = vrot.slane %v3428, 5
      %v3464 = vsel %vm1145, %v3462, %v3463
      %v3465 = vrot.slane %v3463, 4
      %v3466 = vrot.slane %v3429, 5
      %v3467 = vsel %vm1145, %v3465, %v3466
      %v3468 = vrot.slane %v3466, 4
      %v3469 = vrot.slane %v3430, 5
      %v3470 = vsel %vm1145, %v3468, %v3469
      %v3471 = vrot.slane %v3469, 4
      %v3472 = vrot.slane %v3431, 5
      %v3473 = vsel %vm1145, %v3471, %v3472
      %3474 = vrot.lane.b32.xlu0 %v3446, 96
      %v3475 = vpop.permute.xlu0 %3474
      %3476 = vrot.lane.b32.xlu0 %v3449, 96
      %v3477 = vpop.permute.xlu0 %3476
      %3478 = vrot.lane.b32.xlu0 %v3452, 96
      %v3479 = vpop.permute.xlu0 %3478
      %3480 = vrot.lane.b32.xlu0 %v3455, 96
      %v3481 = vpop.permute.xlu0 %3480
      %3482 = vrot.lane.b32.xlu0 %v3458, 96
      %v3483 = vpop.permute.xlu0 %3482
      %3484 = vrot.lane.b32.xlu0 %v3461, 96
      %v3485 = vpop.permute.xlu0 %3484
      %3486 = vrot.lane.b32.xlu0 %v3464, 96
      %v3487 = vpop.permute.xlu0 %3486
      %3488 = vrot.lane.b32.xlu0 %v3467, 96
      %v3489 = vpop.permute.xlu0 %3488
      %3490 = vrot.lane.b32.xlu0 %v3470, 96
      %v3491 = vpop.permute.xlu0 %3490
      %3492 = vrot.lane.b32.xlu0 %v3473, 96
      %v3493 = vpop.permute.xlu0 %3492
      %3504 = vst.msk [vmem:[#allocation2 + $0x4] sm:$0xf] %vm3080, %v3475
      %3505 = vst.msk [vmem:[#allocation2 + $0x10] sm:$0xf] %vm3080, %v3477
      %3506 = vst.msk [vmem:[#allocation2 + $0x1c] sm:$0xf] %vm3080, %v3479
      %3507 = vst.msk [vmem:[#allocation2 + $0x28] sm:$0xf] %vm3080, %v3481
      %3508 = vst.msk [vmem:[#allocation2 + $0x34] sm:$0xf] %vm3080, %v3483
      %3509 = vst.msk [vmem:[#allocation2 + $0x40] sm:$0xf] %vm3080, %v3485
      %3510 = vst.msk [vmem:[#allocation2 + $0x4c] sm:$0xf] %vm3080, %v3487
      %3511 = vst.msk [vmem:[#allocation2 + $0x58] sm:$0xf] %vm3080, %v3489
      %3512 = vst.msk [vmem:[#allocation2 + $0x64] sm:$0xf] %vm3080, %v3491
      %3513 = vst.msk [vmem:[#allocation2 + $0x70] sm:$0xf] %vm3080, %v3493
      %v3514 = vld [vmem:[#allocation3 + $0xc] sm:$0xe]
      %v3515 = vld [vmem:[#allocation3 + $0x10] sm:$0xf]
      %v3516 = vld [vmem:[#allocation3 + $0x14] sm:$0xf]
      %v3517 = vld [vmem:[#allocation3 + $0x18] sm:$0xf]
      %v3518 = vld [vmem:[#allocation3 + $0x1c] sm:$0xf]
      %v3519 = vld [vmem:[#allocation3 + $0x20] sm:$0xf]
      %v3520 = vld [vmem:[#allocation3 + $0x24] sm:$0xf]
      %v3521 = vld [vmem:[#allocation3 + $0x28] sm:$0xf]
      %v3522 = vld [vmem:[#allocation3 + $0x2c] sm:$0xf]
      %v3523 = vld [vmem:[#allocation3 + $0x30] sm:$0xf]
      %v3524 = vld [vmem:[#allocation3 + $0x34] sm:$0x3]
      %v3526 = vshrl.u32 %v3514, 16
      %v3528 = vrot.slane %v3526, 5
      %v3529 = vshll.u32 %v3514, 16
      %v3531 = vrot.slane %v3529, 6
      %v3532 = vor.u32 %v3528, %v3531
      %v3533 = vrot.slane %v3532, 4
      %v3535 = vshrl.u32 %v3515, 16
      %v3537 = vrot.slane %v3535, 5
      %v3538 = vshll.u32 %v3515, 16
      %v3540 = vrot.slane %v3538, 6
      %v3541 = vor.u32 %v3537, %v3540
      %v3542 = vsel %vm1325, %v3533, %v3541
      %v3543 = vrot.slane %v3541, 4
      %v3545 = vshrl.u32 %v3516, 16
      %v3547 = vrot.slane %v3545, 5
      %v3548 = vshll.u32 %v3516, 16
      %v3550 = vrot.slane %v3548, 6
      %v3551 = vor.u32 %v3547, %v3550
      %v3552 = vsel %vm1325, %v3543, %v3551
      %v3553 = vrot.slane %v3551, 4
      %v3555 = vshrl.u32 %v3517, 16
      %v3557 = vrot.slane %v3555, 5
      %v3558 = vshll.u32 %v3517, 16
      %v3560 = vrot.slane %v3558, 6
      %v3561 = vor.u32 %v3557, %v3560
      %v3562 = vsel %vm1325, %v3553, %v3561
      %v3563 = vrot.slane %v3561, 4
      %v3565 = vshrl.u32 %v3518, 16
      %v3567 = vrot.slane %v3565, 5
      %v3568 = vshll.u32 %v3518, 16
      %v3570 = vrot.slane %v3568, 6
      %v3571 = vor.u32 %v3567, %v3570
      %v3572 = vsel %vm1325, %v3563, %v3571
      %v3573 = vrot.slane %v3571, 4
      %v3575 = vshrl.u32 %v3519, 16
      %v3577 = vrot.slane %v3575, 5
      %v3578 = vshll.u32 %v3519, 16
      %v3580 = vrot.slane %v3578, 6
      %v3581 = vor.u32 %v3577, %v3580
      %v3582 = vsel %vm1325, %v3573, %v3581
      %v3583 = vrot.slane %v3581, 4
      %v3585 = vshrl.u32 %v3520, 16
      %v3587 = vrot.slane %v3585, 5
      %v3588 = vshll.u32 %v3520, 16
      %v3590 = vrot.slane %v3588, 6
      %v3591 = vor.u32 %v3587, %v3590
      %v3592 = vsel %vm1325, %v3583, %v3591
      %v3593 = vrot.slane %v3591, 4
      %v3595 = vshrl.u32 %v3521, 16
      %v3597 = vrot.slane %v3595, 5
      %v3598 = vshll.u32 %v3521, 16
      %v3600 = vrot.slane %v3598, 6
      %v3601 = vor.u32 %v3597, %v3600
      %v3602 = vsel %vm1325, %v3593, %v3601
      %v3603 = vrot.slane %v3601, 4
      %v3605 = vshrl.u32 %v3522, 16
      %v3607 = vrot.slane %v3605, 5
      %v3608 = vshll.u32 %v3522, 16
      %v3610 = vrot.slane %v3608, 6
      %v3611 = vor.u32 %v3607, %v3610
      %v3612 = vsel %vm1325, %v3603, %v3611
      %v3613 = vrot.slane %v3611, 4
      %v3615 = vshrl.u32 %v3523, 16
      %v3617 = vrot.slane %v3615, 5
      %v3618 = vshll.u32 %v3523, 16
      %v3620 = vrot.slane %v3618, 6
      %v3621 = vor.u32 %v3617, %v3620
      %v3622 = vsel %vm1325, %v3613, %v3621
      %v3623 = vrot.slane %v3621, 4
      %v3625 = vshrl.u32 %v3524, 16
      %v3627 = vrot.slane %v3625, 5
      %v3628 = vshll.u32 %v3524, 16
      %v3630 = vrot.slane %v3628, 6
      %v3631 = vor.u32 %v3627, %v3630
      %v3632 = vsel %vm1325, %v3623, %v3631
      %3643 = vst.msk [vmem:[#allocation2 + $0x8] sm:$0xf] %vm2482, %v3542
      %3644 = vst.msk [vmem:[#allocation2 + $0x14] sm:$0xf] %vm2482, %v3552
      %3645 = vst.msk [vmem:[#allocation2 + $0x20] sm:$0xf] %vm2482, %v3562
      %3646 = vst.msk [vmem:[#allocation2 + $0x2c] sm:$0xf] %vm2482, %v3572
      %3647 = vst.msk [vmem:[#allocation2 + $0x38] sm:$0xf] %vm2482, %v3582
      %3648 = vst.msk [vmem:[#allocation2 + $0x44] sm:$0xf] %vm2482, %v3592
      %3649 = vst.msk [vmem:[#allocation2 + $0x50] sm:$0xf] %vm2482, %v3602
      %3650 = vst.msk [vmem:[#allocation2 + $0x5c] sm:$0xf] %vm2482, %v3612
      %3651 = vst.msk [vmem:[#allocation2 + $0x68] sm:$0xf] %vm2482, %v3622
      %3652 = vst.msk [vmem:[#allocation2 + $0x74] sm:$0xf] %vm2482, %v3632
      %v3653 = vld [vmem:[#allocation2] sm:$0xff]
      %v3654 = vld [vmem:[#allocation2 + $0x8] sm:$0xf]
      %v3655 = vld [vmem:[#allocation2 + $0xc] sm:$0xff]
      %v3656 = vld [vmem:[#allocation2 + $0x14] sm:$0xf]
      %v3657 = vld [vmem:[#allocation2 + $0x18] sm:$0xff]
      %v3658 = vld [vmem:[#allocation2 + $0x20] sm:$0xf]
      %v3659 = vld [vmem:[#allocation2 + $0x24] sm:$0xff]
      %v3660 = vld [vmem:[#allocation2 + $0x2c] sm:$0xf]
      %v3661 = vld [vmem:[#allocation2 + $0x30] sm:$0xff]
      %v3662 = vld [vmem:[#allocation2 + $0x38] sm:$0xf]
      %v3663 = vld [vmem:[#allocation2 + $0x3c] sm:$0xff]
      %v3664 = vld [vmem:[#allocation2 + $0x44] sm:$0xf]
      %v3665 = vld [vmem:[#allocation2 + $0x48] sm:$0xff]
      %v3666 = vld [vmem:[#allocation2 + $0x50] sm:$0xf]
      %v3667 = vld [vmem:[#allocation2 + $0x54] sm:$0xff]
      %v3668 = vld [vmem:[#allocation2 + $0x5c] sm:$0xf]
      %v3669 = vld [vmem:[#allocation2 + $0x60] sm:$0xff]
      %v3670 = vld [vmem:[#allocation2 + $0x68] sm:$0xf]
      %v3671 = vld [vmem:[#allocation2 + $0x6c] sm:$0xff]
      %v3672 = vld [vmem:[#allocation2 + $0x74] sm:$0xf]
      %v3673 = vld [vmem:[%s6] sm:$0xf]
      %v3674 = vld [vmem:[%s6 + $0x4] sm:$0xf]
      %v3675 = vld [vmem:[%s6 + $0x8] sm:$0xf]
      %v3676 = vld [vmem:[%s6 + $0xc] sm:$0xf]
      %v3677 = vld [vmem:[%s6 + $0x10] sm:$0xf]
      %v3678 = vld [vmem:[%s6 + $0x14] sm:$0xf]
      %v3679 = vld [vmem:[%s6 + $0x18] sm:$0xf]
      %v3680 = vld [vmem:[%s6 + $0x1c] sm:$0xf]
      %v3681 = vld [vmem:[%s6 + $0x20] sm:$0xf]
      %v3682 = vld [vmem:[%s6 + $0x24] sm:$0xf]
      %v3683 = vld [vmem:[%s6 + $0x28] sm:$0xf]
      %v3684 = vld [vmem:[%s6 + $0x2c] sm:$0xf]
      %v3685 = vld [vmem:[%s6 + $0x30] sm:$0xf]
      %v3686 = vld [vmem:[%s6 + $0x34] sm:$0xf]
      %v3687 = vld [vmem:[%s6 + $0x38] sm:$0xf]
      %v3688 = vld [vmem:[%s6 + $0x3c] sm:$0xf]
      %v3689 = vld [vmem:[%s6 + $0x40] sm:$0xf]
      %v3690 = vld [vmem:[%s6 + $0x44] sm:$0xf]
      %v3691 = vld [vmem:[%s6 + $0x48] sm:$0xf]
      %v3692 = vld [vmem:[%s6 + $0x4c] sm:$0xf]
      %v3693 = vld [vmem:[%s6 + $0x50] sm:$0xf]
      %v3694 = vld [vmem:[%s6 + $0x54] sm:$0xf]
      %v3695 = vld [vmem:[%s6 + $0x58] sm:$0xf]
      %v3696 = vld [vmem:[%s6 + $0x5c] sm:$0xf]
      %v3697 = vld [vmem:[%s6 + $0x60] sm:$0xf]
      %v3698 = vld [vmem:[%s6 + $0x64] sm:$0xf]
      %v3699 = vld [vmem:[%s6 + $0x68] sm:$0xf]
      %v3700 = vld [vmem:[%s6 + $0x6c] sm:$0xf]
      %v3701 = vld [vmem:[%s6 + $0x70] sm:$0xf]
      %v3702 = vld [vmem:[%s6 + $0x74] sm:$0xf]
      %v3703 = vld [vmem:[%s6 + $0x78] sm:$0xf]
      %v3704 = vld [vmem:[%s6 + $0x7c] sm:$0xf]
      %v3705 = vld [vmem:[%s6 + $0x80] sm:$0xf]
      %v3706 = vld [vmem:[%s6 + $0x84] sm:$0xf]
      %v3707 = vld [vmem:[%s6 + $0x88] sm:$0xf]
      %v3708 = vld [vmem:[%s6 + $0x8c] sm:$0xf]
      %v3709 = vld [vmem:[%s7] sm:$0x1]
      %v3711 = vlaneseq
      %v3712 = vshrl.u32 %v3711, 7
      %v3713 = vsub.s32 0, %v3712
      %v3714 = vrot.slane %v3709, %v3713
      %v3736 = vunpack.c.l.b16 %v3653
      %v3737 = vunpack.c.h.b16 %v3653
      %v3738 = vunpack.c.l.b16 %v3654
      %v3739 = vunpack.c.l.b16 %v3655
      %v3740 = vunpack.c.h.b16 %v3655
      %v3741 = vunpack.c.l.b16 %v3656
      %v3742 = vunpack.c.l.b16 %v3657
      %v3743 = vunpack.c.h.b16 %v3657
      %v3744 = vunpack.c.l.b16 %v3658
      %v3745 = vunpack.c.l.b16 %v3659
      %v3746 = vunpack.c.h.b16 %v3659
      %v3747 = vunpack.c.l.b16 %v3660
      %v3748 = vunpack.c.l.b16 %v3661
      %v3749 = vunpack.c.h.b16 %v3661
      %v3750 = vunpack.c.l.b16 %v3662
      %v3751 = vunpack.c.l.b16 %v3663
      %v3752 = vunpack.c.h.b16 %v3663
      %v3753 = vunpack.c.l.b16 %v3664
      %v3754 = vunpack.c.l.b16 %v3665
      %v3755 = vunpack.c.h.b16 %v3665
      %v3756 = vunpack.c.l.b16 %v3666
      %v3757 = vunpack.c.l.b16 %v3667
      %v3758 = vunpack.c.h.b16 %v3667
      %v3759 = vunpack.c.l.b16 %v3668
      %v3760 = vunpack.c.l.b16 %v3669
      %v3761 = vunpack.c.h.b16 %v3669
      %v3762 = vunpack.c.l.b16 %v3670
      %v3763 = vunpack.c.l.b16 %v3671
      %v3764 = vunpack.c.h.b16 %v3671
      %v3765 = vunpack.c.l.b16 %v3672
      %v3766 = vpack.c.b16 %v3739, %v3736
      %v3767 = vpack.c.b16 %v3740, %v3737
      %v3768 = vpack.c.b16 %v3741, %v3738
      %v3769 = vpack.c.b16 %v3745, %v3742
      %v3770 = vpack.c.b16 %v3746, %v3743
      %v3771 = vpack.c.b16 %v3747, %v3744
      %v3772 = vpack.c.b16 %v3751, %v3748
      %v3773 = vpack.c.b16 %v3752, %v3749
      %v3774 = vpack.c.b16 %v3753, %v3750
      %v3775 = vpack.c.b16 %v3757, %v3754
      %v3776 = vpack.c.b16 %v3758, %v3755
      %v3777 = vpack.c.b16 %v3759, %v3756
      %v3778 = vpack.c.b16 %v3763, %v3760
      %v3779 = vpack.c.b16 %v3764, %v3761
      %v3780 = vpack.c.b16 %v3765, %v3762
      %v3827 = vunpack.c.l.b16 %v3673
      %v3828 = vunpack.c.l.b16 %v3674
      %v3829 = vunpack.c.l.b16 %v3675
      %v3830 = vunpack.c.l.b16 %v3676
      %v3831 = vunpack.c.l.b16 %v3677
      %v3832 = vunpack.c.l.b16 %v3678
      %v3833 = vunpack.c.l.b16 %v3679
      %v3834 = vunpack.c.l.b16 %v3680
      %v3835 = vunpack.c.l.b16 %v3681
      %v3836 = vunpack.c.l.b16 %v3682
      %v3837 = vunpack.c.l.b16 %v3683
      %v3838 = vunpack.c.l.b16 %v3684
      %v3839 = vunpack.c.l.b16 %v3685
      %v3840 = vunpack.c.l.b16 %v3686
      %v3841 = vunpack.c.l.b16 %v3687
      %v3842 = vunpack.c.l.b16 %v3688
      %v3843 = vunpack.c.l.b16 %v3689
      %v3844 = vunpack.c.l.b16 %v3690
      %v3845 = vunpack.c.l.b16 %v3691
      %v3846 = vunpack.c.l.b16 %v3692
      %v3847 = vunpack.c.l.b16 %v3693
      %v3848 = vunpack.c.l.b16 %v3694
      %v3849 = vunpack.c.l.b16 %v3695
      %v3850 = vunpack.c.l.b16 %v3696
      %v3851 = vunpack.c.l.b16 %v3697
      %v3852 = vunpack.c.l.b16 %v3698
      %v3853 = vunpack.c.l.b16 %v3699
      %v3854 = vunpack.c.l.b16 %v3700
      %v3855 = vunpack.c.l.b16 %v3701
      %v3856 = vunpack.c.l.b16 %v3702
      %v3857 = vunpack.c.l.b16 %v3703
      %v3858 = vunpack.c.l.b16 %v3704
      %v3859 = vunpack.c.l.b16 %v3705
      %v3860 = vunpack.c.l.b16 %v3706
      %v3861 = vunpack.c.l.b16 %v3707
      %v3862 = vunpack.c.l.b16 %v3708
      %v3863 = vpack.c.b16 %v3828, %v3827
      %v3864 = vpack.c.b16 %v3830, %v3829
      %v3865 = vpack.c.b16 %v3832, %v3831
      %v3866 = vpack.c.b16 %v3834, %v3833
      %v3867 = vpack.c.b16 %v3836, %v3835
      %v3868 = vpack.c.b16 %v3838, %v3837
      %v3869 = vpack.c.b16 %v3840, %v3839
      %v3870 = vpack.c.b16 %v3842, %v3841
      %v3871 = vpack.c.b16 %v3844, %v3843
      %v3872 = vpack.c.b16 %v3846, %v3845
      %v3873 = vpack.c.b16 %v3848, %v3847
      %v3874 = vpack.c.b16 %v3850, %v3849
      %v3875 = vpack.c.b16 %v3852, %v3851
      %v3876 = vpack.c.b16 %v3854, %v3853
      %v3877 = vpack.c.b16 %v3856, %v3855
      %v3878 = vpack.c.b16 %v3858, %v3857
      %v3879 = vpack.c.b16 %v3860, %v3859
      %v3880 = vpack.c.b16 %v3862, %v3861
      %v3900 = vsel %vm1689, %v3768, 0
      %v3903 = vsel %vm1689, %v3771, 0
      %v3906 = vsel %vm1689, %v3774, 0
      %v3909 = vsel %vm1689, %v3777, 0
      %v3912 = vsel %vm1689, %v3780, 0
      %3914 = vmatprep.subr.bf16.mxu0 0
      %3915 = vmatpush1.bf16.msra.mxu0 %v3870
      %3916 = vmatprep.subr.bf16.mxu0 0
      %3917 = vmatpush1.bf16.msra.mxu0 %v3869
      %3918 = vmatprep.subr.bf16.mxu0 0
      %3919 = vmatpush1.bf16.msra.mxu0 %v3868
      %3920 = vmatprep.subr.bf16.mxu0 0
      %3921 = vmatpush1.bf16.msra.mxu0 %v3867
      %3922 = vmatprep.subr.bf16.mxu0 0
      %3923 = vmatpush1.bf16.msra.mxu0 %v3866
      %3924 = vmatprep.subr.bf16.mxu0 0
      %3925 = vmatpush1.bf16.msra.mxu0 %v3865
      %3926 = vmatprep.subr.bf16.mxu0 0
      %3927 = vmatpush1.bf16.msra.mxu0 %v3864
      %3928 = vmatprep.subr.bf16.mxu0 0
      %3929 = vmatpush1.bf16.msra.mxu0 %v3863
      %3930 = vmatprep.subr.bf16.mxu0 0
      %3931 = vmatpush2.bf16.msra.mxu0 %v3878
      %3932 = vmatprep.subr.bf16.mxu0 0
      %3933 = vmatpush2.bf16.msra.mxu0 %v3877
      %3934 = vmatprep.subr.bf16.mxu0 0
      %3935 = vmatpush2.bf16.msra.mxu0 %v3876
      %3936 = vmatprep.subr.bf16.mxu0 0
      %3937 = vmatpush2.bf16.msra.mxu0 %v3875
      %3938 = vmatprep.subr.bf16.mxu0 0
      %3939 = vmatpush2.bf16.msra.mxu0 %v3874
      %3940 = vmatprep.subr.bf16.mxu0 0
      %3941 = vmatpush2.bf16.msra.mxu0 %v3873
      %3942 = vmatprep.subr.bf16.mxu0 0
      %3943 = vmatpush2.bf16.msra.mxu0 %v3872
      %3944 = vmatprep.subr.bf16.mxu0 0
      %3945 = vmatpush2.bf16.msra.mxu0 %v3871
      %3946 = vmatprep.mubr.bf16.mxu0 %v3767
      %3947 = vmatmul.mubr.bf16.gmra.mxu0 %v3766
      %v3948 = vpop.f32.mrf.mxu0
      %v3949 = vadd.f32 %v3714, %v3948
      %v3950 = vpop.f32.mrf.mxu0
      %v3951 = vpop.f32.mrf.mxu0
      %v3952 = vadd.f32 %v3714, %v3951
      %v3953 = vpop.f32.mrf.mxu0
      %3954 = vmatprep.mubr.bf16.mxu0 %v3770
      %3955 = vmatmul.mubr.bf16.gmra.mxu0 %v3769
      %v3956 = vpop.f32.mrf.mxu0
      %v3957 = vadd.f32 %v3714, %v3956
      %v3958 = vpop.f32.mrf.mxu0
      %v3959 = vpop.f32.mrf.mxu0
      %v3960 = vadd.f32 %v3714, %v3959
      %v3961 = vpop.f32.mrf.mxu0
      %3962 = vmatprep.mubr.bf16.mxu0 %v3773
      %3963 = vmatmul.mubr.bf16.gmra.mxu0 %v3772
      %v3964 = vpop.f32.mrf.mxu0
      %v3965 = vadd.f32 %v3714, %v3964
      %v3966 = vpop.f32.mrf.mxu0
      %v3967 = vpop.f32.mrf.mxu0
      %v3968 = vadd.f32 %v3714, %v3967
      %v3969 = vpop.f32.mrf.mxu0
      %3970 = vmatprep.mubr.bf16.mxu0 %v3776
      %3971 = vmatmul.mubr.bf16.gmra.mxu0 %v3775
      %v3972 = vpop.f32.mrf.mxu0
      %v3973 = vadd.f32 %v3714, %v3972
      %v3974 = vpop.f32.mrf.mxu0
      %v3975 = vpop.f32.mrf.mxu0
      %v3976 = vadd.f32 %v3714, %v3975
      %v3977 = vpop.f32.mrf.mxu0
      %3978 = vmatprep.mubr.bf16.mxu0 %v3779
      %3979 = vmatmul.mubr.bf16.gmra.mxu0 %v3778
      %v3980 = vpop.f32.mrf.mxu0
      %v3981 = vadd.f32 %v3714, %v3980
      %v3982 = vpop.f32.mrf.mxu0
      %v3983 = vpop.f32.mrf.mxu0
      %v3984 = vadd.f32 %v3714, %v3983
      %v3985 = vpop.f32.mrf.mxu0
      %3986 = vdwg.mxu0
      %3987 = vmatprep.subr.bf16.mxu0 0
      %3988 = vmatpush1.bf16.msra.mxu0 0
      %3989 = vmatprep.subr.bf16.mxu0 0
      %3990 = vmatpush1.bf16.msra.mxu0 0
      %3991 = vmatprep.subr.bf16.mxu0 0
      %3992 = vmatpush1.bf16.msra.mxu0 0
      %3993 = vmatprep.subr.bf16.mxu0 0
      %3994 = vmatpush1.bf16.msra.mxu0 0
      %3995 = vmatprep.subr.bf16.mxu0 0
      %3996 = vmatpush1.bf16.msra.mxu0 0
      %3997 = vmatprep.subr.bf16.mxu0 0
      %3998 = vmatpush1.bf16.msra.mxu0 0
      %3999 = vmatprep.subr.bf16.mxu0 0
      %4000 = vmatpush1.bf16.msra.mxu0 %v3880
      %4001 = vmatprep.subr.bf16.mxu0 0
      %4002 = vmatpush1.bf16.msra.mxu0 %v3879
      %4003 = vmatprep.subr.bf16.mxu0 0
      %4004 = vmatpush2.bf16.msra.mxu0 0
      %4005 = vmatprep.subr.bf16.mxu0 0
      %4006 = vmatpush2.bf16.msra.mxu0 0
      %4007 = vmatprep.subr.bf16.mxu0 0
      %4008 = vmatpush2.bf16.msra.mxu0 0
      %4009 = vmatprep.subr.bf16.mxu0 0
      %4010 = vmatpush2.bf16.msra.mxu0 0
      %4011 = vmatprep.subr.bf16.mxu0 0
      %4012 = vmatpush2.bf16.msra.mxu0 0
      %4013 = vmatprep.subr.bf16.mxu0 0
      %4014 = vmatpush2.bf16.msra.mxu0 0
      %4015 = vmatprep.subr.bf16.mxu0 0
      %4016 = vmatpush2.bf16.msra.mxu0 0
      %4017 = vmatprep.subr.bf16.mxu0 0
      %4018 = vmatpush2.bf16.msra.mxu0 0
      %4019 = vmatprep.mubr.bf16.mxu0 0
      %4020 = vmatmul.mubr.bf16.gmra.mxu0 %v3900
      %v4021 = vpop.f32.mrf.mxu0
      %v4022 = vadd.f32 %v3949, %v4021
      %v4023 = vpop.f32.mrf.mxu0
      %v4024 = vpop.f32.mrf.mxu0
      %v4025 = vadd.f32 %v3952, %v4024
      %v4026 = vpop.f32.mrf.mxu0
      %4027 = vmatprep.mubr.bf16.mxu0 0
      %4028 = vmatmul.mubr.bf16.gmra.mxu0 %v3903
      %v4029 = vpop.f32.mrf.mxu0
      %v4030 = vadd.f32 %v3957, %v4029
      %v4031 = vpop.f32.mrf.mxu0
      %v4032 = vpop.f32.mrf.mxu0
      %v4033 = vadd.f32 %v3960, %v4032
      %v4034 = vpop.f32.mrf.mxu0
      %4035 = vmatprep.mubr.bf16.mxu0 0
      %4036 = vmatmul.mubr.bf16.gmra.mxu0 %v3906
      %v4037 = vpop.f32.mrf.mxu0
      %v4038 = vadd.f32 %v3965, %v4037
      %v4039 = vpop.f32.mrf.mxu0
      %v4040 = vpop.f32.mrf.mxu0
      %v4041 = vadd.f32 %v3968, %v4040
      %v4042 = vpop.f32.mrf.mxu0
      %4043 = vmatprep.mubr.bf16.mxu0 0
      %4044 = vmatmul.mubr.bf16.gmra.mxu0 %v3909
      %v4045 = vpop.f32.mrf.mxu0
      %v4046 = vadd.f32 %v3973, %v4045
      %v4047 = vpop.f32.mrf.mxu0
      %v4048 = vpop.f32.mrf.mxu0
      %v4049 = vadd.f32 %v3976, %v4048
      %v4050 = vpop.f32.mrf.mxu0
      %4051 = vmatprep.mubr.bf16.mxu0 0
      %4052 = vmatmul.mubr.bf16.gmra.mxu0 %v3912
      %v4053 = vpop.f32.mrf.mxu0
      %v4054 = vadd.f32 %v3981, %v4053
      %v4055 = vpop.f32.mrf.mxu0
      %v4056 = vpop.f32.mrf.mxu0
      %v4057 = vadd.f32 %v3984, %v4056
      %v4058 = vpop.f32.mrf.mxu0
      %4059 = vdwg.mxu0
      %v4060 = vld [vmem:[%s8] sm:$0x1]
      %v4061 = vld [vmem:[%s9] sm:$0x1]
      %v4062 = vmul.f32 %v4022, %v590
      %v4063 = vmul.f32 %v4025, %v591
      %v4064 = vmul.f32 %v4030, %v592
      %v4065 = vmul.f32 %v4033, %v593
      %v4066 = vmul.f32 %v4038, %v594
      %v4067 = vmul.f32 %v4041, %v595
      %v4068 = vmul.f32 %v4046, %v596
      %v4069 = vmul.f32 %v4049, %v597
      %v4070 = vmul.f32 %v4054, %v598
      %v4071 = vmul.f32 %v4057, %v599
      %v4072 = vsel %vm1689, %v4062, 0.0
      %v4073 = vsel %vm1689, %v4063, 0.0
      %v4074 = vadd.f32 %v4072, %v4073
      %v4075 = vsel %vm1689, %v4064, 0.0
      %v4076 = vadd.f32 %v4074, %v4075
      %v4077 = vsel %vm1689, %v4065, 0.0
      %v4078 = vadd.f32 %v4076, %v4077
      %v4079 = vsel %vm1689, %v4066, 0.0
      %v4080 = vadd.f32 %v4078, %v4079
      %v4081 = vsel %vm1689, %v4067, 0.0
      %v4082 = vadd.f32 %v4080, %v4081
      %v4083 = vsel %vm1689, %v4068, 0.0
      %v4084 = vadd.f32 %v4082, %v4083
      %v4085 = vsel %vm1689, %v4069, 0.0
      %v4086 = vadd.f32 %v4084, %v4085
      %v4087 = vsel %vm1689, %v4070, 0.0
      %v4088 = vadd.f32 %v4086, %v4087
      %v4089 = vsel %vm1689, %v4071, 0.0
      %v4090 = vadd.f32 %v4088, %v4089
      %v4091 = vrot.slane %v4090, 4
      %v4092 = vadd.f32 %v4090, %v4091
      %v4093 = vrot.slane %v4092, 2
      %v4094 = vadd.f32 %v4092, %v4093
      %v4095 = vrot.slane %v4094, 1
      %v4096 = vadd.f32 %v4094, %v4095
      %v4097 = vmul.f32 %v4062, %v4022
      %v4098 = vmul.f32 %v4063, %v4025
      %v4099 = vmul.f32 %v4064, %v4030
      %v4100 = vmul.f32 %v4065, %v4033
      %v4101 = vmul.f32 %v4066, %v4038
      %v4102 = vmul.f32 %v4067, %v4041
      %v4103 = vmul.f32 %v4068, %v4046
      %v4104 = vmul.f32 %v4069, %v4049
      %v4105 = vmul.f32 %v4070, %v4054
      %v4106 = vmul.f32 %v4071, %v4057
      %v4107 = vsel %vm1689, %v4097, 0.0
      %v4108 = vsel %vm1689, %v4098, 0.0
      %v4109 = vadd.f32 %v4107, %v4108
      %v4110 = vsel %vm1689, %v4099, 0.0
      %v4111 = vadd.f32 %v4109, %v4110
      %v4112 = vsel %vm1689, %v4100, 0.0
      %v4113 = vadd.f32 %v4111, %v4112
      %v4114 = vsel %vm1689, %v4101, 0.0
      %v4115 = vadd.f32 %v4113, %v4114
      %v4116 = vsel %vm1689, %v4102, 0.0
      %v4117 = vadd.f32 %v4115, %v4116
      %v4118 = vsel %vm1689, %v4103, 0.0
      %v4119 = vadd.f32 %v4117, %v4118
      %v4120 = vsel %vm1689, %v4104, 0.0
      %v4121 = vadd.f32 %v4119, %v4120
      %v4122 = vsel %vm1689, %v4105, 0.0
      %v4123 = vadd.f32 %v4121, %v4122
      %v4124 = vsel %vm1689, %v4106, 0.0
      %v4125 = vadd.f32 %v4123, %v4124
      %v4126 = vrot.slane %v4125, 4
      %v4127 = vadd.f32 %v4125, %v4126
      %v4128 = vrot.slane %v4127, 2
      %v4129 = vadd.f32 %v4127, %v4128
      %v4130 = vrot.slane %v4129, 1
      %v4131 = vadd.f32 %v4129, %v4130
      %v4132 = vmul.f32 %v4096, %v1754
      %v4133 = vsel %vm1756, %v4132, 0.0
      %4134 = vadd.xlane.f32.xlu0 %v4133
      %v4135 = vpop.xlane.xlu0 %4134
      %v4136 = vrot.slane %v4135, 4
      %v4137 = vadd.f32 %v4135, %v4136
      %v4138 = vrot.slane %v4137, 2
      %v4139 = vadd.f32 %v4137, %v4138
      %v4140 = vrot.slane %v4139, 1
      %v4141 = vadd.f32 %v4139, %v4140
      %s4142 = vtos %v4141
      %v4143 = vstv %s4142
      %v4144 = vmul.f32 %v4143, 0.0078125
      %v4145 = vmul.f32 %v4131, %v1754
      %v4146 = vsel %vm1756, %v4145, 0.0
      %4147 = vadd.xlane.f32.xlu0 %v4146
      %v4148 = vpop.xlane.xlu0 %4147
      %v4149 = vrot.slane %v4148, 4
      %v4150 = vadd.f32 %v4148, %v4149
      %v4151 = vrot.slane %v4150, 2
      %v4152 = vadd.f32 %v4150, %v4151
      %v4153 = vrot.slane %v4152, 1
      %v4154 = vadd.f32 %v4152, %v4153
      %s4155 = vtos %v4154
      %v4156 = vstv %s4155
      %v4157 = vmul.f32 %v4156, 0.0078125
      %v4158 = vmul.f32 %v4144, %v4144
      %v4159 = vsub.f32 %v4157, %v4158
      %v4160 = vmax.f32 %v4159, 0.0
      %v4161 = vadd.f32 %v4160, 1e-05
      %v4162 = vrsqrt.pop %v4161
      %v4163 = vmul.f32 %v4144, %v1754
      %v4164 = vadd.f32 %v4163, 0.0
      %v4165 = vmul.f32 %v4162, %v1754
      %v4166 = vadd.f32 %v4165, 0.0
      %v4167 = vmul.f32 %v4096, %v1795
      %v4168 = vsel %vm1756, %v4167, 0.0
      %4169 = vadd.xlane.f32.xlu0 %v4168
      %v4170 = vpop.xlane.xlu0 %4169
      %v4171 = vrot.slane %v4170, 4
      %v4172 = vadd.f32 %v4170, %v4171
      %v4173 = vrot.slane %v4172, 2
      %v4174 = vadd.f32 %v4172, %v4173
      %v4175 = vrot.slane %v4174, 1
      %v4176 = vadd.f32 %v4174, %v4175
      %s4177 = vtos %v4176
      %v4178 = vstv %s4177
      %v4179 = vmul.f32 %v4178, 0.0078125
      %v4180 = vmul.f32 %v4131, %v1795
      %v4181 = vsel %vm1756, %v4180, 0.0
      %4182 = vadd.xlane.f32.xlu0 %v4181
      %v4183 = vpop.xlane.xlu0 %4182
      %v4184 = vrot.slane %v4183, 4
      %v4185 = vadd.f32 %v4183, %v4184
      %v4186 = vrot.slane %v4185, 2
      %v4187 = vadd.f32 %v4185, %v4186
      %v4188 = vrot.slane %v4187, 1
      %v4189 = vadd.f32 %v4187, %v4188
      %s4190 = vtos %v4189
      %v4191 = vstv %s4190
      %v4192 = vmul.f32 %v4191, 0.0078125
      %v4193 = vmul.f32 %v4179, %v4179
      %v4194 = vsub.f32 %v4192, %v4193
      %v4195 = vmax.f32 %v4194, 0.0
      %v4196 = vadd.f32 %v4195, 1e-05
      %v4197 = vrsqrt.pop %v4196
      %v4198 = vmul.f32 %v4179, %v1795
      %v4199 = vadd.f32 %v4164, %v4198
      %v4200 = vmul.f32 %v4197, %v1795
      %v4201 = vadd.f32 %v4166, %v4200
      %v4202 = vmul.f32 %v4096, %v1835
      %v4203 = vsel %vm1756, %v4202, 0.0
      %4204 = vadd.xlane.f32.xlu0 %v4203
      %v4205 = vpop.xlane.xlu0 %4204
      %v4206 = vrot.slane %v4205, 4
      %v4207 = vadd.f32 %v4205, %v4206
      %v4208 = vrot.slane %v4207, 2
      %v4209 = vadd.f32 %v4207, %v4208
      %v4210 = vrot.slane %v4209, 1
      %v4211 = vadd.f32 %v4209, %v4210
      %s4212 = vtos %v4211
      %v4213 = vstv %s4212
      %v4214 = vmul.f32 %v4213, 0.0078125
      %v4215 = vmul.f32 %v4131, %v1835
      %v4216 = vsel %vm1756, %v4215, 0.0
      %4217 = vadd.xlane.f32.xlu0 %v4216
      %v4218 = vpop.xlane.xlu0 %4217
      %v4219 = vrot.slane %v4218, 4
      %v4220 = vadd.f32 %v4218, %v4219
      %v4221 = vrot.slane %v4220, 2
      %v4222 = vadd.f32 %v4220, %v4221
      %v4223 = vrot.slane %v4222, 1
      %v4224 = vadd.f32 %v4222, %v4223
      %s4225 = vtos %v4224
      %v4226 = vstv %s4225
      %v4227 = vmul.f32 %v4226, 0.0078125
      %v4228 = vmul.f32 %v4214, %v4214
      %v4229 = vsub.f32 %v4227, %v4228
      %v4230 = vmax.f32 %v4229, 0.0
      %v4231 = vadd.f32 %v4230, 1e-05
      %v4232 = vrsqrt.pop %v4231
      %v4233 = vmul.f32 %v4214, %v1835
      %v4234 = vadd.f32 %v4199, %v4233
      %v4235 = vmul.f32 %v4232, %v1835
      %v4236 = vadd.f32 %v4201, %v4235
      %v4237 = vmul.f32 %v4096, %v1875
      %v4238 = vsel %vm1756, %v4237, 0.0
      %4239 = vadd.xlane.f32.xlu0 %v4238
      %v4240 = vpop.xlane.xlu0 %4239
      %v4241 = vrot.slane %v4240, 4
      %v4242 = vadd.f32 %v4240, %v4241
      %v4243 = vrot.slane %v4242, 2
      %v4244 = vadd.f32 %v4242, %v4243
      %v4245 = vrot.slane %v4244, 1
      %v4246 = vadd.f32 %v4244, %v4245
      %s4247 = vtos %v4246
      %v4248 = vstv %s4247
      %v4249 = vmul.f32 %v4248, 0.0078125
      %v4250 = vmul.f32 %v4131, %v1875
      %v4251 = vsel %vm1756, %v4250, 0.0
      %4252 = vadd.xlane.f32.xlu0 %v4251
      %v4253 = vpop.xlane.xlu0 %4252
      %v4254 = vrot.slane %v4253, 4
      %v4255 = vadd.f32 %v4253, %v4254
      %v4256 = vrot.slane %v4255, 2
      %v4257 = vadd.f32 %v4255, %v4256
      %v4258 = vrot.slane %v4257, 1
      %v4259 = vadd.f32 %v4257, %v4258
      %s4260 = vtos %v4259
      %v4261 = vstv %s4260
      %v4262 = vmul.f32 %v4261, 0.0078125
      %v4263 = vmul.f32 %v4249, %v4249
      %v4264 = vsub.f32 %v4262, %v4263
      %v4265 = vmax.f32 %v4264, 0.0
      %v4266 = vadd.f32 %v4265, 1e-05
      %v4267 = vrsqrt.pop %v4266
      %v4268 = vmul.f32 %v4249, %v1875
      %v4269 = vadd.f32 %v4234, %v4268
      %v4270 = vmul.f32 %v4267, %v1875
      %v4271 = vadd.f32 %v4236, %v4270
      %v4272 = vmul.f32 %v4096, %v1915
      %v4273 = vsel %vm1756, %v4272, 0.0
      %4274 = vadd.xlane.f32.xlu0 %v4273
      %v4275 = vpop.xlane.xlu0 %4274
      %v4276 = vrot.slane %v4275, 4
      %v4277 = vadd.f32 %v4275, %v4276
      %v4278 = vrot.slane %v4277, 2
      %v4279 = vadd.f32 %v4277, %v4278
      %v4280 = vrot.slane %v4279, 1
      %v4281 = vadd.f32 %v4279, %v4280
      %s4282 = vtos %v4281
      %v4283 = vstv %s4282
      %v4284 = vmul.f32 %v4283, 0.0078125
      %v4285 = vmul.f32 %v4131, %v1915
      %v4286 = vsel %vm1756, %v4285, 0.0
      %4287 = vadd.xlane.f32.xlu0 %v4286
      %v4288 = vpop.xlane.xlu0 %4287
      %v4289 = vrot.slane %v4288, 4
      %v4290 = vadd.f32 %v4288, %v4289
      %v4291 = vrot.slane %v4290, 2
      %v4292 = vadd.f32 %v4290, %v4291
      %v4293 = vrot.slane %v4292, 1
      %v4294 = vadd.f32 %v4292, %v4293
      %s4295 = vtos %v4294
      %v4296 = vstv %s4295
      %v4297 = vmul.f32 %v4296, 0.0078125
      %v4298 = vmul.f32 %v4284, %v4284
      %v4299 = vsub.f32 %v4297, %v4298
      %v4300 = vmax.f32 %v4299, 0.0
      %v4301 = vadd.f32 %v4300, 1e-05
      %v4302 = vrsqrt.pop %v4301
      %v4303 = vmul.f32 %v4284, %v1915
      %v4304 = vadd.f32 %v4269, %v4303
      %v4305 = vmul.f32 %v4302, %v1915
      %v4306 = vadd.f32 %v4271, %v4305
      %v4307 = vmul.f32 %v4096, %v1955
      %v4308 = vsel %vm1756, %v4307, 0.0
      %4309 = vadd.xlane.f32.xlu0 %v4308
      %v4310 = vpop.xlane.xlu0 %4309
      %v4311 = vrot.slane %v4310, 4
      %v4312 = vadd.f32 %v4310, %v4311
      %v4313 = vrot.slane %v4312, 2
      %v4314 = vadd.f32 %v4312, %v4313
      %v4315 = vrot.slane %v4314, 1
      %v4316 = vadd.f32 %v4314, %v4315
      %s4317 = vtos %v4316
      %v4318 = vstv %s4317
      %v4319 = vmul.f32 %v4318, 0.0078125
      %v4320 = vmul.f32 %v4131, %v1955
      %v4321 = vsel %vm1756, %v4320, 0.0
      %4322 = vadd.xlane.f32.xlu0 %v4321
      %v4323 = vpop.xlane.xlu0 %4322
      %v4324 = vrot.slane %v4323, 4
      %v4325 = vadd.f32 %v4323, %v4324
      %v4326 = vrot.slane %v4325, 2
      %v4327 = vadd.f32 %v4325, %v4326
      %v4328 = vrot.slane %v4327, 1
      %v4329 = vadd.f32 %v4327, %v4328
      %s4330 = vtos %v4329
      %v4331 = vstv %s4330
      %v4332 = vmul.f32 %v4331, 0.0078125
      %v4333 = vmul.f32 %v4319, %v4319
      %v4334 = vsub.f32 %v4332, %v4333
      %v4335 = vmax.f32 %v4334, 0.0
      %v4336 = vadd.f32 %v4335, 1e-05
      %v4337 = vrsqrt.pop %v4336
      %v4338 = vmul.f32 %v4319, %v1955
      %v4339 = vadd.f32 %v4304, %v4338
      %v4340 = vmul.f32 %v4337, %v1955
      %v4341 = vadd.f32 %v4306, %v4340
      %v4342 = vmul.f32 %v4096, %v1995
      %v4343 = vsel %vm1756, %v4342, 0.0
      %4344 = vadd.xlane.f32.xlu0 %v4343
      %v4345 = vpop.xlane.xlu0 %4344
      %v4346 = vrot.slane %v4345, 4
      %v4347 = vadd.f32 %v4345, %v4346
      %v4348 = vrot.slane %v4347, 2
      %v4349 = vadd.f32 %v4347, %v4348
      %v4350 = vrot.slane %v4349, 1
      %v4351 = vadd.f32 %v4349, %v4350
      %s4352 = vtos %v4351
      %v4353 = vstv %s4352
      %v4354 = vmul.f32 %v4353, 0.0078125
      %v4355 = vmul.f32 %v4131, %v1995
      %v4356 = vsel %vm1756, %v4355, 0.0
      %4357 = vadd.xlane.f32.xlu0 %v4356
      %v4358 = vpop.xlane.xlu0 %4357
      %v4359 = vrot.slane %v4358, 4
      %v4360 = vadd.f32 %v4358, %v4359
      %v4361 = vrot.slane %v4360, 2
      %v4362 = vadd.f32 %v4360, %v4361
      %v4363 = vrot.slane %v4362, 1
      %v4364 = vadd.f32 %v4362, %v4363
      %s4365 = vtos %v4364
      %v4366 = vstv %s4365
      %v4367 = vmul.f32 %v4366, 0.0078125
      %v4368 = vmul.f32 %v4354, %v4354
      %v4369 = vsub.f32 %v4367, %v4368
      %v4370 = vmax.f32 %v4369, 0.0
      %v4371 = vadd.f32 %v4370, 1e-05
      %v4372 = vrsqrt.pop %v4371
      %v4373 = vmul.f32 %v4354, %v1995
      %v4374 = vadd.f32 %v4339, %v4373
      %v4375 = vmul.f32 %v4372, %v1995
      %v4376 = vadd.f32 %v4341, %v4375
      %v4377 = vmul.f32 %v4096, %v2035
      %v4378 = vsel %vm1756, %v4377, 0.0
      %4379 = vadd.xlane.f32.xlu0 %v4378
      %v4380 = vpop.xlane.xlu0 %4379
      %v4381 = vrot.slane %v4380, 4
      %v4382 = vadd.f32 %v4380, %v4381
      %v4383 = vrot.slane %v4382, 2
      %v4384 = vadd.f32 %v4382, %v4383
      %v4385 = vrot.slane %v4384, 1
      %v4386 = vadd.f32 %v4384, %v4385
      %s4387 = vtos %v4386
      %v4388 = vstv %s4387
      %v4389 = vmul.f32 %v4388, 0.0078125
      %v4390 = vmul.f32 %v4131, %v2035
      %v4391 = vsel %vm1756, %v4390, 0.0
      %4392 = vadd.xlane.f32.xlu0 %v4391
      %v4393 = vpop.xlane.xlu0 %4392
      %v4394 = vrot.slane %v4393, 4
      %v4395 = vadd.f32 %v4393, %v4394
      %v4396 = vrot.slane %v4395, 2
      %v4397 = vadd.f32 %v4395, %v4396
      %v4398 = vrot.slane %v4397, 1
      %v4399 = vadd.f32 %v4397, %v4398
      %s4400 = vtos %v4399
      %v4401 = vstv %s4400
      %v4402 = vmul.f32 %v4401, 0.0078125
      %v4403 = vmul.f32 %v4389, %v4389
      %v4404 = vsub.f32 %v4402, %v4403
      %v4405 = vmax.f32 %v4404, 0.0
      %v4406 = vadd.f32 %v4405, 1e-05
      %v4407 = vrsqrt.pop %v4406
      %v4408 = vmul.f32 %v4389, %v2035
      %v4409 = vadd.f32 %v4374, %v4408
      %v4410 = vmul.f32 %v4407, %v2035
      %v4411 = vadd.f32 %v4376, %v4410
      %v4412 = vmul.f32 %v4096, %v2075
      %v4413 = vsel %vm1756, %v4412, 0.0
      %4414 = vadd.xlane.f32.xlu0 %v4413
      %v4415 = vpop.xlane.xlu0 %4414
      %v4416 = vrot.slane %v4415, 4
      %v4417 = vadd.f32 %v4415, %v4416
      %v4418 = vrot.slane %v4417, 2
      %v4419 = vadd.f32 %v4417, %v4418
      %v4420 = vrot.slane %v4419, 1
      %v4421 = vadd.f32 %v4419, %v4420
      %s4422 = vtos %v4421
      %v4423 = vstv %s4422
      %v4424 = vmul.f32 %v4423, 0.0078125
      %v4425 = vmul.f32 %v4131, %v2075
      %v4426 = vsel %vm1756, %v4425, 0.0
      %4427 = vadd.xlane.f32.xlu0 %v4426
      %v4428 = vpop.xlane.xlu0 %4427
      %v4429 = vrot.slane %v4428, 4
      %v4430 = vadd.f32 %v4428, %v4429
      %v4431 = vrot.slane %v4430, 2
      %v4432 = vadd.f32 %v4430, %v4431
      %v4433 = vrot.slane %v4432, 1
      %v4434 = vadd.f32 %v4432, %v4433
      %s4435 = vtos %v4434
      %v4436 = vstv %s4435
      %v4437 = vmul.f32 %v4436, 0.0078125
      %v4438 = vmul.f32 %v4424, %v4424
      %v4439 = vsub.f32 %v4437, %v4438
      %v4440 = vmax.f32 %v4439, 0.0
      %v4441 = vadd.f32 %v4440, 1e-05
      %v4442 = vrsqrt.pop %v4441
      %v4443 = vmul.f32 %v4424, %v2075
      %v4444 = vadd.f32 %v4409, %v4443
      %v4445 = vmul.f32 %v4442, %v2075
      %v4446 = vadd.f32 %v4411, %v4445
      %v4447 = vmul.f32 %v4096, %v2115
      %v4448 = vsel %vm1756, %v4447, 0.0
      %4449 = vadd.xlane.f32.xlu0 %v4448
      %v4450 = vpop.xlane.xlu0 %4449
      %v4451 = vrot.slane %v4450, 4
      %v4452 = vadd.f32 %v4450, %v4451
      %v4453 = vrot.slane %v4452, 2
      %v4454 = vadd.f32 %v4452, %v4453
      %v4455 = vrot.slane %v4454, 1
      %v4456 = vadd.f32 %v4454, %v4455
      %s4457 = vtos %v4456
      %v4458 = vstv %s4457
      %v4459 = vmul.f32 %v4458, 0.0078125
      %v4460 = vmul.f32 %v4131, %v2115
      %v4461 = vsel %vm1756, %v4460, 0.0
      %4462 = vadd.xlane.f32.xlu0 %v4461
      %v4463 = vpop.xlane.xlu0 %4462
      %v4464 = vrot.slane %v4463, 4
      %v4465 = vadd.f32 %v4463, %v4464
      %v4466 = vrot.slane %v4465, 2
      %v4467 = vadd.f32 %v4465, %v4466
      %v4468 = vrot.slane %v4467, 1
      %v4469 = vadd.f32 %v4467, %v4468
      %s4470 = vtos %v4469
      %v4471 = vstv %s4470
      %v4472 = vmul.f32 %v4471, 0.0078125
      %v4473 = vmul.f32 %v4459, %v4459
      %v4474 = vsub.f32 %v4472, %v4473
      %v4475 = vmax.f32 %v4474, 0.0
      %v4476 = vadd.f32 %v4475, 1e-05
      %v4477 = vrsqrt.pop %v4476
      %v4478 = vmul.f32 %v4459, %v2115
      %v4479 = vadd.f32 %v4444, %v4478
      %v4480 = vmul.f32 %v4477, %v2115
      %v4481 = vadd.f32 %v4446, %v4480
      %v4482 = vmul.f32 %v4096, %v2155
      %v4483 = vsel %vm1756, %v4482, 0.0
      %4484 = vadd.xlane.f32.xlu0 %v4483
      %v4485 = vpop.xlane.xlu0 %4484
      %v4486 = vrot.slane %v4485, 4
      %v4487 = vadd.f32 %v4485, %v4486
      %v4488 = vrot.slane %v4487, 2
      %v4489 = vadd.f32 %v4487, %v4488
      %v4490 = vrot.slane %v4489, 1
      %v4491 = vadd.f32 %v4489, %v4490
      %s4492 = vtos %v4491
      %v4493 = vstv %s4492
      %v4494 = vmul.f32 %v4493, 0.0078125
      %v4495 = vmul.f32 %v4131, %v2155
      %v4496 = vsel %vm1756, %v4495, 0.0
      %4497 = vadd.xlane.f32.xlu0 %v4496
      %v4498 = vpop.xlane.xlu0 %4497
      %v4499 = vrot.slane %v4498, 4
      %v4500 = vadd.f32 %v4498, %v4499
      %v4501 = vrot.slane %v4500, 2
      %v4502 = vadd.f32 %v4500, %v4501
      %v4503 = vrot.slane %v4502, 1
      %v4504 = vadd.f32 %v4502, %v4503
      %s4505 = vtos %v4504
      %v4506 = vstv %s4505
      %v4507 = vmul.f32 %v4506, 0.0078125
      %v4508 = vmul.f32 %v4494, %v4494
      %v4509 = vsub.f32 %v4507, %v4508
      %v4510 = vmax.f32 %v4509, 0.0
      %v4511 = vadd.f32 %v4510, 1e-05
      %v4512 = vrsqrt.pop %v4511
      %v4513 = vmul.f32 %v4494, %v2155
      %v4514 = vadd.f32 %v4479, %v4513
      %v4515 = vmul.f32 %v4512, %v2155
      %v4516 = vadd.f32 %v4481, %v4515
      %v4517 = vmul.f32 %v4096, %v2195
      %v4518 = vsel %vm1756, %v4517, 0.0
      %4519 = vadd.xlane.f32.xlu0 %v4518
      %v4520 = vpop.xlane.xlu0 %4519
      %v4521 = vrot.slane %v4520, 4
      %v4522 = vadd.f32 %v4520, %v4521
      %v4523 = vrot.slane %v4522, 2
      %v4524 = vadd.f32 %v4522, %v4523
      %v4525 = vrot.slane %v4524, 1
      %v4526 = vadd.f32 %v4524, %v4525
      %s4527 = vtos %v4526
      %v4528 = vstv %s4527
      %v4529 = vmul.f32 %v4528, 0.0078125
      %v4530 = vmul.f32 %v4131, %v2195
      %v4531 = vsel %vm1756, %v4530, 0.0
      %4532 = vadd.xlane.f32.xlu0 %v4531
      %v4533 = vpop.xlane.xlu0 %4532
      %v4534 = vrot.slane %v4533, 4
      %v4535 = vadd.f32 %v4533, %v4534
      %v4536 = vrot.slane %v4535, 2
      %v4537 = vadd.f32 %v4535, %v4536
      %v4538 = vrot.slane %v4537, 1
      %v4539 = vadd.f32 %v4537, %v4538
      %s4540 = vtos %v4539
      %v4541 = vstv %s4540
      %v4542 = vmul.f32 %v4541, 0.0078125
      %v4543 = vmul.f32 %v4529, %v4529
      %v4544 = vsub.f32 %v4542, %v4543
      %v4545 = vmax.f32 %v4544, 0.0
      %v4546 = vadd.f32 %v4545, 1e-05
      %v4547 = vrsqrt.pop %v4546
      %v4548 = vmul.f32 %v4529, %v2195
      %v4549 = vadd.f32 %v4514, %v4548
      %v4550 = vmul.f32 %v4547, %v2195
      %v4551 = vadd.f32 %v4516, %v4550
      %v4552 = vmul.f32 %v4096, %v2235
      %v4553 = vsel %vm1756, %v4552, 0.0
      %4554 = vadd.xlane.f32.xlu0 %v4553
      %v4555 = vpop.xlane.xlu0 %4554
      %v4556 = vrot.slane %v4555, 4
      %v4557 = vadd.f32 %v4555, %v4556
      %v4558 = vrot.slane %v4557, 2
      %v4559 = vadd.f32 %v4557, %v4558
      %v4560 = vrot.slane %v4559, 1
      %v4561 = vadd.f32 %v4559, %v4560
      %s4562 = vtos %v4561
      %v4563 = vstv %s4562
      %v4564 = vmul.f32 %v4563, 0.0078125
      %v4565 = vmul.f32 %v4131, %v2235
      %v4566 = vsel %vm1756, %v4565, 0.0
      %4567 = vadd.xlane.f32.xlu0 %v4566
      %v4568 = vpop.xlane.xlu0 %4567
      %v4569 = vrot.slane %v4568, 4
      %v4570 = vadd.f32 %v4568, %v4569
      %v4571 = vrot.slane %v4570, 2
      %v4572 = vadd.f32 %v4570, %v4571
      %v4573 = vrot.slane %v4572, 1
      %v4574 = vadd.f32 %v4572, %v4573
      %s4575 = vtos %v4574
      %v4576 = vstv %s4575
      %v4577 = vmul.f32 %v4576, 0.0078125
      %v4578 = vmul.f32 %v4564, %v4564
      %v4579 = vsub.f32 %v4577, %v4578
      %v4580 = vmax.f32 %v4579, 0.0
      %v4581 = vadd.f32 %v4580, 1e-05
      %v4582 = vrsqrt.pop %v4581
      %v4583 = vmul.f32 %v4564, %v2235
      %v4584 = vadd.f32 %v4549, %v4583
      %v4585 = vmul.f32 %v4582, %v2235
      %v4586 = vadd.f32 %v4551, %v4585
      %v4587 = vmul.f32 %v4096, %v2275
      %v4588 = vsel %vm1756, %v4587, 0.0
      %4589 = vadd.xlane.f32.xlu0 %v4588
      %v4590 = vpop.xlane.xlu0 %4589
      %v4591 = vrot.slane %v4590, 4
      %v4592 = vadd.f32 %v4590, %v4591
      %v4593 = vrot.slane %v4592, 2
      %v4594 = vadd.f32 %v4592, %v4593
      %v4595 = vrot.slane %v4594, 1
      %v4596 = vadd.f32 %v4594, %v4595
      %s4597 = vtos %v4596
      %v4598 = vstv %s4597
      %v4599 = vmul.f32 %v4598, 0.0078125
      %v4600 = vmul.f32 %v4131, %v2275
      %v4601 = vsel %vm1756, %v4600, 0.0
      %4602 = vadd.xlane.f32.xlu0 %v4601
      %v4603 = vpop.xlane.xlu0 %4602
      %v4604 = vrot.slane %v4603, 4
      %v4605 = vadd.f32 %v4603, %v4604
      %v4606 = vrot.slane %v4605, 2
      %v4607 = vadd.f32 %v4605, %v4606
      %v4608 = vrot.slane %v4607, 1
      %v4609 = vadd.f32 %v4607, %v4608
      %s4610 = vtos %v4609
      %v4611 = vstv %s4610
      %v4612 = vmul.f32 %v4611, 0.0078125
      %v4613 = vmul.f32 %v4599, %v4599
      %v4614 = vsub.f32 %v4612, %v4613
      %v4615 = vmax.f32 %v4614, 0.0
      %v4616 = vadd.f32 %v4615, 1e-05
      %v4617 = vrsqrt.pop %v4616
      %v4618 = vmul.f32 %v4599, %v2275
      %v4619 = vadd.f32 %v4584, %v4618
      %v4620 = vmul.f32 %v4617, %v2275
      %v4621 = vadd.f32 %v4586, %v4620
      %v4622 = vmul.f32 %v4096, %v2315
      %v4623 = vsel %vm1756, %v4622, 0.0
      %4624 = vadd.xlane.f32.xlu0 %v4623
      %v4625 = vpop.xlane.xlu0 %4624
      %v4626 = vrot.slane %v4625, 4
      %v4627 = vadd.f32 %v4625, %v4626
      %v4628 = vrot.slane %v4627, 2
      %v4629 = vadd.f32 %v4627, %v4628
      %v4630 = vrot.slane %v4629, 1
      %v4631 = vadd.f32 %v4629, %v4630
      %s4632 = vtos %v4631
      %v4633 = vstv %s4632
      %v4634 = vmul.f32 %v4633, 0.0078125
      %v4635 = vmul.f32 %v4131, %v2315
      %v4636 = vsel %vm1756, %v4635, 0.0
      %4637 = vadd.xlane.f32.xlu0 %v4636
      %v4638 = vpop.xlane.xlu0 %4637
      %v4639 = vrot.slane %v4638, 4
      %v4640 = vadd.f32 %v4638, %v4639
      %v4641 = vrot.slane %v4640, 2
      %v4642 = vadd.f32 %v4640, %v4641
      %v4643 = vrot.slane %v4642, 1
      %v4644 = vadd.f32 %v4642, %v4643
      %s4645 = vtos %v4644
      %v4646 = vstv %s4645
      %v4647 = vmul.f32 %v4646, 0.0078125
      %v4648 = vmul.f32 %v4634, %v4634
      %v4649 = vsub.f32 %v4647, %v4648
      %v4650 = vmax.f32 %v4649, 0.0
      %v4651 = vadd.f32 %v4650, 1e-05
      %v4652 = vrsqrt.pop %v4651
      %v4653 = vmul.f32 %v4634, %v2315
      %v4654 = vadd.f32 %v4619, %v4653
      %v4655 = vmul.f32 %v4652, %v2315
      %v4656 = vadd.f32 %v4621, %v4655
      %v4657 = vmul.f32 %v4096, %v2355
      %v4658 = vsel %vm1756, %v4657, 0.0
      %4659 = vadd.xlane.f32.xlu0 %v4658
      %v4660 = vpop.xlane.xlu0 %4659
      %v4661 = vrot.slane %v4660, 4
      %v4662 = vadd.f32 %v4660, %v4661
      %v4663 = vrot.slane %v4662, 2
      %v4664 = vadd.f32 %v4662, %v4663
      %v4665 = vrot.slane %v4664, 1
      %v4666 = vadd.f32 %v4664, %v4665
      %s4667 = vtos %v4666
      %v4668 = vstv %s4667
      %v4669 = vmul.f32 %v4668, 0.0078125
      %v4670 = vmul.f32 %v4131, %v2355
      %v4671 = vsel %vm1756, %v4670, 0.0
      %4672 = vadd.xlane.f32.xlu0 %v4671
      %v4673 = vpop.xlane.xlu0 %4672
      %v4674 = vrot.slane %v4673, 4
      %v4675 = vadd.f32 %v4673, %v4674
      %v4676 = vrot.slane %v4675, 2
      %v4677 = vadd.f32 %v4675, %v4676
      %v4678 = vrot.slane %v4677, 1
      %v4679 = vadd.f32 %v4677, %v4678
      %s4680 = vtos %v4679
      %v4681 = vstv %s4680
      %v4682 = vmul.f32 %v4681, 0.0078125
      %v4683 = vmul.f32 %v4669, %v4669
      %v4684 = vsub.f32 %v4682, %v4683
      %v4685 = vmax.f32 %v4684, 0.0
      %v4686 = vadd.f32 %v4685, 1e-05
      %v4687 = vrsqrt.pop %v4686
      %v4688 = vmul.f32 %v4669, %v2355
      %v4689 = vadd.f32 %v4654, %v4688
      %v4690 = vmul.f32 %v4687, %v2355
      %v4691 = vadd.f32 %v4656, %v4690
      %v4692 = vsub.f32 %v4022, %v4689
      %v4693 = vsub.f32 %v4025, %v4689
      %v4694 = vsub.f32 %v4030, %v4689
      %v4695 = vsub.f32 %v4033, %v4689
      %v4696 = vsub.f32 %v4038, %v4689
      %v4697 = vsub.f32 %v4041, %v4689
      %v4698 = vsub.f32 %v4046, %v4689
      %v4699 = vsub.f32 %v4049, %v4689
      %v4700 = vsub.f32 %v4054, %v4689
      %v4701 = vsub.f32 %v4057, %v4689
      %v4702 = vmul.f32 %v4691, %v4060
      %v4703 = vlaneseq
      %v4704 = vshrl.u32 %v4703, 7
      %v4705 = vsub.s32 0, %v4704
      %v4706 = vrot.slane %v4702, %v4705
      %v4707 = vmul.f32 %v4692, %v4706
      %v4708 = vmul.f32 %v4693, %v4706
      %v4709 = vmul.f32 %v4694, %v4706
      %v4710 = vmul.f32 %v4695, %v4706
      %v4711 = vmul.f32 %v4696, %v4706
      %v4712 = vmul.f32 %v4697, %v4706
      %v4713 = vmul.f32 %v4698, %v4706
      %v4714 = vmul.f32 %v4699, %v4706
      %v4715 = vmul.f32 %v4700, %v4706
      %v4716 = vmul.f32 %v4701, %v4706
      %v4718 = vlaneseq
      %v4719 = vshrl.u32 %v4718, 7
      %v4720 = vsub.s32 0, %v4719
      %v4721 = vrot.slane %v4061, %v4720
      %v4723 = vadd.f32 %v4707, %v4721
      %v4724 = vadd.f32 %v4708, %v4721
      %v4725 = vadd.f32 %v4709, %v4721
      %v4726 = vadd.f32 %v4710, %v4721
      %v4727 = vadd.f32 %v4711, %v4721
      %v4728 = vadd.f32 %v4712, %v4721
      %v4729 = vadd.f32 %v4713, %v4721
      %v4730 = vadd.f32 %v4714, %v4721
      %v4731 = vadd.f32 %v4715, %v4721
      %v4732 = vadd.f32 %v4716, %v4721
      %vm4733 = vcmp.gt.f32.partialorder %v4723, 0.0
      %vm4734 = vcmp.gt.f32.partialorder %v4724, 0.0
      %vm4735 = vcmp.gt.f32.partialorder %v4725, 0.0
      %vm4736 = vcmp.gt.f32.partialorder %v4726, 0.0
      %vm4737 = vcmp.gt.f32.partialorder %v4727, 0.0
      %vm4738 = vcmp.gt.f32.partialorder %v4728, 0.0
      %vm4739 = vcmp.gt.f32.partialorder %v4729, 0.0
      %vm4740 = vcmp.gt.f32.partialorder %v4730, 0.0
      %vm4741 = vcmp.gt.f32.partialorder %v4731, 0.0
      %vm4742 = vcmp.gt.f32.partialorder %v4732, 0.0
      %v4743 = vmul.f32 %v4723, 1.442695
      %v4744 = vpow.pop %v4743
      %v4745 = vmul.f32 %v4724, 1.442695
      %v4746 = vpow.pop %v4745
      %v4747 = vmul.f32 %v4725, 1.442695
      %v4748 = vpow.pop %v4747
      %v4749 = vmul.f32 %v4726, 1.442695
      %v4750 = vpow.pop %v4749
      %v4751 = vmul.f32 %v4727, 1.442695
      %v4752 = vpow.pop %v4751
      %v4753 = vmul.f32 %v4728, 1.442695
      %v4754 = vpow.pop %v4753
      %v4755 = vmul.f32 %v4729, 1.442695
      %v4756 = vpow.pop %v4755
      %v4757 = vmul.f32 %v4730, 1.442695
      %v4758 = vpow.pop %v4757
      %v4759 = vmul.f32 %v4731, 1.442695
      %v4760 = vpow.pop %v4759
      %v4761 = vmul.f32 %v4732, 1.442695
      %v4762 = vpow.pop %v4761
      %v4763 = vsub.f32 %v4744, 1.0
      %v4764 = vsub.f32 %v4746, 1.0
      %v4765 = vsub.f32 %v4748, 1.0
      %v4766 = vsub.f32 %v4750, 1.0
      %v4767 = vsub.f32 %v4752, 1.0
      %v4768 = vsub.f32 %v4754, 1.0
      %v4769 = vsub.f32 %v4756, 1.0
      %v4770 = vsub.f32 %v4758, 1.0
      %v4771 = vsub.f32 %v4760, 1.0
      %v4772 = vsub.f32 %v4762, 1.0
      %v4773 = vsel %vm4733, %v4723, %v4763
      %v4774 = vsel %vm4734, %v4724, %v4764
      %v4775 = vsel %vm4735, %v4725, %v4765
      %v4776 = vsel %vm4736, %v4726, %v4766
      %v4777 = vsel %vm4737, %v4727, %v4767
      %v4778 = vsel %vm4738, %v4728, %v4768
      %v4779 = vsel %vm4739, %v4729, %v4769
      %v4780 = vsel %vm4740, %v4730, %v4770
      %v4781 = vsel %vm4741, %v4731, %v4771
      %v4782 = vsel %vm4742, %v4732, %v4772
      %v4783 = vld [vmem:[%s11] sm:$0x1]
      %v4785 = vlaneseq
      %v4786 = vshrl.u32 %v4785, 7
      %v4787 = vsub.s32 0, %v4786
      %v4788 = vrot.slane %v4783, %v4787
      %v4790 = vadd.f32 %v4773, %v4788
      %v4791 = vadd.f32 %v4774, %v4788
      %v4792 = vadd.f32 %v4775, %v4788
      %v4793 = vadd.f32 %v4776, %v4788
      %v4794 = vadd.f32 %v4777, %v4788
      %v4795 = vadd.f32 %v4778, %v4788
      %v4796 = vadd.f32 %v4779, %v4788
      %v4797 = vadd.f32 %v4780, %v4788
      %v4798 = vadd.f32 %v4781, %v4788
      %v4799 = vadd.f32 %v4782, %v4788
      %v4800 = vld [vmem:[%s482] sm:$0xf]
      %v4801 = vld [vmem:[%s482 + $0x4] sm:$0xf]
      %v4802 = vld [vmem:[%s482 + $0x8] sm:$0xf]
      %v4803 = vld [vmem:[%s482 + $0xc] sm:$0xf]
      %v4804 = vld [vmem:[%s482 + $0x10] sm:$0xf]
      %v4805 = vld [vmem:[%s482 + $0x14] sm:$0xf]
      %v4806 = vld [vmem:[%s482 + $0x18] sm:$0xf]
      %v4807 = vld [vmem:[%s482 + $0x1c] sm:$0xf]
      %v4808 = vld [vmem:[%s482 + $0x20] sm:$0xf]
      %v4809 = vld [vmem:[%s482 + $0x24] sm:$0xf]
      %v4810 = vld [vmem:[%s10] sm:$0xf]
      %v4811 = vld [vmem:[%s10 + $0x4] sm:$0xf]
      %v4822 = vunpack.c.l.b16 %v4800
      %v4823 = vunpack.c.l.b16 %v4801
      %v4824 = vunpack.c.l.b16 %v4802
      %v4825 = vunpack.c.l.b16 %v4803
      %v4826 = vunpack.c.l.b16 %v4804
      %v4827 = vunpack.c.l.b16 %v4805
      %v4828 = vunpack.c.l.b16 %v4806
      %v4829 = vunpack.c.l.b16 %v4807
      %v4830 = vunpack.c.l.b16 %v4808
      %v4831 = vunpack.c.l.b16 %v4809
      %v4832 = vpack.c.b16 %v4823, %v4822
      %v4833 = vpack.c.b16 %v4825, %v4824
      %v4834 = vpack.c.b16 %v4827, %v4826
      %v4835 = vpack.c.b16 %v4829, %v4828
      %v4836 = vpack.c.b16 %v4831, %v4830
      %v4839 = vunpack.c.l.b16 %v4810
      %v4840 = vunpack.c.l.b16 %v4811
      %v4841 = vpack.c.b16 %v4840, %v4839
      %v4844 = vsel %vm1588, %v4832, 0
      %v4847 = vsel %vm1588, %v4833, 0
      %v4850 = vsel %vm1588, %v4834, 0
      %v4853 = vsel %vm1588, %v4835, 0
      %v4856 = vsel %vm1588, %v4836, 0
      %4858 = vmatprep.subr.bf16.mxu0 0
      %4859 = vmatpush1.bf16.msra.mxu0 0
      %4860 = vmatprep.subr.bf16.mxu0 0
      %4861 = vmatpush1.bf16.msra.mxu0 0
      %4862 = vmatprep.subr.bf16.mxu0 0
      %4863 = vmatpush1.bf16.msra.mxu0 0
      %4864 = vmatprep.subr.bf16.mxu0 0
      %4865 = vmatpush1.bf16.msra.mxu0 0
      %4866 = vmatprep.subr.bf16.mxu0 0
      %4867 = vmatpush1.bf16.msra.mxu0 0
      %4868 = vmatprep.subr.bf16.mxu0 0
      %4869 = vmatpush1.bf16.msra.mxu0 0
      %4870 = vmatprep.subr.bf16.mxu0 0
      %4871 = vmatpush1.bf16.msra.mxu0 0
      %4872 = vmatprep.subr.bf16.mxu0 0
      %4873 = vmatpush1.bf16.msra.mxu0 %v4841
      %4874 = vmatprep.subr.bf16.mxu0 0
      %4875 = vmatpush2.bf16.msra.mxu0 0
      %4876 = vmatprep.subr.bf16.mxu0 0
      %4877 = vmatpush2.bf16.msra.mxu0 0
      %4878 = vmatprep.subr.bf16.mxu0 0
      %4879 = vmatpush2.bf16.msra.mxu0 0
      %4880 = vmatprep.subr.bf16.mxu0 0
      %4881 = vmatpush2.bf16.msra.mxu0 0
      %4882 = vmatprep.subr.bf16.mxu0 0
      %4883 = vmatpush2.bf16.msra.mxu0 0
      %4884 = vmatprep.subr.bf16.mxu0 0
      %4885 = vmatpush2.bf16.msra.mxu0 0
      %4886 = vmatprep.subr.bf16.mxu0 0
      %4887 = vmatpush2.bf16.msra.mxu0 0
      %4888 = vmatprep.subr.bf16.mxu0 0
      %4889 = vmatpush2.bf16.msra.mxu0 0
      %4890 = vmatprep.mubr.bf16.mxu0 0
      %4891 = vmatmul.mubr.bf16.gmra.mxu0 %v4844
      %v4892 = vpop.f32.mrf.mxu0
      %v4893 = vadd.f32 0.0, %v4892
      %v4894 = vpop.f32.mrf.mxu0
      %v4895 = vpop.f32.mrf.mxu0
      %v4896 = vadd.f32 0.0, %v4895
      %v4897 = vpop.f32.mrf.mxu0
      %4898 = vmatprep.mubr.bf16.mxu0 0
      %4899 = vmatmul.mubr.bf16.gmra.mxu0 %v4847
      %v4900 = vpop.f32.mrf.mxu0
      %v4901 = vadd.f32 0.0, %v4900
      %v4902 = vpop.f32.mrf.mxu0
      %v4903 = vpop.f32.mrf.mxu0
      %v4904 = vadd.f32 0.0, %v4903
      %v4905 = vpop.f32.mrf.mxu0
      %4906 = vmatprep.mubr.bf16.mxu0 0
      %4907 = vmatmul.mubr.bf16.gmra.mxu0 %v4850
      %v4908 = vpop.f32.mrf.mxu0
      %v4909 = vadd.f32 0.0, %v4908
      %v4910 = vpop.f32.mrf.mxu0
      %v4911 = vpop.f32.mrf.mxu0
      %v4912 = vadd.f32 0.0, %v4911
      %v4913 = vpop.f32.mrf.mxu0
      %4914 = vmatprep.mubr.bf16.mxu0 0
      %4915 = vmatmul.mubr.bf16.gmra.mxu0 %v4853
      %v4916 = vpop.f32.mrf.mxu0
      %v4917 = vadd.f32 0.0, %v4916
      %v4918 = vpop.f32.mrf.mxu0
      %v4919 = vpop.f32.mrf.mxu0
      %v4920 = vadd.f32 0.0, %v4919
      %v4921 = vpop.f32.mrf.mxu0
      %4922 = vmatprep.mubr.bf16.mxu0 0
      %4923 = vmatmul.mubr.bf16.gmra.mxu0 %v4856
      %v4924 = vpop.f32.mrf.mxu0
      %v4925 = vadd.f32 0.0, %v4924
      %v4926 = vpop.f32.mrf.mxu0
      %v4927 = vpop.f32.mrf.mxu0
      %v4928 = vadd.f32 0.0, %v4927
      %v4929 = vpop.f32.mrf.mxu0
      %4930 = vdwg.mxu0
      %v4931 = vadd.f32 %v4790, %v4893
      %v4932 = vadd.f32 %v4791, %v4896
      %v4933 = vadd.f32 %v4792, %v4901
      %v4934 = vadd.f32 %v4793, %v4904
      %v4935 = vadd.f32 %v4794, %v4909
      %v4936 = vadd.f32 %v4795, %v4912
      %v4937 = vadd.f32 %v4796, %v4917
      %v4938 = vadd.f32 %v4797, %v4920
      %v4939 = vadd.f32 %v4798, %v4925
      %v4940 = vadd.f32 %v4799, %v4928
      %v4941 = vld [vmem:[%s12] sm:$0x1]
      %v4942 = vld [vmem:[%s13] sm:$0x1]
      %v4943 = vmul.f32 %v4931, %v590
      %v4944 = vmul.f32 %v4932, %v591
      %v4945 = vmul.f32 %v4933, %v592
      %v4946 = vmul.f32 %v4934, %v593
      %v4947 = vmul.f32 %v4935, %v594
      %v4948 = vmul.f32 %v4936, %v595
      %v4949 = vmul.f32 %v4937, %v596
      %v4950 = vmul.f32 %v4938, %v597
      %v4951 = vmul.f32 %v4939, %v598
      %v4952 = vmul.f32 %v4940, %v599
      %v4953 = vsel %vm1689, %v4943, 0.0
      %v4954 = vsel %vm1689, %v4944, 0.0
      %v4955 = vadd.f32 %v4953, %v4954
      %v4956 = vsel %vm1689, %v4945, 0.0
      %v4957 = vadd.f32 %v4955, %v4956
      %v4958 = vsel %vm1689, %v4946, 0.0
      %v4959 = vadd.f32 %v4957, %v4958
      %v4960 = vsel %vm1689, %v4947, 0.0
      %v4961 = vadd.f32 %v4959, %v4960
      %v4962 = vsel %vm1689, %v4948, 0.0
      %v4963 = vadd.f32 %v4961, %v4962
      %v4964 = vsel %vm1689, %v4949, 0.0
      %v4965 = vadd.f32 %v4963, %v4964
      %v4966 = vsel %vm1689, %v4950, 0.0
      %v4967 = vadd.f32 %v4965, %v4966
      %v4968 = vsel %vm1689, %v4951, 0.0
      %v4969 = vadd.f32 %v4967, %v4968
      %v4970 = vsel %vm1689, %v4952, 0.0
      %v4971 = vadd.f32 %v4969, %v4970
      %v4972 = vrot.slane %v4971, 4
      %v4973 = vadd.f32 %v4971, %v4972
      %v4974 = vrot.slane %v4973, 2
      %v4975 = vadd.f32 %v4973, %v4974
      %v4976 = vrot.slane %v4975, 1
      %v4977 = vadd.f32 %v4975, %v4976
      %v4978 = vmul.f32 %v4943, %v4931
      %v4979 = vmul.f32 %v4944, %v4932
      %v4980 = vmul.f32 %v4945, %v4933
      %v4981 = vmul.f32 %v4946, %v4934
      %v4982 = vmul.f32 %v4947, %v4935
      %v4983 = vmul.f32 %v4948, %v4936
      %v4984 = vmul.f32 %v4949, %v4937
      %v4985 = vmul.f32 %v4950, %v4938
      %v4986 = vmul.f32 %v4951, %v4939
      %v4987 = vmul.f32 %v4952, %v4940
      %v4988 = vsel %vm1689, %v4978, 0.0
      %v4989 = vsel %vm1689, %v4979, 0.0
      %v4990 = vadd.f32 %v4988, %v4989
      %v4991 = vsel %vm1689, %v4980, 0.0
      %v4992 = vadd.f32 %v4990, %v4991
      %v4993 = vsel %vm1689, %v4981, 0.0
      %v4994 = vadd.f32 %v4992, %v4993
      %v4995 = vsel %vm1689, %v4982, 0.0
      %v4996 = vadd.f32 %v4994, %v4995
      %v4997 = vsel %vm1689, %v4983, 0.0
      %v4998 = vadd.f32 %v4996, %v4997
      %v4999 = vsel %vm1689, %v4984, 0.0
      %v5000 = vadd.f32 %v4998, %v4999
      %v5001 = vsel %vm1689, %v4985, 0.0
      %v5002 = vadd.f32 %v5000, %v5001
      %v5003 = vsel %vm1689, %v4986, 0.0
      %v5004 = vadd.f32 %v5002, %v5003
      %v5005 = vsel %vm1689, %v4987, 0.0
      %v5006 = vadd.f32 %v5004, %v5005
      %v5007 = vrot.slane %v5006, 4
      %v5008 = vadd.f32 %v5006, %v5007
      %v5009 = vrot.slane %v5008, 2
      %v5010 = vadd.f32 %v5008, %v5009
      %v5011 = vrot.slane %v5010, 1
      %v5012 = vadd.f32 %v5010, %v5011
      %v5013 = vmul.f32 %v4977, %v1754
      %v5014 = vsel %vm1756, %v5013, 0.0
      %5015 = vadd.xlane.f32.xlu0 %v5014
      %v5016 = vpop.xlane.xlu0 %5015
      %v5017 = vrot.slane %v5016, 4
      %v5018 = vadd.f32 %v5016, %v5017
      %v5019 = vrot.slane %v5018, 2
      %v5020 = vadd.f32 %v5018, %v5019
      %v5021 = vrot.slane %v5020, 1
      %v5022 = vadd.f32 %v5020, %v5021
      %s5023 = vtos %v5022
      %v5024 = vstv %s5023
      %v5025 = vmul.f32 %v5024, 0.0078125
      %v5026 = vmul.f32 %v5012, %v1754
      %v5027 = vsel %vm1756, %v5026, 0.0
      %5028 = vadd.xlane.f32.xlu0 %v5027
      %v5029 = vpop.xlane.xlu0 %5028
      %v5030 = vrot.slane %v5029, 4
      %v5031 = vadd.f32 %v5029, %v5030
      %v5032 = vrot.slane %v5031, 2
      %v5033 = vadd.f32 %v5031, %v5032
      %v5034 = vrot.slane %v5033, 1
      %v5035 = vadd.f32 %v5033, %v5034
      %s5036 = vtos %v5035
      %v5037 = vstv %s5036
      %v5038 = vmul.f32 %v5037, 0.0078125
      %v5039 = vmul.f32 %v5025, %v5025
      %v5040 = vsub.f32 %v5038, %v5039
      %v5041 = vmax.f32 %v5040, 0.0
      %v5042 = vadd.f32 %v5041, 1e-05
      %v5043 = vrsqrt.pop %v5042
      %v5044 = vmul.f32 %v5025, %v1754
      %v5045 = vadd.f32 %v5044, 0.0
      %v5046 = vmul.f32 %v5043, %v1754
      %v5047 = vadd.f32 %v5046, 0.0
      %v5048 = vmul.f32 %v4977, %v1795
      %v5049 = vsel %vm1756, %v5048, 0.0
      %5050 = vadd.xlane.f32.xlu0 %v5049
      %v5051 = vpop.xlane.xlu0 %5050
      %v5052 = vrot.slane %v5051, 4
      %v5053 = vadd.f32 %v5051, %v5052
      %v5054 = vrot.slane %v5053, 2
      %v5055 = vadd.f32 %v5053, %v5054
      %v5056 = vrot.slane %v5055, 1
      %v5057 = vadd.f32 %v5055, %v5056
      %s5058 = vtos %v5057
      %v5059 = vstv %s5058
      %v5060 = vmul.f32 %v5059, 0.0078125
      %v5061 = vmul.f32 %v5012, %v1795
      %v5062 = vsel %vm1756, %v5061, 0.0
      %5063 = vadd.xlane.f32.xlu0 %v5062
      %v5064 = vpop.xlane.xlu0 %5063
      %v5065 = vrot.slane %v5064, 4
      %v5066 = vadd.f32 %v5064, %v5065
      %v5067 = vrot.slane %v5066, 2
      %v5068 = vadd.f32 %v5066, %v5067
      %v5069 = vrot.slane %v5068, 1
      %v5070 = vadd.f32 %v5068, %v5069
      %s5071 = vtos %v5070
      %v5072 = vstv %s5071
      %v5073 = vmul.f32 %v5072, 0.0078125
      %v5074 = vmul.f32 %v5060, %v5060
      %v5075 = vsub.f32 %v5073, %v5074
      %v5076 = vmax.f32 %v5075, 0.0
      %v5077 = vadd.f32 %v5076, 1e-05
      %v5078 = vrsqrt.pop %v5077
      %v5079 = vmul.f32 %v5060, %v1795
      %v5080 = vadd.f32 %v5045, %v5079
      %v5081 = vmul.f32 %v5078, %v1795
      %v5082 = vadd.f32 %v5047, %v5081
      %v5083 = vmul.f32 %v4977, %v1835
      %v5084 = vsel %vm1756, %v5083, 0.0
      %5085 = vadd.xlane.f32.xlu0 %v5084
      %v5086 = vpop.xlane.xlu0 %5085
      %v5087 = vrot.slane %v5086, 4
      %v5088 = vadd.f32 %v5086, %v5087
      %v5089 = vrot.slane %v5088, 2
      %v5090 = vadd.f32 %v5088, %v5089
      %v5091 = vrot.slane %v5090, 1
      %v5092 = vadd.f32 %v5090, %v5091
      %s5093 = vtos %v5092
      %v5094 = vstv %s5093
      %v5095 = vmul.f32 %v5094, 0.0078125
      %v5096 = vmul.f32 %v5012, %v1835
      %v5097 = vsel %vm1756, %v5096, 0.0
      %5098 = vadd.xlane.f32.xlu0 %v5097
      %v5099 = vpop.xlane.xlu0 %5098
      %v5100 = vrot.slane %v5099, 4
      %v5101 = vadd.f32 %v5099, %v5100
      %v5102 = vrot.slane %v5101, 2
      %v5103 = vadd.f32 %v5101, %v5102
      %v5104 = vrot.slane %v5103, 1
      %v5105 = vadd.f32 %v5103, %v5104
      %s5106 = vtos %v5105
      %v5107 = vstv %s5106
      %v5108 = vmul.f32 %v5107, 0.0078125
      %v5109 = vmul.f32 %v5095, %v5095
      %v5110 = vsub.f32 %v5108, %v5109
      %v5111 = vmax.f32 %v5110, 0.0
      %v5112 = vadd.f32 %v5111, 1e-05
      %v5113 = vrsqrt.pop %v5112
      %v5114 = vmul.f32 %v5095, %v1835
      %v5115 = vadd.f32 %v5080, %v5114
      %v5116 = vmul.f32 %v5113, %v1835
      %v5117 = vadd.f32 %v5082, %v5116
      %v5118 = vmul.f32 %v4977, %v1875
      %v5119 = vsel %vm1756, %v5118, 0.0
      %5120 = vadd.xlane.f32.xlu0 %v5119
      %v5121 = vpop.xlane.xlu0 %5120
      %v5122 = vrot.slane %v5121, 4
      %v5123 = vadd.f32 %v5121, %v5122
      %v5124 = vrot.slane %v5123, 2
      %v5125 = vadd.f32 %v5123, %v5124
      %v5126 = vrot.slane %v5125, 1
      %v5127 = vadd.f32 %v5125, %v5126
      %s5128 = vtos %v5127
      %v5129 = vstv %s5128
      %v5130 = vmul.f32 %v5129, 0.0078125
      %v5131 = vmul.f32 %v5012, %v1875
      %v5132 = vsel %vm1756, %v5131, 0.0
      %5133 = vadd.xlane.f32.xlu0 %v5132
      %v5134 = vpop.xlane.xlu0 %5133
      %v5135 = vrot.slane %v5134, 4
      %v5136 = vadd.f32 %v5134, %v5135
      %v5137 = vrot.slane %v5136, 2
      %v5138 = vadd.f32 %v5136, %v5137
      %v5139 = vrot.slane %v5138, 1
      %v5140 = vadd.f32 %v5138, %v5139
      %s5141 = vtos %v5140
      %v5142 = vstv %s5141
      %v5143 = vmul.f32 %v5142, 0.0078125
      %v5144 = vmul.f32 %v5130, %v5130
      %v5145 = vsub.f32 %v5143, %v5144
      %v5146 = vmax.f32 %v5145, 0.0
      %v5147 = vadd.f32 %v5146, 1e-05
      %v5148 = vrsqrt.pop %v5147
      %v5149 = vmul.f32 %v5130, %v1875
      %v5150 = vadd.f32 %v5115, %v5149
      %v5151 = vmul.f32 %v5148, %v1875
      %v5152 = vadd.f32 %v5117, %v5151
      %v5153 = vmul.f32 %v4977, %v1915
      %v5154 = vsel %vm1756, %v5153, 0.0
      %5155 = vadd.xlane.f32.xlu0 %v5154
      %v5156 = vpop.xlane.xlu0 %5155
      %v5157 = vrot.slane %v5156, 4
      %v5158 = vadd.f32 %v5156, %v5157
      %v5159 = vrot.slane %v5158, 2
      %v5160 = vadd.f32 %v5158, %v5159
      %v5161 = vrot.slane %v5160, 1
      %v5162 = vadd.f32 %v5160, %v5161
      %s5163 = vtos %v5162
      %v5164 = vstv %s5163
      %v5165 = vmul.f32 %v5164, 0.0078125
      %v5166 = vmul.f32 %v5012, %v1915
      %v5167 = vsel %vm1756, %v5166, 0.0
      %5168 = vadd.xlane.f32.xlu0 %v5167
      %v5169 = vpop.xlane.xlu0 %5168
      %v5170 = vrot.slane %v5169, 4
      %v5171 = vadd.f32 %v5169, %v5170
      %v5172 = vrot.slane %v5171, 2
      %v5173 = vadd.f32 %v5171, %v5172
      %v5174 = vrot.slane %v5173, 1
      %v5175 = vadd.f32 %v5173, %v5174
      %s5176 = vtos %v5175
      %v5177 = vstv %s5176
      %v5178 = vmul.f32 %v5177, 0.0078125
      %v5179 = vmul.f32 %v5165, %v5165
      %v5180 = vsub.f32 %v5178, %v5179
      %v5181 = vmax.f32 %v5180, 0.0
      %v5182 = vadd.f32 %v5181, 1e-05
      %v5183 = vrsqrt.pop %v5182
      %v5184 = vmul.f32 %v5165, %v1915
      %v5185 = vadd.f32 %v5150, %v5184
      %v5186 = vmul.f32 %v5183, %v1915
      %v5187 = vadd.f32 %v5152, %v5186
      %v5188 = vmul.f32 %v4977, %v1955
      %v5189 = vsel %vm1756, %v5188, 0.0
      %5190 = vadd.xlane.f32.xlu0 %v5189
      %v5191 = vpop.xlane.xlu0 %5190
      %v5192 = vrot.slane %v5191, 4
      %v5193 = vadd.f32 %v5191, %v5192
      %v5194 = vrot.slane %v5193, 2
      %v5195 = vadd.f32 %v5193, %v5194
      %v5196 = vrot.slane %v5195, 1
      %v5197 = vadd.f32 %v5195, %v5196
      %s5198 = vtos %v5197
      %v5199 = vstv %s5198
      %v5200 = vmul.f32 %v5199, 0.0078125
      %v5201 = vmul.f32 %v5012, %v1955
      %v5202 = vsel %vm1756, %v5201, 0.0
      %5203 = vadd.xlane.f32.xlu0 %v5202
      %v5204 = vpop.xlane.xlu0 %5203
      %v5205 = vrot.slane %v5204, 4
      %v5206 = vadd.f32 %v5204, %v5205
      %v5207 = vrot.slane %v5206, 2
      %v5208 = vadd.f32 %v5206, %v5207
      %v5209 = vrot.slane %v5208, 1
      %v5210 = vadd.f32 %v5208, %v5209
      %s5211 = vtos %v5210
      %v5212 = vstv %s5211
      %v5213 = vmul.f32 %v5212, 0.0078125
      %v5214 = vmul.f32 %v5200, %v5200
      %v5215 = vsub.f32 %v5213, %v5214
      %v5216 = vmax.f32 %v5215, 0.0
      %v5217 = vadd.f32 %v5216, 1e-05
      %v5218 = vrsqrt.pop %v5217
      %v5219 = vmul.f32 %v5200, %v1955
      %v5220 = vadd.f32 %v5185, %v5219
      %v5221 = vmul.f32 %v5218, %v1955
      %v5222 = vadd.f32 %v5187, %v5221
      %v5223 = vmul.f32 %v4977, %v1995
      %v5224 = vsel %vm1756, %v5223, 0.0
      %5225 = vadd.xlane.f32.xlu0 %v5224
      %v5226 = vpop.xlane.xlu0 %5225
      %v5227 = vrot.slane %v5226, 4
      %v5228 = vadd.f32 %v5226, %v5227
      %v5229 = vrot.slane %v5228, 2
      %v5230 = vadd.f32 %v5228, %v5229
      %v5231 = vrot.slane %v5230, 1
      %v5232 = vadd.f32 %v5230, %v5231
      %s5233 = vtos %v5232
      %v5234 = vstv %s5233
      %v5235 = vmul.f32 %v5234, 0.0078125
      %v5236 = vmul.f32 %v5012, %v1995
      %v5237 = vsel %vm1756, %v5236, 0.0
      %5238 = vadd.xlane.f32.xlu0 %v5237
      %v5239 = vpop.xlane.xlu0 %5238
      %v5240 = vrot.slane %v5239, 4
      %v5241 = vadd.f32 %v5239, %v5240
      %v5242 = vrot.slane %v5241, 2
      %v5243 = vadd.f32 %v5241, %v5242
      %v5244 = vrot.slane %v5243, 1
      %v5245 = vadd.f32 %v5243, %v5244
      %s5246 = vtos %v5245
      %v5247 = vstv %s5246
      %v5248 = vmul.f32 %v5247, 0.0078125
      %v5249 = vmul.f32 %v5235, %v5235
      %v5250 = vsub.f32 %v5248, %v5249
      %v5251 = vmax.f32 %v5250, 0.0
      %v5252 = vadd.f32 %v5251, 1e-05
      %v5253 = vrsqrt.pop %v5252
      %v5254 = vmul.f32 %v5235, %v1995
      %v5255 = vadd.f32 %v5220, %v5254
      %v5256 = vmul.f32 %v5253, %v1995
      %v5257 = vadd.f32 %v5222, %v5256
      %v5258 = vmul.f32 %v4977, %v2035
      %v5259 = vsel %vm1756, %v5258, 0.0
      %5260 = vadd.xlane.f32.xlu0 %v5259
      %v5261 = vpop.xlane.xlu0 %5260
      %v5262 = vrot.slane %v5261, 4
      %v5263 = vadd.f32 %v5261, %v5262
      %v5264 = vrot.slane %v5263, 2
      %v5265 = vadd.f32 %v5263, %v5264
      %v5266 = vrot.slane %v5265, 1
      %v5267 = vadd.f32 %v5265, %v5266
      %s5268 = vtos %v5267
      %v5269 = vstv %s5268
      %v5270 = vmul.f32 %v5269, 0.0078125
      %v5271 = vmul.f32 %v5012, %v2035
      %v5272 = vsel %vm1756, %v5271, 0.0
      %5273 = vadd.xlane.f32.xlu0 %v5272
      %v5274 = vpop.xlane.xlu0 %5273
      %v5275 = vrot.slane %v5274, 4
      %v5276 = vadd.f32 %v5274, %v5275
      %v5277 = vrot.slane %v5276, 2
      %v5278 = vadd.f32 %v5276, %v5277
      %v5279 = vrot.slane %v5278, 1
      %v5280 = vadd.f32 %v5278, %v5279
      %s5281 = vtos %v5280
      %v5282 = vstv %s5281
      %v5283 = vmul.f32 %v5282, 0.0078125
      %v5284 = vmul.f32 %v5270, %v5270
      %v5285 = vsub.f32 %v5283, %v5284
      %v5286 = vmax.f32 %v5285, 0.0
      %v5287 = vadd.f32 %v5286, 1e-05
      %v5288 = vrsqrt.pop %v5287
      %v5289 = vmul.f32 %v5270, %v2035
      %v5290 = vadd.f32 %v5255, %v5289
      %v5291 = vmul.f32 %v5288, %v2035
      %v5292 = vadd.f32 %v5257, %v5291
      %v5293 = vmul.f32 %v4977, %v2075
      %v5294 = vsel %vm1756, %v5293, 0.0
      %5295 = vadd.xlane.f32.xlu0 %v5294
      %v5296 = vpop.xlane.xlu0 %5295
      %v5297 = vrot.slane %v5296, 4
      %v5298 = vadd.f32 %v5296, %v5297
      %v5299 = vrot.slane %v5298, 2
      %v5300 = vadd.f32 %v5298, %v5299
      %v5301 = vrot.slane %v5300, 1
      %v5302 = vadd.f32 %v5300, %v5301
      %s5303 = vtos %v5302
      %v5304 = vstv %s5303
      %v5305 = vmul.f32 %v5304, 0.0078125
      %v5306 = vmul.f32 %v5012, %v2075
      %v5307 = vsel %vm1756, %v5306, 0.0
      %5308 = vadd.xlane.f32.xlu0 %v5307
      %v5309 = vpop.xlane.xlu0 %5308
      %v5310 = vrot.slane %v5309, 4
      %v5311 = vadd.f32 %v5309, %v5310
      %v5312 = vrot.slane %v5311, 2
      %v5313 = vadd.f32 %v5311, %v5312
      %v5314 = vrot.slane %v5313, 1
      %v5315 = vadd.f32 %v5313, %v5314
      %s5316 = vtos %v5315
      %v5317 = vstv %s5316
      %v5318 = vmul.f32 %v5317, 0.0078125
      %v5319 = vmul.f32 %v5305, %v5305
      %v5320 = vsub.f32 %v5318, %v5319
      %v5321 = vmax.f32 %v5320, 0.0
      %v5322 = vadd.f32 %v5321, 1e-05
      %v5323 = vrsqrt.pop %v5322
      %v5324 = vmul.f32 %v5305, %v2075
      %v5325 = vadd.f32 %v5290, %v5324
      %v5326 = vmul.f32 %v5323, %v2075
      %v5327 = vadd.f32 %v5292, %v5326
      %v5328 = vmul.f32 %v4977, %v2115
      %v5329 = vsel %vm1756, %v5328, 0.0
      %5330 = vadd.xlane.f32.xlu0 %v5329
      %v5331 = vpop.xlane.xlu0 %5330
      %v5332 = vrot.slane %v5331, 4
      %v5333 = vadd.f32 %v5331, %v5332
      %v5334 = vrot.slane %v5333, 2
      %v5335 = vadd.f32 %v5333, %v5334
      %v5336 = vrot.slane %v5335, 1
      %v5337 = vadd.f32 %v5335, %v5336
      %s5338 = vtos %v5337
      %v5339 = vstv %s5338
      %v5340 = vmul.f32 %v5339, 0.0078125
      %v5341 = vmul.f32 %v5012, %v2115
      %v5342 = vsel %vm1756, %v5341, 0.0
      %5343 = vadd.xlane.f32.xlu0 %v5342
      %v5344 = vpop.xlane.xlu0 %5343
      %v5345 = vrot.slane %v5344, 4
      %v5346 = vadd.f32 %v5344, %v5345
      %v5347 = vrot.slane %v5346, 2
      %v5348 = vadd.f32 %v5346, %v5347
      %v5349 = vrot.slane %v5348, 1
      %v5350 = vadd.f32 %v5348, %v5349
      %s5351 = vtos %v5350
      %v5352 = vstv %s5351
      %v5353 = vmul.f32 %v5352, 0.0078125
      %v5354 = vmul.f32 %v5340, %v5340
      %v5355 = vsub.f32 %v5353, %v5354
      %v5356 = vmax.f32 %v5355, 0.0
      %v5357 = vadd.f32 %v5356, 1e-05
      %v5358 = vrsqrt.pop %v5357
      %v5359 = vmul.f32 %v5340, %v2115
      %v5360 = vadd.f32 %v5325, %v5359
      %v5361 = vmul.f32 %v5358, %v2115
      %v5362 = vadd.f32 %v5327, %v5361
      %v5363 = vmul.f32 %v4977, %v2155
      %v5364 = vsel %vm1756, %v5363, 0.0
      %5365 = vadd.xlane.f32.xlu0 %v5364
      %v5366 = vpop.xlane.xlu0 %5365
      %v5367 = vrot.slane %v5366, 4
      %v5368 = vadd.f32 %v5366, %v5367
      %v5369 = vrot.slane %v5368, 2
      %v5370 = vadd.f32 %v5368, %v5369
      %v5371 = vrot.slane %v5370, 1
      %v5372 = vadd.f32 %v5370, %v5371
      %s5373 = vtos %v5372
      %v5374 = vstv %s5373
      %v5375 = vmul.f32 %v5374, 0.0078125
      %v5376 = vmul.f32 %v5012, %v2155
      %v5377 = vsel %vm1756, %v5376, 0.0
      %5378 = vadd.xlane.f32.xlu0 %v5377
      %v5379 = vpop.xlane.xlu0 %5378
      %v5380 = vrot.slane %v5379, 4
      %v5381 = vadd.f32 %v5379, %v5380
      %v5382 = vrot.slane %v5381, 2
      %v5383 = vadd.f32 %v5381, %v5382
      %v5384 = vrot.slane %v5383, 1
      %v5385 = vadd.f32 %v5383, %v5384
      %s5386 = vtos %v5385
      %v5387 = vstv %s5386
      %v5388 = vmul.f32 %v5387, 0.0078125
      %v5389 = vmul.f32 %v5375, %v5375
      %v5390 = vsub.f32 %v5388, %v5389
      %v5391 = vmax.f32 %v5390, 0.0
      %v5392 = vadd.f32 %v5391, 1e-05
      %v5393 = vrsqrt.pop %v5392
      %v5394 = vmul.f32 %v5375, %v2155
      %v5395 = vadd.f32 %v5360, %v5394
      %v5396 = vmul.f32 %v5393, %v2155
      %v5397 = vadd.f32 %v5362, %v5396
      %v5398 = vmul.f32 %v4977, %v2195
      %v5399 = vsel %vm1756, %v5398, 0.0
      %5400 = vadd.xlane.f32.xlu0 %v5399
      %v5401 = vpop.xlane.xlu0 %5400
      %v5402 = vrot.slane %v5401, 4
      %v5403 = vadd.f32 %v5401, %v5402
      %v5404 = vrot.slane %v5403, 2
      %v5405 = vadd.f32 %v5403, %v5404
      %v5406 = vrot.slane %v5405, 1
      %v5407 = vadd.f32 %v5405, %v5406
      %s5408 = vtos %v5407
      %v5409 = vstv %s5408
      %v5410 = vmul.f32 %v5409, 0.0078125
      %v5411 = vmul.f32 %v5012, %v2195
      %v5412 = vsel %vm1756, %v5411, 0.0
      %5413 = vadd.xlane.f32.xlu0 %v5412
      %v5414 = vpop.xlane.xlu0 %5413
      %v5415 = vrot.slane %v5414, 4
      %v5416 = vadd.f32 %v5414, %v5415
      %v5417 = vrot.slane %v5416, 2
      %v5418 = vadd.f32 %v5416, %v5417
      %v5419 = vrot.slane %v5418, 1
      %v5420 = vadd.f32 %v5418, %v5419
      %s5421 = vtos %v5420
      %v5422 = vstv %s5421
      %v5423 = vmul.f32 %v5422, 0.0078125
      %v5424 = vmul.f32 %v5410, %v5410
      %v5425 = vsub.f32 %v5423, %v5424
      %v5426 = vmax.f32 %v5425, 0.0
      %v5427 = vadd.f32 %v5426, 1e-05
      %v5428 = vrsqrt.pop %v5427
      %v5429 = vmul.f32 %v5410, %v2195
      %v5430 = vadd.f32 %v5395, %v5429
      %v5431 = vmul.f32 %v5428, %v2195
      %v5432 = vadd.f32 %v5397, %v5431
      %v5433 = vmul.f32 %v4977, %v2235
      %v5434 = vsel %vm1756, %v5433, 0.0
      %5435 = vadd.xlane.f32.xlu0 %v5434
      %v5436 = vpop.xlane.xlu0 %5435
      %v5437 = vrot.slane %v5436, 4
      %v5438 = vadd.f32 %v5436, %v5437
      %v5439 = vrot.slane %v5438, 2
      %v5440 = vadd.f32 %v5438, %v5439
      %v5441 = vrot.slane %v5440, 1
      %v5442 = vadd.f32 %v5440, %v5441
      %s5443 = vtos %v5442
      %v5444 = vstv %s5443
      %v5445 = vmul.f32 %v5444, 0.0078125
      %v5446 = vmul.f32 %v5012, %v2235
      %v5447 = vsel %vm1756, %v5446, 0.0
      %5448 = vadd.xlane.f32.xlu0 %v5447
      %v5449 = vpop.xlane.xlu0 %5448
      %v5450 = vrot.slane %v5449, 4
      %v5451 = vadd.f32 %v5449, %v5450
      %v5452 = vrot.slane %v5451, 2
      %v5453 = vadd.f32 %v5451, %v5452
      %v5454 = vrot.slane %v5453, 1
      %v5455 = vadd.f32 %v5453, %v5454
      %s5456 = vtos %v5455
      %v5457 = vstv %s5456
      %v5458 = vmul.f32 %v5457, 0.0078125
      %v5459 = vmul.f32 %v5445, %v5445
      %v5460 = vsub.f32 %v5458, %v5459
      %v5461 = vmax.f32 %v5460, 0.0
      %v5462 = vadd.f32 %v5461, 1e-05
      %v5463 = vrsqrt.pop %v5462
      %v5464 = vmul.f32 %v5445, %v2235
      %v5465 = vadd.f32 %v5430, %v5464
      %v5466 = vmul.f32 %v5463, %v2235
      %v5467 = vadd.f32 %v5432, %v5466
      %v5468 = vmul.f32 %v4977, %v2275
      %v5469 = vsel %vm1756, %v5468, 0.0
      %5470 = vadd.xlane.f32.xlu0 %v5469
      %v5471 = vpop.xlane.xlu0 %5470
      %v5472 = vrot.slane %v5471, 4
      %v5473 = vadd.f32 %v5471, %v5472
      %v5474 = vrot.slane %v5473, 2
      %v5475 = vadd.f32 %v5473, %v5474
      %v5476 = vrot.slane %v5475, 1
      %v5477 = vadd.f32 %v5475, %v5476
      %s5478 = vtos %v5477
      %v5479 = vstv %s5478
      %v5480 = vmul.f32 %v5479, 0.0078125
      %v5481 = vmul.f32 %v5012, %v2275
      %v5482 = vsel %vm1756, %v5481, 0.0
      %5483 = vadd.xlane.f32.xlu0 %v5482
      %v5484 = vpop.xlane.xlu0 %5483
      %v5485 = vrot.slane %v5484, 4
      %v5486 = vadd.f32 %v5484, %v5485
      %v5487 = vrot.slane %v5486, 2
      %v5488 = vadd.f32 %v5486, %v5487
      %v5489 = vrot.slane %v5488, 1
      %v5490 = vadd.f32 %v5488, %v5489
      %s5491 = vtos %v5490
      %v5492 = vstv %s5491
      %v5493 = vmul.f32 %v5492, 0.0078125
      %v5494 = vmul.f32 %v5480, %v5480
      %v5495 = vsub.f32 %v5493, %v5494
      %v5496 = vmax.f32 %v5495, 0.0
      %v5497 = vadd.f32 %v5496, 1e-05
      %v5498 = vrsqrt.pop %v5497
      %v5499 = vmul.f32 %v5480, %v2275
      %v5500 = vadd.f32 %v5465, %v5499
      %v5501 = vmul.f32 %v5498, %v2275
      %v5502 = vadd.f32 %v5467, %v5501
      %v5503 = vmul.f32 %v4977, %v2315
      %v5504 = vsel %vm1756, %v5503, 0.0
      %5505 = vadd.xlane.f32.xlu0 %v5504
      %v5506 = vpop.xlane.xlu0 %5505
      %v5507 = vrot.slane %v5506, 4
      %v5508 = vadd.f32 %v5506, %v5507
      %v5509 = vrot.slane %v5508, 2
      %v5510 = vadd.f32 %v5508, %v5509
      %v5511 = vrot.slane %v5510, 1
      %v5512 = vadd.f32 %v5510, %v5511
      %s5513 = vtos %v5512
      %v5514 = vstv %s5513
      %v5515 = vmul.f32 %v5514, 0.0078125
      %v5516 = vmul.f32 %v5012, %v2315
      %v5517 = vsel %vm1756, %v5516, 0.0
      %5518 = vadd.xlane.f32.xlu0 %v5517
      %v5519 = vpop.xlane.xlu0 %5518
      %v5520 = vrot.slane %v5519, 4
      %v5521 = vadd.f32 %v5519, %v5520
      %v5522 = vrot.slane %v5521, 2
      %v5523 = vadd.f32 %v5521, %v5522
      %v5524 = vrot.slane %v5523, 1
      %v5525 = vadd.f32 %v5523, %v5524
      %s5526 = vtos %v5525
      %v5527 = vstv %s5526
      %v5528 = vmul.f32 %v5527, 0.0078125
      %v5529 = vmul.f32 %v5515, %v5515
      %v5530 = vsub.f32 %v5528, %v5529
      %v5531 = vmax.f32 %v5530, 0.0
      %v5532 = vadd.f32 %v5531, 1e-05
      %v5533 = vrsqrt.pop %v5532
      %v5534 = vmul.f32 %v5515, %v2315
      %v5535 = vadd.f32 %v5500, %v5534
      %v5536 = vmul.f32 %v5533, %v2315
      %v5537 = vadd.f32 %v5502, %v5536
      %v5538 = vmul.f32 %v4977, %v2355
      %v5539 = vsel %vm1756, %v5538, 0.0
      %5540 = vadd.xlane.f32.xlu0 %v5539
      %v5541 = vpop.xlane.xlu0 %5540
      %v5542 = vrot.slane %v5541, 4
      %v5543 = vadd.f32 %v5541, %v5542
      %v5544 = vrot.slane %v5543, 2
      %v5545 = vadd.f32 %v5543, %v5544
      %v5546 = vrot.slane %v5545, 1
      %v5547 = vadd.f32 %v5545, %v5546
      %s5548 = vtos %v5547
      %v5549 = vstv %s5548
      %v5550 = vmul.f32 %v5549, 0.0078125
      %v5551 = vmul.f32 %v5012, %v2355
      %v5552 = vsel %vm1756, %v5551, 0.0
      %5553 = vadd.xlane.f32.xlu0 %v5552
      %v5554 = vpop.xlane.xlu0 %5553
      %v5555 = vrot.slane %v5554, 4
      %v5556 = vadd.f32 %v5554, %v5555
      %v5557 = vrot.slane %v5556, 2
      %v5558 = vadd.f32 %v5556, %v5557
      %v5559 = vrot.slane %v5558, 1
      %v5560 = vadd.f32 %v5558, %v5559
      %s5561 = vtos %v5560
      %v5562 = vstv %s5561
      %v5563 = vmul.f32 %v5562, 0.0078125
      %v5564 = vmul.f32 %v5550, %v5550
      %v5565 = vsub.f32 %v5563, %v5564
      %v5566 = vmax.f32 %v5565, 0.0
      %v5567 = vadd.f32 %v5566, 1e-05
      %v5568 = vrsqrt.pop %v5567
      %v5569 = vmul.f32 %v5550, %v2355
      %v5570 = vadd.f32 %v5535, %v5569
      %v5571 = vmul.f32 %v5568, %v2355
      %v5572 = vadd.f32 %v5537, %v5571
      %v5573 = vsub.f32 %v4931, %v5570
      %v5574 = vsub.f32 %v4932, %v5570
      %v5575 = vsub.f32 %v4933, %v5570
      %v5576 = vsub.f32 %v4934, %v5570
      %v5577 = vsub.f32 %v4935, %v5570
      %v5578 = vsub.f32 %v4936, %v5570
      %v5579 = vsub.f32 %v4937, %v5570
      %v5580 = vsub.f32 %v4938, %v5570
      %v5581 = vsub.f32 %v4939, %v5570
      %v5582 = vsub.f32 %v4940, %v5570
      %v5583 = vmul.f32 %v5572, %v4941
      %v5584 = vlaneseq
      %v5585 = vshrl.u32 %v5584, 7
      %v5586 = vsub.s32 0, %v5585
      %v5587 = vrot.slane %v5583, %v5586
      %v5588 = vmul.f32 %v5573, %v5587
      %v5589 = vmul.f32 %v5574, %v5587
      %v5590 = vmul.f32 %v5575, %v5587
      %v5591 = vmul.f32 %v5576, %v5587
      %v5592 = vmul.f32 %v5577, %v5587
      %v5593 = vmul.f32 %v5578, %v5587
      %v5594 = vmul.f32 %v5579, %v5587
      %v5595 = vmul.f32 %v5580, %v5587
      %v5596 = vmul.f32 %v5581, %v5587
      %v5597 = vmul.f32 %v5582, %v5587
      %v5599 = vlaneseq
      %v5600 = vshrl.u32 %v5599, 7
      %v5601 = vsub.s32 0, %v5600
      %v5602 = vrot.slane %v4942, %v5601
      %v5604 = vadd.f32 %v5588, %v5602
      %v5605 = vadd.f32 %v5589, %v5602
      %v5606 = vadd.f32 %v5590, %v5602
      %v5607 = vadd.f32 %v5591, %v5602
      %v5608 = vadd.f32 %v5592, %v5602
      %v5609 = vadd.f32 %v5593, %v5602
      %v5610 = vadd.f32 %v5594, %v5602
      %v5611 = vadd.f32 %v5595, %v5602
      %v5612 = vadd.f32 %v5596, %v5602
      %v5613 = vadd.f32 %v5597, %v5602
      %vm5614 = vcmp.gt.f32.partialorder %v5604, 0.0
      %vm5615 = vcmp.gt.f32.partialorder %v5605, 0.0
      %vm5616 = vcmp.gt.f32.partialorder %v5606, 0.0
      %vm5617 = vcmp.gt.f32.partialorder %v5607, 0.0
      %vm5618 = vcmp.gt.f32.partialorder %v5608, 0.0
      %vm5619 = vcmp.gt.f32.partialorder %v5609, 0.0
      %vm5620 = vcmp.gt.f32.partialorder %v5610, 0.0
      %vm5621 = vcmp.gt.f32.partialorder %v5611, 0.0
      %vm5622 = vcmp.gt.f32.partialorder %v5612, 0.0
      %vm5623 = vcmp.gt.f32.partialorder %v5613, 0.0
      %v5624 = vmul.f32 %v5604, 1.442695
      %v5625 = vpow.pop %v5624
      %v5626 = vmul.f32 %v5605, 1.442695
      %v5627 = vpow.pop %v5626
      %v5628 = vmul.f32 %v5606, 1.442695
      %v5629 = vpow.pop %v5628
      %v5630 = vmul.f32 %v5607, 1.442695
      %v5631 = vpow.pop %v5630
      %v5632 = vmul.f32 %v5608, 1.442695
      %v5633 = vpow.pop %v5632
      %v5634 = vmul.f32 %v5609, 1.442695
      %v5635 = vpow.pop %v5634
      %v5636 = vmul.f32 %v5610, 1.442695
      %v5637 = vpow.pop %v5636
      %v5638 = vmul.f32 %v5611, 1.442695
      %v5639 = vpow.pop %v5638
      %v5640 = vmul.f32 %v5612, 1.442695
      %v5641 = vpow.pop %v5640
      %v5642 = vmul.f32 %v5613, 1.442695
      %v5643 = vpow.pop %v5642
      %v5644 = vsub.f32 %v5625, 1.0
      %v5645 = vsub.f32 %v5627, 1.0
      %v5646 = vsub.f32 %v5629, 1.0
      %v5647 = vsub.f32 %v5631, 1.0
      %v5648 = vsub.f32 %v5633, 1.0
      %v5649 = vsub.f32 %v5635, 1.0
      %v5650 = vsub.f32 %v5637, 1.0
      %v5651 = vsub.f32 %v5639, 1.0
      %v5652 = vsub.f32 %v5641, 1.0
      %v5653 = vsub.f32 %v5643, 1.0
      %v5654 = vsel %vm5614, %v5604, %v5644
      %v5655 = vsel %vm5615, %v5605, %v5645
      %v5656 = vsel %vm5616, %v5606, %v5646
      %v5657 = vsel %vm5617, %v5607, %v5647
      %v5658 = vsel %vm5618, %v5608, %v5648
      %v5659 = vsel %vm5619, %v5609, %v5649
      %v5660 = vsel %vm5620, %v5610, %v5650
      %v5661 = vsel %vm5621, %v5611, %v5651
      %v5662 = vsel %vm5622, %v5612, %v5652
      %v5663 = vsel %vm5623, %v5613, %v5653
      %5664 = vxpose.xlu0.b32.start [1/16] %v5654, 128
      %5665 = vxpose.xlu0.b32.cont [2/16] %v5655, 128
      %5666 = vxpose.xlu0.b32.cont [3/16] %v5656, 128
      %5667 = vxpose.xlu0.b32.cont [4/16] %v5657, 128
      %5668 = vxpose.xlu0.b32.cont [5/16] %v5658, 128
      %5669 = vxpose.xlu0.b32.cont [6/16] %v5659, 128
      %5670 = vxpose.xlu0.b32.cont [7/16] %v5660, 128
      %5671 = vxpose.xlu0.b32.cont [8/16] %v5661, 128
      %5672 = vxpose.xlu0.b32.cont [9/16] %v5662, 128
      %5673 = vxpose.xlu0.b32.cont [10/16] %v5663, 128
      %5674 = vxpose.xlu0.b32.cont [11/16] 0.0, 128
      %5675 = vxpose.xlu0.b32.cont [12/16] 0.0, 128
      %5676 = vxpose.xlu0.b32.cont [13/16] 0.0, 128
      %5677 = vxpose.xlu0.b32.cont [14/16] 0.0, 128
      %5678 = vxpose.xlu0.b32.cont [15/16] 0.0, 128
      %5679 = vxpose.xlu0.b32.end [16/16] 0.0, 128
      %v5680 = vpop.trf.xlu0
      %v5681 = vpop.trf.xlu0
      %v5682 = vpop.trf.xlu0
      %v5683 = vpop.trf.xlu0
      %v5684 = vpop.trf.xlu0
      %v5685 = vpop.trf.xlu0
      %v5686 = vpop.trf.xlu0
      %v5687 = vpop.trf.xlu0
      %v5688 = vpop.trf.xlu0
      %v5689 = vpop.trf.xlu0
      %v5690 = vpop.trf.xlu0
      %v5691 = vpop.trf.xlu0
      %v5692 = vpop.trf.xlu0
      %v5693 = vpop.trf.xlu0
      %v5694 = vpop.trf.xlu0
      %v5695 = vpop.trf.xlu0
      %vm5696 = vcmask 654336
      %5697 = vst.msk [vmem:[%s487] sm:$0xff] %vm5696, %v5680
      %5698 = vst.msk [vmem:[%s487 + $0x8] sm:$0xff] %vm5696, %v5681
      %5699 = vst.msk [vmem:[%s487 + $0x10] sm:$0xff] %vm5696, %v5682
      %5700 = vst.msk [vmem:[%s487 + $0x18] sm:$0xff] %vm5696, %v5683
      %p5701 = scmp.lt.s32.totalorder %s25, 1
      %s5702 = scalar_select %p5701, %s25, 1
      %s5703 = smul.addr %s5702, 4
      %s5704 = smul.addr %s5703, 8
      %s5705 = scalar_lea.vmem %s14, %s5704
      // Predicated region
      $region77: #{resconv_basic_forward.1} parent=75 // pred_check
        %p5706 = pneg %p347
      $region78: #{resconv_basic_forward.1} parent=75 // pred_check_branch
        %5708 = sbr.rel (%p5706) target = $region80
      $region79: #{resconv_basic_forward.1} parent=75 // pred_region
        _
      $region80: #{resconv_basic_forward.1} parent=75 // pred_fallthru
        _
    $region76: #{resconv_basic_forward.1} parent=5 // pred_fallthru
      _
    %p5709 = scmp.le.s32.totalorder 2, %s20
    // Predicated region
    $region81: #{resconv_basic_forward.1} parent=5 // pred_check
      %p5710 = pneg %p5709
    $region82: #{resconv_basic_forward.1} parent=5 // pred_check_branch
      %5712 = sbr.rel (%p5710) target = $region84
    $region83: #{resconv_basic_forward.1} parent=5 // pred_region
      %s5713 = ssub.s32 %s20, 2
      // Predicated region
      $region85: #{resconv_basic_forward.1} parent=83 // pred_check
        %p5714 = pneg %p353
      $region86: #{resconv_basic_forward.1} parent=83 // pred_check_branch
        %5716 = sbr.rel (%p5714) target = $region88
      $region87: #{resconv_basic_forward.1} parent=83 // pred_region
        %p5717 = scmp.lt.s32.totalorder %s26, 1
        %s5718 = scalar_select %p5717, %s26, 1
        %s5719 = smul.addr %s5718, 4
        %s5720 = smul.addr %s5719, 8
        %s5721 = scalar_lea.vmem %s14, %s5720
      $region88: #{resconv_basic_forward.1} parent=83 // pred_fallthru
        _
    $region84: #{resconv_basic_forward.1} parent=5 // pred_fallthru
      _
  $region6: #{resconv_basic_forward.1} parent=0 // loop_footer
    %s24 = sadd.s32 1, %s20
  $region7: #{resconv_basic_forward.1} parent=0 // loop_footer_branch
    %19 = sbr.rel target = $region3
  $region8: #{resconv_basic_forward.1} parent=0 // loop_exit
    _

</llo_original>
